<compile_context>
chip_gen: v6e
topology: v6e:2x2x1
jax: 0.10.0
libtpu: 0.0.40
codegen_flags: <defaults>
</compile_context>

<pallas_src>
import functools

import jax
import jax.numpy as jnp
from jax.experimental import pallas as pl
from jax.experimental.pallas import tpu as pltpu

NUM_CLASSES = 10

C1, C1P = 5, 8        # conv1 out channels (padded to 8 lanes)
C2, C2P = 50, 64      # conv2 out channels (padded to 64, NOT 128 -> halves wc)
K1P = 32              # conv1 im2col depth: 25 taps + 1 bias column + 6 zeros
NTAPS = 25            # conv2 kernel taps (5x5)
NPOS = 16             # conv2 output positions (4x4)
NCLSP = 128           # classifier out (padded to 128 lanes -> lane-dense store)


# ----------------------------------------------------------------------------
# Fused Pallas kernel: conv1 + ReLU + conv2 + ReLU + Linear (all on the MXU)
# ----------------------------------------------------------------------------
def _fused_kernel(a1_ref, w1_ref, w2_ref, b2_ref, wc_ref, bc_ref, out_ref, *,
                  batch):
    """Layouts:
      a1_ref : (25*16*B, K1P) f32  conv1 im2col, row = (t*16 + g)*B + b with
                                   t = kh2*5+kw2 (conv2 tap), g = i2*4+j2
                                   (conv2 output position); col = kh1*5+kw1,
                                   col 25 == 1.0 (bias column), rest zero.
      w1_ref : (K1P, C1P) f32      conv1 weights, row 25 = conv1 bias.
      w2_ref : (25, C1P, C2P) f32  conv2 weights per tap.
      b2_ref : (1, C2P)  f32
      wc_ref : (16, C2P, NCLSP) bf16  classifier weight per spatial position g
                                      (PyTorch NCHW flatten folded in).
      bc_ref : (1, NCLSP) f32
      out    : (B, NCLSP) f32      lane-dense logits (classes 0..9 real).
    """
    B = batch
    M2 = NPOS * B                      # rows of the conv2/classifier stage

    w1 = w1_ref[...]                   # (K1P, C1P), kept resident in vregs
    acc2 = jnp.zeros((M2, C2P), jnp.float32)

    # conv1 (MXU) -> ReLU -> conv2 tap contribution (MXU), one short chain per
    # conv2 tap.  All slices are static and sublane-aligned (M2 = 32 for B=2);
    # live set per iteration is ~10 vregs + the 4-vreg accumulator.
    for t in range(NTAPS):
        a1_t = a1_ref[t * M2:(t + 1) * M2, :]                  # (M2, K1P)
        y1_t = jnp.dot(a1_t, w1,
                       preferred_element_type=jnp.float32)     # (M2, C1P) + bias
        y1_t = jnp.maximum(y1_t, 0.0)                          # ReLU (VPU, tiny)
        acc2 = acc2 + jnp.dot(y1_t, w2_ref[t],
                              preferred_element_type=jnp.float32)  # (M2, C2P)

    y2 = jnp.maximum(acc2 + b2_ref[...], 0.0)                  # ReLU, (M2, C2P)
    y2b = y2.astype(jnp.bfloat16)                              # MXU operands bf16

    # Classifier: 16 accumulated (B, C2P) @ (C2P, NCLSP) dots, f32 accumulator.
    # Row order of y2 is (g, b), so each per-position slice is contiguous.
    logits = jnp.zeros((B, NCLSP), jnp.float32)
    for g in range(NPOS):
        logits = logits + jnp.dot(y2b[g * B:(g + 1) * B, :], wc_ref[g],
                                  preferred_element_type=jnp.float32)
    out_ref[...] = logits + bc_ref[...]


# ----------------------------------------------------------------------------
# One-time parameter repack (PyTorch layout -> kernel layout)
# ----------------------------------------------------------------------------
def pack_params(params):
    w1, b1 = params["conv1_w"], params["conv1_b"]   # (5,1,5,5), (5,)
    w2, b2 = params["conv2_w"], params["conv2_b"]   # (50,5,5,5), (50,)
    wc, bc = params["fc_w"], params["fc_b"]         # (10,800), (10,)

    # conv1 -> (K1P, C1P): row kh1*5+kw1, col out-channel; row 25 carries the
    # bias (matched by the constant-1 im2col column); padded slots are zero.
    w1k = jnp.zeros((K1P, C1P), jnp.float32)
    w1k = w1k.at[:25, :C1].set(jnp.transpose(w1[:, 0], (1, 2, 0)).reshape(25, C1))
    w1k = w1k.at[25, :C1].set(b1)

    # conv2 -> (25, C1P, C2P): [tap = kh2*5+kw2, c1_in, c2_out], channels padded.
    w2k = jnp.transpose(w2, (2, 3, 1, 0)).reshape(25, C1, C2)
    w2k = jnp.pad(w2k, ((0, 0), (0, C1P - C1), (0, C2P - C2)))
    b2k = jnp.pad(b2, (0, C2P - C2)).reshape(1, C2P)

    # classifier -> (16, C2P, NCLSP): PyTorch flatten index = c2*16 + (i2*4+j2),
    # regrouped per spatial position g; only 64 (not 128) K rows per group so
    # no guaranteed-zero K rows are stored/DMA'd.  MXU operand -> bf16.
    wck = jnp.transpose(wc.reshape(NUM_CLASSES, C2, NPOS), (2, 1, 0))  # (g,c2,k)
    wck = jnp.pad(wck, ((0, 0), (0, C2P - C2), (0, NCLSP - NUM_CLASSES)))
    bck = jnp.pad(bc, (0, NCLSP - NUM_CLASSES)).reshape(1, NCLSP)

    return {
        "w1": w1k.astype(jnp.float32),
        "w2": w2k.astype(jnp.float32),
        "b2": b2k.astype(jnp.float32),
        "wc": wck.astype(jnp.bfloat16),
        "bc": bck.astype(jnp.float32),
    }


# ----------------------------------------------------------------------------
# Forward pass (single fused pallas_call)
# ----------------------------------------------------------------------------
def attack_net_mnist_forward(x_nchw, kparams):
    x = x_nchw.astype(jnp.float32)
    B = x.shape[0]
    x2 = x[:, 0]                                            # (B, 28, 28)

    # conv1 im2col patches: P[b, oh, ow, kh1*5+kw1] = x[b, 2*oh+kh1, 2*ow+kw1]
    cols = []
    for kh1 in range(5):
        for kw1 in range(5):
            cols.append(x2[:, kh1:kh1 + 23:2, kw1:kw1 + 23:2])   # (B, 12, 12)
    P = jnp.stack(cols, axis=-1)                            # (B, 12, 12, 25)

    # Duplicate per conv2 tap so every in-kernel access is a contiguous,
    # aligned slice: rows ordered (t = kh2*5+kw2, g = i2*4+j2, b).  ~100 KiB.
    pieces = []
    for kh2 in range(5):
        for kw2 in range(5):
            pieces.append(P[:, kh2:kh2 + 8:2, kw2:kw2 + 8:2, :])  # (B,4,4,25)
    A = jnp.stack(pieces, axis=0)                           # (25, B, 4, 4, 25)
    A = jnp.transpose(A, (0, 2, 3, 1, 4))                   # (25, 4, 4, B, 25)
    a1 = A.reshape(NTAPS * NPOS * B, 25)
    a1 = jnp.concatenate(                                   # pad K 25 -> 32,
        [a1,                                                # col 25 == 1.0 to
         jnp.ones((NTAPS * NPOS * B, 1), jnp.float32),      # fold conv1 bias
         jnp.zeros((NTAPS * NPOS * B, K1P - 26), jnp.float32)], axis=1)

    M2 = NPOS * B
    flops = 2 * (NTAPS * M2 * 25 * C1          # conv1 (tap-duplicated)
                 + NTAPS * M2 * C1 * C2        # conv2
                 + B * NPOS * C2 * NUM_CLASSES)  # classifier
    bytes_accessed = (a1.size * 4 + kparams["w1"].size * 4
                      + kparams["w2"].size * 4 + kparams["b2"].size * 4
                      + kparams["wc"].size * 2 + kparams["bc"].size * 4
                      + B * NCLSP * 4)

    # B=2: a single grid-less call is best.  For large batches: add a batch
    # grid with dimension_semantics=("parallel",) and constant weight
    # index_maps (v7x second TensorCore + pipelined per-tile im2col DMA).
    vmem_spec = pl.BlockSpec(memory_space=pltpu.MemorySpace.VMEM)
    out = pl.pallas_call(
        functools.partial(_fused_kernel, batch=B),
        out_shape=jax.ShapeDtypeStruct((B, NCLSP), jnp.float32),
        in_specs=[vmem_spec] * 6,
        out_specs=vmem_spec,
        cost_estimate=pl.CostEstimate(flops=flops, transcendentals=0,
                                      bytes_accessed=bytes_accessed),
    )(a1, kparams["w1"], kparams["w2"], kparams["b2"],
      kparams["wc"], kparams["bc"])

    return out[:, :NUM_CLASSES]


# ----------------------------------------------------------------------------
# Deterministic PyTorch-layout parameters + pure-JAX reference
# ----------------------------------------------------------------------------
def init_params(key):
    k1, k2, k3, k4, k5, k6 = jax.random.split(key, 6)
    return {
        "conv1_w": jax.random.normal(k1, (5, 1, 5, 5), jnp.float32) * 0.1,
        "conv1_b": jax.random.normal(k2, (5,), jnp.float32) * 0.1,
        "conv2_w": jax.random.normal(k3, (50, 5, 5, 5), jnp.float32) * 0.05,
        "conv2_b": jax.random.normal(k4, (50,), jnp.float32) * 0.05,
        "fc_w":    jax.random.normal(k5, (10, 800), jnp.float32) * 0.02,
        "fc_b":    jax.random.normal(k6, (10,), jnp.float32) * 0.02,
    }


def reference_forward(x, params):
    y = jax.lax.conv_general_dilated(
        x, params["conv1_w"], window_strides=(2, 2), padding="VALID",
        dimension_numbers=("NCHW", "OIHW", "NCHW"))
    y = jax.nn.relu(y + params["conv1_b"].reshape(1, -1, 1, 1))
    y = jax.lax.conv_general_dilated(
        y, params["conv2_w"], window_strides=(2, 2), padding="VALID",
        dimension_numbers=("NCHW", "OIHW", "NCHW"))
    y = jax.nn.relu(y + params["conv2_b"].reshape(1, -1, 1, 1))
    feat = y.reshape(y.shape[0], -1)
    return feat @ params["fc_w"].T + params["fc_b"]


if __name__ == "__main__":
    key = jax.random.PRNGKey(0)
    pkey, xkey = jax.random.split(key)

    params = init_params(pkey)
    kparams = pack_params(params)   # one-time weight repack (amortized at init)

    x = jax.random.normal(xkey, (2, 1, 28, 28), jnp.float32)

    fwd = jax.jit(attack_net_mnist_forward)
    logits = jax.block_until_ready(fwd(x, kparams))

    assert logits.shape == (2, NUM_CLASSES), logits.shape
    assert bool(jnp.all(jnp.isfinite(logits)))

    ref = reference_forward(x, params)
    assert bool(jnp.allclose(logits, ref, atol=1e-2, rtol=1e-2)), (
        "mismatch vs. pure-JAX reference")

    print("KERNEL_OK")
</pallas_src>

<mosaic_0001>
module attributes {stable_mosaic.version = 11 : i64} {
  func.func @_fused_kernel(%arg0: memref<800x32xf32, #tpu.memory_space<vmem>>, %arg1: memref<32x8xf32, #tpu.memory_space<vmem>>, %arg2: memref<25x8x64xf32, #tpu.memory_space<vmem>>, %arg3: memref<1x64xf32, #tpu.memory_space<vmem>>, %arg4: memref<16x64x128xbf16, #tpu.memory_space<vmem>>, %arg5: memref<1x128xf32, #tpu.memory_space<vmem>>, %arg6: memref<2x128xf32, #tpu.memory_space<vmem>>) attributes {dimension_semantics = [], scalar_prefetch = 0 : i64, scratch_operands = 0 : i64, tpu.core_type = #tpu.core_type<tc>} {
    %c0 = arith.constant 0 : index
    %c0_0 = arith.constant 0 : index
    %0 = vector.load %arg1[%c0, %c0_0] : memref<32x8xf32, #tpu.memory_space<vmem>>, vector<32x8xf32>
    %cst = arith.constant 0.000000e+00 : f32
    %1 = vector.broadcast %cst : f32 to vector<32x64xf32>
    %c0_1 = arith.constant 0 : index
    %c0_2 = arith.constant 0 : index
    %2 = vector.load %arg0[%c0_1, %c0_2] : memref<800x32xf32, #tpu.memory_space<vmem>>, vector<32x32xf32>
    %cst_3 = arith.constant dense<0.000000e+00> : vector<32x8xf32>
    %3 = tpu.matmul %2, %0, %cst_3 {dimension_numbers = #tpu.dot_dimension_numbers<[1], [0], [0], [1], [0, 0, 1, 1], [], []>} : vector<32x32xf32>, vector<32x8xf32>, vector<32x8xf32> -> vector<32x8xf32>
    %cst_4 = arith.constant 0.000000e+00 : f32
    %4 = vector.broadcast %cst_4 : f32 to vector<32x8xf32>
    %5 = arith.maximumf %3, %4 : vector<32x8xf32>
    %c0_5 = arith.constant 0 : index
    %c0_6 = arith.constant 0 : index
    %c0_7 = arith.constant 0 : index
    %6 = vector.load %arg2[%c0_5, %c0_6, %c0_7] : memref<25x8x64xf32, #tpu.memory_space<vmem>>, vector<1x8x64xf32>
    %7 = vector.shape_cast %6 : vector<1x8x64xf32> to vector<8x64xf32>
    %cst_8 = arith.constant dense<0.000000e+00> : vector<32x64xf32>
    %8 = tpu.matmul %5, %7, %cst_8 {dimension_numbers = #tpu.dot_dimension_numbers<[1], [0], [0], [1], [0, 0, 1, 1], [], []>} : vector<32x8xf32>, vector<8x64xf32>, vector<32x64xf32> -> vector<32x64xf32>
    %9 = arith.addf %1, %8 : vector<32x64xf32>
    %c32 = arith.constant 32 : index
    %c0_9 = arith.constant 0 : index
    %10 = vector.load %arg0[%c32, %c0_9] : memref<800x32xf32, #tpu.memory_space<vmem>>, vector<32x32xf32>
    %cst_10 = arith.constant dense<0.000000e+00> : vector<32x8xf32>
    %11 = tpu.matmul %10, %0, %cst_10 {dimension_numbers = #tpu.dot_dimension_numbers<[1], [0], [0], [1], [0, 0, 1, 1], [], []>} : vector<32x32xf32>, vector<32x8xf32>, vector<32x8xf32> -> vector<32x8xf32>
    %cst_11 = arith.constant 0.000000e+00 : f32
    %12 = vector.broadcast %cst_11 : f32 to vector<32x8xf32>
    %13 = arith.maximumf %11, %12 : vector<32x8xf32>
    %c1 = arith.constant 1 : index
    %c0_12 = arith.constant 0 : index
    %c0_13 = arith.constant 0 : index
    %14 = vector.load %arg2[%c1, %c0_12, %c0_13] : memref<25x8x64xf32, #tpu.memory_space<vmem>>, vector<1x8x64xf32>
    %15 = vector.shape_cast %14 : vector<1x8x64xf32> to vector<8x64xf32>
    %cst_14 = arith.constant dense<0.000000e+00> : vector<32x64xf32>
    %16 = tpu.matmul %13, %15, %cst_14 {dimension_numbers = #tpu.dot_dimension_numbers<[1], [0], [0], [1], [0, 0, 1, 1], [], []>} : vector<32x8xf32>, vector<8x64xf32>, vector<32x64xf32> -> vector<32x64xf32>
    %17 = arith.addf %9, %16 : vector<32x64xf32>
    %c64 = arith.constant 64 : index
    %c0_15 = arith.constant 0 : index
    %18 = vector.load %arg0[%c64, %c0_15] : memref<800x32xf32, #tpu.memory_space<vmem>>, vector<32x32xf32>
    %cst_16 = arith.constant dense<0.000000e+00> : vector<32x8xf32>
    %19 = tpu.matmul %18, %0, %cst_16 {dimension_numbers = #tpu.dot_dimension_numbers<[1], [0], [0], [1], [0, 0, 1, 1], [], []>} : vector<32x32xf32>, vector<32x8xf32>, vector<32x8xf32> -> vector<32x8xf32>
    %cst_17 = arith.constant 0.000000e+00 : f32
    %20 = vector.broadcast %cst_17 : f32 to vector<32x8xf32>
    %21 = arith.maximumf %19, %20 : vector<32x8xf32>
    %c2 = arith.constant 2 : index
    %c0_18 = arith.constant 0 : index
    %c0_19 = arith.constant 0 : index
    %22 = vector.load %arg2[%c2, %c0_18, %c0_19] : memref<25x8x64xf32, #tpu.memory_space<vmem>>, vector<1x8x64xf32>
    %23 = vector.shape_cast %22 : vector<1x8x64xf32> to vector<8x64xf32>
    %cst_20 = arith.constant dense<0.000000e+00> : vector<32x64xf32>
    %24 = tpu.matmul %21, %23, %cst_20 {dimension_numbers = #tpu.dot_dimension_numbers<[1], [0], [0], [1], [0, 0, 1, 1], [], []>} : vector<32x8xf32>, vector<8x64xf32>, vector<32x64xf32> -> vector<32x64xf32>
    %25 = arith.addf %17, %24 : vector<32x64xf32>
    %c96 = arith.constant 96 : index
    %c0_21 = arith.constant 0 : index
    %26 = vector.load %arg0[%c96, %c0_21] : memref<800x32xf32, #tpu.memory_space<vmem>>, vector<32x32xf32>
    %cst_22 = arith.constant dense<0.000000e+00> : vector<32x8xf32>
    %27 = tpu.matmul %26, %0, %cst_22 {dimension_numbers = #tpu.dot_dimension_numbers<[1], [0], [0], [1], [0, 0, 1, 1], [], []>} : vector<32x32xf32>, vector<32x8xf32>, vector<32x8xf32> -> vector<32x8xf32>
    %cst_23 = arith.constant 0.000000e+00 : f32
    %28 = vector.broadcast %cst_23 : f32 to vector<32x8xf32>
    %29 = arith.maximumf %27, %28 : vector<32x8xf32>
    %c3 = arith.constant 3 : index
    %c0_24 = arith.constant 0 : index
    %c0_25 = arith.constant 0 : index
    %30 = vector.load %arg2[%c3, %c0_24, %c0_25] : memref<25x8x64xf32, #tpu.memory_space<vmem>>, vector<1x8x64xf32>
    %31 = vector.shape_cast %30 : vector<1x8x64xf32> to vector<8x64xf32>
    %cst_26 = arith.constant dense<0.000000e+00> : vector<32x64xf32>
    %32 = tpu.matmul %29, %31, %cst_26 {dimension_numbers = #tpu.dot_dimension_numbers<[1], [0], [0], [1], [0, 0, 1, 1], [], []>} : vector<32x8xf32>, vector<8x64xf32>, vector<32x64xf32> -> vector<32x64xf32>
    %33 = arith.addf %25, %32 : vector<32x64xf32>
    %c128 = arith.constant 128 : index
    %c0_27 = arith.constant 0 : index
    %34 = vector.load %arg0[%c128, %c0_27] : memref<800x32xf32, #tpu.memory_space<vmem>>, vector<32x32xf32>
    %cst_28 = arith.constant dense<0.000000e+00> : vector<32x8xf32>
    %35 = tpu.matmul %34, %0, %cst_28 {dimension_numbers = #tpu.dot_dimension_numbers<[1], [0], [0], [1], [0, 0, 1, 1], [], []>} : vector<32x32xf32>, vector<32x8xf32>, vector<32x8xf32> -> vector<32x8xf32>
    %cst_29 = arith.constant 0.000000e+00 : f32
    %36 = vector.broadcast %cst_29 : f32 to vector<32x8xf32>
    %37 = arith.maximumf %35, %36 : vector<32x8xf32>
    %c4 = arith.constant 4 : index
    %c0_30 = arith.constant 0 : index
    %c0_31 = arith.constant 0 : index
    %38 = vector.load %arg2[%c4, %c0_30, %c0_31] : memref<25x8x64xf32, #tpu.memory_space<vmem>>, vector<1x8x64xf32>
    %39 = vector.shape_cast %38 : vector<1x8x64xf32> to vector<8x64xf32>
    %cst_32 = arith.constant dense<0.000000e+00> : vector<32x64xf32>
    %40 = tpu.matmul %37, %39, %cst_32 {dimension_numbers = #tpu.dot_dimension_numbers<[1], [0], [0], [1], [0, 0, 1, 1], [], []>} : vector<32x8xf32>, vector<8x64xf32>, vector<32x64xf32> -> vector<32x64xf32>
    %41 = arith.addf %33, %40 : vector<32x64xf32>
    %c160 = arith.constant 160 : index
    %c0_33 = arith.constant 0 : index
    %42 = vector.load %arg0[%c160, %c0_33] : memref<800x32xf32, #tpu.memory_space<vmem>>, vector<32x32xf32>
    %cst_34 = arith.constant dense<0.000000e+00> : vector<32x8xf32>
    %43 = tpu.matmul %42, %0, %cst_34 {dimension_numbers = #tpu.dot_dimension_numbers<[1], [0], [0], [1], [0, 0, 1, 1], [], []>} : vector<32x32xf32>, vector<32x8xf32>, vector<32x8xf32> -> vector<32x8xf32>
    %cst_35 = arith.constant 0.000000e+00 : f32
    %44 = vector.broadcast %cst_35 : f32 to vector<32x8xf32>
    %45 = arith.maximumf %43, %44 : vector<32x8xf32>
    %c5 = arith.constant 5 : index
    %c0_36 = arith.constant 0 : index
    %c0_37 = arith.constant 0 : index
    %46 = vector.load %arg2[%c5, %c0_36, %c0_37] : memref<25x8x64xf32, #tpu.memory_space<vmem>>, vector<1x8x64xf32>
    %47 = vector.shape_cast %46 : vector<1x8x64xf32> to vector<8x64xf32>
    %cst_38 = arith.constant dense<0.000000e+00> : vector<32x64xf32>
    %48 = tpu.matmul %45, %47, %cst_38 {dimension_numbers = #tpu.dot_dimension_numbers<[1], [0], [0], [1], [0, 0, 1, 1], [], []>} : vector<32x8xf32>, vector<8x64xf32>, vector<32x64xf32> -> vector<32x64xf32>
    %49 = arith.addf %41, %48 : vector<32x64xf32>
    %c192 = arith.constant 192 : index
    %c0_39 = arith.constant 0 : index
    %50 = vector.load %arg0[%c192, %c0_39] : memref<800x32xf32, #tpu.memory_space<vmem>>, vector<32x32xf32>
    %cst_40 = arith.constant dense<0.000000e+00> : vector<32x8xf32>
    %51 = tpu.matmul %50, %0, %cst_40 {dimension_numbers = #tpu.dot_dimension_numbers<[1], [0], [0], [1], [0, 0, 1, 1], [], []>} : vector<32x32xf32>, vector<32x8xf32>, vector<32x8xf32> -> vector<32x8xf32>
    %cst_41 = arith.constant 0.000000e+00 : f32
    %52 = vector.broadcast %cst_41 : f32 to vector<32x8xf32>
    %53 = arith.maximumf %51, %52 : vector<32x8xf32>
    %c6 = arith.constant 6 : index
    %c0_42 = arith.constant 0 : index
    %c0_43 = arith.constant 0 : index
    %54 = vector.load %arg2[%c6, %c0_42, %c0_43] : memref<25x8x64xf32, #tpu.memory_space<vmem>>, vector<1x8x64xf32>
    %55 = vector.shape_cast %54 : vector<1x8x64xf32> to vector<8x64xf32>
    %cst_44 = arith.constant dense<0.000000e+00> : vector<32x64xf32>
    %56 = tpu.matmul %53, %55, %cst_44 {dimension_numbers = #tpu.dot_dimension_numbers<[1], [0], [0], [1], [0, 0, 1, 1], [], []>} : vector<32x8xf32>, vector<8x64xf32>, vector<32x64xf32> -> vector<32x64xf32>
    %57 = arith.addf %49, %56 : vector<32x64xf32>
    %c224 = arith.constant 224 : index
    %c0_45 = arith.constant 0 : index
    %58 = vector.load %arg0[%c224, %c0_45] : memref<800x32xf32, #tpu.memory_space<vmem>>, vector<32x32xf32>
    %cst_46 = arith.constant dense<0.000000e+00> : vector<32x8xf32>
    %59 = tpu.matmul %58, %0, %cst_46 {dimension_numbers = #tpu.dot_dimension_numbers<[1], [0], [0], [1], [0, 0, 1, 1], [], []>} : vector<32x32xf32>, vector<32x8xf32>, vector<32x8xf32> -> vector<32x8xf32>
    %cst_47 = arith.constant 0.000000e+00 : f32
    %60 = vector.broadcast %cst_47 : f32 to vector<32x8xf32>
    %61 = arith.maximumf %59, %60 : vector<32x8xf32>
    %c7 = arith.constant 7 : index
    %c0_48 = arith.constant 0 : index
    %c0_49 = arith.constant 0 : index
    %62 = vector.load %arg2[%c7, %c0_48, %c0_49] : memref<25x8x64xf32, #tpu.memory_space<vmem>>, vector<1x8x64xf32>
    %63 = vector.shape_cast %62 : vector<1x8x64xf32> to vector<8x64xf32>
    %cst_50 = arith.constant dense<0.000000e+00> : vector<32x64xf32>
    %64 = tpu.matmul %61, %63, %cst_50 {dimension_numbers = #tpu.dot_dimension_numbers<[1], [0], [0], [1], [0, 0, 1, 1], [], []>} : vector<32x8xf32>, vector<8x64xf32>, vector<32x64xf32> -> vector<32x64xf32>
    %65 = arith.addf %57, %64 : vector<32x64xf32>
    %c256 = arith.constant 256 : index
    %c0_51 = arith.constant 0 : index
    %66 = vector.load %arg0[%c256, %c0_51] : memref<800x32xf32, #tpu.memory_space<vmem>>, vector<32x32xf32>
    %cst_52 = arith.constant dense<0.000000e+00> : vector<32x8xf32>
    %67 = tpu.matmul %66, %0, %cst_52 {dimension_numbers = #tpu.dot_dimension_numbers<[1], [0], [0], [1], [0, 0, 1, 1], [], []>} : vector<32x32xf32>, vector<32x8xf32>, vector<32x8xf32> -> vector<32x8xf32>
    %cst_53 = arith.constant 0.000000e+00 : f32
    %68 = vector.broadcast %cst_53 : f32 to vector<32x8xf32>
    %69 = arith.maximumf %67, %68 : vector<32x8xf32>
    %c8 = arith.constant 8 : index
    %c0_54 = arith.constant 0 : index
    %c0_55 = arith.constant 0 : index
    %70 = vector.load %arg2[%c8, %c0_54, %c0_55] : memref<25x8x64xf32, #tpu.memory_space<vmem>>, vector<1x8x64xf32>
    %71 = vector.shape_cast %70 : vector<1x8x64xf32> to vector<8x64xf32>
    %cst_56 = arith.constant dense<0.000000e+00> : vector<32x64xf32>
    %72 = tpu.matmul %69, %71, %cst_56 {dimension_numbers = #tpu.dot_dimension_numbers<[1], [0], [0], [1], [0, 0, 1, 1], [], []>} : vector<32x8xf32>, vector<8x64xf32>, vector<32x64xf32> -> vector<32x64xf32>
    %73 = arith.addf %65, %72 : vector<32x64xf32>
    %c288 = arith.constant 288 : index
    %c0_57 = arith.constant 0 : index
    %74 = vector.load %arg0[%c288, %c0_57] : memref<800x32xf32, #tpu.memory_space<vmem>>, vector<32x32xf32>
    %cst_58 = arith.constant dense<0.000000e+00> : vector<32x8xf32>
    %75 = tpu.matmul %74, %0, %cst_58 {dimension_numbers = #tpu.dot_dimension_numbers<[1], [0], [0], [1], [0, 0, 1, 1], [], []>} : vector<32x32xf32>, vector<32x8xf32>, vector<32x8xf32> -> vector<32x8xf32>
    %cst_59 = arith.constant 0.000000e+00 : f32
    %76 = vector.broadcast %cst_59 : f32 to vector<32x8xf32>
    %77 = arith.maximumf %75, %76 : vector<32x8xf32>
    %c9 = arith.constant 9 : index
    %c0_60 = arith.constant 0 : index
    %c0_61 = arith.constant 0 : index
    %78 = vector.load %arg2[%c9, %c0_60, %c0_61] : memref<25x8x64xf32, #tpu.memory_space<vmem>>, vector<1x8x64xf32>
    %79 = vector.shape_cast %78 : vector<1x8x64xf32> to vector<8x64xf32>
    %cst_62 = arith.constant dense<0.000000e+00> : vector<32x64xf32>
    %80 = tpu.matmul %77, %79, %cst_62 {dimension_numbers = #tpu.dot_dimension_numbers<[1], [0], [0], [1], [0, 0, 1, 1], [], []>} : vector<32x8xf32>, vector<8x64xf32>, vector<32x64xf32> -> vector<32x64xf32>
    %81 = arith.addf %73, %80 : vector<32x64xf32>
    %c320 = arith.constant 320 : index
    %c0_63 = arith.constant 0 : index
    %82 = vector.load %arg0[%c320, %c0_63] : memref<800x32xf32, #tpu.memory_space<vmem>>, vector<32x32xf32>
    %cst_64 = arith.constant dense<0.000000e+00> : vector<32x8xf32>
    %83 = tpu.matmul %82, %0, %cst_64 {dimension_numbers = #tpu.dot_dimension_numbers<[1], [0], [0], [1], [0, 0, 1, 1], [], []>} : vector<32x32xf32>, vector<32x8xf32>, vector<32x8xf32> -> vector<32x8xf32>
    %cst_65 = arith.constant 0.000000e+00 : f32
    %84 = vector.broadcast %cst_65 : f32 to vector<32x8xf32>
    %85 = arith.maximumf %83, %84 : vector<32x8xf32>
    %c10 = arith.constant 10 : index
    %c0_66 = arith.constant 0 : index
    %c0_67 = arith.constant 0 : index
    %86 = vector.load %arg2[%c10, %c0_66, %c0_67] : memref<25x8x64xf32, #tpu.memory_space<vmem>>, vector<1x8x64xf32>
    %87 = vector.shape_cast %86 : vector<1x8x64xf32> to vector<8x64xf32>
    %cst_68 = arith.constant dense<0.000000e+00> : vector<32x64xf32>
    %88 = tpu.matmul %85, %87, %cst_68 {dimension_numbers = #tpu.dot_dimension_numbers<[1], [0], [0], [1], [0, 0, 1, 1], [], []>} : vector<32x8xf32>, vector<8x64xf32>, vector<32x64xf32> -> vector<32x64xf32>
    %89 = arith.addf %81, %88 : vector<32x64xf32>
    %c352 = arith.constant 352 : index
    %c0_69 = arith.constant 0 : index
    %90 = vector.load %arg0[%c352, %c0_69] : memref<800x32xf32, #tpu.memory_space<vmem>>, vector<32x32xf32>
    %cst_70 = arith.constant dense<0.000000e+00> : vector<32x8xf32>
    %91 = tpu.matmul %90, %0, %cst_70 {dimension_numbers = #tpu.dot_dimension_numbers<[1], [0], [0], [1], [0, 0, 1, 1], [], []>} : vector<32x32xf32>, vector<32x8xf32>, vector<32x8xf32> -> vector<32x8xf32>
    %cst_71 = arith.constant 0.000000e+00 : f32
    %92 = vector.broadcast %cst_71 : f32 to vector<32x8xf32>
    %93 = arith.maximumf %91, %92 : vector<32x8xf32>
    %c11 = arith.constant 11 : index
    %c0_72 = arith.constant 0 : index
    %c0_73 = arith.constant 0 : index
    %94 = vector.load %arg2[%c11, %c0_72, %c0_73] : memref<25x8x64xf32, #tpu.memory_space<vmem>>, vector<1x8x64xf32>
    %95 = vector.shape_cast %94 : vector<1x8x64xf32> to vector<8x64xf32>
    %cst_74 = arith.constant dense<0.000000e+00> : vector<32x64xf32>
    %96 = tpu.matmul %93, %95, %cst_74 {dimension_numbers = #tpu.dot_dimension_numbers<[1], [0], [0], [1], [0, 0, 1, 1], [], []>} : vector<32x8xf32>, vector<8x64xf32>, vector<32x64xf32> -> vector<32x64xf32>
    %97 = arith.addf %89, %96 : vector<32x64xf32>
    %c384 = arith.constant 384 : index
    %c0_75 = arith.constant 0 : index
    %98 = vector.load %arg0[%c384, %c0_75] : memref<800x32xf32, #tpu.memory_space<vmem>>, vector<32x32xf32>
    %cst_76 = arith.constant dense<0.000000e+00> : vector<32x8xf32>
    %99 = tpu.matmul %98, %0, %cst_76 {dimension_numbers = #tpu.dot_dimension_numbers<[1], [0], [0], [1], [0, 0, 1, 1], [], []>} : vector<32x32xf32>, vector<32x8xf32>, vector<32x8xf32> -> vector<32x8xf32>
    %cst_77 = arith.constant 0.000000e+00 : f32
    %100 = vector.broadcast %cst_77 : f32 to vector<32x8xf32>
    %101 = arith.maximumf %99, %100 : vector<32x8xf32>
    %c12 = arith.constant 12 : index
    %c0_78 = arith.constant 0 : index
    %c0_79 = arith.constant 0 : index
    %102 = vector.load %arg2[%c12, %c0_78, %c0_79] : memref<25x8x64xf32, #tpu.memory_space<vmem>>, vector<1x8x64xf32>
    %103 = vector.shape_cast %102 : vector<1x8x64xf32> to vector<8x64xf32>
    %cst_80 = arith.constant dense<0.000000e+00> : vector<32x64xf32>
    %104 = tpu.matmul %101, %103, %cst_80 {dimension_numbers = #tpu.dot_dimension_numbers<[1], [0], [0], [1], [0, 0, 1, 1], [], []>} : vector<32x8xf32>, vector<8x64xf32>, vector<32x64xf32> -> vector<32x64xf32>
    %105 = arith.addf %97, %104 : vector<32x64xf32>
    %c416 = arith.constant 416 : index
    %c0_81 = arith.constant 0 : index
    %106 = vector.load %arg0[%c416, %c0_81] : memref<800x32xf32, #tpu.memory_space<vmem>>, vector<32x32xf32>
    %cst_82 = arith.constant dense<0.000000e+00> : vector<32x8xf32>
    %107 = tpu.matmul %106, %0, %cst_82 {dimension_numbers = #tpu.dot_dimension_numbers<[1], [0], [0], [1], [0, 0, 1, 1], [], []>} : vector<32x32xf32>, vector<32x8xf32>, vector<32x8xf32> -> vector<32x8xf32>
    %cst_83 = arith.constant 0.000000e+00 : f32
    %108 = vector.broadcast %cst_83 : f32 to vector<32x8xf32>
    %109 = arith.maximumf %107, %108 : vector<32x8xf32>
    %c13 = arith.constant 13 : index
    %c0_84 = arith.constant 0 : index
    %c0_85 = arith.constant 0 : index
    %110 = vector.load %arg2[%c13, %c0_84, %c0_85] : memref<25x8x64xf32, #tpu.memory_space<vmem>>, vector<1x8x64xf32>
    %111 = vector.shape_cast %110 : vector<1x8x64xf32> to vector<8x64xf32>
    %cst_86 = arith.constant dense<0.000000e+00> : vector<32x64xf32>
    %112 = tpu.matmul %109, %111, %cst_86 {dimension_numbers = #tpu.dot_dimension_numbers<[1], [0], [0], [1], [0, 0, 1, 1], [], []>} : vector<32x8xf32>, vector<8x64xf32>, vector<32x64xf32> -> vector<32x64xf32>
    %113 = arith.addf %105, %112 : vector<32x64xf32>
    %c448 = arith.constant 448 : index
    %c0_87 = arith.constant 0 : index
    %114 = vector.load %arg0[%c448, %c0_87] : memref<800x32xf32, #tpu.memory_space<vmem>>, vector<32x32xf32>
    %cst_88 = arith.constant dense<0.000000e+00> : vector<32x8xf32>
    %115 = tpu.matmul %114, %0, %cst_88 {dimension_numbers = #tpu.dot_dimension_numbers<[1], [0], [0], [1], [0, 0, 1, 1], [], []>} : vector<32x32xf32>, vector<32x8xf32>, vector<32x8xf32> -> vector<32x8xf32>
    %cst_89 = arith.constant 0.000000e+00 : f32
    %116 = vector.broadcast %cst_89 : f32 to vector<32x8xf32>
    %117 = arith.maximumf %115, %116 : vector<32x8xf32>
    %c14 = arith.constant 14 : index
    %c0_90 = arith.constant 0 : index
    %c0_91 = arith.constant 0 : index
    %118 = vector.load %arg2[%c14, %c0_90, %c0_91] : memref<25x8x64xf32, #tpu.memory_space<vmem>>, vector<1x8x64xf32>
    %119 = vector.shape_cast %118 : vector<1x8x64xf32> to vector<8x64xf32>
    %cst_92 = arith.constant dense<0.000000e+00> : vector<32x64xf32>
    %120 = tpu.matmul %117, %119, %cst_92 {dimension_numbers = #tpu.dot_dimension_numbers<[1], [0], [0], [1], [0, 0, 1, 1], [], []>} : vector<32x8xf32>, vector<8x64xf32>, vector<32x64xf32> -> vector<32x64xf32>
    %121 = arith.addf %113, %120 : vector<32x64xf32>
    %c480 = arith.constant 480 : index
    %c0_93 = arith.constant 0 : index
    %122 = vector.load %arg0[%c480, %c0_93] : memref<800x32xf32, #tpu.memory_space<vmem>>, vector<32x32xf32>
    %cst_94 = arith.constant dense<0.000000e+00> : vector<32x8xf32>
    %123 = tpu.matmul %122, %0, %cst_94 {dimension_numbers = #tpu.dot_dimension_numbers<[1], [0], [0], [1], [0, 0, 1, 1], [], []>} : vector<32x32xf32>, vector<32x8xf32>, vector<32x8xf32> -> vector<32x8xf32>
    %cst_95 = arith.constant 0.000000e+00 : f32
    %124 = vector.broadcast %cst_95 : f32 to vector<32x8xf32>
    %125 = arith.maximumf %123, %124 : vector<32x8xf32>
    %c15 = arith.constant 15 : index
    %c0_96 = arith.constant 0 : index
    %c0_97 = arith.constant 0 : index
    %126 = vector.load %arg2[%c15, %c0_96, %c0_97] : memref<25x8x64xf32, #tpu.memory_space<vmem>>, vector<1x8x64xf32>
    %127 = vector.shape_cast %126 : vector<1x8x64xf32> to vector<8x64xf32>
    %cst_98 = arith.constant dense<0.000000e+00> : vector<32x64xf32>
    %128 = tpu.matmul %125, %127, %cst_98 {dimension_numbers = #tpu.dot_dimension_numbers<[1], [0], [0], [1], [0, 0, 1, 1], [], []>} : vector<32x8xf32>, vector<8x64xf32>, vector<32x64xf32> -> vector<32x64xf32>
    %129 = arith.addf %121, %128 : vector<32x64xf32>
    %c512 = arith.constant 512 : index
    %c0_99 = arith.constant 0 : index
    %130 = vector.load %arg0[%c512, %c0_99] : memref<800x32xf32, #tpu.memory_space<vmem>>, vector<32x32xf32>
    %cst_100 = arith.constant dense<0.000000e+00> : vector<32x8xf32>
    %131 = tpu.matmul %130, %0, %cst_100 {dimension_numbers = #tpu.dot_dimension_numbers<[1], [0], [0], [1], [0, 0, 1, 1], [], []>} : vector<32x32xf32>, vector<32x8xf32>, vector<32x8xf32> -> vector<32x8xf32>
    %cst_101 = arith.constant 0.000000e+00 : f32
    %132 = vector.broadcast %cst_101 : f32 to vector<32x8xf32>
    %133 = arith.maximumf %131, %132 : vector<32x8xf32>
    %c16 = arith.constant 16 : index
    %c0_102 = arith.constant 0 : index
    %c0_103 = arith.constant 0 : index
    %134 = vector.load %arg2[%c16, %c0_102, %c0_103] : memref<25x8x64xf32, #tpu.memory_space<vmem>>, vector<1x8x64xf32>
    %135 = vector.shape_cast %134 : vector<1x8x64xf32> to vector<8x64xf32>
    %cst_104 = arith.constant dense<0.000000e+00> : vector<32x64xf32>
    %136 = tpu.matmul %133, %135, %cst_104 {dimension_numbers = #tpu.dot_dimension_numbers<[1], [0], [0], [1], [0, 0, 1, 1], [], []>} : vector<32x8xf32>, vector<8x64xf32>, vector<32x64xf32> -> vector<32x64xf32>
    %137 = arith.addf %129, %136 : vector<32x64xf32>
    %c544 = arith.constant 544 : index
    %c0_105 = arith.constant 0 : index
    %138 = vector.load %arg0[%c544, %c0_105] : memref<800x32xf32, #tpu.memory_space<vmem>>, vector<32x32xf32>
    %cst_106 = arith.constant dense<0.000000e+00> : vector<32x8xf32>
    %139 = tpu.matmul %138, %0, %cst_106 {dimension_numbers = #tpu.dot_dimension_numbers<[1], [0], [0], [1], [0, 0, 1, 1], [], []>} : vector<32x32xf32>, vector<32x8xf32>, vector<32x8xf32> -> vector<32x8xf32>
    %cst_107 = arith.constant 0.000000e+00 : f32
    %140 = vector.broadcast %cst_107 : f32 to vector<32x8xf32>
    %141 = arith.maximumf %139, %140 : vector<32x8xf32>
    %c17 = arith.constant 17 : index
    %c0_108 = arith.constant 0 : index
    %c0_109 = arith.constant 0 : index
    %142 = vector.load %arg2[%c17, %c0_108, %c0_109] : memref<25x8x64xf32, #tpu.memory_space<vmem>>, vector<1x8x64xf32>
    %143 = vector.shape_cast %142 : vector<1x8x64xf32> to vector<8x64xf32>
    %cst_110 = arith.constant dense<0.000000e+00> : vector<32x64xf32>
    %144 = tpu.matmul %141, %143, %cst_110 {dimension_numbers = #tpu.dot_dimension_numbers<[1], [0], [0], [1], [0, 0, 1, 1], [], []>} : vector<32x8xf32>, vector<8x64xf32>, vector<32x64xf32> -> vector<32x64xf32>
    %145 = arith.addf %137, %144 : vector<32x64xf32>
    %c576 = arith.constant 576 : index
    %c0_111 = arith.constant 0 : index
    %146 = vector.load %arg0[%c576, %c0_111] : memref<800x32xf32, #tpu.memory_space<vmem>>, vector<32x32xf32>
    %cst_112 = arith.constant dense<0.000000e+00> : vector<32x8xf32>
    %147 = tpu.matmul %146, %0, %cst_112 {dimension_numbers = #tpu.dot_dimension_numbers<[1], [0], [0], [1], [0, 0, 1, 1], [], []>} : vector<32x32xf32>, vector<32x8xf32>, vector<32x8xf32> -> vector<32x8xf32>
    %cst_113 = arith.constant 0.000000e+00 : f32
    %148 = vector.broadcast %cst_113 : f32 to vector<32x8xf32>
    %149 = arith.maximumf %147, %148 : vector<32x8xf32>
    %c18 = arith.constant 18 : index
    %c0_114 = arith.constant 0 : index
    %c0_115 = arith.constant 0 : index
    %150 = vector.load %arg2[%c18, %c0_114, %c0_115] : memref<25x8x64xf32, #tpu.memory_space<vmem>>, vector<1x8x64xf32>
    %151 = vector.shape_cast %150 : vector<1x8x64xf32> to vector<8x64xf32>
    %cst_116 = arith.constant dense<0.000000e+00> : vector<32x64xf32>
    %152 = tpu.matmul %149, %151, %cst_116 {dimension_numbers = #tpu.dot_dimension_numbers<[1], [0], [0], [1], [0, 0, 1, 1], [], []>} : vector<32x8xf32>, vector<8x64xf32>, vector<32x64xf32> -> vector<32x64xf32>
    %153 = arith.addf %145, %152 : vector<32x64xf32>
    %c608 = arith.constant 608 : index
    %c0_117 = arith.constant 0 : index
    %154 = vector.load %arg0[%c608, %c0_117] : memref<800x32xf32, #tpu.memory_space<vmem>>, vector<32x32xf32>
    %cst_118 = arith.constant dense<0.000000e+00> : vector<32x8xf32>
    %155 = tpu.matmul %154, %0, %cst_118 {dimension_numbers = #tpu.dot_dimension_numbers<[1], [0], [0], [1], [0, 0, 1, 1], [], []>} : vector<32x32xf32>, vector<32x8xf32>, vector<32x8xf32> -> vector<32x8xf32>
    %cst_119 = arith.constant 0.000000e+00 : f32
    %156 = vector.broadcast %cst_119 : f32 to vector<32x8xf32>
    %157 = arith.maximumf %155, %156 : vector<32x8xf32>
    %c19 = arith.constant 19 : index
    %c0_120 = arith.constant 0 : index
    %c0_121 = arith.constant 0 : index
    %158 = vector.load %arg2[%c19, %c0_120, %c0_121] : memref<25x8x64xf32, #tpu.memory_space<vmem>>, vector<1x8x64xf32>
    %159 = vector.shape_cast %158 : vector<1x8x64xf32> to vector<8x64xf32>
    %cst_122 = arith.constant dense<0.000000e+00> : vector<32x64xf32>
    %160 = tpu.matmul %157, %159, %cst_122 {dimension_numbers = #tpu.dot_dimension_numbers<[1], [0], [0], [1], [0, 0, 1, 1], [], []>} : vector<32x8xf32>, vector<8x64xf32>, vector<32x64xf32> -> vector<32x64xf32>
    %161 = arith.addf %153, %160 : vector<32x64xf32>
    %c640 = arith.constant 640 : index
    %c0_123 = arith.constant 0 : index
    %162 = vector.load %arg0[%c640, %c0_123] : memref<800x32xf32, #tpu.memory_space<vmem>>, vector<32x32xf32>
    %cst_124 = arith.constant dense<0.000000e+00> : vector<32x8xf32>
    %163 = tpu.matmul %162, %0, %cst_124 {dimension_numbers = #tpu.dot_dimension_numbers<[1], [0], [0], [1], [0, 0, 1, 1], [], []>} : vector<32x32xf32>, vector<32x8xf32>, vector<32x8xf32> -> vector<32x8xf32>
    %cst_125 = arith.constant 0.000000e+00 : f32
    %164 = vector.broadcast %cst_125 : f32 to vector<32x8xf32>
    %165 = arith.maximumf %163, %164 : vector<32x8xf32>
    %c20 = arith.constant 20 : index
    %c0_126 = arith.constant 0 : index
    %c0_127 = arith.constant 0 : index
    %166 = vector.load %arg2[%c20, %c0_126, %c0_127] : memref<25x8x64xf32, #tpu.memory_space<vmem>>, vector<1x8x64xf32>
    %167 = vector.shape_cast %166 : vector<1x8x64xf32> to vector<8x64xf32>
    %cst_128 = arith.constant dense<0.000000e+00> : vector<32x64xf32>
    %168 = tpu.matmul %165, %167, %cst_128 {dimension_numbers = #tpu.dot_dimension_numbers<[1], [0], [0], [1], [0, 0, 1, 1], [], []>} : vector<32x8xf32>, vector<8x64xf32>, vector<32x64xf32> -> vector<32x64xf32>
    %169 = arith.addf %161, %168 : vector<32x64xf32>
    %c672 = arith.constant 672 : index
    %c0_129 = arith.constant 0 : index
    %170 = vector.load %arg0[%c672, %c0_129] : memref<800x32xf32, #tpu.memory_space<vmem>>, vector<32x32xf32>
    %cst_130 = arith.constant dense<0.000000e+00> : vector<32x8xf32>
    %171 = tpu.matmul %170, %0, %cst_130 {dimension_numbers = #tpu.dot_dimension_numbers<[1], [0], [0], [1], [0, 0, 1, 1], [], []>} : vector<32x32xf32>, vector<32x8xf32>, vector<32x8xf32> -> vector<32x8xf32>
    %cst_131 = arith.constant 0.000000e+00 : f32
    %172 = vector.broadcast %cst_131 : f32 to vector<32x8xf32>
    %173 = arith.maximumf %171, %172 : vector<32x8xf32>
    %c21 = arith.constant 21 : index
    %c0_132 = arith.constant 0 : index
    %c0_133 = arith.constant 0 : index
    %174 = vector.load %arg2[%c21, %c0_132, %c0_133] : memref<25x8x64xf32, #tpu.memory_space<vmem>>, vector<1x8x64xf32>
    %175 = vector.shape_cast %174 : vector<1x8x64xf32> to vector<8x64xf32>
    %cst_134 = arith.constant dense<0.000000e+00> : vector<32x64xf32>
    %176 = tpu.matmul %173, %175, %cst_134 {dimension_numbers = #tpu.dot_dimension_numbers<[1], [0], [0], [1], [0, 0, 1, 1], [], []>} : vector<32x8xf32>, vector<8x64xf32>, vector<32x64xf32> -> vector<32x64xf32>
    %177 = arith.addf %169, %176 : vector<32x64xf32>
    %c704 = arith.constant 704 : index
    %c0_135 = arith.constant 0 : index
    %178 = vector.load %arg0[%c704, %c0_135] : memref<800x32xf32, #tpu.memory_space<vmem>>, vector<32x32xf32>
    %cst_136 = arith.constant dense<0.000000e+00> : vector<32x8xf32>
    %179 = tpu.matmul %178, %0, %cst_136 {dimension_numbers = #tpu.dot_dimension_numbers<[1], [0], [0], [1], [0, 0, 1, 1], [], []>} : vector<32x32xf32>, vector<32x8xf32>, vector<32x8xf32> -> vector<32x8xf32>
    %cst_137 = arith.constant 0.000000e+00 : f32
    %180 = vector.broadcast %cst_137 : f32 to vector<32x8xf32>
    %181 = arith.maximumf %179, %180 : vector<32x8xf32>
    %c22 = arith.constant 22 : index
    %c0_138 = arith.constant 0 : index
    %c0_139 = arith.constant 0 : index
    %182 = vector.load %arg2[%c22, %c0_138, %c0_139] : memref<25x8x64xf32, #tpu.memory_space<vmem>>, vector<1x8x64xf32>
    %183 = vector.shape_cast %182 : vector<1x8x64xf32> to vector<8x64xf32>
    %cst_140 = arith.constant dense<0.000000e+00> : vector<32x64xf32>
    %184 = tpu.matmul %181, %183, %cst_140 {dimension_numbers = #tpu.dot_dimension_numbers<[1], [0], [0], [1], [0, 0, 1, 1], [], []>} : vector<32x8xf32>, vector<8x64xf32>, vector<32x64xf32> -> vector<32x64xf32>
    %185 = arith.addf %177, %184 : vector<32x64xf32>
    %c736 = arith.constant 736 : index
    %c0_141 = arith.constant 0 : index
    %186 = vector.load %arg0[%c736, %c0_141] : memref<800x32xf32, #tpu.memory_space<vmem>>, vector<32x32xf32>
    %cst_142 = arith.constant dense<0.000000e+00> : vector<32x8xf32>
    %187 = tpu.matmul %186, %0, %cst_142 {dimension_numbers = #tpu.dot_dimension_numbers<[1], [0], [0], [1], [0, 0, 1, 1], [], []>} : vector<32x32xf32>, vector<32x8xf32>, vector<32x8xf32> -> vector<32x8xf32>
    %cst_143 = arith.constant 0.000000e+00 : f32
    %188 = vector.broadcast %cst_143 : f32 to vector<32x8xf32>
    %189 = arith.maximumf %187, %188 : vector<32x8xf32>
    %c23 = arith.constant 23 : index
    %c0_144 = arith.constant 0 : index
    %c0_145 = arith.constant 0 : index
    %190 = vector.load %arg2[%c23, %c0_144, %c0_145] : memref<25x8x64xf32, #tpu.memory_space<vmem>>, vector<1x8x64xf32>
    %191 = vector.shape_cast %190 : vector<1x8x64xf32> to vector<8x64xf32>
    %cst_146 = arith.constant dense<0.000000e+00> : vector<32x64xf32>
    %192 = tpu.matmul %189, %191, %cst_146 {dimension_numbers = #tpu.dot_dimension_numbers<[1], [0], [0], [1], [0, 0, 1, 1], [], []>} : vector<32x8xf32>, vector<8x64xf32>, vector<32x64xf32> -> vector<32x64xf32>
    %193 = arith.addf %185, %192 : vector<32x64xf32>
    %c768 = arith.constant 768 : index
    %c0_147 = arith.constant 0 : index
    %194 = vector.load %arg0[%c768, %c0_147] : memref<800x32xf32, #tpu.memory_space<vmem>>, vector<32x32xf32>
    %cst_148 = arith.constant dense<0.000000e+00> : vector<32x8xf32>
    %195 = tpu.matmul %194, %0, %cst_148 {dimension_numbers = #tpu.dot_dimension_numbers<[1], [0], [0], [1], [0, 0, 1, 1], [], []>} : vector<32x32xf32>, vector<32x8xf32>, vector<32x8xf32> -> vector<32x8xf32>
    %cst_149 = arith.constant 0.000000e+00 : f32
    %196 = vector.broadcast %cst_149 : f32 to vector<32x8xf32>
    %197 = arith.maximumf %195, %196 : vector<32x8xf32>
    %c24 = arith.constant 24 : index
    %c0_150 = arith.constant 0 : index
    %c0_151 = arith.constant 0 : index
    %198 = vector.load %arg2[%c24, %c0_150, %c0_151] : memref<25x8x64xf32, #tpu.memory_space<vmem>>, vector<1x8x64xf32>
    %199 = vector.shape_cast %198 : vector<1x8x64xf32> to vector<8x64xf32>
    %cst_152 = arith.constant dense<0.000000e+00> : vector<32x64xf32>
    %200 = tpu.matmul %197, %199, %cst_152 {dimension_numbers = #tpu.dot_dimension_numbers<[1], [0], [0], [1], [0, 0, 1, 1], [], []>} : vector<32x8xf32>, vector<8x64xf32>, vector<32x64xf32> -> vector<32x64xf32>
    %201 = arith.addf %193, %200 : vector<32x64xf32>
    %c0_153 = arith.constant 0 : index
    %c0_154 = arith.constant 0 : index
    %202 = vector.load %arg3[%c0_153, %c0_154] : memref<1x64xf32, #tpu.memory_space<vmem>>, vector<1x64xf32>
    %203 = vector.broadcast %202 : vector<1x64xf32> to vector<32x64xf32>
    %204 = arith.addf %201, %203 : vector<32x64xf32>
    %cst_155 = arith.constant 0.000000e+00 : f32
    %205 = vector.broadcast %cst_155 : f32 to vector<32x64xf32>
    %206 = arith.maximumf %204, %205 : vector<32x64xf32>
    %207 = arith.truncf %206 : vector<32x64xf32> to vector<32x64xbf16>
    %cst_156 = arith.constant 0.000000e+00 : f32
    %208 = vector.broadcast %cst_156 : f32 to vector<2x128xf32>
    %209 = vector.extract_strided_slice %207 {offsets = [0, 0], sizes = [2, 64], strides = [1, 1]} : vector<32x64xbf16> to vector<2x64xbf16>
    %c0_157 = arith.constant 0 : index
    %c0_158 = arith.constant 0 : index
    %c0_159 = arith.constant 0 : index
    %210 = vector.load %arg4[%c0_157, %c0_158, %c0_159] : memref<16x64x128xbf16, #tpu.memory_space<vmem>>, vector<1x64x128xbf16>
    %211 = vector.shape_cast %210 : vector<1x64x128xbf16> to vector<64x128xbf16>
    %cst_160 = arith.constant dense<0.000000e+00> : vector<2x128xf32>
    %212 = tpu.matmul %209, %211, %cst_160 {dimension_numbers = #tpu.dot_dimension_numbers<[1], [0], [0], [1], [0, 0, 1, 1], [], []>} : vector<2x64xbf16>, vector<64x128xbf16>, vector<2x128xf32> -> vector<2x128xf32>
    %213 = arith.addf %208, %212 : vector<2x128xf32>
    %214 = vector.extract_strided_slice %207 {offsets = [2, 0], sizes = [2, 64], strides = [1, 1]} : vector<32x64xbf16> to vector<2x64xbf16>
    %c1_161 = arith.constant 1 : index
    %c0_162 = arith.constant 0 : index
    %c0_163 = arith.constant 0 : index
    %215 = vector.load %arg4[%c1_161, %c0_162, %c0_163] : memref<16x64x128xbf16, #tpu.memory_space<vmem>>, vector<1x64x128xbf16>
    %216 = vector.shape_cast %215 : vector<1x64x128xbf16> to vector<64x128xbf16>
    %cst_164 = arith.constant dense<0.000000e+00> : vector<2x128xf32>
    %217 = tpu.matmul %214, %216, %cst_164 {dimension_numbers = #tpu.dot_dimension_numbers<[1], [0], [0], [1], [0, 0, 1, 1], [], []>} : vector<2x64xbf16>, vector<64x128xbf16>, vector<2x128xf32> -> vector<2x128xf32>
    %218 = arith.addf %213, %217 : vector<2x128xf32>
    %219 = vector.extract_strided_slice %207 {offsets = [4, 0], sizes = [2, 64], strides = [1, 1]} : vector<32x64xbf16> to vector<2x64xbf16>
    %c2_165 = arith.constant 2 : index
    %c0_166 = arith.constant 0 : index
    %c0_167 = arith.constant 0 : index
    %220 = vector.load %arg4[%c2_165, %c0_166, %c0_167] : memref<16x64x128xbf16, #tpu.memory_space<vmem>>, vector<1x64x128xbf16>
    %221 = vector.shape_cast %220 : vector<1x64x128xbf16> to vector<64x128xbf16>
    %cst_168 = arith.constant dense<0.000000e+00> : vector<2x128xf32>
    %222 = tpu.matmul %219, %221, %cst_168 {dimension_numbers = #tpu.dot_dimension_numbers<[1], [0], [0], [1], [0, 0, 1, 1], [], []>} : vector<2x64xbf16>, vector<64x128xbf16>, vector<2x128xf32> -> vector<2x128xf32>
    %223 = arith.addf %218, %222 : vector<2x128xf32>
    %224 = vector.extract_strided_slice %207 {offsets = [6, 0], sizes = [2, 64], strides = [1, 1]} : vector<32x64xbf16> to vector<2x64xbf16>
    %c3_169 = arith.constant 3 : index
    %c0_170 = arith.constant 0 : index
    %c0_171 = arith.constant 0 : index
    %225 = vector.load %arg4[%c3_169, %c0_170, %c0_171] : memref<16x64x128xbf16, #tpu.memory_space<vmem>>, vector<1x64x128xbf16>
    %226 = vector.shape_cast %225 : vector<1x64x128xbf16> to vector<64x128xbf16>
    %cst_172 = arith.constant dense<0.000000e+00> : vector<2x128xf32>
    %227 = tpu.matmul %224, %226, %cst_172 {dimension_numbers = #tpu.dot_dimension_numbers<[1], [0], [0], [1], [0, 0, 1, 1], [], []>} : vector<2x64xbf16>, vector<64x128xbf16>, vector<2x128xf32> -> vector<2x128xf32>
    %228 = arith.addf %223, %227 : vector<2x128xf32>
    %229 = vector.extract_strided_slice %207 {offsets = [8, 0], sizes = [2, 64], strides = [1, 1]} : vector<32x64xbf16> to vector<2x64xbf16>
    %c4_173 = arith.constant 4 : index
    %c0_174 = arith.constant 0 : index
    %c0_175 = arith.constant 0 : index
    %230 = vector.load %arg4[%c4_173, %c0_174, %c0_175] : memref<16x64x128xbf16, #tpu.memory_space<vmem>>, vector<1x64x128xbf16>
    %231 = vector.shape_cast %230 : vector<1x64x128xbf16> to vector<64x128xbf16>
    %cst_176 = arith.constant dense<0.000000e+00> : vector<2x128xf32>
    %232 = tpu.matmul %229, %231, %cst_176 {dimension_numbers = #tpu.dot_dimension_numbers<[1], [0], [0], [1], [0, 0, 1, 1], [], []>} : vector<2x64xbf16>, vector<64x128xbf16>, vector<2x128xf32> -> vector<2x128xf32>
    %233 = arith.addf %228, %232 : vector<2x128xf32>
    %234 = vector.extract_strided_slice %207 {offsets = [10, 0], sizes = [2, 64], strides = [1, 1]} : vector<32x64xbf16> to vector<2x64xbf16>
    %c5_177 = arith.constant 5 : index
    %c0_178 = arith.constant 0 : index
    %c0_179 = arith.constant 0 : index
    %235 = vector.load %arg4[%c5_177, %c0_178, %c0_179] : memref<16x64x128xbf16, #tpu.memory_space<vmem>>, vector<1x64x128xbf16>
    %236 = vector.shape_cast %235 : vector<1x64x128xbf16> to vector<64x128xbf16>
    %cst_180 = arith.constant dense<0.000000e+00> : vector<2x128xf32>
    %237 = tpu.matmul %234, %236, %cst_180 {dimension_numbers = #tpu.dot_dimension_numbers<[1], [0], [0], [1], [0, 0, 1, 1], [], []>} : vector<2x64xbf16>, vector<64x128xbf16>, vector<2x128xf32> -> vector<2x128xf32>
    %238 = arith.addf %233, %237 : vector<2x128xf32>
    %239 = vector.extract_strided_slice %207 {offsets = [12, 0], sizes = [2, 64], strides = [1, 1]} : vector<32x64xbf16> to vector<2x64xbf16>
    %c6_181 = arith.constant 6 : index
    %c0_182 = arith.constant 0 : index
    %c0_183 = arith.constant 0 : index
    %240 = vector.load %arg4[%c6_181, %c0_182, %c0_183] : memref<16x64x128xbf16, #tpu.memory_space<vmem>>, vector<1x64x128xbf16>
    %241 = vector.shape_cast %240 : vector<1x64x128xbf16> to vector<64x128xbf16>
    %cst_184 = arith.constant dense<0.000000e+00> : vector<2x128xf32>
    %242 = tpu.matmul %239, %241, %cst_184 {dimension_numbers = #tpu.dot_dimension_numbers<[1], [0], [0], [1], [0, 0, 1, 1], [], []>} : vector<2x64xbf16>, vector<64x128xbf16>, vector<2x128xf32> -> vector<2x128xf32>
    %243 = arith.addf %238, %242 : vector<2x128xf32>
    %244 = vector.extract_strided_slice %207 {offsets = [14, 0], sizes = [2, 64], strides = [1, 1]} : vector<32x64xbf16> to vector<2x64xbf16>
    %c7_185 = arith.constant 7 : index
    %c0_186 = arith.constant 0 : index
    %c0_187 = arith.constant 0 : index
    %245 = vector.load %arg4[%c7_185, %c0_186, %c0_187] : memref<16x64x128xbf16, #tpu.memory_space<vmem>>, vector<1x64x128xbf16>
    %246 = vector.shape_cast %245 : vector<1x64x128xbf16> to vector<64x128xbf16>
    %cst_188 = arith.constant dense<0.000000e+00> : vector<2x128xf32>
    %247 = tpu.matmul %244, %246, %cst_188 {dimension_numbers = #tpu.dot_dimension_numbers<[1], [0], [0], [1], [0, 0, 1, 1], [], []>} : vector<2x64xbf16>, vector<64x128xbf16>, vector<2x128xf32> -> vector<2x128xf32>
    %248 = arith.addf %243, %247 : vector<2x128xf32>
    %249 = vector.extract_strided_slice %207 {offsets = [16, 0], sizes = [2, 64], strides = [1, 1]} : vector<32x64xbf16> to vector<2x64xbf16>
    %c8_189 = arith.constant 8 : index
    %c0_190 = arith.constant 0 : index
    %c0_191 = arith.constant 0 : index
    %250 = vector.load %arg4[%c8_189, %c0_190, %c0_191] : memref<16x64x128xbf16, #tpu.memory_space<vmem>>, vector<1x64x128xbf16>
    %251 = vector.shape_cast %250 : vector<1x64x128xbf16> to vector<64x128xbf16>
    %cst_192 = arith.constant dense<0.000000e+00> : vector<2x128xf32>
    %252 = tpu.matmul %249, %251, %cst_192 {dimension_numbers = #tpu.dot_dimension_numbers<[1], [0], [0], [1], [0, 0, 1, 1], [], []>} : vector<2x64xbf16>, vector<64x128xbf16>, vector<2x128xf32> -> vector<2x128xf32>
    %253 = arith.addf %248, %252 : vector<2x128xf32>
    %254 = vector.extract_strided_slice %207 {offsets = [18, 0], sizes = [2, 64], strides = [1, 1]} : vector<32x64xbf16> to vector<2x64xbf16>
    %c9_193 = arith.constant 9 : index
    %c0_194 = arith.constant 0 : index
    %c0_195 = arith.constant 0 : index
    %255 = vector.load %arg4[%c9_193, %c0_194, %c0_195] : memref<16x64x128xbf16, #tpu.memory_space<vmem>>, vector<1x64x128xbf16>
    %256 = vector.shape_cast %255 : vector<1x64x128xbf16> to vector<64x128xbf16>
    %cst_196 = arith.constant dense<0.000000e+00> : vector<2x128xf32>
    %257 = tpu.matmul %254, %256, %cst_196 {dimension_numbers = #tpu.dot_dimension_numbers<[1], [0], [0], [1], [0, 0, 1, 1], [], []>} : vector<2x64xbf16>, vector<64x128xbf16>, vector<2x128xf32> -> vector<2x128xf32>
    %258 = arith.addf %253, %257 : vector<2x128xf32>
    %259 = vector.extract_strided_slice %207 {offsets = [20, 0], sizes = [2, 64], strides = [1, 1]} : vector<32x64xbf16> to vector<2x64xbf16>
    %c10_197 = arith.constant 10 : index
    %c0_198 = arith.constant 0 : index
    %c0_199 = arith.constant 0 : index
    %260 = vector.load %arg4[%c10_197, %c0_198, %c0_199] : memref<16x64x128xbf16, #tpu.memory_space<vmem>>, vector<1x64x128xbf16>
    %261 = vector.shape_cast %260 : vector<1x64x128xbf16> to vector<64x128xbf16>
    %cst_200 = arith.constant dense<0.000000e+00> : vector<2x128xf32>
    %262 = tpu.matmul %259, %261, %cst_200 {dimension_numbers = #tpu.dot_dimension_numbers<[1], [0], [0], [1], [0, 0, 1, 1], [], []>} : vector<2x64xbf16>, vector<64x128xbf16>, vector<2x128xf32> -> vector<2x128xf32>
    %263 = arith.addf %258, %262 : vector<2x128xf32>
    %264 = vector.extract_strided_slice %207 {offsets = [22, 0], sizes = [2, 64], strides = [1, 1]} : vector<32x64xbf16> to vector<2x64xbf16>
    %c11_201 = arith.constant 11 : index
    %c0_202 = arith.constant 0 : index
    %c0_203 = arith.constant 0 : index
    %265 = vector.load %arg4[%c11_201, %c0_202, %c0_203] : memref<16x64x128xbf16, #tpu.memory_space<vmem>>, vector<1x64x128xbf16>
    %266 = vector.shape_cast %265 : vector<1x64x128xbf16> to vector<64x128xbf16>
    %cst_204 = arith.constant dense<0.000000e+00> : vector<2x128xf32>
    %267 = tpu.matmul %264, %266, %cst_204 {dimension_numbers = #tpu.dot_dimension_numbers<[1], [0], [0], [1], [0, 0, 1, 1], [], []>} : vector<2x64xbf16>, vector<64x128xbf16>, vector<2x128xf32> -> vector<2x128xf32>
    %268 = arith.addf %263, %267 : vector<2x128xf32>
    %269 = vector.extract_strided_slice %207 {offsets = [24, 0], sizes = [2, 64], strides = [1, 1]} : vector<32x64xbf16> to vector<2x64xbf16>
    %c12_205 = arith.constant 12 : index
    %c0_206 = arith.constant 0 : index
    %c0_207 = arith.constant 0 : index
    %270 = vector.load %arg4[%c12_205, %c0_206, %c0_207] : memref<16x64x128xbf16, #tpu.memory_space<vmem>>, vector<1x64x128xbf16>
    %271 = vector.shape_cast %270 : vector<1x64x128xbf16> to vector<64x128xbf16>
    %cst_208 = arith.constant dense<0.000000e+00> : vector<2x128xf32>
    %272 = tpu.matmul %269, %271, %cst_208 {dimension_numbers = #tpu.dot_dimension_numbers<[1], [0], [0], [1], [0, 0, 1, 1], [], []>} : vector<2x64xbf16>, vector<64x128xbf16>, vector<2x128xf32> -> vector<2x128xf32>
    %273 = arith.addf %268, %272 : vector<2x128xf32>
    %274 = vector.extract_strided_slice %207 {offsets = [26, 0], sizes = [2, 64], strides = [1, 1]} : vector<32x64xbf16> to vector<2x64xbf16>
    %c13_209 = arith.constant 13 : index
    %c0_210 = arith.constant 0 : index
    %c0_211 = arith.constant 0 : index
    %275 = vector.load %arg4[%c13_209, %c0_210, %c0_211] : memref<16x64x128xbf16, #tpu.memory_space<vmem>>, vector<1x64x128xbf16>
    %276 = vector.shape_cast %275 : vector<1x64x128xbf16> to vector<64x128xbf16>
    %cst_212 = arith.constant dense<0.000000e+00> : vector<2x128xf32>
    %277 = tpu.matmul %274, %276, %cst_212 {dimension_numbers = #tpu.dot_dimension_numbers<[1], [0], [0], [1], [0, 0, 1, 1], [], []>} : vector<2x64xbf16>, vector<64x128xbf16>, vector<2x128xf32> -> vector<2x128xf32>
    %278 = arith.addf %273, %277 : vector<2x128xf32>
    %279 = vector.extract_strided_slice %207 {offsets = [28, 0], sizes = [2, 64], strides = [1, 1]} : vector<32x64xbf16> to vector<2x64xbf16>
    %c14_213 = arith.constant 14 : index
    %c0_214 = arith.constant 0 : index
    %c0_215 = arith.constant 0 : index
    %280 = vector.load %arg4[%c14_213, %c0_214, %c0_215] : memref<16x64x128xbf16, #tpu.memory_space<vmem>>, vector<1x64x128xbf16>
    %281 = vector.shape_cast %280 : vector<1x64x128xbf16> to vector<64x128xbf16>
    %cst_216 = arith.constant dense<0.000000e+00> : vector<2x128xf32>
    %282 = tpu.matmul %279, %281, %cst_216 {dimension_numbers = #tpu.dot_dimension_numbers<[1], [0], [0], [1], [0, 0, 1, 1], [], []>} : vector<2x64xbf16>, vector<64x128xbf16>, vector<2x128xf32> -> vector<2x128xf32>
    %283 = arith.addf %278, %282 : vector<2x128xf32>
    %284 = vector.extract_strided_slice %207 {offsets = [30, 0], sizes = [2, 64], strides = [1, 1]} : vector<32x64xbf16> to vector<2x64xbf16>
    %c15_217 = arith.constant 15 : index
    %c0_218 = arith.constant 0 : index
    %c0_219 = arith.constant 0 : index
    %285 = vector.load %arg4[%c15_217, %c0_218, %c0_219] : memref<16x64x128xbf16, #tpu.memory_space<vmem>>, vector<1x64x128xbf16>
    %286 = vector.shape_cast %285 : vector<1x64x128xbf16> to vector<64x128xbf16>
    %cst_220 = arith.constant dense<0.000000e+00> : vector<2x128xf32>
    %287 = tpu.matmul %284, %286, %cst_220 {dimension_numbers = #tpu.dot_dimension_numbers<[1], [0], [0], [1], [0, 0, 1, 1], [], []>} : vector<2x64xbf16>, vector<64x128xbf16>, vector<2x128xf32> -> vector<2x128xf32>
    %288 = arith.addf %283, %287 : vector<2x128xf32>
    %c0_221 = arith.constant 0 : index
    %c0_222 = arith.constant 0 : index
    %289 = vector.load %arg5[%c0_221, %c0_222] : memref<1x128xf32, #tpu.memory_space<vmem>>, vector<1x128xf32>
    %290 = vector.broadcast %289 : vector<1x128xf32> to vector<2x128xf32>
    %291 = arith.addf %288, %290 : vector<2x128xf32>
    %c0_223 = arith.constant 0 : index
    %c0_224 = arith.constant 0 : index
    %292 = vector.load %arg6[%c0_223, %c0_224] : memref<2x128xf32, #tpu.memory_space<vmem>>, vector<2x128xf32>
    tpu.vector_store %arg6[%c0_223, %c0_224], %291 {strides = array<i32>} : memref<2x128xf32, #tpu.memory_space<vmem>>, vector<2x128xf32>,
    return
  }
}

</mosaic_0001>

<llo_original>
// kernel: attack_net_mnist_forward.1
$region0: #{attack_net_mnist_forward.1}
  #allocation0 [shape = 'u32[]', space=smem, size = 0x4, offset = 0x4, fixed_abs, tag = 'smem constant byte address 0x4 - core index']
  #allocation1 [shape = 'u32[144,128]{1,0:T(1,128)}', space=vmem, size = 0x12000, scoped, tag = 'internal scratch']
  %s0 = inlined_call_operand.vmem [shape: f32[800,32], index: 0, kind: input, shape index: {}]
  %s1 = inlined_call_operand.vmem [shape: f32[32,8], index: 1, kind: input, shape index: {}]
  %s2 = inlined_call_operand.vmem [shape: f32[25,8,64], index: 2, kind: input, shape index: {}]
  %s3 = inlined_call_operand.vmem [shape: f32[1,64], index: 3, kind: input, shape index: {}]
  %s4 = inlined_call_operand.vmem [shape: bf16[16,64,128], index: 4, kind: input, shape index: {}]
  %s5 = inlined_call_operand.vmem [shape: f32[1,128], index: 5, kind: input, shape index: {}]
  %s6 = inlined_call_operand.hbm [shape: f32[2,128], index: 6, kind: output, shape index: {}]
  %s7 = sld [smem:[#allocation0]]
  $region34: #{attack_net_mnist_forward.1} parent=0
    _
  %s9 = ssub.s32 1, %s7
  %s10 = scalar_select 0, %s9, %s7
  $region1: #{attack_net_mnist_forward.1} parent=0
    #allocation2 [shape = 'u8[1024]{0}', space=vmem, size = 0x400, scoped, tag = 'output window, operand 0, single buffered']
    #allocation3 [shape = 's32[1]{0}', space=sflag, size = 0x4, scoped, tag = 'scoped memory for attack_net_mnist_forward.1']
    %11 = vsyncpa [#allocation3], 0
    // Predicated region
    $region2: #{attack_net_mnist_forward.1} parent=1 // pred_check
      _
    $region3: #{attack_net_mnist_forward.1} parent=1 // pred_check_branch
      %13 = sbr.rel (0) target = $region5
    $region4: #{attack_net_mnist_forward.1} parent=1 // pred_region
      _
    $region5: #{attack_net_mnist_forward.1} parent=1 // pred_fallthru
      _
    // Predicated region
    $region6: #{attack_net_mnist_forward.1} parent=1 // pred_check
      _
    $region7: #{attack_net_mnist_forward.1} parent=1 // pred_check_branch
      %15 = sbr.rel (0) target = $region9
    $region8: #{attack_net_mnist_forward.1} parent=1 // pred_region
      _
    $region9: #{attack_net_mnist_forward.1} parent=1 // pred_fallthru
      _
    // Predicated region
    $region10: #{attack_net_mnist_forward.1} parent=1 // pred_check
      _
    $region11: #{attack_net_mnist_forward.1} parent=1 // pred_check_branch
      %17 = sbr.rel (0) target = $region13
    $region12: #{attack_net_mnist_forward.1} parent=1 // pred_region
      _
    $region13: #{attack_net_mnist_forward.1} parent=1 // pred_fallthru
      _
    // Predicated region
    $region14: #{attack_net_mnist_forward.1} parent=1 // pred_check
      _
    $region15: #{attack_net_mnist_forward.1} parent=1 // pred_check_branch
      %19 = sbr.rel (0) target = $region17
    $region16: #{attack_net_mnist_forward.1} parent=1 // pred_region
      _
    $region17: #{attack_net_mnist_forward.1} parent=1 // pred_fallthru
      _
    // Predicated region
    $region18: #{attack_net_mnist_forward.1} parent=1 // pred_check
      _
    $region19: #{attack_net_mnist_forward.1} parent=1 // pred_check_branch
      %21 = sbr.rel (0) target = $region21
    $region20: #{attack_net_mnist_forward.1} parent=1 // pred_region
      _
    $region21: #{attack_net_mnist_forward.1} parent=1 // pred_fallthru
      _
    // Predicated region
    $region22: #{attack_net_mnist_forward.1} parent=1 // pred_check
      _
    $region23: #{attack_net_mnist_forward.1} parent=1 // pred_check_branch
      %23 = sbr.rel (0) target = $region25
    $region24: #{attack_net_mnist_forward.1} parent=1 // pred_region
      _
    $region25: #{attack_net_mnist_forward.1} parent=1 // pred_fallthru
      _
    %v25 = vld [vmem:[%s1] sm:$0xff]
    %v26 = vld [vmem:[%s1 + $0x8] sm:$0xff]
    %v27 = vld [vmem:[%s1 + $0x10] sm:$0xff]
    %v28 = vld [vmem:[%s1 + $0x18] sm:$0xff]
    %v29 = vld [vmem:[%s0] sm:$0xff]
    %v30 = vld [vmem:[%s0 + $0x8] sm:$0xff]
    %v31 = vld [vmem:[%s0 + $0x10] sm:$0xff]
    %v32 = vld [vmem:[%s0 + $0x18] sm:$0xff]
    %vm33 = vcmask 261120
    %v35 = vsel %vm33, %v29, 0
    %v38 = vsel %vm33, %v30, 0
    %v41 = vsel %vm33, %v31, 0
    %v44 = vsel %vm33, %v32, 0
    %46 = vmatprep.subr.mxu0 0.0
    %47 = vmatpush1.msra.mxu0 0.0
    %48 = vmatprep.subr.mxu0 0.0
    %49 = vmatpush1.msra.mxu0 0.0
    %50 = vmatprep.subr.mxu0 0.0
    %51 = vmatpush1.msra.mxu0 0.0
    %52 = vmatprep.subr.mxu0 0.0
    %53 = vmatpush1.msra.mxu0 0.0
    %54 = vmatprep.subr.mxu0 0.0
    %55 = vmatpush1.msra.mxu0 0.0
    %56 = vmatprep.subr.mxu0 0.0
    %57 = vmatpush1.msra.mxu0 0.0
    %58 = vmatprep.subr.mxu0 0.0
    %59 = vmatpush1.msra.mxu0 0.0
    %60 = vmatprep.subr.mxu0 0.0
    %61 = vmatpush1.msra.mxu0 0.0
    %62 = vmatprep.subr.mxu0 0.0
    %63 = vmatpush1.msra.mxu0 0.0
    %64 = vmatprep.subr.mxu0 0.0
    %65 = vmatpush1.msra.mxu0 0.0
    %66 = vmatprep.subr.mxu0 0.0
    %67 = vmatpush1.msra.mxu0 0.0
    %68 = vmatprep.subr.mxu0 0.0
    %69 = vmatpush1.msra.mxu0 0.0
    %70 = vmatprep.subr.mxu0 0.0
    %71 = vmatpush1.msra.mxu0 %v28
    %72 = vmatprep.subr.mxu0 0.0
    %73 = vmatpush1.msra.mxu0 %v27
    %74 = vmatprep.subr.mxu0 0.0
    %75 = vmatpush1.msra.mxu0 %v26
    %76 = vmatprep.subr.mxu0 0.0
    %77 = vmatpush1.msra.mxu0 %v25
    %78 = vmatprep.subr.mxu0 0.0
    %79 = vmatpush2.msra.mxu0 0.0
    %80 = vmatprep.subr.mxu0 0.0
    %81 = vmatpush2.msra.mxu0 0.0
    %82 = vmatprep.subr.mxu0 0.0
    %83 = vmatpush2.msra.mxu0 0.0
    %84 = vmatprep.subr.mxu0 0.0
    %85 = vmatpush2.msra.mxu0 0.0
    %86 = vmatprep.subr.mxu0 0.0
    %87 = vmatpush2.msra.mxu0 0.0
    %88 = vmatprep.subr.mxu0 0.0
    %89 = vmatpush2.msra.mxu0 0.0
    %90 = vmatprep.subr.mxu0 0.0
    %91 = vmatpush2.msra.mxu0 0.0
    %92 = vmatprep.subr.mxu0 0.0
    %93 = vmatpush2.msra.mxu0 0.0
    %94 = vmatprep.subr.mxu0 0.0
    %95 = vmatpush2.msra.mxu0 0.0
    %96 = vmatprep.subr.mxu0 0.0
    %97 = vmatpush2.msra.mxu0 0.0
    %98 = vmatprep.subr.mxu0 0.0
    %99 = vmatpush2.msra.mxu0 0.0
    %100 = vmatprep.subr.mxu0 0.0
    %101 = vmatpush2.msra.mxu0 0.0
    %102 = vmatprep.subr.mxu0 0.0
    %103 = vmatpush2.msra.mxu0 0.0
    %104 = vmatprep.subr.mxu0 0.0
    %105 = vmatpush2.msra.mxu0 0.0
    %106 = vmatprep.subr.mxu0 0.0
    %107 = vmatpush2.msra.mxu0 0.0
    %108 = vmatprep.subr.mxu0 0.0
    %109 = vmatpush2.msra.mxu0 0.0
    %110 = vmatprep.mubr.f32.mxu0 0.0
    %111 = vmatmul.mubr.f32.gmra.mxu0 %v35
    %v112 = vpop.f32.mrf.mxu0
    %v113 = vadd.f32 0.0, %v112
    %v114 = vpop.f32.mrf.mxu0
    %115 = vmatprep.mubr.f32.mxu0 0.0
    %116 = vmatmul.mubr.f32.gmra.mxu0 %v38
    %v117 = vpop.f32.mrf.mxu0
    %v118 = vadd.f32 0.0, %v117
    %v119 = vpop.f32.mrf.mxu0
    %120 = vmatprep.mubr.f32.mxu0 0.0
    %121 = vmatmul.mubr.f32.gmra.mxu0 %v41
    %v122 = vpop.f32.mrf.mxu0
    %v123 = vadd.f32 0.0, %v122
    %v124 = vpop.f32.mrf.mxu0
    %125 = vmatprep.mubr.f32.mxu0 0.0
    %126 = vmatmul.mubr.f32.gmra.mxu0 %v44
    %v127 = vpop.f32.mrf.mxu0
    %v128 = vadd.f32 0.0, %v127
    %v129 = vpop.f32.mrf.mxu0
    %130 = vdwg.mxu0
    %v131 = vmax.f32 %v113, 0.0
    %v132 = vmax.f32 %v118, 0.0
    %v133 = vmax.f32 %v123, 0.0
    %v134 = vmax.f32 %v128, 0.0
    %v135 = vld [vmem:[%s2] sm:$0xff]
    %v136 = vld [vmem:[%s0 + $0x20] sm:$0xff]
    %v137 = vld [vmem:[%s0 + $0x28] sm:$0xff]
    %v138 = vld [vmem:[%s0 + $0x30] sm:$0xff]
    %v139 = vld [vmem:[%s0 + $0x38] sm:$0xff]
    %v141 = vsel %vm33, %v136, 0
    %v144 = vsel %vm33, %v137, 0
    %v147 = vsel %vm33, %v138, 0
    %v150 = vsel %vm33, %v139, 0
    %152 = vmatprep.subr.mxu0 0.0
    %153 = vmatpush1.msra.mxu0 0.0
    %154 = vmatprep.subr.mxu0 0.0
    %155 = vmatpush1.msra.mxu0 0.0
    %156 = vmatprep.subr.mxu0 0.0
    %157 = vmatpush1.msra.mxu0 0.0
    %158 = vmatprep.subr.mxu0 0.0
    %159 = vmatpush1.msra.mxu0 0.0
    %160 = vmatprep.subr.mxu0 0.0
    %161 = vmatpush1.msra.mxu0 0.0
    %162 = vmatprep.subr.mxu0 0.0
    %163 = vmatpush1.msra.mxu0 0.0
    %164 = vmatprep.subr.mxu0 0.0
    %165 = vmatpush1.msra.mxu0 0.0
    %166 = vmatprep.subr.mxu0 0.0
    %167 = vmatpush1.msra.mxu0 0.0
    %168 = vmatprep.subr.mxu0 0.0
    %169 = vmatpush1.msra.mxu0 0.0
    %170 = vmatprep.subr.mxu0 0.0
    %171 = vmatpush1.msra.mxu0 0.0
    %172 = vmatprep.subr.mxu0 0.0
    %173 = vmatpush1.msra.mxu0 0.0
    %174 = vmatprep.subr.mxu0 0.0
    %175 = vmatpush1.msra.mxu0 0.0
    %176 = vmatprep.subr.mxu0 0.0
    %177 = vmatpush1.msra.mxu0 %v28
    %178 = vmatprep.subr.mxu0 0.0
    %179 = vmatpush1.msra.mxu0 %v27
    %180 = vmatprep.subr.mxu0 0.0
    %181 = vmatpush1.msra.mxu0 %v26
    %182 = vmatprep.subr.mxu0 0.0
    %183 = vmatpush1.msra.mxu0 %v25
    %184 = vmatprep.subr.mxu0 0.0
    %185 = vmatpush2.msra.mxu0 0.0
    %186 = vmatprep.subr.mxu0 0.0
    %187 = vmatpush2.msra.mxu0 0.0
    %188 = vmatprep.subr.mxu0 0.0
    %189 = vmatpush2.msra.mxu0 0.0
    %190 = vmatprep.subr.mxu0 0.0
    %191 = vmatpush2.msra.mxu0 0.0
    %192 = vmatprep.subr.mxu0 0.0
    %193 = vmatpush2.msra.mxu0 0.0
    %194 = vmatprep.subr.mxu0 0.0
    %195 = vmatpush2.msra.mxu0 0.0
    %196 = vmatprep.subr.mxu0 0.0
    %197 = vmatpush2.msra.mxu0 0.0
    %198 = vmatprep.subr.mxu0 0.0
    %199 = vmatpush2.msra.mxu0 0.0
    %200 = vmatprep.subr.mxu0 0.0
    %201 = vmatpush2.msra.mxu0 0.0
    %202 = vmatprep.subr.mxu0 0.0
    %203 = vmatpush2.msra.mxu0 0.0
    %204 = vmatprep.subr.mxu0 0.0
    %205 = vmatpush2.msra.mxu0 0.0
    %206 = vmatprep.subr.mxu0 0.0
    %207 = vmatpush2.msra.mxu0 0.0
    %208 = vmatprep.subr.mxu0 0.0
    %209 = vmatpush2.msra.mxu0 0.0
    %210 = vmatprep.subr.mxu0 0.0
    %211 = vmatpush2.msra.mxu0 0.0
    %212 = vmatprep.subr.mxu0 0.0
    %213 = vmatpush2.msra.mxu0 0.0
    %214 = vmatprep.subr.mxu0 0.0
    %215 = vmatpush2.msra.mxu0 0.0
    %216 = vmatprep.mubr.f32.mxu0 0.0
    %217 = vmatmul.mubr.f32.gmra.mxu0 %v141
    %v218 = vpop.f32.mrf.mxu0
    %v219 = vadd.f32 0.0, %v218
    %v220 = vpop.f32.mrf.mxu0
    %221 = vmatprep.mubr.f32.mxu0 0.0
    %222 = vmatmul.mubr.f32.gmra.mxu0 %v144
    %v223 = vpop.f32.mrf.mxu0
    %v224 = vadd.f32 0.0, %v223
    %v225 = vpop.f32.mrf.mxu0
    %226 = vmatprep.mubr.f32.mxu0 0.0
    %227 = vmatmul.mubr.f32.gmra.mxu0 %v147
    %v228 = vpop.f32.mrf.mxu0
    %v229 = vadd.f32 0.0, %v228
    %v230 = vpop.f32.mrf.mxu0
    %231 = vmatprep.mubr.f32.mxu0 0.0
    %232 = vmatmul.mubr.f32.gmra.mxu0 %v150
    %v233 = vpop.f32.mrf.mxu0
    %v234 = vadd.f32 0.0, %v233
    %v235 = vpop.f32.mrf.mxu0
    %236 = vdwg.mxu0
    %v237 = vmax.f32 %v219, 0.0
    %v238 = vmax.f32 %v224, 0.0
    %v239 = vmax.f32 %v229, 0.0
    %v240 = vmax.f32 %v234, 0.0
    %s241 = scalar_lea.vmem %s2, 8
    %v242 = vld [vmem:[%s241] sm:$0xff]
    %vm243 = vcmask 64512
    %v245 = vsel %vm243, %v237, 0
    %v248 = vsel %vm243, %v238, 0
    %v251 = vsel %vm243, %v239, 0
    %v254 = vsel %vm243, %v240, 0
    %256 = vmatprep.subr.mxu0 0.0
    %257 = vmatpush1.msra.mxu0 0.0
    %258 = vmatprep.subr.mxu0 0.0
    %259 = vmatpush1.msra.mxu0 0.0
    %260 = vmatprep.subr.mxu0 0.0
    %261 = vmatpush1.msra.mxu0 0.0
    %262 = vmatprep.subr.mxu0 0.0
    %263 = vmatpush1.msra.mxu0 0.0
    %264 = vmatprep.subr.mxu0 0.0
    %265 = vmatpush1.msra.mxu0 0.0
    %266 = vmatprep.subr.mxu0 0.0
    %267 = vmatpush1.msra.mxu0 0.0
    %268 = vmatprep.subr.mxu0 0.0
    %269 = vmatpush1.msra.mxu0 0.0
    %270 = vmatprep.subr.mxu0 0.0
    %271 = vmatpush1.msra.mxu0 0.0
    %272 = vmatprep.subr.mxu0 0.0
    %273 = vmatpush1.msra.mxu0 0.0
    %274 = vmatprep.subr.mxu0 0.0
    %275 = vmatpush1.msra.mxu0 0.0
    %276 = vmatprep.subr.mxu0 0.0
    %277 = vmatpush1.msra.mxu0 0.0
    %278 = vmatprep.subr.mxu0 0.0
    %279 = vmatpush1.msra.mxu0 0.0
    %280 = vmatprep.subr.mxu0 0.0
    %281 = vmatpush1.msra.mxu0 0.0
    %282 = vmatprep.subr.mxu0 0.0
    %283 = vmatpush1.msra.mxu0 0.0
    %284 = vmatprep.subr.mxu0 0.0
    %285 = vmatpush1.msra.mxu0 0.0
    %286 = vmatprep.subr.mxu0 0.0
    %287 = vmatpush1.msra.mxu0 %v242
    %288 = vmatprep.subr.mxu0 0.0
    %289 = vmatpush2.msra.mxu0 0.0
    %290 = vmatprep.subr.mxu0 0.0
    %291 = vmatpush2.msra.mxu0 0.0
    %292 = vmatprep.subr.mxu0 0.0
    %293 = vmatpush2.msra.mxu0 0.0
    %294 = vmatprep.subr.mxu0 0.0
    %295 = vmatpush2.msra.mxu0 0.0
    %296 = vmatprep.subr.mxu0 0.0
    %297 = vmatpush2.msra.mxu0 0.0
    %298 = vmatprep.subr.mxu0 0.0
    %299 = vmatpush2.msra.mxu0 0.0
    %300 = vmatprep.subr.mxu0 0.0
    %301 = vmatpush2.msra.mxu0 0.0
    %302 = vmatprep.subr.mxu0 0.0
    %303 = vmatpush2.msra.mxu0 0.0
    %304 = vmatprep.subr.mxu0 0.0
    %305 = vmatpush2.msra.mxu0 0.0
    %306 = vmatprep.subr.mxu0 0.0
    %307 = vmatpush2.msra.mxu0 0.0
    %308 = vmatprep.subr.mxu0 0.0
    %309 = vmatpush2.msra.mxu0 0.0
    %310 = vmatprep.subr.mxu0 0.0
    %311 = vmatpush2.msra.mxu0 0.0
    %312 = vmatprep.subr.mxu0 0.0
    %313 = vmatpush2.msra.mxu0 0.0
    %314 = vmatprep.subr.mxu0 0.0
    %315 = vmatpush2.msra.mxu0 0.0
    %316 = vmatprep.subr.mxu0 0.0
    %317 = vmatpush2.msra.mxu0 0.0
    %318 = vmatprep.subr.mxu0 0.0
    %319 = vmatpush2.msra.mxu0 0.0
    %320 = vmatprep.mubr.f32.mxu0 0.0
    %321 = vmatmul.mubr.f32.gmra.mxu0 %v245
    %v322 = vpop.f32.mrf.mxu0
    %v323 = vadd.f32 0.0, %v322
    %v324 = vpop.f32.mrf.mxu0
    %325 = vmatprep.mubr.f32.mxu0 0.0
    %326 = vmatmul.mubr.f32.gmra.mxu0 %v248
    %v327 = vpop.f32.mrf.mxu0
    %v328 = vadd.f32 0.0, %v327
    %v329 = vpop.f32.mrf.mxu0
    %330 = vmatprep.mubr.f32.mxu0 0.0
    %331 = vmatmul.mubr.f32.gmra.mxu0 %v251
    %v332 = vpop.f32.mrf.mxu0
    %v333 = vadd.f32 0.0, %v332
    %v334 = vpop.f32.mrf.mxu0
    %335 = vmatprep.mubr.f32.mxu0 0.0
    %336 = vmatmul.mubr.f32.gmra.mxu0 %v254
    %v337 = vpop.f32.mrf.mxu0
    %v338 = vadd.f32 0.0, %v337
    %v339 = vpop.f32.mrf.mxu0
    %340 = vdwg.mxu0
    %v342 = vsel %vm243, %v131, 0
    %v345 = vsel %vm243, %v132, 0
    %v348 = vsel %vm243, %v133, 0
    %v351 = vsel %vm243, %v134, 0
    %353 = vmatprep.subr.mxu0 0.0
    %354 = vmatpush1.msra.mxu0 0.0
    %355 = vmatprep.subr.mxu0 0.0
    %356 = vmatpush1.msra.mxu0 0.0
    %357 = vmatprep.subr.mxu0 0.0
    %358 = vmatpush1.msra.mxu0 0.0
    %359 = vmatprep.subr.mxu0 0.0
    %360 = vmatpush1.msra.mxu0 0.0
    %361 = vmatprep.subr.mxu0 0.0
    %362 = vmatpush1.msra.mxu0 0.0
    %363 = vmatprep.subr.mxu0 0.0
    %364 = vmatpush1.msra.mxu0 0.0
    %365 = vmatprep.subr.mxu0 0.0
    %366 = vmatpush1.msra.mxu0 0.0
    %367 = vmatprep.subr.mxu0 0.0
    %368 = vmatpush1.msra.mxu0 0.0
    %369 = vmatprep.subr.mxu0 0.0
    %370 = vmatpush1.msra.mxu0 0.0
    %371 = vmatprep.subr.mxu0 0.0
    %372 = vmatpush1.msra.mxu0 0.0
    %373 = vmatprep.subr.mxu0 0.0
    %374 = vmatpush1.msra.mxu0 0.0
    %375 = vmatprep.subr.mxu0 0.0
    %376 = vmatpush1.msra.mxu0 0.0
    %377 = vmatprep.subr.mxu0 0.0
    %378 = vmatpush1.msra.mxu0 0.0
    %379 = vmatprep.subr.mxu0 0.0
    %380 = vmatpush1.msra.mxu0 0.0
    %381 = vmatprep.subr.mxu0 0.0
    %382 = vmatpush1.msra.mxu0 0.0
    %383 = vmatprep.subr.mxu0 0.0
    %384 = vmatpush1.msra.mxu0 %v135
    %385 = vmatprep.subr.mxu0 0.0
    %386 = vmatpush2.msra.mxu0 0.0
    %387 = vmatprep.subr.mxu0 0.0
    %388 = vmatpush2.msra.mxu0 0.0
    %389 = vmatprep.subr.mxu0 0.0
    %390 = vmatpush2.msra.mxu0 0.0
    %391 = vmatprep.subr.mxu0 0.0
    %392 = vmatpush2.msra.mxu0 0.0
    %393 = vmatprep.subr.mxu0 0.0
    %394 = vmatpush2.msra.mxu0 0.0
    %395 = vmatprep.subr.mxu0 0.0
    %396 = vmatpush2.msra.mxu0 0.0
    %397 = vmatprep.subr.mxu0 0.0
    %398 = vmatpush2.msra.mxu0 0.0
    %399 = vmatprep.subr.mxu0 0.0
    %400 = vmatpush2.msra.mxu0 0.0
    %401 = vmatprep.subr.mxu0 0.0
    %402 = vmatpush2.msra.mxu0 0.0
    %403 = vmatprep.subr.mxu0 0.0
    %404 = vmatpush2.msra.mxu0 0.0
    %405 = vmatprep.subr.mxu0 0.0
    %406 = vmatpush2.msra.mxu0 0.0
    %407 = vmatprep.subr.mxu0 0.0
    %408 = vmatpush2.msra.mxu0 0.0
    %409 = vmatprep.subr.mxu0 0.0
    %410 = vmatpush2.msra.mxu0 0.0
    %411 = vmatprep.subr.mxu0 0.0
    %412 = vmatpush2.msra.mxu0 0.0
    %413 = vmatprep.subr.mxu0 0.0
    %414 = vmatpush2.msra.mxu0 0.0
    %415 = vmatprep.subr.mxu0 0.0
    %416 = vmatpush2.msra.mxu0 0.0
    %417 = vmatprep.mubr.f32.mxu0 0.0
    %418 = vmatmul.mubr.f32.gmra.mxu0 %v342
    %v419 = vpop.f32.mrf.mxu0
    %v420 = vadd.f32 %v323, %v419
    %v421 = vpop.f32.mrf.mxu0
    %422 = vmatprep.mubr.f32.mxu0 0.0
    %423 = vmatmul.mubr.f32.gmra.mxu0 %v345
    %v424 = vpop.f32.mrf.mxu0
    %v425 = vadd.f32 %v328, %v424
    %v426 = vpop.f32.mrf.mxu0
    %427 = vmatprep.mubr.f32.mxu0 0.0
    %428 = vmatmul.mubr.f32.gmra.mxu0 %v348
    %v429 = vpop.f32.mrf.mxu0
    %v430 = vadd.f32 %v333, %v429
    %v431 = vpop.f32.mrf.mxu0
    %432 = vmatprep.mubr.f32.mxu0 0.0
    %433 = vmatmul.mubr.f32.gmra.mxu0 %v351
    %v434 = vpop.f32.mrf.mxu0
    %v435 = vadd.f32 %v338, %v434
    %v436 = vpop.f32.mrf.mxu0
    %437 = vdwg.mxu0
    %v438 = vld [vmem:[%s0 + $0x40] sm:$0xff]
    %v439 = vld [vmem:[%s0 + $0x48] sm:$0xff]
    %v440 = vld [vmem:[%s0 + $0x50] sm:$0xff]
    %v441 = vld [vmem:[%s0 + $0x58] sm:$0xff]
    %v443 = vsel %vm33, %v438, 0
    %v446 = vsel %vm33, %v439, 0
    %v449 = vsel %vm33, %v440, 0
    %v452 = vsel %vm33, %v441, 0
    %454 = vmatprep.subr.mxu0 0.0
    %455 = vmatpush1.msra.mxu0 0.0
    %456 = vmatprep.subr.mxu0 0.0
    %457 = vmatpush1.msra.mxu0 0.0
    %458 = vmatprep.subr.mxu0 0.0
    %459 = vmatpush1.msra.mxu0 0.0
    %460 = vmatprep.subr.mxu0 0.0
    %461 = vmatpush1.msra.mxu0 0.0
    %462 = vmatprep.subr.mxu0 0.0
    %463 = vmatpush1.msra.mxu0 0.0
    %464 = vmatprep.subr.mxu0 0.0
    %465 = vmatpush1.msra.mxu0 0.0
    %466 = vmatprep.subr.mxu0 0.0
    %467 = vmatpush1.msra.mxu0 0.0
    %468 = vmatprep.subr.mxu0 0.0
    %469 = vmatpush1.msra.mxu0 0.0
    %470 = vmatprep.subr.mxu0 0.0
    %471 = vmatpush1.msra.mxu0 0.0
    %472 = vmatprep.subr.mxu0 0.0
    %473 = vmatpush1.msra.mxu0 0.0
    %474 = vmatprep.subr.mxu0 0.0
    %475 = vmatpush1.msra.mxu0 0.0
    %476 = vmatprep.subr.mxu0 0.0
    %477 = vmatpush1.msra.mxu0 0.0
    %478 = vmatprep.subr.mxu0 0.0
    %479 = vmatpush1.msra.mxu0 %v28
    %480 = vmatprep.subr.mxu0 0.0
    %481 = vmatpush1.msra.mxu0 %v27
    %482 = vmatprep.subr.mxu0 0.0
    %483 = vmatpush1.msra.mxu0 %v26
    %484 = vmatprep.subr.mxu0 0.0
    %485 = vmatpush1.msra.mxu0 %v25
    %486 = vmatprep.subr.mxu0 0.0
    %487 = vmatpush2.msra.mxu0 0.0
    %488 = vmatprep.subr.mxu0 0.0
    %489 = vmatpush2.msra.mxu0 0.0
    %490 = vmatprep.subr.mxu0 0.0
    %491 = vmatpush2.msra.mxu0 0.0
    %492 = vmatprep.subr.mxu0 0.0
    %493 = vmatpush2.msra.mxu0 0.0
    %494 = vmatprep.subr.mxu0 0.0
    %495 = vmatpush2.msra.mxu0 0.0
    %496 = vmatprep.subr.mxu0 0.0
    %497 = vmatpush2.msra.mxu0 0.0
    %498 = vmatprep.subr.mxu0 0.0
    %499 = vmatpush2.msra.mxu0 0.0
    %500 = vmatprep.subr.mxu0 0.0
    %501 = vmatpush2.msra.mxu0 0.0
    %502 = vmatprep.subr.mxu0 0.0
    %503 = vmatpush2.msra.mxu0 0.0
    %504 = vmatprep.subr.mxu0 0.0
    %505 = vmatpush2.msra.mxu0 0.0
    %506 = vmatprep.subr.mxu0 0.0
    %507 = vmatpush2.msra.mxu0 0.0
    %508 = vmatprep.subr.mxu0 0.0
    %509 = vmatpush2.msra.mxu0 0.0
    %510 = vmatprep.subr.mxu0 0.0
    %511 = vmatpush2.msra.mxu0 0.0
    %512 = vmatprep.subr.mxu0 0.0
    %513 = vmatpush2.msra.mxu0 0.0
    %514 = vmatprep.subr.mxu0 0.0
    %515 = vmatpush2.msra.mxu0 0.0
    %516 = vmatprep.subr.mxu0 0.0
    %517 = vmatpush2.msra.mxu0 0.0
    %518 = vmatprep.mubr.f32.mxu0 0.0
    %519 = vmatmul.mubr.f32.gmra.mxu0 %v443
    %v520 = vpop.f32.mrf.mxu0
    %v521 = vadd.f32 0.0, %v520
    %v522 = vpop.f32.mrf.mxu0
    %523 = vmatprep.mubr.f32.mxu0 0.0
    %524 = vmatmul.mubr.f32.gmra.mxu0 %v446
    %v525 = vpop.f32.mrf.mxu0
    %v526 = vadd.f32 0.0, %v525
    %v527 = vpop.f32.mrf.mxu0
    %528 = vmatprep.mubr.f32.mxu0 0.0
    %529 = vmatmul.mubr.f32.gmra.mxu0 %v449
    %v530 = vpop.f32.mrf.mxu0
    %v531 = vadd.f32 0.0, %v530
    %v532 = vpop.f32.mrf.mxu0
    %533 = vmatprep.mubr.f32.mxu0 0.0
    %534 = vmatmul.mubr.f32.gmra.mxu0 %v452
    %v535 = vpop.f32.mrf.mxu0
    %v536 = vadd.f32 0.0, %v535
    %v537 = vpop.f32.mrf.mxu0
    %538 = vdwg.mxu0
    %v539 = vmax.f32 %v521, 0.0
    %v540 = vmax.f32 %v526, 0.0
    %v541 = vmax.f32 %v531, 0.0
    %v542 = vmax.f32 %v536, 0.0
    %s543 = scalar_lea.vmem %s2, 16
    %v544 = vld [vmem:[%s543] sm:$0xff]
    %v546 = vsel %vm243, %v539, 0
    %v549 = vsel %vm243, %v540, 0
    %v552 = vsel %vm243, %v541, 0
    %v555 = vsel %vm243, %v542, 0
    %557 = vmatprep.subr.mxu0 0.0
    %558 = vmatpush1.msra.mxu0 0.0
    %559 = vmatprep.subr.mxu0 0.0
    %560 = vmatpush1.msra.mxu0 0.0
    %561 = vmatprep.subr.mxu0 0.0
    %562 = vmatpush1.msra.mxu0 0.0
    %563 = vmatprep.subr.mxu0 0.0
    %564 = vmatpush1.msra.mxu0 0.0
    %565 = vmatprep.subr.mxu0 0.0
    %566 = vmatpush1.msra.mxu0 0.0
    %567 = vmatprep.subr.mxu0 0.0
    %568 = vmatpush1.msra.mxu0 0.0
    %569 = vmatprep.subr.mxu0 0.0
    %570 = vmatpush1.msra.mxu0 0.0
    %571 = vmatprep.subr.mxu0 0.0
    %572 = vmatpush1.msra.mxu0 0.0
    %573 = vmatprep.subr.mxu0 0.0
    %574 = vmatpush1.msra.mxu0 0.0
    %575 = vmatprep.subr.mxu0 0.0
    %576 = vmatpush1.msra.mxu0 0.0
    %577 = vmatprep.subr.mxu0 0.0
    %578 = vmatpush1.msra.mxu0 0.0
    %579 = vmatprep.subr.mxu0 0.0
    %580 = vmatpush1.msra.mxu0 0.0
    %581 = vmatprep.subr.mxu0 0.0
    %582 = vmatpush1.msra.mxu0 0.0
    %583 = vmatprep.subr.mxu0 0.0
    %584 = vmatpush1.msra.mxu0 0.0
    %585 = vmatprep.subr.mxu0 0.0
    %586 = vmatpush1.msra.mxu0 0.0
    %587 = vmatprep.subr.mxu0 0.0
    %588 = vmatpush1.msra.mxu0 %v544
    %589 = vmatprep.subr.mxu0 0.0
    %590 = vmatpush2.msra.mxu0 0.0
    %591 = vmatprep.subr.mxu0 0.0
    %592 = vmatpush2.msra.mxu0 0.0
    %593 = vmatprep.subr.mxu0 0.0
    %594 = vmatpush2.msra.mxu0 0.0
    %595 = vmatprep.subr.mxu0 0.0
    %596 = vmatpush2.msra.mxu0 0.0
    %597 = vmatprep.subr.mxu0 0.0
    %598 = vmatpush2.msra.mxu0 0.0
    %599 = vmatprep.subr.mxu0 0.0
    %600 = vmatpush2.msra.mxu0 0.0
    %601 = vmatprep.subr.mxu0 0.0
    %602 = vmatpush2.msra.mxu0 0.0
    %603 = vmatprep.subr.mxu0 0.0
    %604 = vmatpush2.msra.mxu0 0.0
    %605 = vmatprep.subr.mxu0 0.0
    %606 = vmatpush2.msra.mxu0 0.0
    %607 = vmatprep.subr.mxu0 0.0
    %608 = vmatpush2.msra.mxu0 0.0
    %609 = vmatprep.subr.mxu0 0.0
    %610 = vmatpush2.msra.mxu0 0.0
    %611 = vmatprep.subr.mxu0 0.0
    %612 = vmatpush2.msra.mxu0 0.0
    %613 = vmatprep.subr.mxu0 0.0
    %614 = vmatpush2.msra.mxu0 0.0
    %615 = vmatprep.subr.mxu0 0.0
    %616 = vmatpush2.msra.mxu0 0.0
    %617 = vmatprep.subr.mxu0 0.0
    %618 = vmatpush2.msra.mxu0 0.0
    %619 = vmatprep.subr.mxu0 0.0
    %620 = vmatpush2.msra.mxu0 0.0
    %621 = vmatprep.mubr.f32.mxu0 0.0
    %622 = vmatmul.mubr.f32.gmra.mxu0 %v546
    %v623 = vpop.f32.mrf.mxu0
    %v624 = vadd.f32 0.0, %v623
    %v625 = vpop.f32.mrf.mxu0
    %626 = vmatprep.mubr.f32.mxu0 0.0
    %627 = vmatmul.mubr.f32.gmra.mxu0 %v549
    %v628 = vpop.f32.mrf.mxu0
    %v629 = vadd.f32 0.0, %v628
    %v630 = vpop.f32.mrf.mxu0
    %631 = vmatprep.mubr.f32.mxu0 0.0
    %632 = vmatmul.mubr.f32.gmra.mxu0 %v552
    %v633 = vpop.f32.mrf.mxu0
    %v634 = vadd.f32 0.0, %v633
    %v635 = vpop.f32.mrf.mxu0
    %636 = vmatprep.mubr.f32.mxu0 0.0
    %637 = vmatmul.mubr.f32.gmra.mxu0 %v555
    %v638 = vpop.f32.mrf.mxu0
    %v639 = vadd.f32 0.0, %v638
    %v640 = vpop.f32.mrf.mxu0
    %641 = vdwg.mxu0
    %v642 = vadd.f32 %v420, %v624
    %v643 = vadd.f32 %v425, %v629
    %v644 = vadd.f32 %v430, %v634
    %v645 = vadd.f32 %v435, %v639
    %v646 = vld [vmem:[%s0 + $0x60] sm:$0xff]
    %v647 = vld [vmem:[%s0 + $0x68] sm:$0xff]
    %v648 = vld [vmem:[%s0 + $0x70] sm:$0xff]
    %v649 = vld [vmem:[%s0 + $0x78] sm:$0xff]
    %v651 = vsel %vm33, %v646, 0
    %v654 = vsel %vm33, %v647, 0
    %v657 = vsel %vm33, %v648, 0
    %v660 = vsel %vm33, %v649, 0
    %662 = vmatprep.subr.mxu0 0.0
    %663 = vmatpush1.msra.mxu0 0.0
    %664 = vmatprep.subr.mxu0 0.0
    %665 = vmatpush1.msra.mxu0 0.0
    %666 = vmatprep.subr.mxu0 0.0
    %667 = vmatpush1.msra.mxu0 0.0
    %668 = vmatprep.subr.mxu0 0.0
    %669 = vmatpush1.msra.mxu0 0.0
    %670 = vmatprep.subr.mxu0 0.0
    %671 = vmatpush1.msra.mxu0 0.0
    %672 = vmatprep.subr.mxu0 0.0
    %673 = vmatpush1.msra.mxu0 0.0
    %674 = vmatprep.subr.mxu0 0.0
    %675 = vmatpush1.msra.mxu0 0.0
    %676 = vmatprep.subr.mxu0 0.0
    %677 = vmatpush1.msra.mxu0 0.0
    %678 = vmatprep.subr.mxu0 0.0
    %679 = vmatpush1.msra.mxu0 0.0
    %680 = vmatprep.subr.mxu0 0.0
    %681 = vmatpush1.msra.mxu0 0.0
    %682 = vmatprep.subr.mxu0 0.0
    %683 = vmatpush1.msra.mxu0 0.0
    %684 = vmatprep.subr.mxu0 0.0
    %685 = vmatpush1.msra.mxu0 0.0
    %686 = vmatprep.subr.mxu0 0.0
    %687 = vmatpush1.msra.mxu0 %v28
    %688 = vmatprep.subr.mxu0 0.0
    %689 = vmatpush1.msra.mxu0 %v27
    %690 = vmatprep.subr.mxu0 0.0
    %691 = vmatpush1.msra.mxu0 %v26
    %692 = vmatprep.subr.mxu0 0.0
    %693 = vmatpush1.msra.mxu0 %v25
    %694 = vmatprep.subr.mxu0 0.0
    %695 = vmatpush2.msra.mxu0 0.0
    %696 = vmatprep.subr.mxu0 0.0
    %697 = vmatpush2.msra.mxu0 0.0
    %698 = vmatprep.subr.mxu0 0.0
    %699 = vmatpush2.msra.mxu0 0.0
    %700 = vmatprep.subr.mxu0 0.0
    %701 = vmatpush2.msra.mxu0 0.0
    %702 = vmatprep.subr.mxu0 0.0
    %703 = vmatpush2.msra.mxu0 0.0
    %704 = vmatprep.subr.mxu0 0.0
    %705 = vmatpush2.msra.mxu0 0.0
    %706 = vmatprep.subr.mxu0 0.0
    %707 = vmatpush2.msra.mxu0 0.0
    %708 = vmatprep.subr.mxu0 0.0
    %709 = vmatpush2.msra.mxu0 0.0
    %710 = vmatprep.subr.mxu0 0.0
    %711 = vmatpush2.msra.mxu0 0.0
    %712 = vmatprep.subr.mxu0 0.0
    %713 = vmatpush2.msra.mxu0 0.0
    %714 = vmatprep.subr.mxu0 0.0
    %715 = vmatpush2.msra.mxu0 0.0
    %716 = vmatprep.subr.mxu0 0.0
    %717 = vmatpush2.msra.mxu0 0.0
    %718 = vmatprep.subr.mxu0 0.0
    %719 = vmatpush2.msra.mxu0 0.0
    %720 = vmatprep.subr.mxu0 0.0
    %721 = vmatpush2.msra.mxu0 0.0
    %722 = vmatprep.subr.mxu0 0.0
    %723 = vmatpush2.msra.mxu0 0.0
    %724 = vmatprep.subr.mxu0 0.0
    %725 = vmatpush2.msra.mxu0 0.0
    %726 = vmatprep.mubr.f32.mxu0 0.0
    %727 = vmatmul.mubr.f32.gmra.mxu0 %v651
    %v728 = vpop.f32.mrf.mxu0
    %v729 = vadd.f32 0.0, %v728
    %v730 = vpop.f32.mrf.mxu0
    %731 = vmatprep.mubr.f32.mxu0 0.0
    %732 = vmatmul.mubr.f32.gmra.mxu0 %v654
    %v733 = vpop.f32.mrf.mxu0
    %v734 = vadd.f32 0.0, %v733
    %v735 = vpop.f32.mrf.mxu0
    %736 = vmatprep.mubr.f32.mxu0 0.0
    %737 = vmatmul.mubr.f32.gmra.mxu0 %v657
    %v738 = vpop.f32.mrf.mxu0
    %v739 = vadd.f32 0.0, %v738
    %v740 = vpop.f32.mrf.mxu0
    %741 = vmatprep.mubr.f32.mxu0 0.0
    %742 = vmatmul.mubr.f32.gmra.mxu0 %v660
    %v743 = vpop.f32.mrf.mxu0
    %v744 = vadd.f32 0.0, %v743
    %v745 = vpop.f32.mrf.mxu0
    %746 = vdwg.mxu0
    %v747 = vmax.f32 %v729, 0.0
    %v748 = vmax.f32 %v734, 0.0
    %v749 = vmax.f32 %v739, 0.0
    %v750 = vmax.f32 %v744, 0.0
    %s751 = scalar_lea.vmem %s2, 24
    %v752 = vld [vmem:[%s751] sm:$0xff]
    %v754 = vsel %vm243, %v747, 0
    %v757 = vsel %vm243, %v748, 0
    %v760 = vsel %vm243, %v749, 0
    %v763 = vsel %vm243, %v750, 0
    %765 = vmatprep.subr.mxu0 0.0
    %766 = vmatpush1.msra.mxu0 0.0
    %767 = vmatprep.subr.mxu0 0.0
    %768 = vmatpush1.msra.mxu0 0.0
    %769 = vmatprep.subr.mxu0 0.0
    %770 = vmatpush1.msra.mxu0 0.0
    %771 = vmatprep.subr.mxu0 0.0
    %772 = vmatpush1.msra.mxu0 0.0
    %773 = vmatprep.subr.mxu0 0.0
    %774 = vmatpush1.msra.mxu0 0.0
    %775 = vmatprep.subr.mxu0 0.0
    %776 = vmatpush1.msra.mxu0 0.0
    %777 = vmatprep.subr.mxu0 0.0
    %778 = vmatpush1.msra.mxu0 0.0
    %779 = vmatprep.subr.mxu0 0.0
    %780 = vmatpush1.msra.mxu0 0.0
    %781 = vmatprep.subr.mxu0 0.0
    %782 = vmatpush1.msra.mxu0 0.0
    %783 = vmatprep.subr.mxu0 0.0
    %784 = vmatpush1.msra.mxu0 0.0
    %785 = vmatprep.subr.mxu0 0.0
    %786 = vmatpush1.msra.mxu0 0.0
    %787 = vmatprep.subr.mxu0 0.0
    %788 = vmatpush1.msra.mxu0 0.0
    %789 = vmatprep.subr.mxu0 0.0
    %790 = vmatpush1.msra.mxu0 0.0
    %791 = vmatprep.subr.mxu0 0.0
    %792 = vmatpush1.msra.mxu0 0.0
    %793 = vmatprep.subr.mxu0 0.0
    %794 = vmatpush1.msra.mxu0 0.0
    %795 = vmatprep.subr.mxu0 0.0
    %796 = vmatpush1.msra.mxu0 %v752
    %797 = vmatprep.subr.mxu0 0.0
    %798 = vmatpush2.msra.mxu0 0.0
    %799 = vmatprep.subr.mxu0 0.0
    %800 = vmatpush2.msra.mxu0 0.0
    %801 = vmatprep.subr.mxu0 0.0
    %802 = vmatpush2.msra.mxu0 0.0
    %803 = vmatprep.subr.mxu0 0.0
    %804 = vmatpush2.msra.mxu0 0.0
    %805 = vmatprep.subr.mxu0 0.0
    %806 = vmatpush2.msra.mxu0 0.0
    %807 = vmatprep.subr.mxu0 0.0
    %808 = vmatpush2.msra.mxu0 0.0
    %809 = vmatprep.subr.mxu0 0.0
    %810 = vmatpush2.msra.mxu0 0.0
    %811 = vmatprep.subr.mxu0 0.0
    %812 = vmatpush2.msra.mxu0 0.0
    %813 = vmatprep.subr.mxu0 0.0
    %814 = vmatpush2.msra.mxu0 0.0
    %815 = vmatprep.subr.mxu0 0.0
    %816 = vmatpush2.msra.mxu0 0.0
    %817 = vmatprep.subr.mxu0 0.0
    %818 = vmatpush2.msra.mxu0 0.0
    %819 = vmatprep.subr.mxu0 0.0
    %820 = vmatpush2.msra.mxu0 0.0
    %821 = vmatprep.subr.mxu0 0.0
    %822 = vmatpush2.msra.mxu0 0.0
    %823 = vmatprep.subr.mxu0 0.0
    %824 = vmatpush2.msra.mxu0 0.0
    %825 = vmatprep.subr.mxu0 0.0
    %826 = vmatpush2.msra.mxu0 0.0
    %827 = vmatprep.subr.mxu0 0.0
    %828 = vmatpush2.msra.mxu0 0.0
    %829 = vmatprep.mubr.f32.mxu0 0.0
    %830 = vmatmul.mubr.f32.gmra.mxu0 %v754
    %v831 = vpop.f32.mrf.mxu0
    %v832 = vadd.f32 0.0, %v831
    %v833 = vpop.f32.mrf.mxu0
    %834 = vmatprep.mubr.f32.mxu0 0.0
    %835 = vmatmul.mubr.f32.gmra.mxu0 %v757
    %v836 = vpop.f32.mrf.mxu0
    %v837 = vadd.f32 0.0, %v836
    %v838 = vpop.f32.mrf.mxu0
    %839 = vmatprep.mubr.f32.mxu0 0.0
    %840 = vmatmul.mubr.f32.gmra.mxu0 %v760
    %v841 = vpop.f32.mrf.mxu0
    %v842 = vadd.f32 0.0, %v841
    %v843 = vpop.f32.mrf.mxu0
    %844 = vmatprep.mubr.f32.mxu0 0.0
    %845 = vmatmul.mubr.f32.gmra.mxu0 %v763
    %v846 = vpop.f32.mrf.mxu0
    %v847 = vadd.f32 0.0, %v846
    %v848 = vpop.f32.mrf.mxu0
    %849 = vdwg.mxu0
    %v850 = vadd.f32 %v642, %v832
    %v851 = vadd.f32 %v643, %v837
    %v852 = vadd.f32 %v644, %v842
    %v853 = vadd.f32 %v645, %v847
    %v854 = vld [vmem:[%s0 + $0x80] sm:$0xff]
    %v855 = vld [vmem:[%s0 + $0x88] sm:$0xff]
    %v856 = vld [vmem:[%s0 + $0x90] sm:$0xff]
    %v857 = vld [vmem:[%s0 + $0x98] sm:$0xff]
    %v859 = vsel %vm33, %v854, 0
    %v862 = vsel %vm33, %v855, 0
    %v865 = vsel %vm33, %v856, 0
    %v868 = vsel %vm33, %v857, 0
    %870 = vmatprep.subr.mxu0 0.0
    %871 = vmatpush1.msra.mxu0 0.0
    %872 = vmatprep.subr.mxu0 0.0
    %873 = vmatpush1.msra.mxu0 0.0
    %874 = vmatprep.subr.mxu0 0.0
    %875 = vmatpush1.msra.mxu0 0.0
    %876 = vmatprep.subr.mxu0 0.0
    %877 = vmatpush1.msra.mxu0 0.0
    %878 = vmatprep.subr.mxu0 0.0
    %879 = vmatpush1.msra.mxu0 0.0
    %880 = vmatprep.subr.mxu0 0.0
    %881 = vmatpush1.msra.mxu0 0.0
    %882 = vmatprep.subr.mxu0 0.0
    %883 = vmatpush1.msra.mxu0 0.0
    %884 = vmatprep.subr.mxu0 0.0
    %885 = vmatpush1.msra.mxu0 0.0
    %886 = vmatprep.subr.mxu0 0.0
    %887 = vmatpush1.msra.mxu0 0.0
    %888 = vmatprep.subr.mxu0 0.0
    %889 = vmatpush1.msra.mxu0 0.0
    %890 = vmatprep.subr.mxu0 0.0
    %891 = vmatpush1.msra.mxu0 0.0
    %892 = vmatprep.subr.mxu0 0.0
    %893 = vmatpush1.msra.mxu0 0.0
    %894 = vmatprep.subr.mxu0 0.0
    %895 = vmatpush1.msra.mxu0 %v28
    %896 = vmatprep.subr.mxu0 0.0
    %897 = vmatpush1.msra.mxu0 %v27
    %898 = vmatprep.subr.mxu0 0.0
    %899 = vmatpush1.msra.mxu0 %v26
    %900 = vmatprep.subr.mxu0 0.0
    %901 = vmatpush1.msra.mxu0 %v25
    %902 = vmatprep.subr.mxu0 0.0
    %903 = vmatpush2.msra.mxu0 0.0
    %904 = vmatprep.subr.mxu0 0.0
    %905 = vmatpush2.msra.mxu0 0.0
    %906 = vmatprep.subr.mxu0 0.0
    %907 = vmatpush2.msra.mxu0 0.0
    %908 = vmatprep.subr.mxu0 0.0
    %909 = vmatpush2.msra.mxu0 0.0
    %910 = vmatprep.subr.mxu0 0.0
    %911 = vmatpush2.msra.mxu0 0.0
    %912 = vmatprep.subr.mxu0 0.0
    %913 = vmatpush2.msra.mxu0 0.0
    %914 = vmatprep.subr.mxu0 0.0
    %915 = vmatpush2.msra.mxu0 0.0
    %916 = vmatprep.subr.mxu0 0.0
    %917 = vmatpush2.msra.mxu0 0.0
    %918 = vmatprep.subr.mxu0 0.0
    %919 = vmatpush2.msra.mxu0 0.0
    %920 = vmatprep.subr.mxu0 0.0
    %921 = vmatpush2.msra.mxu0 0.0
    %922 = vmatprep.subr.mxu0 0.0
    %923 = vmatpush2.msra.mxu0 0.0
    %924 = vmatprep.subr.mxu0 0.0
    %925 = vmatpush2.msra.mxu0 0.0
    %926 = vmatprep.subr.mxu0 0.0
    %927 = vmatpush2.msra.mxu0 0.0
    %928 = vmatprep.subr.mxu0 0.0
    %929 = vmatpush2.msra.mxu0 0.0
    %930 = vmatprep.subr.mxu0 0.0
    %931 = vmatpush2.msra.mxu0 0.0
    %932 = vmatprep.subr.mxu0 0.0
    %933 = vmatpush2.msra.mxu0 0.0
    %934 = vmatprep.mubr.f32.mxu0 0.0
    %935 = vmatmul.mubr.f32.gmra.mxu0 %v859
    %v936 = vpop.f32.mrf.mxu0
    %v937 = vadd.f32 0.0, %v936
    %v938 = vpop.f32.mrf.mxu0
    %939 = vmatprep.mubr.f32.mxu0 0.0
    %940 = vmatmul.mubr.f32.gmra.mxu0 %v862
    %v941 = vpop.f32.mrf.mxu0
    %v942 = vadd.f32 0.0, %v941
    %v943 = vpop.f32.mrf.mxu0
    %944 = vmatprep.mubr.f32.mxu0 0.0
    %945 = vmatmul.mubr.f32.gmra.mxu0 %v865
    %v946 = vpop.f32.mrf.mxu0
    %v947 = vadd.f32 0.0, %v946
    %v948 = vpop.f32.mrf.mxu0
    %949 = vmatprep.mubr.f32.mxu0 0.0
    %950 = vmatmul.mubr.f32.gmra.mxu0 %v868
    %v951 = vpop.f32.mrf.mxu0
    %v952 = vadd.f32 0.0, %v951
    %v953 = vpop.f32.mrf.mxu0
    %954 = vdwg.mxu0
    %v955 = vmax.f32 %v937, 0.0
    %v956 = vmax.f32 %v942, 0.0
    %v957 = vmax.f32 %v947, 0.0
    %v958 = vmax.f32 %v952, 0.0
    %s959 = scalar_lea.vmem %s2, 32
    %v960 = vld [vmem:[%s959] sm:$0xff]
    %v962 = vsel %vm243, %v955, 0
    %v965 = vsel %vm243, %v956, 0
    %v968 = vsel %vm243, %v957, 0
    %v971 = vsel %vm243, %v958, 0
    %973 = vmatprep.subr.mxu0 0.0
    %974 = vmatpush1.msra.mxu0 0.0
    %975 = vmatprep.subr.mxu0 0.0
    %976 = vmatpush1.msra.mxu0 0.0
    %977 = vmatprep.subr.mxu0 0.0
    %978 = vmatpush1.msra.mxu0 0.0
    %979 = vmatprep.subr.mxu0 0.0
    %980 = vmatpush1.msra.mxu0 0.0
    %981 = vmatprep.subr.mxu0 0.0
    %982 = vmatpush1.msra.mxu0 0.0
    %983 = vmatprep.subr.mxu0 0.0
    %984 = vmatpush1.msra.mxu0 0.0
    %985 = vmatprep.subr.mxu0 0.0
    %986 = vmatpush1.msra.mxu0 0.0
    %987 = vmatprep.subr.mxu0 0.0
    %988 = vmatpush1.msra.mxu0 0.0
    %989 = vmatprep.subr.mxu0 0.0
    %990 = vmatpush1.msra.mxu0 0.0
    %991 = vmatprep.subr.mxu0 0.0
    %992 = vmatpush1.msra.mxu0 0.0
    %993 = vmatprep.subr.mxu0 0.0
    %994 = vmatpush1.msra.mxu0 0.0
    %995 = vmatprep.subr.mxu0 0.0
    %996 = vmatpush1.msra.mxu0 0.0
    %997 = vmatprep.subr.mxu0 0.0
    %998 = vmatpush1.msra.mxu0 0.0
    %999 = vmatprep.subr.mxu0 0.0
    %1000 = vmatpush1.msra.mxu0 0.0
    %1001 = vmatprep.subr.mxu0 0.0
    %1002 = vmatpush1.msra.mxu0 0.0
    %1003 = vmatprep.subr.mxu0 0.0
    %1004 = vmatpush1.msra.mxu0 %v960
    %1005 = vmatprep.subr.mxu0 0.0
    %1006 = vmatpush2.msra.mxu0 0.0
    %1007 = vmatprep.subr.mxu0 0.0
    %1008 = vmatpush2.msra.mxu0 0.0
    %1009 = vmatprep.subr.mxu0 0.0
    %1010 = vmatpush2.msra.mxu0 0.0
    %1011 = vmatprep.subr.mxu0 0.0
    %1012 = vmatpush2.msra.mxu0 0.0
    %1013 = vmatprep.subr.mxu0 0.0
    %1014 = vmatpush2.msra.mxu0 0.0
    %1015 = vmatprep.subr.mxu0 0.0
    %1016 = vmatpush2.msra.mxu0 0.0
    %1017 = vmatprep.subr.mxu0 0.0
    %1018 = vmatpush2.msra.mxu0 0.0
    %1019 = vmatprep.subr.mxu0 0.0
    %1020 = vmatpush2.msra.mxu0 0.0
    %1021 = vmatprep.subr.mxu0 0.0
    %1022 = vmatpush2.msra.mxu0 0.0
    %1023 = vmatprep.subr.mxu0 0.0
    %1024 = vmatpush2.msra.mxu0 0.0
    %1025 = vmatprep.subr.mxu0 0.0
    %1026 = vmatpush2.msra.mxu0 0.0
    %1027 = vmatprep.subr.mxu0 0.0
    %1028 = vmatpush2.msra.mxu0 0.0
    %1029 = vmatprep.subr.mxu0 0.0
    %1030 = vmatpush2.msra.mxu0 0.0
    %1031 = vmatprep.subr.mxu0 0.0
    %1032 = vmatpush2.msra.mxu0 0.0
    %1033 = vmatprep.subr.mxu0 0.0
    %1034 = vmatpush2.msra.mxu0 0.0
    %1035 = vmatprep.subr.mxu0 0.0
    %1036 = vmatpush2.msra.mxu0 0.0
    %1037 = vmatprep.mubr.f32.mxu0 0.0
    %1038 = vmatmul.mubr.f32.gmra.mxu0 %v962
    %v1039 = vpop.f32.mrf.mxu0
    %v1040 = vadd.f32 0.0, %v1039
    %v1041 = vpop.f32.mrf.mxu0
    %1042 = vmatprep.mubr.f32.mxu0 0.0
    %1043 = vmatmul.mubr.f32.gmra.mxu0 %v965
    %v1044 = vpop.f32.mrf.mxu0
    %v1045 = vadd.f32 0.0, %v1044
    %v1046 = vpop.f32.mrf.mxu0
    %1047 = vmatprep.mubr.f32.mxu0 0.0
    %1048 = vmatmul.mubr.f32.gmra.mxu0 %v968
    %v1049 = vpop.f32.mrf.mxu0
    %v1050 = vadd.f32 0.0, %v1049
    %v1051 = vpop.f32.mrf.mxu0
    %1052 = vmatprep.mubr.f32.mxu0 0.0
    %1053 = vmatmul.mubr.f32.gmra.mxu0 %v971
    %v1054 = vpop.f32.mrf.mxu0
    %v1055 = vadd.f32 0.0, %v1054
    %v1056 = vpop.f32.mrf.mxu0
    %1057 = vdwg.mxu0
    %v1058 = vadd.f32 %v850, %v1040
    %v1059 = vadd.f32 %v851, %v1045
    %v1060 = vadd.f32 %v852, %v1050
    %v1061 = vadd.f32 %v853, %v1055
    %v1062 = vld [vmem:[%s0 + $0xa0] sm:$0xff]
    %v1063 = vld [vmem:[%s0 + $0xa8] sm:$0xff]
    %v1064 = vld [vmem:[%s0 + $0xb0] sm:$0xff]
    %v1065 = vld [vmem:[%s0 + $0xb8] sm:$0xff]
    %v1067 = vsel %vm33, %v1062, 0
    %v1070 = vsel %vm33, %v1063, 0
    %v1073 = vsel %vm33, %v1064, 0
    %v1076 = vsel %vm33, %v1065, 0
    %1078 = vmatprep.subr.mxu0 0.0
    %1079 = vmatpush1.msra.mxu0 0.0
    %1080 = vmatprep.subr.mxu0 0.0
    %1081 = vmatpush1.msra.mxu0 0.0
    %1082 = vmatprep.subr.mxu0 0.0
    %1083 = vmatpush1.msra.mxu0 0.0
    %1084 = vmatprep.subr.mxu0 0.0
    %1085 = vmatpush1.msra.mxu0 0.0
    %1086 = vmatprep.subr.mxu0 0.0
    %1087 = vmatpush1.msra.mxu0 0.0
    %1088 = vmatprep.subr.mxu0 0.0
    %1089 = vmatpush1.msra.mxu0 0.0
    %1090 = vmatprep.subr.mxu0 0.0
    %1091 = vmatpush1.msra.mxu0 0.0
    %1092 = vmatprep.subr.mxu0 0.0
    %1093 = vmatpush1.msra.mxu0 0.0
    %1094 = vmatprep.subr.mxu0 0.0
    %1095 = vmatpush1.msra.mxu0 0.0
    %1096 = vmatprep.subr.mxu0 0.0
    %1097 = vmatpush1.msra.mxu0 0.0
    %1098 = vmatprep.subr.mxu0 0.0
    %1099 = vmatpush1.msra.mxu0 0.0
    %1100 = vmatprep.subr.mxu0 0.0
    %1101 = vmatpush1.msra.mxu0 0.0
    %1102 = vmatprep.subr.mxu0 0.0
    %1103 = vmatpush1.msra.mxu0 %v28
    %1104 = vmatprep.subr.mxu0 0.0
    %1105 = vmatpush1.msra.mxu0 %v27
    %1106 = vmatprep.subr.mxu0 0.0
    %1107 = vmatpush1.msra.mxu0 %v26
    %1108 = vmatprep.subr.mxu0 0.0
    %1109 = vmatpush1.msra.mxu0 %v25
    %1110 = vmatprep.subr.mxu0 0.0
    %1111 = vmatpush2.msra.mxu0 0.0
    %1112 = vmatprep.subr.mxu0 0.0
    %1113 = vmatpush2.msra.mxu0 0.0
    %1114 = vmatprep.subr.mxu0 0.0
    %1115 = vmatpush2.msra.mxu0 0.0
    %1116 = vmatprep.subr.mxu0 0.0
    %1117 = vmatpush2.msra.mxu0 0.0
    %1118 = vmatprep.subr.mxu0 0.0
    %1119 = vmatpush2.msra.mxu0 0.0
    %1120 = vmatprep.subr.mxu0 0.0
    %1121 = vmatpush2.msra.mxu0 0.0
    %1122 = vmatprep.subr.mxu0 0.0
    %1123 = vmatpush2.msra.mxu0 0.0
    %1124 = vmatprep.subr.mxu0 0.0
    %1125 = vmatpush2.msra.mxu0 0.0
    %1126 = vmatprep.subr.mxu0 0.0
    %1127 = vmatpush2.msra.mxu0 0.0
    %1128 = vmatprep.subr.mxu0 0.0
    %1129 = vmatpush2.msra.mxu0 0.0
    %1130 = vmatprep.subr.mxu0 0.0
    %1131 = vmatpush2.msra.mxu0 0.0
    %1132 = vmatprep.subr.mxu0 0.0
    %1133 = vmatpush2.msra.mxu0 0.0
    %1134 = vmatprep.subr.mxu0 0.0
    %1135 = vmatpush2.msra.mxu0 0.0
    %1136 = vmatprep.subr.mxu0 0.0
    %1137 = vmatpush2.msra.mxu0 0.0
    %1138 = vmatprep.subr.mxu0 0.0
    %1139 = vmatpush2.msra.mxu0 0.0
    %1140 = vmatprep.subr.mxu0 0.0
    %1141 = vmatpush2.msra.mxu0 0.0
    %1142 = vmatprep.mubr.f32.mxu0 0.0
    %1143 = vmatmul.mubr.f32.gmra.mxu0 %v1067
    %v1144 = vpop.f32.mrf.mxu0
    %v1145 = vadd.f32 0.0, %v1144
    %v1146 = vpop.f32.mrf.mxu0
    %1147 = vmatprep.mubr.f32.mxu0 0.0
    %1148 = vmatmul.mubr.f32.gmra.mxu0 %v1070
    %v1149 = vpop.f32.mrf.mxu0
    %v1150 = vadd.f32 0.0, %v1149
    %v1151 = vpop.f32.mrf.mxu0
    %1152 = vmatprep.mubr.f32.mxu0 0.0
    %1153 = vmatmul.mubr.f32.gmra.mxu0 %v1073
    %v1154 = vpop.f32.mrf.mxu0
    %v1155 = vadd.f32 0.0, %v1154
    %v1156 = vpop.f32.mrf.mxu0
    %1157 = vmatprep.mubr.f32.mxu0 0.0
    %1158 = vmatmul.mubr.f32.gmra.mxu0 %v1076
    %v1159 = vpop.f32.mrf.mxu0
    %v1160 = vadd.f32 0.0, %v1159
    %v1161 = vpop.f32.mrf.mxu0
    %1162 = vdwg.mxu0
    %v1163 = vmax.f32 %v1145, 0.0
    %v1164 = vmax.f32 %v1150, 0.0
    %v1165 = vmax.f32 %v1155, 0.0
    %v1166 = vmax.f32 %v1160, 0.0
    %s1167 = scalar_lea.vmem %s2, 40
    %v1168 = vld [vmem:[%s1167] sm:$0xff]
    %v1170 = vsel %vm243, %v1163, 0
    %v1173 = vsel %vm243, %v1164, 0
    %v1176 = vsel %vm243, %v1165, 0
    %v1179 = vsel %vm243, %v1166, 0
    %1181 = vmatprep.subr.mxu0 0.0
    %1182 = vmatpush1.msra.mxu0 0.0
    %1183 = vmatprep.subr.mxu0 0.0
    %1184 = vmatpush1.msra.mxu0 0.0
    %1185 = vmatprep.subr.mxu0 0.0
    %1186 = vmatpush1.msra.mxu0 0.0
    %1187 = vmatprep.subr.mxu0 0.0
    %1188 = vmatpush1.msra.mxu0 0.0
    %1189 = vmatprep.subr.mxu0 0.0
    %1190 = vmatpush1.msra.mxu0 0.0
    %1191 = vmatprep.subr.mxu0 0.0
    %1192 = vmatpush1.msra.mxu0 0.0
    %1193 = vmatprep.subr.mxu0 0.0
    %1194 = vmatpush1.msra.mxu0 0.0
    %1195 = vmatprep.subr.mxu0 0.0
    %1196 = vmatpush1.msra.mxu0 0.0
    %1197 = vmatprep.subr.mxu0 0.0
    %1198 = vmatpush1.msra.mxu0 0.0
    %1199 = vmatprep.subr.mxu0 0.0
    %1200 = vmatpush1.msra.mxu0 0.0
    %1201 = vmatprep.subr.mxu0 0.0
    %1202 = vmatpush1.msra.mxu0 0.0
    %1203 = vmatprep.subr.mxu0 0.0
    %1204 = vmatpush1.msra.mxu0 0.0
    %1205 = vmatprep.subr.mxu0 0.0
    %1206 = vmatpush1.msra.mxu0 0.0
    %1207 = vmatprep.subr.mxu0 0.0
    %1208 = vmatpush1.msra.mxu0 0.0
    %1209 = vmatprep.subr.mxu0 0.0
    %1210 = vmatpush1.msra.mxu0 0.0
    %1211 = vmatprep.subr.mxu0 0.0
    %1212 = vmatpush1.msra.mxu0 %v1168
    %1213 = vmatprep.subr.mxu0 0.0
    %1214 = vmatpush2.msra.mxu0 0.0
    %1215 = vmatprep.subr.mxu0 0.0
    %1216 = vmatpush2.msra.mxu0 0.0
    %1217 = vmatprep.subr.mxu0 0.0
    %1218 = vmatpush2.msra.mxu0 0.0
    %1219 = vmatprep.subr.mxu0 0.0
    %1220 = vmatpush2.msra.mxu0 0.0
    %1221 = vmatprep.subr.mxu0 0.0
    %1222 = vmatpush2.msra.mxu0 0.0
    %1223 = vmatprep.subr.mxu0 0.0
    %1224 = vmatpush2.msra.mxu0 0.0
    %1225 = vmatprep.subr.mxu0 0.0
    %1226 = vmatpush2.msra.mxu0 0.0
    %1227 = vmatprep.subr.mxu0 0.0
    %1228 = vmatpush2.msra.mxu0 0.0
    %1229 = vmatprep.subr.mxu0 0.0
    %1230 = vmatpush2.msra.mxu0 0.0
    %1231 = vmatprep.subr.mxu0 0.0
    %1232 = vmatpush2.msra.mxu0 0.0
    %1233 = vmatprep.subr.mxu0 0.0
    %1234 = vmatpush2.msra.mxu0 0.0
    %1235 = vmatprep.subr.mxu0 0.0
    %1236 = vmatpush2.msra.mxu0 0.0
    %1237 = vmatprep.subr.mxu0 0.0
    %1238 = vmatpush2.msra.mxu0 0.0
    %1239 = vmatprep.subr.mxu0 0.0
    %1240 = vmatpush2.msra.mxu0 0.0
    %1241 = vmatprep.subr.mxu0 0.0
    %1242 = vmatpush2.msra.mxu0 0.0
    %1243 = vmatprep.subr.mxu0 0.0
    %1244 = vmatpush2.msra.mxu0 0.0
    %1245 = vmatprep.mubr.f32.mxu0 0.0
    %1246 = vmatmul.mubr.f32.gmra.mxu0 %v1170
    %v1247 = vpop.f32.mrf.mxu0
    %v1248 = vadd.f32 0.0, %v1247
    %v1249 = vpop.f32.mrf.mxu0
    %1250 = vmatprep.mubr.f32.mxu0 0.0
    %1251 = vmatmul.mubr.f32.gmra.mxu0 %v1173
    %v1252 = vpop.f32.mrf.mxu0
    %v1253 = vadd.f32 0.0, %v1252
    %v1254 = vpop.f32.mrf.mxu0
    %1255 = vmatprep.mubr.f32.mxu0 0.0
    %1256 = vmatmul.mubr.f32.gmra.mxu0 %v1176
    %v1257 = vpop.f32.mrf.mxu0
    %v1258 = vadd.f32 0.0, %v1257
    %v1259 = vpop.f32.mrf.mxu0
    %1260 = vmatprep.mubr.f32.mxu0 0.0
    %1261 = vmatmul.mubr.f32.gmra.mxu0 %v1179
    %v1262 = vpop.f32.mrf.mxu0
    %v1263 = vadd.f32 0.0, %v1262
    %v1264 = vpop.f32.mrf.mxu0
    %1265 = vdwg.mxu0
    %v1266 = vadd.f32 %v1058, %v1248
    %v1267 = vadd.f32 %v1059, %v1253
    %v1268 = vadd.f32 %v1060, %v1258
    %v1269 = vadd.f32 %v1061, %v1263
    %v1270 = vld [vmem:[%s0 + $0xc0] sm:$0xff]
    %v1271 = vld [vmem:[%s0 + $0xc8] sm:$0xff]
    %v1272 = vld [vmem:[%s0 + $0xd0] sm:$0xff]
    %v1273 = vld [vmem:[%s0 + $0xd8] sm:$0xff]
    %v1275 = vsel %vm33, %v1270, 0
    %v1278 = vsel %vm33, %v1271, 0
    %v1281 = vsel %vm33, %v1272, 0
    %v1284 = vsel %vm33, %v1273, 0
    %1286 = vmatprep.subr.mxu0 0.0
    %1287 = vmatpush1.msra.mxu0 0.0
    %1288 = vmatprep.subr.mxu0 0.0
    %1289 = vmatpush1.msra.mxu0 0.0
    %1290 = vmatprep.subr.mxu0 0.0
    %1291 = vmatpush1.msra.mxu0 0.0
    %1292 = vmatprep.subr.mxu0 0.0
    %1293 = vmatpush1.msra.mxu0 0.0
    %1294 = vmatprep.subr.mxu0 0.0
    %1295 = vmatpush1.msra.mxu0 0.0
    %1296 = vmatprep.subr.mxu0 0.0
    %1297 = vmatpush1.msra.mxu0 0.0
    %1298 = vmatprep.subr.mxu0 0.0
    %1299 = vmatpush1.msra.mxu0 0.0
    %1300 = vmatprep.subr.mxu0 0.0
    %1301 = vmatpush1.msra.mxu0 0.0
    %1302 = vmatprep.subr.mxu0 0.0
    %1303 = vmatpush1.msra.mxu0 0.0
    %1304 = vmatprep.subr.mxu0 0.0
    %1305 = vmatpush1.msra.mxu0 0.0
    %1306 = vmatprep.subr.mxu0 0.0
    %1307 = vmatpush1.msra.mxu0 0.0
    %1308 = vmatprep.subr.mxu0 0.0
    %1309 = vmatpush1.msra.mxu0 0.0
    %1310 = vmatprep.subr.mxu0 0.0
    %1311 = vmatpush1.msra.mxu0 %v28
    %1312 = vmatprep.subr.mxu0 0.0
    %1313 = vmatpush1.msra.mxu0 %v27
    %1314 = vmatprep.subr.mxu0 0.0
    %1315 = vmatpush1.msra.mxu0 %v26
    %1316 = vmatprep.subr.mxu0 0.0
    %1317 = vmatpush1.msra.mxu0 %v25
    %1318 = vmatprep.subr.mxu0 0.0
    %1319 = vmatpush2.msra.mxu0 0.0
    %1320 = vmatprep.subr.mxu0 0.0
    %1321 = vmatpush2.msra.mxu0 0.0
    %1322 = vmatprep.subr.mxu0 0.0
    %1323 = vmatpush2.msra.mxu0 0.0
    %1324 = vmatprep.subr.mxu0 0.0
    %1325 = vmatpush2.msra.mxu0 0.0
    %1326 = vmatprep.subr.mxu0 0.0
    %1327 = vmatpush2.msra.mxu0 0.0
    %1328 = vmatprep.subr.mxu0 0.0
    %1329 = vmatpush2.msra.mxu0 0.0
    %1330 = vmatprep.subr.mxu0 0.0
    %1331 = vmatpush2.msra.mxu0 0.0
    %1332 = vmatprep.subr.mxu0 0.0
    %1333 = vmatpush2.msra.mxu0 0.0
    %1334 = vmatprep.subr.mxu0 0.0
    %1335 = vmatpush2.msra.mxu0 0.0
    %1336 = vmatprep.subr.mxu0 0.0
    %1337 = vmatpush2.msra.mxu0 0.0
    %1338 = vmatprep.subr.mxu0 0.0
    %1339 = vmatpush2.msra.mxu0 0.0
    %1340 = vmatprep.subr.mxu0 0.0
    %1341 = vmatpush2.msra.mxu0 0.0
    %1342 = vmatprep.subr.mxu0 0.0
    %1343 = vmatpush2.msra.mxu0 0.0
    %1344 = vmatprep.subr.mxu0 0.0
    %1345 = vmatpush2.msra.mxu0 0.0
    %1346 = vmatprep.subr.mxu0 0.0
    %1347 = vmatpush2.msra.mxu0 0.0
    %1348 = vmatprep.subr.mxu0 0.0
    %1349 = vmatpush2.msra.mxu0 0.0
    %1350 = vmatprep.mubr.f32.mxu0 0.0
    %1351 = vmatmul.mubr.f32.gmra.mxu0 %v1275
    %v1352 = vpop.f32.mrf.mxu0
    %v1353 = vadd.f32 0.0, %v1352
    %v1354 = vpop.f32.mrf.mxu0
    %1355 = vmatprep.mubr.f32.mxu0 0.0
    %1356 = vmatmul.mubr.f32.gmra.mxu0 %v1278
    %v1357 = vpop.f32.mrf.mxu0
    %v1358 = vadd.f32 0.0, %v1357
    %v1359 = vpop.f32.mrf.mxu0
    %1360 = vmatprep.mubr.f32.mxu0 0.0
    %1361 = vmatmul.mubr.f32.gmra.mxu0 %v1281
    %v1362 = vpop.f32.mrf.mxu0
    %v1363 = vadd.f32 0.0, %v1362
    %v1364 = vpop.f32.mrf.mxu0
    %1365 = vmatprep.mubr.f32.mxu0 0.0
    %1366 = vmatmul.mubr.f32.gmra.mxu0 %v1284
    %v1367 = vpop.f32.mrf.mxu0
    %v1368 = vadd.f32 0.0, %v1367
    %v1369 = vpop.f32.mrf.mxu0
    %1370 = vdwg.mxu0
    %v1371 = vmax.f32 %v1353, 0.0
    %v1372 = vmax.f32 %v1358, 0.0
    %v1373 = vmax.f32 %v1363, 0.0
    %v1374 = vmax.f32 %v1368, 0.0
    %s1375 = scalar_lea.vmem %s2, 48
    %v1376 = vld [vmem:[%s1375] sm:$0xff]
    %v1378 = vsel %vm243, %v1371, 0
    %v1381 = vsel %vm243, %v1372, 0
    %v1384 = vsel %vm243, %v1373, 0
    %v1387 = vsel %vm243, %v1374, 0
    %1389 = vmatprep.subr.mxu0 0.0
    %1390 = vmatpush1.msra.mxu0 0.0
    %1391 = vmatprep.subr.mxu0 0.0
    %1392 = vmatpush1.msra.mxu0 0.0
    %1393 = vmatprep.subr.mxu0 0.0
    %1394 = vmatpush1.msra.mxu0 0.0
    %1395 = vmatprep.subr.mxu0 0.0
    %1396 = vmatpush1.msra.mxu0 0.0
    %1397 = vmatprep.subr.mxu0 0.0
    %1398 = vmatpush1.msra.mxu0 0.0
    %1399 = vmatprep.subr.mxu0 0.0
    %1400 = vmatpush1.msra.mxu0 0.0
    %1401 = vmatprep.subr.mxu0 0.0
    %1402 = vmatpush1.msra.mxu0 0.0
    %1403 = vmatprep.subr.mxu0 0.0
    %1404 = vmatpush1.msra.mxu0 0.0
    %1405 = vmatprep.subr.mxu0 0.0
    %1406 = vmatpush1.msra.mxu0 0.0
    %1407 = vmatprep.subr.mxu0 0.0
    %1408 = vmatpush1.msra.mxu0 0.0
    %1409 = vmatprep.subr.mxu0 0.0
    %1410 = vmatpush1.msra.mxu0 0.0
    %1411 = vmatprep.subr.mxu0 0.0
    %1412 = vmatpush1.msra.mxu0 0.0
    %1413 = vmatprep.subr.mxu0 0.0
    %1414 = vmatpush1.msra.mxu0 0.0
    %1415 = vmatprep.subr.mxu0 0.0
    %1416 = vmatpush1.msra.mxu0 0.0
    %1417 = vmatprep.subr.mxu0 0.0
    %1418 = vmatpush1.msra.mxu0 0.0
    %1419 = vmatprep.subr.mxu0 0.0
    %1420 = vmatpush1.msra.mxu0 %v1376
    %1421 = vmatprep.subr.mxu0 0.0
    %1422 = vmatpush2.msra.mxu0 0.0
    %1423 = vmatprep.subr.mxu0 0.0
    %1424 = vmatpush2.msra.mxu0 0.0
    %1425 = vmatprep.subr.mxu0 0.0
    %1426 = vmatpush2.msra.mxu0 0.0
    %1427 = vmatprep.subr.mxu0 0.0
    %1428 = vmatpush2.msra.mxu0 0.0
    %1429 = vmatprep.subr.mxu0 0.0
    %1430 = vmatpush2.msra.mxu0 0.0
    %1431 = vmatprep.subr.mxu0 0.0
    %1432 = vmatpush2.msra.mxu0 0.0
    %1433 = vmatprep.subr.mxu0 0.0
    %1434 = vmatpush2.msra.mxu0 0.0
    %1435 = vmatprep.subr.mxu0 0.0
    %1436 = vmatpush2.msra.mxu0 0.0
    %1437 = vmatprep.subr.mxu0 0.0
    %1438 = vmatpush2.msra.mxu0 0.0
    %1439 = vmatprep.subr.mxu0 0.0
    %1440 = vmatpush2.msra.mxu0 0.0
    %1441 = vmatprep.subr.mxu0 0.0
    %1442 = vmatpush2.msra.mxu0 0.0
    %1443 = vmatprep.subr.mxu0 0.0
    %1444 = vmatpush2.msra.mxu0 0.0
    %1445 = vmatprep.subr.mxu0 0.0
    %1446 = vmatpush2.msra.mxu0 0.0
    %1447 = vmatprep.subr.mxu0 0.0
    %1448 = vmatpush2.msra.mxu0 0.0
    %1449 = vmatprep.subr.mxu0 0.0
    %1450 = vmatpush2.msra.mxu0 0.0
    %1451 = vmatprep.subr.mxu0 0.0
    %1452 = vmatpush2.msra.mxu0 0.0
    %1453 = vmatprep.mubr.f32.mxu0 0.0
    %1454 = vmatmul.mubr.f32.gmra.mxu0 %v1378
    %v1455 = vpop.f32.mrf.mxu0
    %v1456 = vadd.f32 0.0, %v1455
    %v1457 = vpop.f32.mrf.mxu0
    %1458 = vmatprep.mubr.f32.mxu0 0.0
    %1459 = vmatmul.mubr.f32.gmra.mxu0 %v1381
    %v1460 = vpop.f32.mrf.mxu0
    %v1461 = vadd.f32 0.0, %v1460
    %v1462 = vpop.f32.mrf.mxu0
    %1463 = vmatprep.mubr.f32.mxu0 0.0
    %1464 = vmatmul.mubr.f32.gmra.mxu0 %v1384
    %v1465 = vpop.f32.mrf.mxu0
    %v1466 = vadd.f32 0.0, %v1465
    %v1467 = vpop.f32.mrf.mxu0
    %1468 = vmatprep.mubr.f32.mxu0 0.0
    %1469 = vmatmul.mubr.f32.gmra.mxu0 %v1387
    %v1470 = vpop.f32.mrf.mxu0
    %v1471 = vadd.f32 0.0, %v1470
    %v1472 = vpop.f32.mrf.mxu0
    %1473 = vdwg.mxu0
    %v1474 = vadd.f32 %v1266, %v1456
    %v1475 = vadd.f32 %v1267, %v1461
    %v1476 = vadd.f32 %v1268, %v1466
    %v1477 = vadd.f32 %v1269, %v1471
    %v1478 = vld [vmem:[%s0 + $0xe0] sm:$0xff]
    %v1479 = vld [vmem:[%s0 + $0xe8] sm:$0xff]
    %v1480 = vld [vmem:[%s0 + $0xf0] sm:$0xff]
    %v1481 = vld [vmem:[%s0 + $0xf8] sm:$0xff]
    %v1483 = vsel %vm33, %v1478, 0
    %v1486 = vsel %vm33, %v1479, 0
    %v1489 = vsel %vm33, %v1480, 0
    %v1492 = vsel %vm33, %v1481, 0
    %1494 = vmatprep.subr.mxu0 0.0
    %1495 = vmatpush1.msra.mxu0 0.0
    %1496 = vmatprep.subr.mxu0 0.0
    %1497 = vmatpush1.msra.mxu0 0.0
    %1498 = vmatprep.subr.mxu0 0.0
    %1499 = vmatpush1.msra.mxu0 0.0
    %1500 = vmatprep.subr.mxu0 0.0
    %1501 = vmatpush1.msra.mxu0 0.0
    %1502 = vmatprep.subr.mxu0 0.0
    %1503 = vmatpush1.msra.mxu0 0.0
    %1504 = vmatprep.subr.mxu0 0.0
    %1505 = vmatpush1.msra.mxu0 0.0
    %1506 = vmatprep.subr.mxu0 0.0
    %1507 = vmatpush1.msra.mxu0 0.0
    %1508 = vmatprep.subr.mxu0 0.0
    %1509 = vmatpush1.msra.mxu0 0.0
    %1510 = vmatprep.subr.mxu0 0.0
    %1511 = vmatpush1.msra.mxu0 0.0
    %1512 = vmatprep.subr.mxu0 0.0
    %1513 = vmatpush1.msra.mxu0 0.0
    %1514 = vmatprep.subr.mxu0 0.0
    %1515 = vmatpush1.msra.mxu0 0.0
    %1516 = vmatprep.subr.mxu0 0.0
    %1517 = vmatpush1.msra.mxu0 0.0
    %1518 = vmatprep.subr.mxu0 0.0
    %1519 = vmatpush1.msra.mxu0 %v28
    %1520 = vmatprep.subr.mxu0 0.0
    %1521 = vmatpush1.msra.mxu0 %v27
    %1522 = vmatprep.subr.mxu0 0.0
    %1523 = vmatpush1.msra.mxu0 %v26
    %1524 = vmatprep.subr.mxu0 0.0
    %1525 = vmatpush1.msra.mxu0 %v25
    %1526 = vmatprep.subr.mxu0 0.0
    %1527 = vmatpush2.msra.mxu0 0.0
    %1528 = vmatprep.subr.mxu0 0.0
    %1529 = vmatpush2.msra.mxu0 0.0
    %1530 = vmatprep.subr.mxu0 0.0
    %1531 = vmatpush2.msra.mxu0 0.0
    %1532 = vmatprep.subr.mxu0 0.0
    %1533 = vmatpush2.msra.mxu0 0.0
    %1534 = vmatprep.subr.mxu0 0.0
    %1535 = vmatpush2.msra.mxu0 0.0
    %1536 = vmatprep.subr.mxu0 0.0
    %1537 = vmatpush2.msra.mxu0 0.0
    %1538 = vmatprep.subr.mxu0 0.0
    %1539 = vmatpush2.msra.mxu0 0.0
    %1540 = vmatprep.subr.mxu0 0.0
    %1541 = vmatpush2.msra.mxu0 0.0
    %1542 = vmatprep.subr.mxu0 0.0
    %1543 = vmatpush2.msra.mxu0 0.0
    %1544 = vmatprep.subr.mxu0 0.0
    %1545 = vmatpush2.msra.mxu0 0.0
    %1546 = vmatprep.subr.mxu0 0.0
    %1547 = vmatpush2.msra.mxu0 0.0
    %1548 = vmatprep.subr.mxu0 0.0
    %1549 = vmatpush2.msra.mxu0 0.0
    %1550 = vmatprep.subr.mxu0 0.0
    %1551 = vmatpush2.msra.mxu0 0.0
    %1552 = vmatprep.subr.mxu0 0.0
    %1553 = vmatpush2.msra.mxu0 0.0
    %1554 = vmatprep.subr.mxu0 0.0
    %1555 = vmatpush2.msra.mxu0 0.0
    %1556 = vmatprep.subr.mxu0 0.0
    %1557 = vmatpush2.msra.mxu0 0.0
    %1558 = vmatprep.mubr.f32.mxu0 0.0
    %1559 = vmatmul.mubr.f32.gmra.mxu0 %v1483
    %v1560 = vpop.f32.mrf.mxu0
    %v1561 = vadd.f32 0.0, %v1560
    %v1562 = vpop.f32.mrf.mxu0
    %1563 = vmatprep.mubr.f32.mxu0 0.0
    %1564 = vmatmul.mubr.f32.gmra.mxu0 %v1486
    %v1565 = vpop.f32.mrf.mxu0
    %v1566 = vadd.f32 0.0, %v1565
    %v1567 = vpop.f32.mrf.mxu0
    %1568 = vmatprep.mubr.f32.mxu0 0.0
    %1569 = vmatmul.mubr.f32.gmra.mxu0 %v1489
    %v1570 = vpop.f32.mrf.mxu0
    %v1571 = vadd.f32 0.0, %v1570
    %v1572 = vpop.f32.mrf.mxu0
    %1573 = vmatprep.mubr.f32.mxu0 0.0
    %1574 = vmatmul.mubr.f32.gmra.mxu0 %v1492
    %v1575 = vpop.f32.mrf.mxu0
    %v1576 = vadd.f32 0.0, %v1575
    %v1577 = vpop.f32.mrf.mxu0
    %1578 = vdwg.mxu0
    %v1579 = vmax.f32 %v1561, 0.0
    %v1580 = vmax.f32 %v1566, 0.0
    %v1581 = vmax.f32 %v1571, 0.0
    %v1582 = vmax.f32 %v1576, 0.0
    %s1583 = scalar_lea.vmem %s2, 56
    %v1584 = vld [vmem:[%s1583] sm:$0xff]
    %v1586 = vsel %vm243, %v1579, 0
    %v1589 = vsel %vm243, %v1580, 0
    %v1592 = vsel %vm243, %v1581, 0
    %v1595 = vsel %vm243, %v1582, 0
    %1597 = vmatprep.subr.mxu0 0.0
    %1598 = vmatpush1.msra.mxu0 0.0
    %1599 = vmatprep.subr.mxu0 0.0
    %1600 = vmatpush1.msra.mxu0 0.0
    %1601 = vmatprep.subr.mxu0 0.0
    %1602 = vmatpush1.msra.mxu0 0.0
    %1603 = vmatprep.subr.mxu0 0.0
    %1604 = vmatpush1.msra.mxu0 0.0
    %1605 = vmatprep.subr.mxu0 0.0
    %1606 = vmatpush1.msra.mxu0 0.0
    %1607 = vmatprep.subr.mxu0 0.0
    %1608 = vmatpush1.msra.mxu0 0.0
    %1609 = vmatprep.subr.mxu0 0.0
    %1610 = vmatpush1.msra.mxu0 0.0
    %1611 = vmatprep.subr.mxu0 0.0
    %1612 = vmatpush1.msra.mxu0 0.0
    %1613 = vmatprep.subr.mxu0 0.0
    %1614 = vmatpush1.msra.mxu0 0.0
    %1615 = vmatprep.subr.mxu0 0.0
    %1616 = vmatpush1.msra.mxu0 0.0
    %1617 = vmatprep.subr.mxu0 0.0
    %1618 = vmatpush1.msra.mxu0 0.0
    %1619 = vmatprep.subr.mxu0 0.0
    %1620 = vmatpush1.msra.mxu0 0.0
    %1621 = vmatprep.subr.mxu0 0.0
    %1622 = vmatpush1.msra.mxu0 0.0
    %1623 = vmatprep.subr.mxu0 0.0
    %1624 = vmatpush1.msra.mxu0 0.0
    %1625 = vmatprep.subr.mxu0 0.0
    %1626 = vmatpush1.msra.mxu0 0.0
    %1627 = vmatprep.subr.mxu0 0.0
    %1628 = vmatpush1.msra.mxu0 %v1584
    %1629 = vmatprep.subr.mxu0 0.0
    %1630 = vmatpush2.msra.mxu0 0.0
    %1631 = vmatprep.subr.mxu0 0.0
    %1632 = vmatpush2.msra.mxu0 0.0
    %1633 = vmatprep.subr.mxu0 0.0
    %1634 = vmatpush2.msra.mxu0 0.0
    %1635 = vmatprep.subr.mxu0 0.0
    %1636 = vmatpush2.msra.mxu0 0.0
    %1637 = vmatprep.subr.mxu0 0.0
    %1638 = vmatpush2.msra.mxu0 0.0
    %1639 = vmatprep.subr.mxu0 0.0
    %1640 = vmatpush2.msra.mxu0 0.0
    %1641 = vmatprep.subr.mxu0 0.0
    %1642 = vmatpush2.msra.mxu0 0.0
    %1643 = vmatprep.subr.mxu0 0.0
    %1644 = vmatpush2.msra.mxu0 0.0
    %1645 = vmatprep.subr.mxu0 0.0
    %1646 = vmatpush2.msra.mxu0 0.0
    %1647 = vmatprep.subr.mxu0 0.0
    %1648 = vmatpush2.msra.mxu0 0.0
    %1649 = vmatprep.subr.mxu0 0.0
    %1650 = vmatpush2.msra.mxu0 0.0
    %1651 = vmatprep.subr.mxu0 0.0
    %1652 = vmatpush2.msra.mxu0 0.0
    %1653 = vmatprep.subr.mxu0 0.0
    %1654 = vmatpush2.msra.mxu0 0.0
    %1655 = vmatprep.subr.mxu0 0.0
    %1656 = vmatpush2.msra.mxu0 0.0
    %1657 = vmatprep.subr.mxu0 0.0
    %1658 = vmatpush2.msra.mxu0 0.0
    %1659 = vmatprep.subr.mxu0 0.0
    %1660 = vmatpush2.msra.mxu0 0.0
    %1661 = vmatprep.mubr.f32.mxu0 0.0
    %1662 = vmatmul.mubr.f32.gmra.mxu0 %v1586
    %v1663 = vpop.f32.mrf.mxu0
    %v1664 = vadd.f32 0.0, %v1663
    %v1665 = vpop.f32.mrf.mxu0
    %1666 = vmatprep.mubr.f32.mxu0 0.0
    %1667 = vmatmul.mubr.f32.gmra.mxu0 %v1589
    %v1668 = vpop.f32.mrf.mxu0
    %v1669 = vadd.f32 0.0, %v1668
    %v1670 = vpop.f32.mrf.mxu0
    %1671 = vmatprep.mubr.f32.mxu0 0.0
    %1672 = vmatmul.mubr.f32.gmra.mxu0 %v1592
    %v1673 = vpop.f32.mrf.mxu0
    %v1674 = vadd.f32 0.0, %v1673
    %v1675 = vpop.f32.mrf.mxu0
    %1676 = vmatprep.mubr.f32.mxu0 0.0
    %1677 = vmatmul.mubr.f32.gmra.mxu0 %v1595
    %v1678 = vpop.f32.mrf.mxu0
    %v1679 = vadd.f32 0.0, %v1678
    %v1680 = vpop.f32.mrf.mxu0
    %1681 = vdwg.mxu0
    %v1682 = vadd.f32 %v1474, %v1664
    %v1683 = vadd.f32 %v1475, %v1669
    %v1684 = vadd.f32 %v1476, %v1674
    %v1685 = vadd.f32 %v1477, %v1679
    %v1686 = vld [vmem:[%s0 + $0x100] sm:$0xff]
    %v1687 = vld [vmem:[%s0 + $0x108] sm:$0xff]
    %v1688 = vld [vmem:[%s0 + $0x110] sm:$0xff]
    %v1689 = vld [vmem:[%s0 + $0x118] sm:$0xff]
    %v1691 = vsel %vm33, %v1686, 0
    %v1694 = vsel %vm33, %v1687, 0
    %v1697 = vsel %vm33, %v1688, 0
    %v1700 = vsel %vm33, %v1689, 0
    %1702 = vmatprep.subr.mxu0 0.0
    %1703 = vmatpush1.msra.mxu0 0.0
    %1704 = vmatprep.subr.mxu0 0.0
    %1705 = vmatpush1.msra.mxu0 0.0
    %1706 = vmatprep.subr.mxu0 0.0
    %1707 = vmatpush1.msra.mxu0 0.0
    %1708 = vmatprep.subr.mxu0 0.0
    %1709 = vmatpush1.msra.mxu0 0.0
    %1710 = vmatprep.subr.mxu0 0.0
    %1711 = vmatpush1.msra.mxu0 0.0
    %1712 = vmatprep.subr.mxu0 0.0
    %1713 = vmatpush1.msra.mxu0 0.0
    %1714 = vmatprep.subr.mxu0 0.0
    %1715 = vmatpush1.msra.mxu0 0.0
    %1716 = vmatprep.subr.mxu0 0.0
    %1717 = vmatpush1.msra.mxu0 0.0
    %1718 = vmatprep.subr.mxu0 0.0
    %1719 = vmatpush1.msra.mxu0 0.0
    %1720 = vmatprep.subr.mxu0 0.0
    %1721 = vmatpush1.msra.mxu0 0.0
    %1722 = vmatprep.subr.mxu0 0.0
    %1723 = vmatpush1.msra.mxu0 0.0
    %1724 = vmatprep.subr.mxu0 0.0
    %1725 = vmatpush1.msra.mxu0 0.0
    %1726 = vmatprep.subr.mxu0 0.0
    %1727 = vmatpush1.msra.mxu0 %v28
    %1728 = vmatprep.subr.mxu0 0.0
    %1729 = vmatpush1.msra.mxu0 %v27
    %1730 = vmatprep.subr.mxu0 0.0
    %1731 = vmatpush1.msra.mxu0 %v26
    %1732 = vmatprep.subr.mxu0 0.0
    %1733 = vmatpush1.msra.mxu0 %v25
    %1734 = vmatprep.subr.mxu0 0.0
    %1735 = vmatpush2.msra.mxu0 0.0
    %1736 = vmatprep.subr.mxu0 0.0
    %1737 = vmatpush2.msra.mxu0 0.0
    %1738 = vmatprep.subr.mxu0 0.0
    %1739 = vmatpush2.msra.mxu0 0.0
    %1740 = vmatprep.subr.mxu0 0.0
    %1741 = vmatpush2.msra.mxu0 0.0
    %1742 = vmatprep.subr.mxu0 0.0
    %1743 = vmatpush2.msra.mxu0 0.0
    %1744 = vmatprep.subr.mxu0 0.0
    %1745 = vmatpush2.msra.mxu0 0.0
    %1746 = vmatprep.subr.mxu0 0.0
    %1747 = vmatpush2.msra.mxu0 0.0
    %1748 = vmatprep.subr.mxu0 0.0
    %1749 = vmatpush2.msra.mxu0 0.0
    %1750 = vmatprep.subr.mxu0 0.0
    %1751 = vmatpush2.msra.mxu0 0.0
    %1752 = vmatprep.subr.mxu0 0.0
    %1753 = vmatpush2.msra.mxu0 0.0
    %1754 = vmatprep.subr.mxu0 0.0
    %1755 = vmatpush2.msra.mxu0 0.0
    %1756 = vmatprep.subr.mxu0 0.0
    %1757 = vmatpush2.msra.mxu0 0.0
    %1758 = vmatprep.subr.mxu0 0.0
    %1759 = vmatpush2.msra.mxu0 0.0
    %1760 = vmatprep.subr.mxu0 0.0
    %1761 = vmatpush2.msra.mxu0 0.0
    %1762 = vmatprep.subr.mxu0 0.0
    %1763 = vmatpush2.msra.mxu0 0.0
    %1764 = vmatprep.subr.mxu0 0.0
    %1765 = vmatpush2.msra.mxu0 0.0
    %1766 = vmatprep.mubr.f32.mxu0 0.0
    %1767 = vmatmul.mubr.f32.gmra.mxu0 %v1691
    %v1768 = vpop.f32.mrf.mxu0
    %v1769 = vadd.f32 0.0, %v1768
    %v1770 = vpop.f32.mrf.mxu0
    %1771 = vmatprep.mubr.f32.mxu0 0.0
    %1772 = vmatmul.mubr.f32.gmra.mxu0 %v1694
    %v1773 = vpop.f32.mrf.mxu0
    %v1774 = vadd.f32 0.0, %v1773
    %v1775 = vpop.f32.mrf.mxu0
    %1776 = vmatprep.mubr.f32.mxu0 0.0
    %1777 = vmatmul.mubr.f32.gmra.mxu0 %v1697
    %v1778 = vpop.f32.mrf.mxu0
    %v1779 = vadd.f32 0.0, %v1778
    %v1780 = vpop.f32.mrf.mxu0
    %1781 = vmatprep.mubr.f32.mxu0 0.0
    %1782 = vmatmul.mubr.f32.gmra.mxu0 %v1700
    %v1783 = vpop.f32.mrf.mxu0
    %v1784 = vadd.f32 0.0, %v1783
    %v1785 = vpop.f32.mrf.mxu0
    %1786 = vdwg.mxu0
    %v1787 = vmax.f32 %v1769, 0.0
    %v1788 = vmax.f32 %v1774, 0.0
    %v1789 = vmax.f32 %v1779, 0.0
    %v1790 = vmax.f32 %v1784, 0.0
    %s1791 = scalar_lea.vmem %s2, 64
    %v1792 = vld [vmem:[%s1791] sm:$0xff]
    %v1794 = vsel %vm243, %v1787, 0
    %v1797 = vsel %vm243, %v1788, 0
    %v1800 = vsel %vm243, %v1789, 0
    %v1803 = vsel %vm243, %v1790, 0
    %1805 = vmatprep.subr.mxu0 0.0
    %1806 = vmatpush1.msra.mxu0 0.0
    %1807 = vmatprep.subr.mxu0 0.0
    %1808 = vmatpush1.msra.mxu0 0.0
    %1809 = vmatprep.subr.mxu0 0.0
    %1810 = vmatpush1.msra.mxu0 0.0
    %1811 = vmatprep.subr.mxu0 0.0
    %1812 = vmatpush1.msra.mxu0 0.0
    %1813 = vmatprep.subr.mxu0 0.0
    %1814 = vmatpush1.msra.mxu0 0.0
    %1815 = vmatprep.subr.mxu0 0.0
    %1816 = vmatpush1.msra.mxu0 0.0
    %1817 = vmatprep.subr.mxu0 0.0
    %1818 = vmatpush1.msra.mxu0 0.0
    %1819 = vmatprep.subr.mxu0 0.0
    %1820 = vmatpush1.msra.mxu0 0.0
    %1821 = vmatprep.subr.mxu0 0.0
    %1822 = vmatpush1.msra.mxu0 0.0
    %1823 = vmatprep.subr.mxu0 0.0
    %1824 = vmatpush1.msra.mxu0 0.0
    %1825 = vmatprep.subr.mxu0 0.0
    %1826 = vmatpush1.msra.mxu0 0.0
    %1827 = vmatprep.subr.mxu0 0.0
    %1828 = vmatpush1.msra.mxu0 0.0
    %1829 = vmatprep.subr.mxu0 0.0
    %1830 = vmatpush1.msra.mxu0 0.0
    %1831 = vmatprep.subr.mxu0 0.0
    %1832 = vmatpush1.msra.mxu0 0.0
    %1833 = vmatprep.subr.mxu0 0.0
    %1834 = vmatpush1.msra.mxu0 0.0
    %1835 = vmatprep.subr.mxu0 0.0
    %1836 = vmatpush1.msra.mxu0 %v1792
    %1837 = vmatprep.subr.mxu0 0.0
    %1838 = vmatpush2.msra.mxu0 0.0
    %1839 = vmatprep.subr.mxu0 0.0
    %1840 = vmatpush2.msra.mxu0 0.0
    %1841 = vmatprep.subr.mxu0 0.0
    %1842 = vmatpush2.msra.mxu0 0.0
    %1843 = vmatprep.subr.mxu0 0.0
    %1844 = vmatpush2.msra.mxu0 0.0
    %1845 = vmatprep.subr.mxu0 0.0
    %1846 = vmatpush2.msra.mxu0 0.0
    %1847 = vmatprep.subr.mxu0 0.0
    %1848 = vmatpush2.msra.mxu0 0.0
    %1849 = vmatprep.subr.mxu0 0.0
    %1850 = vmatpush2.msra.mxu0 0.0
    %1851 = vmatprep.subr.mxu0 0.0
    %1852 = vmatpush2.msra.mxu0 0.0
    %1853 = vmatprep.subr.mxu0 0.0
    %1854 = vmatpush2.msra.mxu0 0.0
    %1855 = vmatprep.subr.mxu0 0.0
    %1856 = vmatpush2.msra.mxu0 0.0
    %1857 = vmatprep.subr.mxu0 0.0
    %1858 = vmatpush2.msra.mxu0 0.0
    %1859 = vmatprep.subr.mxu0 0.0
    %1860 = vmatpush2.msra.mxu0 0.0
    %1861 = vmatprep.subr.mxu0 0.0
    %1862 = vmatpush2.msra.mxu0 0.0
    %1863 = vmatprep.subr.mxu0 0.0
    %1864 = vmatpush2.msra.mxu0 0.0
    %1865 = vmatprep.subr.mxu0 0.0
    %1866 = vmatpush2.msra.mxu0 0.0
    %1867 = vmatprep.subr.mxu0 0.0
    %1868 = vmatpush2.msra.mxu0 0.0
    %1869 = vmatprep.mubr.f32.mxu0 0.0
    %1870 = vmatmul.mubr.f32.gmra.mxu0 %v1794
    %v1871 = vpop.f32.mrf.mxu0
    %v1872 = vadd.f32 0.0, %v1871
    %v1873 = vpop.f32.mrf.mxu0
    %1874 = vmatprep.mubr.f32.mxu0 0.0
    %1875 = vmatmul.mubr.f32.gmra.mxu0 %v1797
    %v1876 = vpop.f32.mrf.mxu0
    %v1877 = vadd.f32 0.0, %v1876
    %v1878 = vpop.f32.mrf.mxu0
    %1879 = vmatprep.mubr.f32.mxu0 0.0
    %1880 = vmatmul.mubr.f32.gmra.mxu0 %v1800
    %v1881 = vpop.f32.mrf.mxu0
    %v1882 = vadd.f32 0.0, %v1881
    %v1883 = vpop.f32.mrf.mxu0
    %1884 = vmatprep.mubr.f32.mxu0 0.0
    %1885 = vmatmul.mubr.f32.gmra.mxu0 %v1803
    %v1886 = vpop.f32.mrf.mxu0
    %v1887 = vadd.f32 0.0, %v1886
    %v1888 = vpop.f32.mrf.mxu0
    %1889 = vdwg.mxu0
    %v1890 = vadd.f32 %v1682, %v1872
    %v1891 = vadd.f32 %v1683, %v1877
    %v1892 = vadd.f32 %v1684, %v1882
    %v1893 = vadd.f32 %v1685, %v1887
    %v1894 = vld [vmem:[%s0 + $0x120] sm:$0xff]
    %v1895 = vld [vmem:[%s0 + $0x128] sm:$0xff]
    %v1896 = vld [vmem:[%s0 + $0x130] sm:$0xff]
    %v1897 = vld [vmem:[%s0 + $0x138] sm:$0xff]
    %v1899 = vsel %vm33, %v1894, 0
    %v1902 = vsel %vm33, %v1895, 0
    %v1905 = vsel %vm33, %v1896, 0
    %v1908 = vsel %vm33, %v1897, 0
    %1910 = vmatprep.subr.mxu0 0.0
    %1911 = vmatpush1.msra.mxu0 0.0
    %1912 = vmatprep.subr.mxu0 0.0
    %1913 = vmatpush1.msra.mxu0 0.0
    %1914 = vmatprep.subr.mxu0 0.0
    %1915 = vmatpush1.msra.mxu0 0.0
    %1916 = vmatprep.subr.mxu0 0.0
    %1917 = vmatpush1.msra.mxu0 0.0
    %1918 = vmatprep.subr.mxu0 0.0
    %1919 = vmatpush1.msra.mxu0 0.0
    %1920 = vmatprep.subr.mxu0 0.0
    %1921 = vmatpush1.msra.mxu0 0.0
    %1922 = vmatprep.subr.mxu0 0.0
    %1923 = vmatpush1.msra.mxu0 0.0
    %1924 = vmatprep.subr.mxu0 0.0
    %1925 = vmatpush1.msra.mxu0 0.0
    %1926 = vmatprep.subr.mxu0 0.0
    %1927 = vmatpush1.msra.mxu0 0.0
    %1928 = vmatprep.subr.mxu0 0.0
    %1929 = vmatpush1.msra.mxu0 0.0
    %1930 = vmatprep.subr.mxu0 0.0
    %1931 = vmatpush1.msra.mxu0 0.0
    %1932 = vmatprep.subr.mxu0 0.0
    %1933 = vmatpush1.msra.mxu0 0.0
    %1934 = vmatprep.subr.mxu0 0.0
    %1935 = vmatpush1.msra.mxu0 %v28
    %1936 = vmatprep.subr.mxu0 0.0
    %1937 = vmatpush1.msra.mxu0 %v27
    %1938 = vmatprep.subr.mxu0 0.0
    %1939 = vmatpush1.msra.mxu0 %v26
    %1940 = vmatprep.subr.mxu0 0.0
    %1941 = vmatpush1.msra.mxu0 %v25
    %1942 = vmatprep.subr.mxu0 0.0
    %1943 = vmatpush2.msra.mxu0 0.0
    %1944 = vmatprep.subr.mxu0 0.0
    %1945 = vmatpush2.msra.mxu0 0.0
    %1946 = vmatprep.subr.mxu0 0.0
    %1947 = vmatpush2.msra.mxu0 0.0
    %1948 = vmatprep.subr.mxu0 0.0
    %1949 = vmatpush2.msra.mxu0 0.0
    %1950 = vmatprep.subr.mxu0 0.0
    %1951 = vmatpush2.msra.mxu0 0.0
    %1952 = vmatprep.subr.mxu0 0.0
    %1953 = vmatpush2.msra.mxu0 0.0
    %1954 = vmatprep.subr.mxu0 0.0
    %1955 = vmatpush2.msra.mxu0 0.0
    %1956 = vmatprep.subr.mxu0 0.0
    %1957 = vmatpush2.msra.mxu0 0.0
    %1958 = vmatprep.subr.mxu0 0.0
    %1959 = vmatpush2.msra.mxu0 0.0
    %1960 = vmatprep.subr.mxu0 0.0
    %1961 = vmatpush2.msra.mxu0 0.0
    %1962 = vmatprep.subr.mxu0 0.0
    %1963 = vmatpush2.msra.mxu0 0.0
    %1964 = vmatprep.subr.mxu0 0.0
    %1965 = vmatpush2.msra.mxu0 0.0
    %1966 = vmatprep.subr.mxu0 0.0
    %1967 = vmatpush2.msra.mxu0 0.0
    %1968 = vmatprep.subr.mxu0 0.0
    %1969 = vmatpush2.msra.mxu0 0.0
    %1970 = vmatprep.subr.mxu0 0.0
    %1971 = vmatpush2.msra.mxu0 0.0
    %1972 = vmatprep.subr.mxu0 0.0
    %1973 = vmatpush2.msra.mxu0 0.0
    %1974 = vmatprep.mubr.f32.mxu0 0.0
    %1975 = vmatmul.mubr.f32.gmra.mxu0 %v1899
    %v1976 = vpop.f32.mrf.mxu0
    %v1977 = vadd.f32 0.0, %v1976
    %v1978 = vpop.f32.mrf.mxu0
    %1979 = vmatprep.mubr.f32.mxu0 0.0
    %1980 = vmatmul.mubr.f32.gmra.mxu0 %v1902
    %v1981 = vpop.f32.mrf.mxu0
    %v1982 = vadd.f32 0.0, %v1981
    %v1983 = vpop.f32.mrf.mxu0
    %1984 = vmatprep.mubr.f32.mxu0 0.0
    %1985 = vmatmul.mubr.f32.gmra.mxu0 %v1905
    %v1986 = vpop.f32.mrf.mxu0
    %v1987 = vadd.f32 0.0, %v1986
    %v1988 = vpop.f32.mrf.mxu0
    %1989 = vmatprep.mubr.f32.mxu0 0.0
    %1990 = vmatmul.mubr.f32.gmra.mxu0 %v1908
    %v1991 = vpop.f32.mrf.mxu0
    %v1992 = vadd.f32 0.0, %v1991
    %v1993 = vpop.f32.mrf.mxu0
    %1994 = vdwg.mxu0
    %v1995 = vmax.f32 %v1977, 0.0
    %v1996 = vmax.f32 %v1982, 0.0
    %v1997 = vmax.f32 %v1987, 0.0
    %v1998 = vmax.f32 %v1992, 0.0
    %s1999 = scalar_lea.vmem %s2, 72
    %v2000 = vld [vmem:[%s1999] sm:$0xff]
    %v2002 = vsel %vm243, %v1995, 0
    %v2005 = vsel %vm243, %v1996, 0
    %v2008 = vsel %vm243, %v1997, 0
    %v2011 = vsel %vm243, %v1998, 0
    %2013 = vmatprep.subr.mxu0 0.0
    %2014 = vmatpush1.msra.mxu0 0.0
    %2015 = vmatprep.subr.mxu0 0.0
    %2016 = vmatpush1.msra.mxu0 0.0
    %2017 = vmatprep.subr.mxu0 0.0
    %2018 = vmatpush1.msra.mxu0 0.0
    %2019 = vmatprep.subr.mxu0 0.0
    %2020 = vmatpush1.msra.mxu0 0.0
    %2021 = vmatprep.subr.mxu0 0.0
    %2022 = vmatpush1.msra.mxu0 0.0
    %2023 = vmatprep.subr.mxu0 0.0
    %2024 = vmatpush1.msra.mxu0 0.0
    %2025 = vmatprep.subr.mxu0 0.0
    %2026 = vmatpush1.msra.mxu0 0.0
    %2027 = vmatprep.subr.mxu0 0.0
    %2028 = vmatpush1.msra.mxu0 0.0
    %2029 = vmatprep.subr.mxu0 0.0
    %2030 = vmatpush1.msra.mxu0 0.0
    %2031 = vmatprep.subr.mxu0 0.0
    %2032 = vmatpush1.msra.mxu0 0.0
    %2033 = vmatprep.subr.mxu0 0.0
    %2034 = vmatpush1.msra.mxu0 0.0
    %2035 = vmatprep.subr.mxu0 0.0
    %2036 = vmatpush1.msra.mxu0 0.0
    %2037 = vmatprep.subr.mxu0 0.0
    %2038 = vmatpush1.msra.mxu0 0.0
    %2039 = vmatprep.subr.mxu0 0.0
    %2040 = vmatpush1.msra.mxu0 0.0
    %2041 = vmatprep.subr.mxu0 0.0
    %2042 = vmatpush1.msra.mxu0 0.0
    %2043 = vmatprep.subr.mxu0 0.0
    %2044 = vmatpush1.msra.mxu0 %v2000
    %2045 = vmatprep.subr.mxu0 0.0
    %2046 = vmatpush2.msra.mxu0 0.0
    %2047 = vmatprep.subr.mxu0 0.0
    %2048 = vmatpush2.msra.mxu0 0.0
    %2049 = vmatprep.subr.mxu0 0.0
    %2050 = vmatpush2.msra.mxu0 0.0
    %2051 = vmatprep.subr.mxu0 0.0
    %2052 = vmatpush2.msra.mxu0 0.0
    %2053 = vmatprep.subr.mxu0 0.0
    %2054 = vmatpush2.msra.mxu0 0.0
    %2055 = vmatprep.subr.mxu0 0.0
    %2056 = vmatpush2.msra.mxu0 0.0
    %2057 = vmatprep.subr.mxu0 0.0
    %2058 = vmatpush2.msra.mxu0 0.0
    %2059 = vmatprep.subr.mxu0 0.0
    %2060 = vmatpush2.msra.mxu0 0.0
    %2061 = vmatprep.subr.mxu0 0.0
    %2062 = vmatpush2.msra.mxu0 0.0
    %2063 = vmatprep.subr.mxu0 0.0
    %2064 = vmatpush2.msra.mxu0 0.0
    %2065 = vmatprep.subr.mxu0 0.0
    %2066 = vmatpush2.msra.mxu0 0.0
    %2067 = vmatprep.subr.mxu0 0.0
    %2068 = vmatpush2.msra.mxu0 0.0
    %2069 = vmatprep.subr.mxu0 0.0
    %2070 = vmatpush2.msra.mxu0 0.0
    %2071 = vmatprep.subr.mxu0 0.0
    %2072 = vmatpush2.msra.mxu0 0.0
    %2073 = vmatprep.subr.mxu0 0.0
    %2074 = vmatpush2.msra.mxu0 0.0
    %2075 = vmatprep.subr.mxu0 0.0
    %2076 = vmatpush2.msra.mxu0 0.0
    %2077 = vmatprep.mubr.f32.mxu0 0.0
    %2078 = vmatmul.mubr.f32.gmra.mxu0 %v2002
    %v2079 = vpop.f32.mrf.mxu0
    %v2080 = vadd.f32 0.0, %v2079
    %v2081 = vpop.f32.mrf.mxu0
    %2082 = vmatprep.mubr.f32.mxu0 0.0
    %2083 = vmatmul.mubr.f32.gmra.mxu0 %v2005
    %v2084 = vpop.f32.mrf.mxu0
    %v2085 = vadd.f32 0.0, %v2084
    %v2086 = vpop.f32.mrf.mxu0
    %2087 = vmatprep.mubr.f32.mxu0 0.0
    %2088 = vmatmul.mubr.f32.gmra.mxu0 %v2008
    %v2089 = vpop.f32.mrf.mxu0
    %v2090 = vadd.f32 0.0, %v2089
    %v2091 = vpop.f32.mrf.mxu0
    %2092 = vmatprep.mubr.f32.mxu0 0.0
    %2093 = vmatmul.mubr.f32.gmra.mxu0 %v2011
    %v2094 = vpop.f32.mrf.mxu0
    %v2095 = vadd.f32 0.0, %v2094
    %v2096 = vpop.f32.mrf.mxu0
    %2097 = vdwg.mxu0
    %v2098 = vadd.f32 %v1890, %v2080
    %v2099 = vadd.f32 %v1891, %v2085
    %v2100 = vadd.f32 %v1892, %v2090
    %v2101 = vadd.f32 %v1893, %v2095
    %v2102 = vld [vmem:[%s0 + $0x140] sm:$0xff]
    %v2103 = vld [vmem:[%s0 + $0x148] sm:$0xff]
    %v2104 = vld [vmem:[%s0 + $0x150] sm:$0xff]
    %v2105 = vld [vmem:[%s0 + $0x158] sm:$0xff]
    %v2107 = vsel %vm33, %v2102, 0
    %v2110 = vsel %vm33, %v2103, 0
    %v2113 = vsel %vm33, %v2104, 0
    %v2116 = vsel %vm33, %v2105, 0
    %2118 = vmatprep.subr.mxu0 0.0
    %2119 = vmatpush1.msra.mxu0 0.0
    %2120 = vmatprep.subr.mxu0 0.0
    %2121 = vmatpush1.msra.mxu0 0.0
    %2122 = vmatprep.subr.mxu0 0.0
    %2123 = vmatpush1.msra.mxu0 0.0
    %2124 = vmatprep.subr.mxu0 0.0
    %2125 = vmatpush1.msra.mxu0 0.0
    %2126 = vmatprep.subr.mxu0 0.0
    %2127 = vmatpush1.msra.mxu0 0.0
    %2128 = vmatprep.subr.mxu0 0.0
    %2129 = vmatpush1.msra.mxu0 0.0
    %2130 = vmatprep.subr.mxu0 0.0
    %2131 = vmatpush1.msra.mxu0 0.0
    %2132 = vmatprep.subr.mxu0 0.0
    %2133 = vmatpush1.msra.mxu0 0.0
    %2134 = vmatprep.subr.mxu0 0.0
    %2135 = vmatpush1.msra.mxu0 0.0
    %2136 = vmatprep.subr.mxu0 0.0
    %2137 = vmatpush1.msra.mxu0 0.0
    %2138 = vmatprep.subr.mxu0 0.0
    %2139 = vmatpush1.msra.mxu0 0.0
    %2140 = vmatprep.subr.mxu0 0.0
    %2141 = vmatpush1.msra.mxu0 0.0
    %2142 = vmatprep.subr.mxu0 0.0
    %2143 = vmatpush1.msra.mxu0 %v28
    %2144 = vmatprep.subr.mxu0 0.0
    %2145 = vmatpush1.msra.mxu0 %v27
    %2146 = vmatprep.subr.mxu0 0.0
    %2147 = vmatpush1.msra.mxu0 %v26
    %2148 = vmatprep.subr.mxu0 0.0
    %2149 = vmatpush1.msra.mxu0 %v25
    %2150 = vmatprep.subr.mxu0 0.0
    %2151 = vmatpush2.msra.mxu0 0.0
    %2152 = vmatprep.subr.mxu0 0.0
    %2153 = vmatpush2.msra.mxu0 0.0
    %2154 = vmatprep.subr.mxu0 0.0
    %2155 = vmatpush2.msra.mxu0 0.0
    %2156 = vmatprep.subr.mxu0 0.0
    %2157 = vmatpush2.msra.mxu0 0.0
    %2158 = vmatprep.subr.mxu0 0.0
    %2159 = vmatpush2.msra.mxu0 0.0
    %2160 = vmatprep.subr.mxu0 0.0
    %2161 = vmatpush2.msra.mxu0 0.0
    %2162 = vmatprep.subr.mxu0 0.0
    %2163 = vmatpush2.msra.mxu0 0.0
    %2164 = vmatprep.subr.mxu0 0.0
    %2165 = vmatpush2.msra.mxu0 0.0
    %2166 = vmatprep.subr.mxu0 0.0
    %2167 = vmatpush2.msra.mxu0 0.0
    %2168 = vmatprep.subr.mxu0 0.0
    %2169 = vmatpush2.msra.mxu0 0.0
    %2170 = vmatprep.subr.mxu0 0.0
    %2171 = vmatpush2.msra.mxu0 0.0
    %2172 = vmatprep.subr.mxu0 0.0
    %2173 = vmatpush2.msra.mxu0 0.0
    %2174 = vmatprep.subr.mxu0 0.0
    %2175 = vmatpush2.msra.mxu0 0.0
    %2176 = vmatprep.subr.mxu0 0.0
    %2177 = vmatpush2.msra.mxu0 0.0
    %2178 = vmatprep.subr.mxu0 0.0
    %2179 = vmatpush2.msra.mxu0 0.0
    %2180 = vmatprep.subr.mxu0 0.0
    %2181 = vmatpush2.msra.mxu0 0.0
    %2182 = vmatprep.mubr.f32.mxu0 0.0
    %2183 = vmatmul.mubr.f32.gmra.mxu0 %v2107
    %v2184 = vpop.f32.mrf.mxu0
    %v2185 = vadd.f32 0.0, %v2184
    %v2186 = vpop.f32.mrf.mxu0
    %2187 = vmatprep.mubr.f32.mxu0 0.0
    %2188 = vmatmul.mubr.f32.gmra.mxu0 %v2110
    %v2189 = vpop.f32.mrf.mxu0
    %v2190 = vadd.f32 0.0, %v2189
    %v2191 = vpop.f32.mrf.mxu0
    %2192 = vmatprep.mubr.f32.mxu0 0.0
    %2193 = vmatmul.mubr.f32.gmra.mxu0 %v2113
    %v2194 = vpop.f32.mrf.mxu0
    %v2195 = vadd.f32 0.0, %v2194
    %v2196 = vpop.f32.mrf.mxu0
    %2197 = vmatprep.mubr.f32.mxu0 0.0
    %2198 = vmatmul.mubr.f32.gmra.mxu0 %v2116
    %v2199 = vpop.f32.mrf.mxu0
    %v2200 = vadd.f32 0.0, %v2199
    %v2201 = vpop.f32.mrf.mxu0
    %2202 = vdwg.mxu0
    %v2203 = vmax.f32 %v2185, 0.0
    %v2204 = vmax.f32 %v2190, 0.0
    %v2205 = vmax.f32 %v2195, 0.0
    %v2206 = vmax.f32 %v2200, 0.0
    %s2207 = scalar_lea.vmem %s2, 80
    %v2208 = vld [vmem:[%s2207] sm:$0xff]
    %v2210 = vsel %vm243, %v2203, 0
    %v2213 = vsel %vm243, %v2204, 0
    %v2216 = vsel %vm243, %v2205, 0
    %v2219 = vsel %vm243, %v2206, 0
    %2221 = vmatprep.subr.mxu0 0.0
    %2222 = vmatpush1.msra.mxu0 0.0
    %2223 = vmatprep.subr.mxu0 0.0
    %2224 = vmatpush1.msra.mxu0 0.0
    %2225 = vmatprep.subr.mxu0 0.0
    %2226 = vmatpush1.msra.mxu0 0.0
    %2227 = vmatprep.subr.mxu0 0.0
    %2228 = vmatpush1.msra.mxu0 0.0
    %2229 = vmatprep.subr.mxu0 0.0
    %2230 = vmatpush1.msra.mxu0 0.0
    %2231 = vmatprep.subr.mxu0 0.0
    %2232 = vmatpush1.msra.mxu0 0.0
    %2233 = vmatprep.subr.mxu0 0.0
    %2234 = vmatpush1.msra.mxu0 0.0
    %2235 = vmatprep.subr.mxu0 0.0
    %2236 = vmatpush1.msra.mxu0 0.0
    %2237 = vmatprep.subr.mxu0 0.0
    %2238 = vmatpush1.msra.mxu0 0.0
    %2239 = vmatprep.subr.mxu0 0.0
    %2240 = vmatpush1.msra.mxu0 0.0
    %2241 = vmatprep.subr.mxu0 0.0
    %2242 = vmatpush1.msra.mxu0 0.0
    %2243 = vmatprep.subr.mxu0 0.0
    %2244 = vmatpush1.msra.mxu0 0.0
    %2245 = vmatprep.subr.mxu0 0.0
    %2246 = vmatpush1.msra.mxu0 0.0
    %2247 = vmatprep.subr.mxu0 0.0
    %2248 = vmatpush1.msra.mxu0 0.0
    %2249 = vmatprep.subr.mxu0 0.0
    %2250 = vmatpush1.msra.mxu0 0.0
    %2251 = vmatprep.subr.mxu0 0.0
    %2252 = vmatpush1.msra.mxu0 %v2208
    %2253 = vmatprep.subr.mxu0 0.0
    %2254 = vmatpush2.msra.mxu0 0.0
    %2255 = vmatprep.subr.mxu0 0.0
    %2256 = vmatpush2.msra.mxu0 0.0
    %2257 = vmatprep.subr.mxu0 0.0
    %2258 = vmatpush2.msra.mxu0 0.0
    %2259 = vmatprep.subr.mxu0 0.0
    %2260 = vmatpush2.msra.mxu0 0.0
    %2261 = vmatprep.subr.mxu0 0.0
    %2262 = vmatpush2.msra.mxu0 0.0
    %2263 = vmatprep.subr.mxu0 0.0
    %2264 = vmatpush2.msra.mxu0 0.0
    %2265 = vmatprep.subr.mxu0 0.0
    %2266 = vmatpush2.msra.mxu0 0.0
    %2267 = vmatprep.subr.mxu0 0.0
    %2268 = vmatpush2.msra.mxu0 0.0
    %2269 = vmatprep.subr.mxu0 0.0
    %2270 = vmatpush2.msra.mxu0 0.0
    %2271 = vmatprep.subr.mxu0 0.0
    %2272 = vmatpush2.msra.mxu0 0.0
    %2273 = vmatprep.subr.mxu0 0.0
    %2274 = vmatpush2.msra.mxu0 0.0
    %2275 = vmatprep.subr.mxu0 0.0
    %2276 = vmatpush2.msra.mxu0 0.0
    %2277 = vmatprep.subr.mxu0 0.0
    %2278 = vmatpush2.msra.mxu0 0.0
    %2279 = vmatprep.subr.mxu0 0.0
    %2280 = vmatpush2.msra.mxu0 0.0
    %2281 = vmatprep.subr.mxu0 0.0
    %2282 = vmatpush2.msra.mxu0 0.0
    %2283 = vmatprep.subr.mxu0 0.0
    %2284 = vmatpush2.msra.mxu0 0.0
    %2285 = vmatprep.mubr.f32.mxu0 0.0
    %2286 = vmatmul.mubr.f32.gmra.mxu0 %v2210
    %v2287 = vpop.f32.mrf.mxu0
    %v2288 = vadd.f32 0.0, %v2287
    %v2289 = vpop.f32.mrf.mxu0
    %2290 = vmatprep.mubr.f32.mxu0 0.0
    %2291 = vmatmul.mubr.f32.gmra.mxu0 %v2213
    %v2292 = vpop.f32.mrf.mxu0
    %v2293 = vadd.f32 0.0, %v2292
    %v2294 = vpop.f32.mrf.mxu0
    %2295 = vmatprep.mubr.f32.mxu0 0.0
    %2296 = vmatmul.mubr.f32.gmra.mxu0 %v2216
    %v2297 = vpop.f32.mrf.mxu0
    %v2298 = vadd.f32 0.0, %v2297
    %v2299 = vpop.f32.mrf.mxu0
    %2300 = vmatprep.mubr.f32.mxu0 0.0
    %2301 = vmatmul.mubr.f32.gmra.mxu0 %v2219
    %v2302 = vpop.f32.mrf.mxu0
    %v2303 = vadd.f32 0.0, %v2302
    %v2304 = vpop.f32.mrf.mxu0
    %2305 = vdwg.mxu0
    %v2306 = vadd.f32 %v2098, %v2288
    %v2307 = vadd.f32 %v2099, %v2293
    %v2308 = vadd.f32 %v2100, %v2298
    %v2309 = vadd.f32 %v2101, %v2303
    %v2310 = vld [vmem:[%s0 + $0x160] sm:$0xff]
    %v2311 = vld [vmem:[%s0 + $0x168] sm:$0xff]
    %v2312 = vld [vmem:[%s0 + $0x170] sm:$0xff]
    %v2313 = vld [vmem:[%s0 + $0x178] sm:$0xff]
    %v2315 = vsel %vm33, %v2310, 0
    %v2318 = vsel %vm33, %v2311, 0
    %v2321 = vsel %vm33, %v2312, 0
    %v2324 = vsel %vm33, %v2313, 0
    %2326 = vmatprep.subr.mxu0 0.0
    %2327 = vmatpush1.msra.mxu0 0.0
    %2328 = vmatprep.subr.mxu0 0.0
    %2329 = vmatpush1.msra.mxu0 0.0
    %2330 = vmatprep.subr.mxu0 0.0
    %2331 = vmatpush1.msra.mxu0 0.0
    %2332 = vmatprep.subr.mxu0 0.0
    %2333 = vmatpush1.msra.mxu0 0.0
    %2334 = vmatprep.subr.mxu0 0.0
    %2335 = vmatpush1.msra.mxu0 0.0
    %2336 = vmatprep.subr.mxu0 0.0
    %2337 = vmatpush1.msra.mxu0 0.0
    %2338 = vmatprep.subr.mxu0 0.0
    %2339 = vmatpush1.msra.mxu0 0.0
    %2340 = vmatprep.subr.mxu0 0.0
    %2341 = vmatpush1.msra.mxu0 0.0
    %2342 = vmatprep.subr.mxu0 0.0
    %2343 = vmatpush1.msra.mxu0 0.0
    %2344 = vmatprep.subr.mxu0 0.0
    %2345 = vmatpush1.msra.mxu0 0.0
    %2346 = vmatprep.subr.mxu0 0.0
    %2347 = vmatpush1.msra.mxu0 0.0
    %2348 = vmatprep.subr.mxu0 0.0
    %2349 = vmatpush1.msra.mxu0 0.0
    %2350 = vmatprep.subr.mxu0 0.0
    %2351 = vmatpush1.msra.mxu0 %v28
    %2352 = vmatprep.subr.mxu0 0.0
    %2353 = vmatpush1.msra.mxu0 %v27
    %2354 = vmatprep.subr.mxu0 0.0
    %2355 = vmatpush1.msra.mxu0 %v26
    %2356 = vmatprep.subr.mxu0 0.0
    %2357 = vmatpush1.msra.mxu0 %v25
    %2358 = vmatprep.subr.mxu0 0.0
    %2359 = vmatpush2.msra.mxu0 0.0
    %2360 = vmatprep.subr.mxu0 0.0
    %2361 = vmatpush2.msra.mxu0 0.0
    %2362 = vmatprep.subr.mxu0 0.0
    %2363 = vmatpush2.msra.mxu0 0.0
    %2364 = vmatprep.subr.mxu0 0.0
    %2365 = vmatpush2.msra.mxu0 0.0
    %2366 = vmatprep.subr.mxu0 0.0
    %2367 = vmatpush2.msra.mxu0 0.0
    %2368 = vmatprep.subr.mxu0 0.0
    %2369 = vmatpush2.msra.mxu0 0.0
    %2370 = vmatprep.subr.mxu0 0.0
    %2371 = vmatpush2.msra.mxu0 0.0
    %2372 = vmatprep.subr.mxu0 0.0
    %2373 = vmatpush2.msra.mxu0 0.0
    %2374 = vmatprep.subr.mxu0 0.0
    %2375 = vmatpush2.msra.mxu0 0.0
    %2376 = vmatprep.subr.mxu0 0.0
    %2377 = vmatpush2.msra.mxu0 0.0
    %2378 = vmatprep.subr.mxu0 0.0
    %2379 = vmatpush2.msra.mxu0 0.0
    %2380 = vmatprep.subr.mxu0 0.0
    %2381 = vmatpush2.msra.mxu0 0.0
    %2382 = vmatprep.subr.mxu0 0.0
    %2383 = vmatpush2.msra.mxu0 0.0
    %2384 = vmatprep.subr.mxu0 0.0
    %2385 = vmatpush2.msra.mxu0 0.0
    %2386 = vmatprep.subr.mxu0 0.0
    %2387 = vmatpush2.msra.mxu0 0.0
    %2388 = vmatprep.subr.mxu0 0.0
    %2389 = vmatpush2.msra.mxu0 0.0
    %2390 = vmatprep.mubr.f32.mxu0 0.0
    %2391 = vmatmul.mubr.f32.gmra.mxu0 %v2315
    %v2392 = vpop.f32.mrf.mxu0
    %v2393 = vadd.f32 0.0, %v2392
    %v2394 = vpop.f32.mrf.mxu0
    %2395 = vmatprep.mubr.f32.mxu0 0.0
    %2396 = vmatmul.mubr.f32.gmra.mxu0 %v2318
    %v2397 = vpop.f32.mrf.mxu0
    %v2398 = vadd.f32 0.0, %v2397
    %v2399 = vpop.f32.mrf.mxu0
    %2400 = vmatprep.mubr.f32.mxu0 0.0
    %2401 = vmatmul.mubr.f32.gmra.mxu0 %v2321
    %v2402 = vpop.f32.mrf.mxu0
    %v2403 = vadd.f32 0.0, %v2402
    %v2404 = vpop.f32.mrf.mxu0
    %2405 = vmatprep.mubr.f32.mxu0 0.0
    %2406 = vmatmul.mubr.f32.gmra.mxu0 %v2324
    %v2407 = vpop.f32.mrf.mxu0
    %v2408 = vadd.f32 0.0, %v2407
    %v2409 = vpop.f32.mrf.mxu0
    %2410 = vdwg.mxu0
    %v2411 = vmax.f32 %v2393, 0.0
    %v2412 = vmax.f32 %v2398, 0.0
    %v2413 = vmax.f32 %v2403, 0.0
    %v2414 = vmax.f32 %v2408, 0.0
    %s2415 = scalar_lea.vmem %s2, 88
    %v2416 = vld [vmem:[%s2415] sm:$0xff]
    %v2418 = vsel %vm243, %v2411, 0
    %v2421 = vsel %vm243, %v2412, 0
    %v2424 = vsel %vm243, %v2413, 0
    %v2427 = vsel %vm243, %v2414, 0
    %2429 = vmatprep.subr.mxu0 0.0
    %2430 = vmatpush1.msra.mxu0 0.0
    %2431 = vmatprep.subr.mxu0 0.0
    %2432 = vmatpush1.msra.mxu0 0.0
    %2433 = vmatprep.subr.mxu0 0.0
    %2434 = vmatpush1.msra.mxu0 0.0
    %2435 = vmatprep.subr.mxu0 0.0
    %2436 = vmatpush1.msra.mxu0 0.0
    %2437 = vmatprep.subr.mxu0 0.0
    %2438 = vmatpush1.msra.mxu0 0.0
    %2439 = vmatprep.subr.mxu0 0.0
    %2440 = vmatpush1.msra.mxu0 0.0
    %2441 = vmatprep.subr.mxu0 0.0
    %2442 = vmatpush1.msra.mxu0 0.0
    %2443 = vmatprep.subr.mxu0 0.0
    %2444 = vmatpush1.msra.mxu0 0.0
    %2445 = vmatprep.subr.mxu0 0.0
    %2446 = vmatpush1.msra.mxu0 0.0
    %2447 = vmatprep.subr.mxu0 0.0
    %2448 = vmatpush1.msra.mxu0 0.0
    %2449 = vmatprep.subr.mxu0 0.0
    %2450 = vmatpush1.msra.mxu0 0.0
    %2451 = vmatprep.subr.mxu0 0.0
    %2452 = vmatpush1.msra.mxu0 0.0
    %2453 = vmatprep.subr.mxu0 0.0
    %2454 = vmatpush1.msra.mxu0 0.0
    %2455 = vmatprep.subr.mxu0 0.0
    %2456 = vmatpush1.msra.mxu0 0.0
    %2457 = vmatprep.subr.mxu0 0.0
    %2458 = vmatpush1.msra.mxu0 0.0
    %2459 = vmatprep.subr.mxu0 0.0
    %2460 = vmatpush1.msra.mxu0 %v2416
    %2461 = vmatprep.subr.mxu0 0.0
    %2462 = vmatpush2.msra.mxu0 0.0
    %2463 = vmatprep.subr.mxu0 0.0
    %2464 = vmatpush2.msra.mxu0 0.0
    %2465 = vmatprep.subr.mxu0 0.0
    %2466 = vmatpush2.msra.mxu0 0.0
    %2467 = vmatprep.subr.mxu0 0.0
    %2468 = vmatpush2.msra.mxu0 0.0
    %2469 = vmatprep.subr.mxu0 0.0
    %2470 = vmatpush2.msra.mxu0 0.0
    %2471 = vmatprep.subr.mxu0 0.0
    %2472 = vmatpush2.msra.mxu0 0.0
    %2473 = vmatprep.subr.mxu0 0.0
    %2474 = vmatpush2.msra.mxu0 0.0
    %2475 = vmatprep.subr.mxu0 0.0
    %2476 = vmatpush2.msra.mxu0 0.0
    %2477 = vmatprep.subr.mxu0 0.0
    %2478 = vmatpush2.msra.mxu0 0.0
    %2479 = vmatprep.subr.mxu0 0.0
    %2480 = vmatpush2.msra.mxu0 0.0
    %2481 = vmatprep.subr.mxu0 0.0
    %2482 = vmatpush2.msra.mxu0 0.0
    %2483 = vmatprep.subr.mxu0 0.0
    %2484 = vmatpush2.msra.mxu0 0.0
    %2485 = vmatprep.subr.mxu0 0.0
    %2486 = vmatpush2.msra.mxu0 0.0
    %2487 = vmatprep.subr.mxu0 0.0
    %2488 = vmatpush2.msra.mxu0 0.0
    %2489 = vmatprep.subr.mxu0 0.0
    %2490 = vmatpush2.msra.mxu0 0.0
    %2491 = vmatprep.subr.mxu0 0.0
    %2492 = vmatpush2.msra.mxu0 0.0
    %2493 = vmatprep.mubr.f32.mxu0 0.0
    %2494 = vmatmul.mubr.f32.gmra.mxu0 %v2418
    %v2495 = vpop.f32.mrf.mxu0
    %v2496 = vadd.f32 0.0, %v2495
    %v2497 = vpop.f32.mrf.mxu0
    %2498 = vmatprep.mubr.f32.mxu0 0.0
    %2499 = vmatmul.mubr.f32.gmra.mxu0 %v2421
    %v2500 = vpop.f32.mrf.mxu0
    %v2501 = vadd.f32 0.0, %v2500
    %v2502 = vpop.f32.mrf.mxu0
    %2503 = vmatprep.mubr.f32.mxu0 0.0
    %2504 = vmatmul.mubr.f32.gmra.mxu0 %v2424
    %v2505 = vpop.f32.mrf.mxu0
    %v2506 = vadd.f32 0.0, %v2505
    %v2507 = vpop.f32.mrf.mxu0
    %2508 = vmatprep.mubr.f32.mxu0 0.0
    %2509 = vmatmul.mubr.f32.gmra.mxu0 %v2427
    %v2510 = vpop.f32.mrf.mxu0
    %v2511 = vadd.f32 0.0, %v2510
    %v2512 = vpop.f32.mrf.mxu0
    %2513 = vdwg.mxu0
    %v2514 = vadd.f32 %v2306, %v2496
    %v2515 = vadd.f32 %v2307, %v2501
    %v2516 = vadd.f32 %v2308, %v2506
    %v2517 = vadd.f32 %v2309, %v2511
    %v2518 = vld [vmem:[%s0 + $0x180] sm:$0xff]
    %v2519 = vld [vmem:[%s0 + $0x188] sm:$0xff]
    %v2520 = vld [vmem:[%s0 + $0x190] sm:$0xff]
    %v2521 = vld [vmem:[%s0 + $0x198] sm:$0xff]
    %v2523 = vsel %vm33, %v2518, 0
    %v2526 = vsel %vm33, %v2519, 0
    %v2529 = vsel %vm33, %v2520, 0
    %v2532 = vsel %vm33, %v2521, 0
    %2534 = vmatprep.subr.mxu0 0.0
    %2535 = vmatpush1.msra.mxu0 0.0
    %2536 = vmatprep.subr.mxu0 0.0
    %2537 = vmatpush1.msra.mxu0 0.0
    %2538 = vmatprep.subr.mxu0 0.0
    %2539 = vmatpush1.msra.mxu0 0.0
    %2540 = vmatprep.subr.mxu0 0.0
    %2541 = vmatpush1.msra.mxu0 0.0
    %2542 = vmatprep.subr.mxu0 0.0
    %2543 = vmatpush1.msra.mxu0 0.0
    %2544 = vmatprep.subr.mxu0 0.0
    %2545 = vmatpush1.msra.mxu0 0.0
    %2546 = vmatprep.subr.mxu0 0.0
    %2547 = vmatpush1.msra.mxu0 0.0
    %2548 = vmatprep.subr.mxu0 0.0
    %2549 = vmatpush1.msra.mxu0 0.0
    %2550 = vmatprep.subr.mxu0 0.0
    %2551 = vmatpush1.msra.mxu0 0.0
    %2552 = vmatprep.subr.mxu0 0.0
    %2553 = vmatpush1.msra.mxu0 0.0
    %2554 = vmatprep.subr.mxu0 0.0
    %2555 = vmatpush1.msra.mxu0 0.0
    %2556 = vmatprep.subr.mxu0 0.0
    %2557 = vmatpush1.msra.mxu0 0.0
    %2558 = vmatprep.subr.mxu0 0.0
    %2559 = vmatpush1.msra.mxu0 %v28
    %2560 = vmatprep.subr.mxu0 0.0
    %2561 = vmatpush1.msra.mxu0 %v27
    %2562 = vmatprep.subr.mxu0 0.0
    %2563 = vmatpush1.msra.mxu0 %v26
    %2564 = vmatprep.subr.mxu0 0.0
    %2565 = vmatpush1.msra.mxu0 %v25
    %2566 = vmatprep.subr.mxu0 0.0
    %2567 = vmatpush2.msra.mxu0 0.0
    %2568 = vmatprep.subr.mxu0 0.0
    %2569 = vmatpush2.msra.mxu0 0.0
    %2570 = vmatprep.subr.mxu0 0.0
    %2571 = vmatpush2.msra.mxu0 0.0
    %2572 = vmatprep.subr.mxu0 0.0
    %2573 = vmatpush2.msra.mxu0 0.0
    %2574 = vmatprep.subr.mxu0 0.0
    %2575 = vmatpush2.msra.mxu0 0.0
    %2576 = vmatprep.subr.mxu0 0.0
    %2577 = vmatpush2.msra.mxu0 0.0
    %2578 = vmatprep.subr.mxu0 0.0
    %2579 = vmatpush2.msra.mxu0 0.0
    %2580 = vmatprep.subr.mxu0 0.0
    %2581 = vmatpush2.msra.mxu0 0.0
    %2582 = vmatprep.subr.mxu0 0.0
    %2583 = vmatpush2.msra.mxu0 0.0
    %2584 = vmatprep.subr.mxu0 0.0
    %2585 = vmatpush2.msra.mxu0 0.0
    %2586 = vmatprep.subr.mxu0 0.0
    %2587 = vmatpush2.msra.mxu0 0.0
    %2588 = vmatprep.subr.mxu0 0.0
    %2589 = vmatpush2.msra.mxu0 0.0
    %2590 = vmatprep.subr.mxu0 0.0
    %2591 = vmatpush2.msra.mxu0 0.0
    %2592 = vmatprep.subr.mxu0 0.0
    %2593 = vmatpush2.msra.mxu0 0.0
    %2594 = vmatprep.subr.mxu0 0.0
    %2595 = vmatpush2.msra.mxu0 0.0
    %2596 = vmatprep.subr.mxu0 0.0
    %2597 = vmatpush2.msra.mxu0 0.0
    %2598 = vmatprep.mubr.f32.mxu0 0.0
    %2599 = vmatmul.mubr.f32.gmra.mxu0 %v2523
    %v2600 = vpop.f32.mrf.mxu0
    %v2601 = vadd.f32 0.0, %v2600
    %v2602 = vpop.f32.mrf.mxu0
    %2603 = vmatprep.mubr.f32.mxu0 0.0
    %2604 = vmatmul.mubr.f32.gmra.mxu0 %v2526
    %v2605 = vpop.f32.mrf.mxu0
    %v2606 = vadd.f32 0.0, %v2605
    %v2607 = vpop.f32.mrf.mxu0
    %2608 = vmatprep.mubr.f32.mxu0 0.0
    %2609 = vmatmul.mubr.f32.gmra.mxu0 %v2529
    %v2610 = vpop.f32.mrf.mxu0
    %v2611 = vadd.f32 0.0, %v2610
    %v2612 = vpop.f32.mrf.mxu0
    %2613 = vmatprep.mubr.f32.mxu0 0.0
    %2614 = vmatmul.mubr.f32.gmra.mxu0 %v2532
    %v2615 = vpop.f32.mrf.mxu0
    %v2616 = vadd.f32 0.0, %v2615
    %v2617 = vpop.f32.mrf.mxu0
    %2618 = vdwg.mxu0
    %v2619 = vmax.f32 %v2601, 0.0
    %v2620 = vmax.f32 %v2606, 0.0
    %v2621 = vmax.f32 %v2611, 0.0
    %v2622 = vmax.f32 %v2616, 0.0
    %s2623 = scalar_lea.vmem %s2, 96
    %v2624 = vld [vmem:[%s2623] sm:$0xff]
    %v2626 = vsel %vm243, %v2619, 0
    %v2629 = vsel %vm243, %v2620, 0
    %v2632 = vsel %vm243, %v2621, 0
    %v2635 = vsel %vm243, %v2622, 0
    %2637 = vmatprep.subr.mxu0 0.0
    %2638 = vmatpush1.msra.mxu0 0.0
    %2639 = vmatprep.subr.mxu0 0.0
    %2640 = vmatpush1.msra.mxu0 0.0
    %2641 = vmatprep.subr.mxu0 0.0
    %2642 = vmatpush1.msra.mxu0 0.0
    %2643 = vmatprep.subr.mxu0 0.0
    %2644 = vmatpush1.msra.mxu0 0.0
    %2645 = vmatprep.subr.mxu0 0.0
    %2646 = vmatpush1.msra.mxu0 0.0
    %2647 = vmatprep.subr.mxu0 0.0
    %2648 = vmatpush1.msra.mxu0 0.0
    %2649 = vmatprep.subr.mxu0 0.0
    %2650 = vmatpush1.msra.mxu0 0.0
    %2651 = vmatprep.subr.mxu0 0.0
    %2652 = vmatpush1.msra.mxu0 0.0
    %2653 = vmatprep.subr.mxu0 0.0
    %2654 = vmatpush1.msra.mxu0 0.0
    %2655 = vmatprep.subr.mxu0 0.0
    %2656 = vmatpush1.msra.mxu0 0.0
    %2657 = vmatprep.subr.mxu0 0.0
    %2658 = vmatpush1.msra.mxu0 0.0
    %2659 = vmatprep.subr.mxu0 0.0
    %2660 = vmatpush1.msra.mxu0 0.0
    %2661 = vmatprep.subr.mxu0 0.0
    %2662 = vmatpush1.msra.mxu0 0.0
    %2663 = vmatprep.subr.mxu0 0.0
    %2664 = vmatpush1.msra.mxu0 0.0
    %2665 = vmatprep.subr.mxu0 0.0
    %2666 = vmatpush1.msra.mxu0 0.0
    %2667 = vmatprep.subr.mxu0 0.0
    %2668 = vmatpush1.msra.mxu0 %v2624
    %2669 = vmatprep.subr.mxu0 0.0
    %2670 = vmatpush2.msra.mxu0 0.0
    %2671 = vmatprep.subr.mxu0 0.0
    %2672 = vmatpush2.msra.mxu0 0.0
    %2673 = vmatprep.subr.mxu0 0.0
    %2674 = vmatpush2.msra.mxu0 0.0
    %2675 = vmatprep.subr.mxu0 0.0
    %2676 = vmatpush2.msra.mxu0 0.0
    %2677 = vmatprep.subr.mxu0 0.0
    %2678 = vmatpush2.msra.mxu0 0.0
    %2679 = vmatprep.subr.mxu0 0.0
    %2680 = vmatpush2.msra.mxu0 0.0
    %2681 = vmatprep.subr.mxu0 0.0
    %2682 = vmatpush2.msra.mxu0 0.0
    %2683 = vmatprep.subr.mxu0 0.0
    %2684 = vmatpush2.msra.mxu0 0.0
    %2685 = vmatprep.subr.mxu0 0.0
    %2686 = vmatpush2.msra.mxu0 0.0
    %2687 = vmatprep.subr.mxu0 0.0
    %2688 = vmatpush2.msra.mxu0 0.0
    %2689 = vmatprep.subr.mxu0 0.0
    %2690 = vmatpush2.msra.mxu0 0.0
    %2691 = vmatprep.subr.mxu0 0.0
    %2692 = vmatpush2.msra.mxu0 0.0
    %2693 = vmatprep.subr.mxu0 0.0
    %2694 = vmatpush2.msra.mxu0 0.0
    %2695 = vmatprep.subr.mxu0 0.0
    %2696 = vmatpush2.msra.mxu0 0.0
    %2697 = vmatprep.subr.mxu0 0.0
    %2698 = vmatpush2.msra.mxu0 0.0
    %2699 = vmatprep.subr.mxu0 0.0
    %2700 = vmatpush2.msra.mxu0 0.0
    %2701 = vmatprep.mubr.f32.mxu0 0.0
    %2702 = vmatmul.mubr.f32.gmra.mxu0 %v2626
    %v2703 = vpop.f32.mrf.mxu0
    %v2704 = vadd.f32 0.0, %v2703
    %v2705 = vpop.f32.mrf.mxu0
    %2706 = vmatprep.mubr.f32.mxu0 0.0
    %2707 = vmatmul.mubr.f32.gmra.mxu0 %v2629
    %v2708 = vpop.f32.mrf.mxu0
    %v2709 = vadd.f32 0.0, %v2708
    %v2710 = vpop.f32.mrf.mxu0
    %2711 = vmatprep.mubr.f32.mxu0 0.0
    %2712 = vmatmul.mubr.f32.gmra.mxu0 %v2632
    %v2713 = vpop.f32.mrf.mxu0
    %v2714 = vadd.f32 0.0, %v2713
    %v2715 = vpop.f32.mrf.mxu0
    %2716 = vmatprep.mubr.f32.mxu0 0.0
    %2717 = vmatmul.mubr.f32.gmra.mxu0 %v2635
    %v2718 = vpop.f32.mrf.mxu0
    %v2719 = vadd.f32 0.0, %v2718
    %v2720 = vpop.f32.mrf.mxu0
    %2721 = vdwg.mxu0
    %v2722 = vadd.f32 %v2514, %v2704
    %v2723 = vadd.f32 %v2515, %v2709
    %v2724 = vadd.f32 %v2516, %v2714
    %v2725 = vadd.f32 %v2517, %v2719
    %v2726 = vld [vmem:[%s0 + $0x1a0] sm:$0xff]
    %v2727 = vld [vmem:[%s0 + $0x1a8] sm:$0xff]
    %v2728 = vld [vmem:[%s0 + $0x1b0] sm:$0xff]
    %v2729 = vld [vmem:[%s0 + $0x1b8] sm:$0xff]
    %v2731 = vsel %vm33, %v2726, 0
    %v2734 = vsel %vm33, %v2727, 0
    %v2737 = vsel %vm33, %v2728, 0
    %v2740 = vsel %vm33, %v2729, 0
    %2742 = vmatprep.subr.mxu0 0.0
    %2743 = vmatpush1.msra.mxu0 0.0
    %2744 = vmatprep.subr.mxu0 0.0
    %2745 = vmatpush1.msra.mxu0 0.0
    %2746 = vmatprep.subr.mxu0 0.0
    %2747 = vmatpush1.msra.mxu0 0.0
    %2748 = vmatprep.subr.mxu0 0.0
    %2749 = vmatpush1.msra.mxu0 0.0
    %2750 = vmatprep.subr.mxu0 0.0
    %2751 = vmatpush1.msra.mxu0 0.0
    %2752 = vmatprep.subr.mxu0 0.0
    %2753 = vmatpush1.msra.mxu0 0.0
    %2754 = vmatprep.subr.mxu0 0.0
    %2755 = vmatpush1.msra.mxu0 0.0
    %2756 = vmatprep.subr.mxu0 0.0
    %2757 = vmatpush1.msra.mxu0 0.0
    %2758 = vmatprep.subr.mxu0 0.0
    %2759 = vmatpush1.msra.mxu0 0.0
    %2760 = vmatprep.subr.mxu0 0.0
    %2761 = vmatpush1.msra.mxu0 0.0
    %2762 = vmatprep.subr.mxu0 0.0
    %2763 = vmatpush1.msra.mxu0 0.0
    %2764 = vmatprep.subr.mxu0 0.0
    %2765 = vmatpush1.msra.mxu0 0.0
    %2766 = vmatprep.subr.mxu0 0.0
    %2767 = vmatpush1.msra.mxu0 %v28
    %2768 = vmatprep.subr.mxu0 0.0
    %2769 = vmatpush1.msra.mxu0 %v27
    %2770 = vmatprep.subr.mxu0 0.0
    %2771 = vmatpush1.msra.mxu0 %v26
    %2772 = vmatprep.subr.mxu0 0.0
    %2773 = vmatpush1.msra.mxu0 %v25
    %2774 = vmatprep.subr.mxu0 0.0
    %2775 = vmatpush2.msra.mxu0 0.0
    %2776 = vmatprep.subr.mxu0 0.0
    %2777 = vmatpush2.msra.mxu0 0.0
    %2778 = vmatprep.subr.mxu0 0.0
    %2779 = vmatpush2.msra.mxu0 0.0
    %2780 = vmatprep.subr.mxu0 0.0
    %2781 = vmatpush2.msra.mxu0 0.0
    %2782 = vmatprep.subr.mxu0 0.0
    %2783 = vmatpush2.msra.mxu0 0.0
    %2784 = vmatprep.subr.mxu0 0.0
    %2785 = vmatpush2.msra.mxu0 0.0
    %2786 = vmatprep.subr.mxu0 0.0
    %2787 = vmatpush2.msra.mxu0 0.0
    %2788 = vmatprep.subr.mxu0 0.0
    %2789 = vmatpush2.msra.mxu0 0.0
    %2790 = vmatprep.subr.mxu0 0.0
    %2791 = vmatpush2.msra.mxu0 0.0
    %2792 = vmatprep.subr.mxu0 0.0
    %2793 = vmatpush2.msra.mxu0 0.0
    %2794 = vmatprep.subr.mxu0 0.0
    %2795 = vmatpush2.msra.mxu0 0.0
    %2796 = vmatprep.subr.mxu0 0.0
    %2797 = vmatpush2.msra.mxu0 0.0
    %2798 = vmatprep.subr.mxu0 0.0
    %2799 = vmatpush2.msra.mxu0 0.0
    %2800 = vmatprep.subr.mxu0 0.0
    %2801 = vmatpush2.msra.mxu0 0.0
    %2802 = vmatprep.subr.mxu0 0.0
    %2803 = vmatpush2.msra.mxu0 0.0
    %2804 = vmatprep.subr.mxu0 0.0
    %2805 = vmatpush2.msra.mxu0 0.0
    %2806 = vmatprep.mubr.f32.mxu0 0.0
    %2807 = vmatmul.mubr.f32.gmra.mxu0 %v2731
    %v2808 = vpop.f32.mrf.mxu0
    %v2809 = vadd.f32 0.0, %v2808
    %v2810 = vpop.f32.mrf.mxu0
    %2811 = vmatprep.mubr.f32.mxu0 0.0
    %2812 = vmatmul.mubr.f32.gmra.mxu0 %v2734
    %v2813 = vpop.f32.mrf.mxu0
    %v2814 = vadd.f32 0.0, %v2813
    %v2815 = vpop.f32.mrf.mxu0
    %2816 = vmatprep.mubr.f32.mxu0 0.0
    %2817 = vmatmul.mubr.f32.gmra.mxu0 %v2737
    %v2818 = vpop.f32.mrf.mxu0
    %v2819 = vadd.f32 0.0, %v2818
    %v2820 = vpop.f32.mrf.mxu0
    %2821 = vmatprep.mubr.f32.mxu0 0.0
    %2822 = vmatmul.mubr.f32.gmra.mxu0 %v2740
    %v2823 = vpop.f32.mrf.mxu0
    %v2824 = vadd.f32 0.0, %v2823
    %v2825 = vpop.f32.mrf.mxu0
    %2826 = vdwg.mxu0
    %v2827 = vmax.f32 %v2809, 0.0
    %v2828 = vmax.f32 %v2814, 0.0
    %v2829 = vmax.f32 %v2819, 0.0
    %v2830 = vmax.f32 %v2824, 0.0
    %s2831 = scalar_lea.vmem %s2, 104
    %v2832 = vld [vmem:[%s2831] sm:$0xff]
    %v2834 = vsel %vm243, %v2827, 0
    %v2837 = vsel %vm243, %v2828, 0
    %v2840 = vsel %vm243, %v2829, 0
    %v2843 = vsel %vm243, %v2830, 0
    %2845 = vmatprep.subr.mxu0 0.0
    %2846 = vmatpush1.msra.mxu0 0.0
    %2847 = vmatprep.subr.mxu0 0.0
    %2848 = vmatpush1.msra.mxu0 0.0
    %2849 = vmatprep.subr.mxu0 0.0
    %2850 = vmatpush1.msra.mxu0 0.0
    %2851 = vmatprep.subr.mxu0 0.0
    %2852 = vmatpush1.msra.mxu0 0.0
    %2853 = vmatprep.subr.mxu0 0.0
    %2854 = vmatpush1.msra.mxu0 0.0
    %2855 = vmatprep.subr.mxu0 0.0
    %2856 = vmatpush1.msra.mxu0 0.0
    %2857 = vmatprep.subr.mxu0 0.0
    %2858 = vmatpush1.msra.mxu0 0.0
    %2859 = vmatprep.subr.mxu0 0.0
    %2860 = vmatpush1.msra.mxu0 0.0
    %2861 = vmatprep.subr.mxu0 0.0
    %2862 = vmatpush1.msra.mxu0 0.0
    %2863 = vmatprep.subr.mxu0 0.0
    %2864 = vmatpush1.msra.mxu0 0.0
    %2865 = vmatprep.subr.mxu0 0.0
    %2866 = vmatpush1.msra.mxu0 0.0
    %2867 = vmatprep.subr.mxu0 0.0
    %2868 = vmatpush1.msra.mxu0 0.0
    %2869 = vmatprep.subr.mxu0 0.0
    %2870 = vmatpush1.msra.mxu0 0.0
    %2871 = vmatprep.subr.mxu0 0.0
    %2872 = vmatpush1.msra.mxu0 0.0
    %2873 = vmatprep.subr.mxu0 0.0
    %2874 = vmatpush1.msra.mxu0 0.0
    %2875 = vmatprep.subr.mxu0 0.0
    %2876 = vmatpush1.msra.mxu0 %v2832
    %2877 = vmatprep.subr.mxu0 0.0
    %2878 = vmatpush2.msra.mxu0 0.0
    %2879 = vmatprep.subr.mxu0 0.0
    %2880 = vmatpush2.msra.mxu0 0.0
    %2881 = vmatprep.subr.mxu0 0.0
    %2882 = vmatpush2.msra.mxu0 0.0
    %2883 = vmatprep.subr.mxu0 0.0
    %2884 = vmatpush2.msra.mxu0 0.0
    %2885 = vmatprep.subr.mxu0 0.0
    %2886 = vmatpush2.msra.mxu0 0.0
    %2887 = vmatprep.subr.mxu0 0.0
    %2888 = vmatpush2.msra.mxu0 0.0
    %2889 = vmatprep.subr.mxu0 0.0
    %2890 = vmatpush2.msra.mxu0 0.0
    %2891 = vmatprep.subr.mxu0 0.0
    %2892 = vmatpush2.msra.mxu0 0.0
    %2893 = vmatprep.subr.mxu0 0.0
    %2894 = vmatpush2.msra.mxu0 0.0
    %2895 = vmatprep.subr.mxu0 0.0
    %2896 = vmatpush2.msra.mxu0 0.0
    %2897 = vmatprep.subr.mxu0 0.0
    %2898 = vmatpush2.msra.mxu0 0.0
    %2899 = vmatprep.subr.mxu0 0.0
    %2900 = vmatpush2.msra.mxu0 0.0
    %2901 = vmatprep.subr.mxu0 0.0
    %2902 = vmatpush2.msra.mxu0 0.0
    %2903 = vmatprep.subr.mxu0 0.0
    %2904 = vmatpush2.msra.mxu0 0.0
    %2905 = vmatprep.subr.mxu0 0.0
    %2906 = vmatpush2.msra.mxu0 0.0
    %2907 = vmatprep.subr.mxu0 0.0
    %2908 = vmatpush2.msra.mxu0 0.0
    %2909 = vmatprep.mubr.f32.mxu0 0.0
    %2910 = vmatmul.mubr.f32.gmra.mxu0 %v2834
    %v2911 = vpop.f32.mrf.mxu0
    %v2912 = vadd.f32 0.0, %v2911
    %v2913 = vpop.f32.mrf.mxu0
    %2914 = vmatprep.mubr.f32.mxu0 0.0
    %2915 = vmatmul.mubr.f32.gmra.mxu0 %v2837
    %v2916 = vpop.f32.mrf.mxu0
    %v2917 = vadd.f32 0.0, %v2916
    %v2918 = vpop.f32.mrf.mxu0
    %2919 = vmatprep.mubr.f32.mxu0 0.0
    %2920 = vmatmul.mubr.f32.gmra.mxu0 %v2840
    %v2921 = vpop.f32.mrf.mxu0
    %v2922 = vadd.f32 0.0, %v2921
    %v2923 = vpop.f32.mrf.mxu0
    %2924 = vmatprep.mubr.f32.mxu0 0.0
    %2925 = vmatmul.mubr.f32.gmra.mxu0 %v2843
    %v2926 = vpop.f32.mrf.mxu0
    %v2927 = vadd.f32 0.0, %v2926
    %v2928 = vpop.f32.mrf.mxu0
    %2929 = vdwg.mxu0
    %v2930 = vadd.f32 %v2722, %v2912
    %v2931 = vadd.f32 %v2723, %v2917
    %v2932 = vadd.f32 %v2724, %v2922
    %v2933 = vadd.f32 %v2725, %v2927
    %v2934 = vld [vmem:[%s0 + $0x1c0] sm:$0xff]
    %v2935 = vld [vmem:[%s0 + $0x1c8] sm:$0xff]
    %v2936 = vld [vmem:[%s0 + $0x1d0] sm:$0xff]
    %v2937 = vld [vmem:[%s0 + $0x1d8] sm:$0xff]
    %v2939 = vsel %vm33, %v2934, 0
    %v2942 = vsel %vm33, %v2935, 0
    %v2945 = vsel %vm33, %v2936, 0
    %v2948 = vsel %vm33, %v2937, 0
    %2950 = vmatprep.subr.mxu0 0.0
    %2951 = vmatpush1.msra.mxu0 0.0
    %2952 = vmatprep.subr.mxu0 0.0
    %2953 = vmatpush1.msra.mxu0 0.0
    %2954 = vmatprep.subr.mxu0 0.0
    %2955 = vmatpush1.msra.mxu0 0.0
    %2956 = vmatprep.subr.mxu0 0.0
    %2957 = vmatpush1.msra.mxu0 0.0
    %2958 = vmatprep.subr.mxu0 0.0
    %2959 = vmatpush1.msra.mxu0 0.0
    %2960 = vmatprep.subr.mxu0 0.0
    %2961 = vmatpush1.msra.mxu0 0.0
    %2962 = vmatprep.subr.mxu0 0.0
    %2963 = vmatpush1.msra.mxu0 0.0
    %2964 = vmatprep.subr.mxu0 0.0
    %2965 = vmatpush1.msra.mxu0 0.0
    %2966 = vmatprep.subr.mxu0 0.0
    %2967 = vmatpush1.msra.mxu0 0.0
    %2968 = vmatprep.subr.mxu0 0.0
    %2969 = vmatpush1.msra.mxu0 0.0
    %2970 = vmatprep.subr.mxu0 0.0
    %2971 = vmatpush1.msra.mxu0 0.0
    %2972 = vmatprep.subr.mxu0 0.0
    %2973 = vmatpush1.msra.mxu0 0.0
    %2974 = vmatprep.subr.mxu0 0.0
    %2975 = vmatpush1.msra.mxu0 %v28
    %2976 = vmatprep.subr.mxu0 0.0
    %2977 = vmatpush1.msra.mxu0 %v27
    %2978 = vmatprep.subr.mxu0 0.0
    %2979 = vmatpush1.msra.mxu0 %v26
    %2980 = vmatprep.subr.mxu0 0.0
    %2981 = vmatpush1.msra.mxu0 %v25
    %2982 = vmatprep.subr.mxu0 0.0
    %2983 = vmatpush2.msra.mxu0 0.0
    %2984 = vmatprep.subr.mxu0 0.0
    %2985 = vmatpush2.msra.mxu0 0.0
    %2986 = vmatprep.subr.mxu0 0.0
    %2987 = vmatpush2.msra.mxu0 0.0
    %2988 = vmatprep.subr.mxu0 0.0
    %2989 = vmatpush2.msra.mxu0 0.0
    %2990 = vmatprep.subr.mxu0 0.0
    %2991 = vmatpush2.msra.mxu0 0.0
    %2992 = vmatprep.subr.mxu0 0.0
    %2993 = vmatpush2.msra.mxu0 0.0
    %2994 = vmatprep.subr.mxu0 0.0
    %2995 = vmatpush2.msra.mxu0 0.0
    %2996 = vmatprep.subr.mxu0 0.0
    %2997 = vmatpush2.msra.mxu0 0.0
    %2998 = vmatprep.subr.mxu0 0.0
    %2999 = vmatpush2.msra.mxu0 0.0
    %3000 = vmatprep.subr.mxu0 0.0
    %3001 = vmatpush2.msra.mxu0 0.0
    %3002 = vmatprep.subr.mxu0 0.0
    %3003 = vmatpush2.msra.mxu0 0.0
    %3004 = vmatprep.subr.mxu0 0.0
    %3005 = vmatpush2.msra.mxu0 0.0
    %3006 = vmatprep.subr.mxu0 0.0
    %3007 = vmatpush2.msra.mxu0 0.0
    %3008 = vmatprep.subr.mxu0 0.0
    %3009 = vmatpush2.msra.mxu0 0.0
    %3010 = vmatprep.subr.mxu0 0.0
    %3011 = vmatpush2.msra.mxu0 0.0
    %3012 = vmatprep.subr.mxu0 0.0
    %3013 = vmatpush2.msra.mxu0 0.0
    %3014 = vmatprep.mubr.f32.mxu0 0.0
    %3015 = vmatmul.mubr.f32.gmra.mxu0 %v2939
    %v3016 = vpop.f32.mrf.mxu0
    %v3017 = vadd.f32 0.0, %v3016
    %v3018 = vpop.f32.mrf.mxu0
    %3019 = vmatprep.mubr.f32.mxu0 0.0
    %3020 = vmatmul.mubr.f32.gmra.mxu0 %v2942
    %v3021 = vpop.f32.mrf.mxu0
    %v3022 = vadd.f32 0.0, %v3021
    %v3023 = vpop.f32.mrf.mxu0
    %3024 = vmatprep.mubr.f32.mxu0 0.0
    %3025 = vmatmul.mubr.f32.gmra.mxu0 %v2945
    %v3026 = vpop.f32.mrf.mxu0
    %v3027 = vadd.f32 0.0, %v3026
    %v3028 = vpop.f32.mrf.mxu0
    %3029 = vmatprep.mubr.f32.mxu0 0.0
    %3030 = vmatmul.mubr.f32.gmra.mxu0 %v2948
    %v3031 = vpop.f32.mrf.mxu0
    %v3032 = vadd.f32 0.0, %v3031
    %v3033 = vpop.f32.mrf.mxu0
    %3034 = vdwg.mxu0
    %v3035 = vmax.f32 %v3017, 0.0
    %v3036 = vmax.f32 %v3022, 0.0
    %v3037 = vmax.f32 %v3027, 0.0
    %v3038 = vmax.f32 %v3032, 0.0
    %s3039 = scalar_lea.vmem %s2, 112
    %v3040 = vld [vmem:[%s3039] sm:$0xff]
    %v3042 = vsel %vm243, %v3035, 0
    %v3045 = vsel %vm243, %v3036, 0
    %v3048 = vsel %vm243, %v3037, 0
    %v3051 = vsel %vm243, %v3038, 0
    %3053 = vmatprep.subr.mxu0 0.0
    %3054 = vmatpush1.msra.mxu0 0.0
    %3055 = vmatprep.subr.mxu0 0.0
    %3056 = vmatpush1.msra.mxu0 0.0
    %3057 = vmatprep.subr.mxu0 0.0
    %3058 = vmatpush1.msra.mxu0 0.0
    %3059 = vmatprep.subr.mxu0 0.0
    %3060 = vmatpush1.msra.mxu0 0.0
    %3061 = vmatprep.subr.mxu0 0.0
    %3062 = vmatpush1.msra.mxu0 0.0
    %3063 = vmatprep.subr.mxu0 0.0
    %3064 = vmatpush1.msra.mxu0 0.0
    %3065 = vmatprep.subr.mxu0 0.0
    %3066 = vmatpush1.msra.mxu0 0.0
    %3067 = vmatprep.subr.mxu0 0.0
    %3068 = vmatpush1.msra.mxu0 0.0
    %3069 = vmatprep.subr.mxu0 0.0
    %3070 = vmatpush1.msra.mxu0 0.0
    %3071 = vmatprep.subr.mxu0 0.0
    %3072 = vmatpush1.msra.mxu0 0.0
    %3073 = vmatprep.subr.mxu0 0.0
    %3074 = vmatpush1.msra.mxu0 0.0
    %3075 = vmatprep.subr.mxu0 0.0
    %3076 = vmatpush1.msra.mxu0 0.0
    %3077 = vmatprep.subr.mxu0 0.0
    %3078 = vmatpush1.msra.mxu0 0.0
    %3079 = vmatprep.subr.mxu0 0.0
    %3080 = vmatpush1.msra.mxu0 0.0
    %3081 = vmatprep.subr.mxu0 0.0
    %3082 = vmatpush1.msra.mxu0 0.0
    %3083 = vmatprep.subr.mxu0 0.0
    %3084 = vmatpush1.msra.mxu0 %v3040
    %3085 = vmatprep.subr.mxu0 0.0
    %3086 = vmatpush2.msra.mxu0 0.0
    %3087 = vmatprep.subr.mxu0 0.0
    %3088 = vmatpush2.msra.mxu0 0.0
    %3089 = vmatprep.subr.mxu0 0.0
    %3090 = vmatpush2.msra.mxu0 0.0
    %3091 = vmatprep.subr.mxu0 0.0
    %3092 = vmatpush2.msra.mxu0 0.0
    %3093 = vmatprep.subr.mxu0 0.0
    %3094 = vmatpush2.msra.mxu0 0.0
    %3095 = vmatprep.subr.mxu0 0.0
    %3096 = vmatpush2.msra.mxu0 0.0
    %3097 = vmatprep.subr.mxu0 0.0
    %3098 = vmatpush2.msra.mxu0 0.0
    %3099 = vmatprep.subr.mxu0 0.0
    %3100 = vmatpush2.msra.mxu0 0.0
    %3101 = vmatprep.subr.mxu0 0.0
    %3102 = vmatpush2.msra.mxu0 0.0
    %3103 = vmatprep.subr.mxu0 0.0
    %3104 = vmatpush2.msra.mxu0 0.0
    %3105 = vmatprep.subr.mxu0 0.0
    %3106 = vmatpush2.msra.mxu0 0.0
    %3107 = vmatprep.subr.mxu0 0.0
    %3108 = vmatpush2.msra.mxu0 0.0
    %3109 = vmatprep.subr.mxu0 0.0
    %3110 = vmatpush2.msra.mxu0 0.0
    %3111 = vmatprep.subr.mxu0 0.0
    %3112 = vmatpush2.msra.mxu0 0.0
    %3113 = vmatprep.subr.mxu0 0.0
    %3114 = vmatpush2.msra.mxu0 0.0
    %3115 = vmatprep.subr.mxu0 0.0
    %3116 = vmatpush2.msra.mxu0 0.0
    %3117 = vmatprep.mubr.f32.mxu0 0.0
    %3118 = vmatmul.mubr.f32.gmra.mxu0 %v3042
    %v3119 = vpop.f32.mrf.mxu0
    %v3120 = vadd.f32 0.0, %v3119
    %v3121 = vpop.f32.mrf.mxu0
    %3122 = vmatprep.mubr.f32.mxu0 0.0
    %3123 = vmatmul.mubr.f32.gmra.mxu0 %v3045
    %v3124 = vpop.f32.mrf.mxu0
    %v3125 = vadd.f32 0.0, %v3124
    %v3126 = vpop.f32.mrf.mxu0
    %3127 = vmatprep.mubr.f32.mxu0 0.0
    %3128 = vmatmul.mubr.f32.gmra.mxu0 %v3048
    %v3129 = vpop.f32.mrf.mxu0
    %v3130 = vadd.f32 0.0, %v3129
    %v3131 = vpop.f32.mrf.mxu0
    %3132 = vmatprep.mubr.f32.mxu0 0.0
    %3133 = vmatmul.mubr.f32.gmra.mxu0 %v3051
    %v3134 = vpop.f32.mrf.mxu0
    %v3135 = vadd.f32 0.0, %v3134
    %v3136 = vpop.f32.mrf.mxu0
    %3137 = vdwg.mxu0
    %v3138 = vadd.f32 %v2930, %v3120
    %v3139 = vadd.f32 %v2931, %v3125
    %v3140 = vadd.f32 %v2932, %v3130
    %v3141 = vadd.f32 %v2933, %v3135
    %v3142 = vld [vmem:[%s0 + $0x1e0] sm:$0xff]
    %v3143 = vld [vmem:[%s0 + $0x1e8] sm:$0xff]
    %v3144 = vld [vmem:[%s0 + $0x1f0] sm:$0xff]
    %v3145 = vld [vmem:[%s0 + $0x1f8] sm:$0xff]
    %v3147 = vsel %vm33, %v3142, 0
    %v3150 = vsel %vm33, %v3143, 0
    %v3153 = vsel %vm33, %v3144, 0
    %v3156 = vsel %vm33, %v3145, 0
    %3158 = vmatprep.subr.mxu0 0.0
    %3159 = vmatpush1.msra.mxu0 0.0
    %3160 = vmatprep.subr.mxu0 0.0
    %3161 = vmatpush1.msra.mxu0 0.0
    %3162 = vmatprep.subr.mxu0 0.0
    %3163 = vmatpush1.msra.mxu0 0.0
    %3164 = vmatprep.subr.mxu0 0.0
    %3165 = vmatpush1.msra.mxu0 0.0
    %3166 = vmatprep.subr.mxu0 0.0
    %3167 = vmatpush1.msra.mxu0 0.0
    %3168 = vmatprep.subr.mxu0 0.0
    %3169 = vmatpush1.msra.mxu0 0.0
    %3170 = vmatprep.subr.mxu0 0.0
    %3171 = vmatpush1.msra.mxu0 0.0
    %3172 = vmatprep.subr.mxu0 0.0
    %3173 = vmatpush1.msra.mxu0 0.0
    %3174 = vmatprep.subr.mxu0 0.0
    %3175 = vmatpush1.msra.mxu0 0.0
    %3176 = vmatprep.subr.mxu0 0.0
    %3177 = vmatpush1.msra.mxu0 0.0
    %3178 = vmatprep.subr.mxu0 0.0
    %3179 = vmatpush1.msra.mxu0 0.0
    %3180 = vmatprep.subr.mxu0 0.0
    %3181 = vmatpush1.msra.mxu0 0.0
    %3182 = vmatprep.subr.mxu0 0.0
    %3183 = vmatpush1.msra.mxu0 %v28
    %3184 = vmatprep.subr.mxu0 0.0
    %3185 = vmatpush1.msra.mxu0 %v27
    %3186 = vmatprep.subr.mxu0 0.0
    %3187 = vmatpush1.msra.mxu0 %v26
    %3188 = vmatprep.subr.mxu0 0.0
    %3189 = vmatpush1.msra.mxu0 %v25
    %3190 = vmatprep.subr.mxu0 0.0
    %3191 = vmatpush2.msra.mxu0 0.0
    %3192 = vmatprep.subr.mxu0 0.0
    %3193 = vmatpush2.msra.mxu0 0.0
    %3194 = vmatprep.subr.mxu0 0.0
    %3195 = vmatpush2.msra.mxu0 0.0
    %3196 = vmatprep.subr.mxu0 0.0
    %3197 = vmatpush2.msra.mxu0 0.0
    %3198 = vmatprep.subr.mxu0 0.0
    %3199 = vmatpush2.msra.mxu0 0.0
    %3200 = vmatprep.subr.mxu0 0.0
    %3201 = vmatpush2.msra.mxu0 0.0
    %3202 = vmatprep.subr.mxu0 0.0
    %3203 = vmatpush2.msra.mxu0 0.0
    %3204 = vmatprep.subr.mxu0 0.0
    %3205 = vmatpush2.msra.mxu0 0.0
    %3206 = vmatprep.subr.mxu0 0.0
    %3207 = vmatpush2.msra.mxu0 0.0
    %3208 = vmatprep.subr.mxu0 0.0
    %3209 = vmatpush2.msra.mxu0 0.0
    %3210 = vmatprep.subr.mxu0 0.0
    %3211 = vmatpush2.msra.mxu0 0.0
    %3212 = vmatprep.subr.mxu0 0.0
    %3213 = vmatpush2.msra.mxu0 0.0
    %3214 = vmatprep.subr.mxu0 0.0
    %3215 = vmatpush2.msra.mxu0 0.0
    %3216 = vmatprep.subr.mxu0 0.0
    %3217 = vmatpush2.msra.mxu0 0.0
    %3218 = vmatprep.subr.mxu0 0.0
    %3219 = vmatpush2.msra.mxu0 0.0
    %3220 = vmatprep.subr.mxu0 0.0
    %3221 = vmatpush2.msra.mxu0 0.0
    %3222 = vmatprep.mubr.f32.mxu0 0.0
    %3223 = vmatmul.mubr.f32.gmra.mxu0 %v3147
    %v3224 = vpop.f32.mrf.mxu0
    %v3225 = vadd.f32 0.0, %v3224
    %v3226 = vpop.f32.mrf.mxu0
    %3227 = vmatprep.mubr.f32.mxu0 0.0
    %3228 = vmatmul.mubr.f32.gmra.mxu0 %v3150
    %v3229 = vpop.f32.mrf.mxu0
    %v3230 = vadd.f32 0.0, %v3229
    %v3231 = vpop.f32.mrf.mxu0
    %3232 = vmatprep.mubr.f32.mxu0 0.0
    %3233 = vmatmul.mubr.f32.gmra.mxu0 %v3153
    %v3234 = vpop.f32.mrf.mxu0
    %v3235 = vadd.f32 0.0, %v3234
    %v3236 = vpop.f32.mrf.mxu0
    %3237 = vmatprep.mubr.f32.mxu0 0.0
    %3238 = vmatmul.mubr.f32.gmra.mxu0 %v3156
    %v3239 = vpop.f32.mrf.mxu0
    %v3240 = vadd.f32 0.0, %v3239
    %v3241 = vpop.f32.mrf.mxu0
    %3242 = vdwg.mxu0
    %v3243 = vmax.f32 %v3225, 0.0
    %v3244 = vmax.f32 %v3230, 0.0
    %v3245 = vmax.f32 %v3235, 0.0
    %v3246 = vmax.f32 %v3240, 0.0
    %s3247 = scalar_lea.vmem %s2, 120
    %v3248 = vld [vmem:[%s3247] sm:$0xff]
    %v3250 = vsel %vm243, %v3243, 0
    %v3253 = vsel %vm243, %v3244, 0
    %v3256 = vsel %vm243, %v3245, 0
    %v3259 = vsel %vm243, %v3246, 0
    %3261 = vmatprep.subr.mxu0 0.0
    %3262 = vmatpush1.msra.mxu0 0.0
    %3263 = vmatprep.subr.mxu0 0.0
    %3264 = vmatpush1.msra.mxu0 0.0
    %3265 = vmatprep.subr.mxu0 0.0
    %3266 = vmatpush1.msra.mxu0 0.0
    %3267 = vmatprep.subr.mxu0 0.0
    %3268 = vmatpush1.msra.mxu0 0.0
    %3269 = vmatprep.subr.mxu0 0.0
    %3270 = vmatpush1.msra.mxu0 0.0
    %3271 = vmatprep.subr.mxu0 0.0
    %3272 = vmatpush1.msra.mxu0 0.0
    %3273 = vmatprep.subr.mxu0 0.0
    %3274 = vmatpush1.msra.mxu0 0.0
    %3275 = vmatprep.subr.mxu0 0.0
    %3276 = vmatpush1.msra.mxu0 0.0
    %3277 = vmatprep.subr.mxu0 0.0
    %3278 = vmatpush1.msra.mxu0 0.0
    %3279 = vmatprep.subr.mxu0 0.0
    %3280 = vmatpush1.msra.mxu0 0.0
    %3281 = vmatprep.subr.mxu0 0.0
    %3282 = vmatpush1.msra.mxu0 0.0
    %3283 = vmatprep.subr.mxu0 0.0
    %3284 = vmatpush1.msra.mxu0 0.0
    %3285 = vmatprep.subr.mxu0 0.0
    %3286 = vmatpush1.msra.mxu0 0.0
    %3287 = vmatprep.subr.mxu0 0.0
    %3288 = vmatpush1.msra.mxu0 0.0
    %3289 = vmatprep.subr.mxu0 0.0
    %3290 = vmatpush1.msra.mxu0 0.0
    %3291 = vmatprep.subr.mxu0 0.0
    %3292 = vmatpush1.msra.mxu0 %v3248
    %3293 = vmatprep.subr.mxu0 0.0
    %3294 = vmatpush2.msra.mxu0 0.0
    %3295 = vmatprep.subr.mxu0 0.0
    %3296 = vmatpush2.msra.mxu0 0.0
    %3297 = vmatprep.subr.mxu0 0.0
    %3298 = vmatpush2.msra.mxu0 0.0
    %3299 = vmatprep.subr.mxu0 0.0
    %3300 = vmatpush2.msra.mxu0 0.0
    %3301 = vmatprep.subr.mxu0 0.0
    %3302 = vmatpush2.msra.mxu0 0.0
    %3303 = vmatprep.subr.mxu0 0.0
    %3304 = vmatpush2.msra.mxu0 0.0
    %3305 = vmatprep.subr.mxu0 0.0
    %3306 = vmatpush2.msra.mxu0 0.0
    %3307 = vmatprep.subr.mxu0 0.0
    %3308 = vmatpush2.msra.mxu0 0.0
    %3309 = vmatprep.subr.mxu0 0.0
    %3310 = vmatpush2.msra.mxu0 0.0
    %3311 = vmatprep.subr.mxu0 0.0
    %3312 = vmatpush2.msra.mxu0 0.0
    %3313 = vmatprep.subr.mxu0 0.0
    %3314 = vmatpush2.msra.mxu0 0.0
    %3315 = vmatprep.subr.mxu0 0.0
    %3316 = vmatpush2.msra.mxu0 0.0
    %3317 = vmatprep.subr.mxu0 0.0
    %3318 = vmatpush2.msra.mxu0 0.0
    %3319 = vmatprep.subr.mxu0 0.0
    %3320 = vmatpush2.msra.mxu0 0.0
    %3321 = vmatprep.subr.mxu0 0.0
    %3322 = vmatpush2.msra.mxu0 0.0
    %3323 = vmatprep.subr.mxu0 0.0
    %3324 = vmatpush2.msra.mxu0 0.0
    %3325 = vmatprep.mubr.f32.mxu0 0.0
    %3326 = vmatmul.mubr.f32.gmra.mxu0 %v3250
    %v3327 = vpop.f32.mrf.mxu0
    %v3328 = vadd.f32 0.0, %v3327
    %v3329 = vpop.f32.mrf.mxu0
    %3330 = vmatprep.mubr.f32.mxu0 0.0
    %3331 = vmatmul.mubr.f32.gmra.mxu0 %v3253
    %v3332 = vpop.f32.mrf.mxu0
    %v3333 = vadd.f32 0.0, %v3332
    %v3334 = vpop.f32.mrf.mxu0
    %3335 = vmatprep.mubr.f32.mxu0 0.0
    %3336 = vmatmul.mubr.f32.gmra.mxu0 %v3256
    %v3337 = vpop.f32.mrf.mxu0
    %v3338 = vadd.f32 0.0, %v3337
    %v3339 = vpop.f32.mrf.mxu0
    %3340 = vmatprep.mubr.f32.mxu0 0.0
    %3341 = vmatmul.mubr.f32.gmra.mxu0 %v3259
    %v3342 = vpop.f32.mrf.mxu0
    %v3343 = vadd.f32 0.0, %v3342
    %v3344 = vpop.f32.mrf.mxu0
    %3345 = vdwg.mxu0
    %v3346 = vadd.f32 %v3138, %v3328
    %v3347 = vadd.f32 %v3139, %v3333
    %v3348 = vadd.f32 %v3140, %v3338
    %v3349 = vadd.f32 %v3141, %v3343
    %v3350 = vld [vmem:[%s0 + $0x200] sm:$0xff]
    %v3351 = vld [vmem:[%s0 + $0x208] sm:$0xff]
    %v3352 = vld [vmem:[%s0 + $0x210] sm:$0xff]
    %v3353 = vld [vmem:[%s0 + $0x218] sm:$0xff]
    %v3355 = vsel %vm33, %v3350, 0
    %v3358 = vsel %vm33, %v3351, 0
    %v3361 = vsel %vm33, %v3352, 0
    %v3364 = vsel %vm33, %v3353, 0
    %3366 = vmatprep.subr.mxu0 0.0
    %3367 = vmatpush1.msra.mxu0 0.0
    %3368 = vmatprep.subr.mxu0 0.0
    %3369 = vmatpush1.msra.mxu0 0.0
    %3370 = vmatprep.subr.mxu0 0.0
    %3371 = vmatpush1.msra.mxu0 0.0
    %3372 = vmatprep.subr.mxu0 0.0
    %3373 = vmatpush1.msra.mxu0 0.0
    %3374 = vmatprep.subr.mxu0 0.0
    %3375 = vmatpush1.msra.mxu0 0.0
    %3376 = vmatprep.subr.mxu0 0.0
    %3377 = vmatpush1.msra.mxu0 0.0
    %3378 = vmatprep.subr.mxu0 0.0
    %3379 = vmatpush1.msra.mxu0 0.0
    %3380 = vmatprep.subr.mxu0 0.0
    %3381 = vmatpush1.msra.mxu0 0.0
    %3382 = vmatprep.subr.mxu0 0.0
    %3383 = vmatpush1.msra.mxu0 0.0
    %3384 = vmatprep.subr.mxu0 0.0
    %3385 = vmatpush1.msra.mxu0 0.0
    %3386 = vmatprep.subr.mxu0 0.0
    %3387 = vmatpush1.msra.mxu0 0.0
    %3388 = vmatprep.subr.mxu0 0.0
    %3389 = vmatpush1.msra.mxu0 0.0
    %3390 = vmatprep.subr.mxu0 0.0
    %3391 = vmatpush1.msra.mxu0 %v28
    %3392 = vmatprep.subr.mxu0 0.0
    %3393 = vmatpush1.msra.mxu0 %v27
    %3394 = vmatprep.subr.mxu0 0.0
    %3395 = vmatpush1.msra.mxu0 %v26
    %3396 = vmatprep.subr.mxu0 0.0
    %3397 = vmatpush1.msra.mxu0 %v25
    %3398 = vmatprep.subr.mxu0 0.0
    %3399 = vmatpush2.msra.mxu0 0.0
    %3400 = vmatprep.subr.mxu0 0.0
    %3401 = vmatpush2.msra.mxu0 0.0
    %3402 = vmatprep.subr.mxu0 0.0
    %3403 = vmatpush2.msra.mxu0 0.0
    %3404 = vmatprep.subr.mxu0 0.0
    %3405 = vmatpush2.msra.mxu0 0.0
    %3406 = vmatprep.subr.mxu0 0.0
    %3407 = vmatpush2.msra.mxu0 0.0
    %3408 = vmatprep.subr.mxu0 0.0
    %3409 = vmatpush2.msra.mxu0 0.0
    %3410 = vmatprep.subr.mxu0 0.0
    %3411 = vmatpush2.msra.mxu0 0.0
    %3412 = vmatprep.subr.mxu0 0.0
    %3413 = vmatpush2.msra.mxu0 0.0
    %3414 = vmatprep.subr.mxu0 0.0
    %3415 = vmatpush2.msra.mxu0 0.0
    %3416 = vmatprep.subr.mxu0 0.0
    %3417 = vmatpush2.msra.mxu0 0.0
    %3418 = vmatprep.subr.mxu0 0.0
    %3419 = vmatpush2.msra.mxu0 0.0
    %3420 = vmatprep.subr.mxu0 0.0
    %3421 = vmatpush2.msra.mxu0 0.0
    %3422 = vmatprep.subr.mxu0 0.0
    %3423 = vmatpush2.msra.mxu0 0.0
    %3424 = vmatprep.subr.mxu0 0.0
    %3425 = vmatpush2.msra.mxu0 0.0
    %3426 = vmatprep.subr.mxu0 0.0
    %3427 = vmatpush2.msra.mxu0 0.0
    %3428 = vmatprep.subr.mxu0 0.0
    %3429 = vmatpush2.msra.mxu0 0.0
    %3430 = vmatprep.mubr.f32.mxu0 0.0
    %3431 = vmatmul.mubr.f32.gmra.mxu0 %v3355
    %v3432 = vpop.f32.mrf.mxu0
    %v3433 = vadd.f32 0.0, %v3432
    %v3434 = vpop.f32.mrf.mxu0
    %3435 = vmatprep.mubr.f32.mxu0 0.0
    %3436 = vmatmul.mubr.f32.gmra.mxu0 %v3358
    %v3437 = vpop.f32.mrf.mxu0
    %v3438 = vadd.f32 0.0, %v3437
    %v3439 = vpop.f32.mrf.mxu0
    %3440 = vmatprep.mubr.f32.mxu0 0.0
    %3441 = vmatmul.mubr.f32.gmra.mxu0 %v3361
    %v3442 = vpop.f32.mrf.mxu0
    %v3443 = vadd.f32 0.0, %v3442
    %v3444 = vpop.f32.mrf.mxu0
    %3445 = vmatprep.mubr.f32.mxu0 0.0
    %3446 = vmatmul.mubr.f32.gmra.mxu0 %v3364
    %v3447 = vpop.f32.mrf.mxu0
    %v3448 = vadd.f32 0.0, %v3447
    %v3449 = vpop.f32.mrf.mxu0
    %3450 = vdwg.mxu0
    %v3451 = vmax.f32 %v3433, 0.0
    %v3452 = vmax.f32 %v3438, 0.0
    %v3453 = vmax.f32 %v3443, 0.0
    %v3454 = vmax.f32 %v3448, 0.0
    %s3455 = scalar_lea.vmem %s2, 128
    %v3456 = vld [vmem:[%s3455] sm:$0xff]
    %v3458 = vsel %vm243, %v3451, 0
    %v3461 = vsel %vm243, %v3452, 0
    %v3464 = vsel %vm243, %v3453, 0
    %v3467 = vsel %vm243, %v3454, 0
    %3469 = vmatprep.subr.mxu0 0.0
    %3470 = vmatpush1.msra.mxu0 0.0
    %3471 = vmatprep.subr.mxu0 0.0
    %3472 = vmatpush1.msra.mxu0 0.0
    %3473 = vmatprep.subr.mxu0 0.0
    %3474 = vmatpush1.msra.mxu0 0.0
    %3475 = vmatprep.subr.mxu0 0.0
    %3476 = vmatpush1.msra.mxu0 0.0
    %3477 = vmatprep.subr.mxu0 0.0
    %3478 = vmatpush1.msra.mxu0 0.0
    %3479 = vmatprep.subr.mxu0 0.0
    %3480 = vmatpush1.msra.mxu0 0.0
    %3481 = vmatprep.subr.mxu0 0.0
    %3482 = vmatpush1.msra.mxu0 0.0
    %3483 = vmatprep.subr.mxu0 0.0
    %3484 = vmatpush1.msra.mxu0 0.0
    %3485 = vmatprep.subr.mxu0 0.0
    %3486 = vmatpush1.msra.mxu0 0.0
    %3487 = vmatprep.subr.mxu0 0.0
    %3488 = vmatpush1.msra.mxu0 0.0
    %3489 = vmatprep.subr.mxu0 0.0
    %3490 = vmatpush1.msra.mxu0 0.0
    %3491 = vmatprep.subr.mxu0 0.0
    %3492 = vmatpush1.msra.mxu0 0.0
    %3493 = vmatprep.subr.mxu0 0.0
    %3494 = vmatpush1.msra.mxu0 0.0
    %3495 = vmatprep.subr.mxu0 0.0
    %3496 = vmatpush1.msra.mxu0 0.0
    %3497 = vmatprep.subr.mxu0 0.0
    %3498 = vmatpush1.msra.mxu0 0.0
    %3499 = vmatprep.subr.mxu0 0.0
    %3500 = vmatpush1.msra.mxu0 %v3456
    %3501 = vmatprep.subr.mxu0 0.0
    %3502 = vmatpush2.msra.mxu0 0.0
    %3503 = vmatprep.subr.mxu0 0.0
    %3504 = vmatpush2.msra.mxu0 0.0
    %3505 = vmatprep.subr.mxu0 0.0
    %3506 = vmatpush2.msra.mxu0 0.0
    %3507 = vmatprep.subr.mxu0 0.0
    %3508 = vmatpush2.msra.mxu0 0.0
    %3509 = vmatprep.subr.mxu0 0.0
    %3510 = vmatpush2.msra.mxu0 0.0
    %3511 = vmatprep.subr.mxu0 0.0
    %3512 = vmatpush2.msra.mxu0 0.0
    %3513 = vmatprep.subr.mxu0 0.0
    %3514 = vmatpush2.msra.mxu0 0.0
    %3515 = vmatprep.subr.mxu0 0.0
    %3516 = vmatpush2.msra.mxu0 0.0
    %3517 = vmatprep.subr.mxu0 0.0
    %3518 = vmatpush2.msra.mxu0 0.0
    %3519 = vmatprep.subr.mxu0 0.0
    %3520 = vmatpush2.msra.mxu0 0.0
    %3521 = vmatprep.subr.mxu0 0.0
    %3522 = vmatpush2.msra.mxu0 0.0
    %3523 = vmatprep.subr.mxu0 0.0
    %3524 = vmatpush2.msra.mxu0 0.0
    %3525 = vmatprep.subr.mxu0 0.0
    %3526 = vmatpush2.msra.mxu0 0.0
    %3527 = vmatprep.subr.mxu0 0.0
    %3528 = vmatpush2.msra.mxu0 0.0
    %3529 = vmatprep.subr.mxu0 0.0
    %3530 = vmatpush2.msra.mxu0 0.0
    %3531 = vmatprep.subr.mxu0 0.0
    %3532 = vmatpush2.msra.mxu0 0.0
    %3533 = vmatprep.mubr.f32.mxu0 0.0
    %3534 = vmatmul.mubr.f32.gmra.mxu0 %v3458
    %v3535 = vpop.f32.mrf.mxu0
    %v3536 = vadd.f32 0.0, %v3535
    %v3537 = vpop.f32.mrf.mxu0
    %3538 = vmatprep.mubr.f32.mxu0 0.0
    %3539 = vmatmul.mubr.f32.gmra.mxu0 %v3461
    %v3540 = vpop.f32.mrf.mxu0
    %v3541 = vadd.f32 0.0, %v3540
    %v3542 = vpop.f32.mrf.mxu0
    %3543 = vmatprep.mubr.f32.mxu0 0.0
    %3544 = vmatmul.mubr.f32.gmra.mxu0 %v3464
    %v3545 = vpop.f32.mrf.mxu0
    %v3546 = vadd.f32 0.0, %v3545
    %v3547 = vpop.f32.mrf.mxu0
    %3548 = vmatprep.mubr.f32.mxu0 0.0
    %3549 = vmatmul.mubr.f32.gmra.mxu0 %v3467
    %v3550 = vpop.f32.mrf.mxu0
    %v3551 = vadd.f32 0.0, %v3550
    %v3552 = vpop.f32.mrf.mxu0
    %3553 = vdwg.mxu0
    %v3554 = vadd.f32 %v3346, %v3536
    %v3555 = vadd.f32 %v3347, %v3541
    %v3556 = vadd.f32 %v3348, %v3546
    %v3557 = vadd.f32 %v3349, %v3551
    %v3558 = vld [vmem:[%s0 + $0x220] sm:$0xff]
    %v3559 = vld [vmem:[%s0 + $0x228] sm:$0xff]
    %v3560 = vld [vmem:[%s0 + $0x230] sm:$0xff]
    %v3561 = vld [vmem:[%s0 + $0x238] sm:$0xff]
    %v3563 = vsel %vm33, %v3558, 0
    %v3566 = vsel %vm33, %v3559, 0
    %v3569 = vsel %vm33, %v3560, 0
    %v3572 = vsel %vm33, %v3561, 0
    %3574 = vmatprep.subr.mxu0 0.0
    %3575 = vmatpush1.msra.mxu0 0.0
    %3576 = vmatprep.subr.mxu0 0.0
    %3577 = vmatpush1.msra.mxu0 0.0
    %3578 = vmatprep.subr.mxu0 0.0
    %3579 = vmatpush1.msra.mxu0 0.0
    %3580 = vmatprep.subr.mxu0 0.0
    %3581 = vmatpush1.msra.mxu0 0.0
    %3582 = vmatprep.subr.mxu0 0.0
    %3583 = vmatpush1.msra.mxu0 0.0
    %3584 = vmatprep.subr.mxu0 0.0
    %3585 = vmatpush1.msra.mxu0 0.0
    %3586 = vmatprep.subr.mxu0 0.0
    %3587 = vmatpush1.msra.mxu0 0.0
    %3588 = vmatprep.subr.mxu0 0.0
    %3589 = vmatpush1.msra.mxu0 0.0
    %3590 = vmatprep.subr.mxu0 0.0
    %3591 = vmatpush1.msra.mxu0 0.0
    %3592 = vmatprep.subr.mxu0 0.0
    %3593 = vmatpush1.msra.mxu0 0.0
    %3594 = vmatprep.subr.mxu0 0.0
    %3595 = vmatpush1.msra.mxu0 0.0
    %3596 = vmatprep.subr.mxu0 0.0
    %3597 = vmatpush1.msra.mxu0 0.0
    %3598 = vmatprep.subr.mxu0 0.0
    %3599 = vmatpush1.msra.mxu0 %v28
    %3600 = vmatprep.subr.mxu0 0.0
    %3601 = vmatpush1.msra.mxu0 %v27
    %3602 = vmatprep.subr.mxu0 0.0
    %3603 = vmatpush1.msra.mxu0 %v26
    %3604 = vmatprep.subr.mxu0 0.0
    %3605 = vmatpush1.msra.mxu0 %v25
    %3606 = vmatprep.subr.mxu0 0.0
    %3607 = vmatpush2.msra.mxu0 0.0
    %3608 = vmatprep.subr.mxu0 0.0
    %3609 = vmatpush2.msra.mxu0 0.0
    %3610 = vmatprep.subr.mxu0 0.0
    %3611 = vmatpush2.msra.mxu0 0.0
    %3612 = vmatprep.subr.mxu0 0.0
    %3613 = vmatpush2.msra.mxu0 0.0
    %3614 = vmatprep.subr.mxu0 0.0
    %3615 = vmatpush2.msra.mxu0 0.0
    %3616 = vmatprep.subr.mxu0 0.0
    %3617 = vmatpush2.msra.mxu0 0.0
    %3618 = vmatprep.subr.mxu0 0.0
    %3619 = vmatpush2.msra.mxu0 0.0
    %3620 = vmatprep.subr.mxu0 0.0
    %3621 = vmatpush2.msra.mxu0 0.0
    %3622 = vmatprep.subr.mxu0 0.0
    %3623 = vmatpush2.msra.mxu0 0.0
    %3624 = vmatprep.subr.mxu0 0.0
    %3625 = vmatpush2.msra.mxu0 0.0
    %3626 = vmatprep.subr.mxu0 0.0
    %3627 = vmatpush2.msra.mxu0 0.0
    %3628 = vmatprep.subr.mxu0 0.0
    %3629 = vmatpush2.msra.mxu0 0.0
    %3630 = vmatprep.subr.mxu0 0.0
    %3631 = vmatpush2.msra.mxu0 0.0
    %3632 = vmatprep.subr.mxu0 0.0
    %3633 = vmatpush2.msra.mxu0 0.0
    %3634 = vmatprep.subr.mxu0 0.0
    %3635 = vmatpush2.msra.mxu0 0.0
    %3636 = vmatprep.subr.mxu0 0.0
    %3637 = vmatpush2.msra.mxu0 0.0
    %3638 = vmatprep.mubr.f32.mxu0 0.0
    %3639 = vmatmul.mubr.f32.gmra.mxu0 %v3563
    %v3640 = vpop.f32.mrf.mxu0
    %v3641 = vadd.f32 0.0, %v3640
    %v3642 = vpop.f32.mrf.mxu0
    %3643 = vmatprep.mubr.f32.mxu0 0.0
    %3644 = vmatmul.mubr.f32.gmra.mxu0 %v3566
    %v3645 = vpop.f32.mrf.mxu0
    %v3646 = vadd.f32 0.0, %v3645
    %v3647 = vpop.f32.mrf.mxu0
    %3648 = vmatprep.mubr.f32.mxu0 0.0
    %3649 = vmatmul.mubr.f32.gmra.mxu0 %v3569
    %v3650 = vpop.f32.mrf.mxu0
    %v3651 = vadd.f32 0.0, %v3650
    %v3652 = vpop.f32.mrf.mxu0
    %3653 = vmatprep.mubr.f32.mxu0 0.0
    %3654 = vmatmul.mubr.f32.gmra.mxu0 %v3572
    %v3655 = vpop.f32.mrf.mxu0
    %v3656 = vadd.f32 0.0, %v3655
    %v3657 = vpop.f32.mrf.mxu0
    %3658 = vdwg.mxu0
    %v3659 = vmax.f32 %v3641, 0.0
    %v3660 = vmax.f32 %v3646, 0.0
    %v3661 = vmax.f32 %v3651, 0.0
    %v3662 = vmax.f32 %v3656, 0.0
    %s3663 = scalar_lea.vmem %s2, 136
    %v3664 = vld [vmem:[%s3663] sm:$0xff]
    %v3666 = vsel %vm243, %v3659, 0
    %v3669 = vsel %vm243, %v3660, 0
    %v3672 = vsel %vm243, %v3661, 0
    %v3675 = vsel %vm243, %v3662, 0
    %3677 = vmatprep.subr.mxu0 0.0
    %3678 = vmatpush1.msra.mxu0 0.0
    %3679 = vmatprep.subr.mxu0 0.0
    %3680 = vmatpush1.msra.mxu0 0.0
    %3681 = vmatprep.subr.mxu0 0.0
    %3682 = vmatpush1.msra.mxu0 0.0
    %3683 = vmatprep.subr.mxu0 0.0
    %3684 = vmatpush1.msra.mxu0 0.0
    %3685 = vmatprep.subr.mxu0 0.0
    %3686 = vmatpush1.msra.mxu0 0.0
    %3687 = vmatprep.subr.mxu0 0.0
    %3688 = vmatpush1.msra.mxu0 0.0
    %3689 = vmatprep.subr.mxu0 0.0
    %3690 = vmatpush1.msra.mxu0 0.0
    %3691 = vmatprep.subr.mxu0 0.0
    %3692 = vmatpush1.msra.mxu0 0.0
    %3693 = vmatprep.subr.mxu0 0.0
    %3694 = vmatpush1.msra.mxu0 0.0
    %3695 = vmatprep.subr.mxu0 0.0
    %3696 = vmatpush1.msra.mxu0 0.0
    %3697 = vmatprep.subr.mxu0 0.0
    %3698 = vmatpush1.msra.mxu0 0.0
    %3699 = vmatprep.subr.mxu0 0.0
    %3700 = vmatpush1.msra.mxu0 0.0
    %3701 = vmatprep.subr.mxu0 0.0
    %3702 = vmatpush1.msra.mxu0 0.0
    %3703 = vmatprep.subr.mxu0 0.0
    %3704 = vmatpush1.msra.mxu0 0.0
    %3705 = vmatprep.subr.mxu0 0.0
    %3706 = vmatpush1.msra.mxu0 0.0
    %3707 = vmatprep.subr.mxu0 0.0
    %3708 = vmatpush1.msra.mxu0 %v3664
    %3709 = vmatprep.subr.mxu0 0.0
    %3710 = vmatpush2.msra.mxu0 0.0
    %3711 = vmatprep.subr.mxu0 0.0
    %3712 = vmatpush2.msra.mxu0 0.0
    %3713 = vmatprep.subr.mxu0 0.0
    %3714 = vmatpush2.msra.mxu0 0.0
    %3715 = vmatprep.subr.mxu0 0.0
    %3716 = vmatpush2.msra.mxu0 0.0
    %3717 = vmatprep.subr.mxu0 0.0
    %3718 = vmatpush2.msra.mxu0 0.0
    %3719 = vmatprep.subr.mxu0 0.0
    %3720 = vmatpush2.msra.mxu0 0.0
    %3721 = vmatprep.subr.mxu0 0.0
    %3722 = vmatpush2.msra.mxu0 0.0
    %3723 = vmatprep.subr.mxu0 0.0
    %3724 = vmatpush2.msra.mxu0 0.0
    %3725 = vmatprep.subr.mxu0 0.0
    %3726 = vmatpush2.msra.mxu0 0.0
    %3727 = vmatprep.subr.mxu0 0.0
    %3728 = vmatpush2.msra.mxu0 0.0
    %3729 = vmatprep.subr.mxu0 0.0
    %3730 = vmatpush2.msra.mxu0 0.0
    %3731 = vmatprep.subr.mxu0 0.0
    %3732 = vmatpush2.msra.mxu0 0.0
    %3733 = vmatprep.subr.mxu0 0.0
    %3734 = vmatpush2.msra.mxu0 0.0
    %3735 = vmatprep.subr.mxu0 0.0
    %3736 = vmatpush2.msra.mxu0 0.0
    %3737 = vmatprep.subr.mxu0 0.0
    %3738 = vmatpush2.msra.mxu0 0.0
    %3739 = vmatprep.subr.mxu0 0.0
    %3740 = vmatpush2.msra.mxu0 0.0
    %3741 = vmatprep.mubr.f32.mxu0 0.0
    %3742 = vmatmul.mubr.f32.gmra.mxu0 %v3666
    %v3743 = vpop.f32.mrf.mxu0
    %v3744 = vadd.f32 0.0, %v3743
    %v3745 = vpop.f32.mrf.mxu0
    %3746 = vmatprep.mubr.f32.mxu0 0.0
    %3747 = vmatmul.mubr.f32.gmra.mxu0 %v3669
    %v3748 = vpop.f32.mrf.mxu0
    %v3749 = vadd.f32 0.0, %v3748
    %v3750 = vpop.f32.mrf.mxu0
    %3751 = vmatprep.mubr.f32.mxu0 0.0
    %3752 = vmatmul.mubr.f32.gmra.mxu0 %v3672
    %v3753 = vpop.f32.mrf.mxu0
    %v3754 = vadd.f32 0.0, %v3753
    %v3755 = vpop.f32.mrf.mxu0
    %3756 = vmatprep.mubr.f32.mxu0 0.0
    %3757 = vmatmul.mubr.f32.gmra.mxu0 %v3675
    %v3758 = vpop.f32.mrf.mxu0
    %v3759 = vadd.f32 0.0, %v3758
    %v3760 = vpop.f32.mrf.mxu0
    %3761 = vdwg.mxu0
    %v3762 = vadd.f32 %v3554, %v3744
    %v3763 = vadd.f32 %v3555, %v3749
    %v3764 = vadd.f32 %v3556, %v3754
    %v3765 = vadd.f32 %v3557, %v3759
    %v3766 = vld [vmem:[%s0 + $0x240] sm:$0xff]
    %v3767 = vld [vmem:[%s0 + $0x248] sm:$0xff]
    %v3768 = vld [vmem:[%s0 + $0x250] sm:$0xff]
    %v3769 = vld [vmem:[%s0 + $0x258] sm:$0xff]
    %v3771 = vsel %vm33, %v3766, 0
    %v3774 = vsel %vm33, %v3767, 0
    %v3777 = vsel %vm33, %v3768, 0
    %v3780 = vsel %vm33, %v3769, 0
    %3782 = vmatprep.subr.mxu0 0.0
    %3783 = vmatpush1.msra.mxu0 0.0
    %3784 = vmatprep.subr.mxu0 0.0
    %3785 = vmatpush1.msra.mxu0 0.0
    %3786 = vmatprep.subr.mxu0 0.0
    %3787 = vmatpush1.msra.mxu0 0.0
    %3788 = vmatprep.subr.mxu0 0.0
    %3789 = vmatpush1.msra.mxu0 0.0
    %3790 = vmatprep.subr.mxu0 0.0
    %3791 = vmatpush1.msra.mxu0 0.0
    %3792 = vmatprep.subr.mxu0 0.0
    %3793 = vmatpush1.msra.mxu0 0.0
    %3794 = vmatprep.subr.mxu0 0.0
    %3795 = vmatpush1.msra.mxu0 0.0
    %3796 = vmatprep.subr.mxu0 0.0
    %3797 = vmatpush1.msra.mxu0 0.0
    %3798 = vmatprep.subr.mxu0 0.0
    %3799 = vmatpush1.msra.mxu0 0.0
    %3800 = vmatprep.subr.mxu0 0.0
    %3801 = vmatpush1.msra.mxu0 0.0
    %3802 = vmatprep.subr.mxu0 0.0
    %3803 = vmatpush1.msra.mxu0 0.0
    %3804 = vmatprep.subr.mxu0 0.0
    %3805 = vmatpush1.msra.mxu0 0.0
    %3806 = vmatprep.subr.mxu0 0.0
    %3807 = vmatpush1.msra.mxu0 %v28
    %3808 = vmatprep.subr.mxu0 0.0
    %3809 = vmatpush1.msra.mxu0 %v27
    %3810 = vmatprep.subr.mxu0 0.0
    %3811 = vmatpush1.msra.mxu0 %v26
    %3812 = vmatprep.subr.mxu0 0.0
    %3813 = vmatpush1.msra.mxu0 %v25
    %3814 = vmatprep.subr.mxu0 0.0
    %3815 = vmatpush2.msra.mxu0 0.0
    %3816 = vmatprep.subr.mxu0 0.0
    %3817 = vmatpush2.msra.mxu0 0.0
    %3818 = vmatprep.subr.mxu0 0.0
    %3819 = vmatpush2.msra.mxu0 0.0
    %3820 = vmatprep.subr.mxu0 0.0
    %3821 = vmatpush2.msra.mxu0 0.0
    %3822 = vmatprep.subr.mxu0 0.0
    %3823 = vmatpush2.msra.mxu0 0.0
    %3824 = vmatprep.subr.mxu0 0.0
    %3825 = vmatpush2.msra.mxu0 0.0
    %3826 = vmatprep.subr.mxu0 0.0
    %3827 = vmatpush2.msra.mxu0 0.0
    %3828 = vmatprep.subr.mxu0 0.0
    %3829 = vmatpush2.msra.mxu0 0.0
    %3830 = vmatprep.subr.mxu0 0.0
    %3831 = vmatpush2.msra.mxu0 0.0
    %3832 = vmatprep.subr.mxu0 0.0
    %3833 = vmatpush2.msra.mxu0 0.0
    %3834 = vmatprep.subr.mxu0 0.0
    %3835 = vmatpush2.msra.mxu0 0.0
    %3836 = vmatprep.subr.mxu0 0.0
    %3837 = vmatpush2.msra.mxu0 0.0
    %3838 = vmatprep.subr.mxu0 0.0
    %3839 = vmatpush2.msra.mxu0 0.0
    %3840 = vmatprep.subr.mxu0 0.0
    %3841 = vmatpush2.msra.mxu0 0.0
    %3842 = vmatprep.subr.mxu0 0.0
    %3843 = vmatpush2.msra.mxu0 0.0
    %3844 = vmatprep.subr.mxu0 0.0
    %3845 = vmatpush2.msra.mxu0 0.0
    %3846 = vmatprep.mubr.f32.mxu0 0.0
    %3847 = vmatmul.mubr.f32.gmra.mxu0 %v3771
    %v3848 = vpop.f32.mrf.mxu0
    %v3849 = vadd.f32 0.0, %v3848
    %v3850 = vpop.f32.mrf.mxu0
    %3851 = vmatprep.mubr.f32.mxu0 0.0
    %3852 = vmatmul.mubr.f32.gmra.mxu0 %v3774
    %v3853 = vpop.f32.mrf.mxu0
    %v3854 = vadd.f32 0.0, %v3853
    %v3855 = vpop.f32.mrf.mxu0
    %3856 = vmatprep.mubr.f32.mxu0 0.0
    %3857 = vmatmul.mubr.f32.gmra.mxu0 %v3777
    %v3858 = vpop.f32.mrf.mxu0
    %v3859 = vadd.f32 0.0, %v3858
    %v3860 = vpop.f32.mrf.mxu0
    %3861 = vmatprep.mubr.f32.mxu0 0.0
    %3862 = vmatmul.mubr.f32.gmra.mxu0 %v3780
    %v3863 = vpop.f32.mrf.mxu0
    %v3864 = vadd.f32 0.0, %v3863
    %v3865 = vpop.f32.mrf.mxu0
    %3866 = vdwg.mxu0
    %v3867 = vmax.f32 %v3849, 0.0
    %v3868 = vmax.f32 %v3854, 0.0
    %v3869 = vmax.f32 %v3859, 0.0
    %v3870 = vmax.f32 %v3864, 0.0
    %s3871 = scalar_lea.vmem %s2, 144
    %v3872 = vld [vmem:[%s3871] sm:$0xff]
    %v3874 = vsel %vm243, %v3867, 0
    %v3877 = vsel %vm243, %v3868, 0
    %v3880 = vsel %vm243, %v3869, 0
    %v3883 = vsel %vm243, %v3870, 0
    %3885 = vmatprep.subr.mxu0 0.0
    %3886 = vmatpush1.msra.mxu0 0.0
    %3887 = vmatprep.subr.mxu0 0.0
    %3888 = vmatpush1.msra.mxu0 0.0
    %3889 = vmatprep.subr.mxu0 0.0
    %3890 = vmatpush1.msra.mxu0 0.0
    %3891 = vmatprep.subr.mxu0 0.0
    %3892 = vmatpush1.msra.mxu0 0.0
    %3893 = vmatprep.subr.mxu0 0.0
    %3894 = vmatpush1.msra.mxu0 0.0
    %3895 = vmatprep.subr.mxu0 0.0
    %3896 = vmatpush1.msra.mxu0 0.0
    %3897 = vmatprep.subr.mxu0 0.0
    %3898 = vmatpush1.msra.mxu0 0.0
    %3899 = vmatprep.subr.mxu0 0.0
    %3900 = vmatpush1.msra.mxu0 0.0
    %3901 = vmatprep.subr.mxu0 0.0
    %3902 = vmatpush1.msra.mxu0 0.0
    %3903 = vmatprep.subr.mxu0 0.0
    %3904 = vmatpush1.msra.mxu0 0.0
    %3905 = vmatprep.subr.mxu0 0.0
    %3906 = vmatpush1.msra.mxu0 0.0
    %3907 = vmatprep.subr.mxu0 0.0
    %3908 = vmatpush1.msra.mxu0 0.0
    %3909 = vmatprep.subr.mxu0 0.0
    %3910 = vmatpush1.msra.mxu0 0.0
    %3911 = vmatprep.subr.mxu0 0.0
    %3912 = vmatpush1.msra.mxu0 0.0
    %3913 = vmatprep.subr.mxu0 0.0
    %3914 = vmatpush1.msra.mxu0 0.0
    %3915 = vmatprep.subr.mxu0 0.0
    %3916 = vmatpush1.msra.mxu0 %v3872
    %3917 = vmatprep.subr.mxu0 0.0
    %3918 = vmatpush2.msra.mxu0 0.0
    %3919 = vmatprep.subr.mxu0 0.0
    %3920 = vmatpush2.msra.mxu0 0.0
    %3921 = vmatprep.subr.mxu0 0.0
    %3922 = vmatpush2.msra.mxu0 0.0
    %3923 = vmatprep.subr.mxu0 0.0
    %3924 = vmatpush2.msra.mxu0 0.0
    %3925 = vmatprep.subr.mxu0 0.0
    %3926 = vmatpush2.msra.mxu0 0.0
    %3927 = vmatprep.subr.mxu0 0.0
    %3928 = vmatpush2.msra.mxu0 0.0
    %3929 = vmatprep.subr.mxu0 0.0
    %3930 = vmatpush2.msra.mxu0 0.0
    %3931 = vmatprep.subr.mxu0 0.0
    %3932 = vmatpush2.msra.mxu0 0.0
    %3933 = vmatprep.subr.mxu0 0.0
    %3934 = vmatpush2.msra.mxu0 0.0
    %3935 = vmatprep.subr.mxu0 0.0
    %3936 = vmatpush2.msra.mxu0 0.0
    %3937 = vmatprep.subr.mxu0 0.0
    %3938 = vmatpush2.msra.mxu0 0.0
    %3939 = vmatprep.subr.mxu0 0.0
    %3940 = vmatpush2.msra.mxu0 0.0
    %3941 = vmatprep.subr.mxu0 0.0
    %3942 = vmatpush2.msra.mxu0 0.0
    %3943 = vmatprep.subr.mxu0 0.0
    %3944 = vmatpush2.msra.mxu0 0.0
    %3945 = vmatprep.subr.mxu0 0.0
    %3946 = vmatpush2.msra.mxu0 0.0
    %3947 = vmatprep.subr.mxu0 0.0
    %3948 = vmatpush2.msra.mxu0 0.0
    %3949 = vmatprep.mubr.f32.mxu0 0.0
    %3950 = vmatmul.mubr.f32.gmra.mxu0 %v3874
    %v3951 = vpop.f32.mrf.mxu0
    %v3952 = vadd.f32 0.0, %v3951
    %v3953 = vpop.f32.mrf.mxu0
    %3954 = vmatprep.mubr.f32.mxu0 0.0
    %3955 = vmatmul.mubr.f32.gmra.mxu0 %v3877
    %v3956 = vpop.f32.mrf.mxu0
    %v3957 = vadd.f32 0.0, %v3956
    %v3958 = vpop.f32.mrf.mxu0
    %3959 = vmatprep.mubr.f32.mxu0 0.0
    %3960 = vmatmul.mubr.f32.gmra.mxu0 %v3880
    %v3961 = vpop.f32.mrf.mxu0
    %v3962 = vadd.f32 0.0, %v3961
    %v3963 = vpop.f32.mrf.mxu0
    %3964 = vmatprep.mubr.f32.mxu0 0.0
    %3965 = vmatmul.mubr.f32.gmra.mxu0 %v3883
    %v3966 = vpop.f32.mrf.mxu0
    %v3967 = vadd.f32 0.0, %v3966
    %v3968 = vpop.f32.mrf.mxu0
    %3969 = vdwg.mxu0
    %v3970 = vadd.f32 %v3762, %v3952
    %v3971 = vadd.f32 %v3763, %v3957
    %v3972 = vadd.f32 %v3764, %v3962
    %v3973 = vadd.f32 %v3765, %v3967
    %v3974 = vld [vmem:[%s0 + $0x260] sm:$0xff]
    %v3975 = vld [vmem:[%s0 + $0x268] sm:$0xff]
    %v3976 = vld [vmem:[%s0 + $0x270] sm:$0xff]
    %v3977 = vld [vmem:[%s0 + $0x278] sm:$0xff]
    %v3979 = vsel %vm33, %v3974, 0
    %v3982 = vsel %vm33, %v3975, 0
    %v3985 = vsel %vm33, %v3976, 0
    %v3988 = vsel %vm33, %v3977, 0
    %3990 = vmatprep.subr.mxu0 0.0
    %3991 = vmatpush1.msra.mxu0 0.0
    %3992 = vmatprep.subr.mxu0 0.0
    %3993 = vmatpush1.msra.mxu0 0.0
    %3994 = vmatprep.subr.mxu0 0.0
    %3995 = vmatpush1.msra.mxu0 0.0
    %3996 = vmatprep.subr.mxu0 0.0
    %3997 = vmatpush1.msra.mxu0 0.0
    %3998 = vmatprep.subr.mxu0 0.0
    %3999 = vmatpush1.msra.mxu0 0.0
    %4000 = vmatprep.subr.mxu0 0.0
    %4001 = vmatpush1.msra.mxu0 0.0
    %4002 = vmatprep.subr.mxu0 0.0
    %4003 = vmatpush1.msra.mxu0 0.0
    %4004 = vmatprep.subr.mxu0 0.0
    %4005 = vmatpush1.msra.mxu0 0.0
    %4006 = vmatprep.subr.mxu0 0.0
    %4007 = vmatpush1.msra.mxu0 0.0
    %4008 = vmatprep.subr.mxu0 0.0
    %4009 = vmatpush1.msra.mxu0 0.0
    %4010 = vmatprep.subr.mxu0 0.0
    %4011 = vmatpush1.msra.mxu0 0.0
    %4012 = vmatprep.subr.mxu0 0.0
    %4013 = vmatpush1.msra.mxu0 0.0
    %4014 = vmatprep.subr.mxu0 0.0
    %4015 = vmatpush1.msra.mxu0 %v28
    %4016 = vmatprep.subr.mxu0 0.0
    %4017 = vmatpush1.msra.mxu0 %v27
    %4018 = vmatprep.subr.mxu0 0.0
    %4019 = vmatpush1.msra.mxu0 %v26
    %4020 = vmatprep.subr.mxu0 0.0
    %4021 = vmatpush1.msra.mxu0 %v25
    %4022 = vmatprep.subr.mxu0 0.0
    %4023 = vmatpush2.msra.mxu0 0.0
    %4024 = vmatprep.subr.mxu0 0.0
    %4025 = vmatpush2.msra.mxu0 0.0
    %4026 = vmatprep.subr.mxu0 0.0
    %4027 = vmatpush2.msra.mxu0 0.0
    %4028 = vmatprep.subr.mxu0 0.0
    %4029 = vmatpush2.msra.mxu0 0.0
    %4030 = vmatprep.subr.mxu0 0.0
    %4031 = vmatpush2.msra.mxu0 0.0
    %4032 = vmatprep.subr.mxu0 0.0
    %4033 = vmatpush2.msra.mxu0 0.0
    %4034 = vmatprep.subr.mxu0 0.0
    %4035 = vmatpush2.msra.mxu0 0.0
    %4036 = vmatprep.subr.mxu0 0.0
    %4037 = vmatpush2.msra.mxu0 0.0
    %4038 = vmatprep.subr.mxu0 0.0
    %4039 = vmatpush2.msra.mxu0 0.0
    %4040 = vmatprep.subr.mxu0 0.0
    %4041 = vmatpush2.msra.mxu0 0.0
    %4042 = vmatprep.subr.mxu0 0.0
    %4043 = vmatpush2.msra.mxu0 0.0
    %4044 = vmatprep.subr.mxu0 0.0
    %4045 = vmatpush2.msra.mxu0 0.0
    %4046 = vmatprep.subr.mxu0 0.0
    %4047 = vmatpush2.msra.mxu0 0.0
    %4048 = vmatprep.subr.mxu0 0.0
    %4049 = vmatpush2.msra.mxu0 0.0
    %4050 = vmatprep.subr.mxu0 0.0
    %4051 = vmatpush2.msra.mxu0 0.0
    %4052 = vmatprep.subr.mxu0 0.0
    %4053 = vmatpush2.msra.mxu0 0.0
    %4054 = vmatprep.mubr.f32.mxu0 0.0
    %4055 = vmatmul.mubr.f32.gmra.mxu0 %v3979
    %v4056 = vpop.f32.mrf.mxu0
    %v4057 = vadd.f32 0.0, %v4056
    %v4058 = vpop.f32.mrf.mxu0
    %4059 = vmatprep.mubr.f32.mxu0 0.0
    %4060 = vmatmul.mubr.f32.gmra.mxu0 %v3982
    %v4061 = vpop.f32.mrf.mxu0
    %v4062 = vadd.f32 0.0, %v4061
    %v4063 = vpop.f32.mrf.mxu0
    %4064 = vmatprep.mubr.f32.mxu0 0.0
    %4065 = vmatmul.mubr.f32.gmra.mxu0 %v3985
    %v4066 = vpop.f32.mrf.mxu0
    %v4067 = vadd.f32 0.0, %v4066
    %v4068 = vpop.f32.mrf.mxu0
    %4069 = vmatprep.mubr.f32.mxu0 0.0
    %4070 = vmatmul.mubr.f32.gmra.mxu0 %v3988
    %v4071 = vpop.f32.mrf.mxu0
    %v4072 = vadd.f32 0.0, %v4071
    %v4073 = vpop.f32.mrf.mxu0
    %4074 = vdwg.mxu0
    %v4075 = vmax.f32 %v4057, 0.0
    %v4076 = vmax.f32 %v4062, 0.0
    %v4077 = vmax.f32 %v4067, 0.0
    %v4078 = vmax.f32 %v4072, 0.0
    %s4079 = scalar_lea.vmem %s2, 152
    %v4080 = vld [vmem:[%s4079] sm:$0xff]
    %v4082 = vsel %vm243, %v4075, 0
    %v4085 = vsel %vm243, %v4076, 0
    %v4088 = vsel %vm243, %v4077, 0
    %v4091 = vsel %vm243, %v4078, 0
    %4093 = vmatprep.subr.mxu0 0.0
    %4094 = vmatpush1.msra.mxu0 0.0
    %4095 = vmatprep.subr.mxu0 0.0
    %4096 = vmatpush1.msra.mxu0 0.0
    %4097 = vmatprep.subr.mxu0 0.0
    %4098 = vmatpush1.msra.mxu0 0.0
    %4099 = vmatprep.subr.mxu0 0.0
    %4100 = vmatpush1.msra.mxu0 0.0
    %4101 = vmatprep.subr.mxu0 0.0
    %4102 = vmatpush1.msra.mxu0 0.0
    %4103 = vmatprep.subr.mxu0 0.0
    %4104 = vmatpush1.msra.mxu0 0.0
    %4105 = vmatprep.subr.mxu0 0.0
    %4106 = vmatpush1.msra.mxu0 0.0
    %4107 = vmatprep.subr.mxu0 0.0
    %4108 = vmatpush1.msra.mxu0 0.0
    %4109 = vmatprep.subr.mxu0 0.0
    %4110 = vmatpush1.msra.mxu0 0.0
    %4111 = vmatprep.subr.mxu0 0.0
    %4112 = vmatpush1.msra.mxu0 0.0
    %4113 = vmatprep.subr.mxu0 0.0
    %4114 = vmatpush1.msra.mxu0 0.0
    %4115 = vmatprep.subr.mxu0 0.0
    %4116 = vmatpush1.msra.mxu0 0.0
    %4117 = vmatprep.subr.mxu0 0.0
    %4118 = vmatpush1.msra.mxu0 0.0
    %4119 = vmatprep.subr.mxu0 0.0
    %4120 = vmatpush1.msra.mxu0 0.0
    %4121 = vmatprep.subr.mxu0 0.0
    %4122 = vmatpush1.msra.mxu0 0.0
    %4123 = vmatprep.subr.mxu0 0.0
    %4124 = vmatpush1.msra.mxu0 %v4080
    %4125 = vmatprep.subr.mxu0 0.0
    %4126 = vmatpush2.msra.mxu0 0.0
    %4127 = vmatprep.subr.mxu0 0.0
    %4128 = vmatpush2.msra.mxu0 0.0
    %4129 = vmatprep.subr.mxu0 0.0
    %4130 = vmatpush2.msra.mxu0 0.0
    %4131 = vmatprep.subr.mxu0 0.0
    %4132 = vmatpush2.msra.mxu0 0.0
    %4133 = vmatprep.subr.mxu0 0.0
    %4134 = vmatpush2.msra.mxu0 0.0
    %4135 = vmatprep.subr.mxu0 0.0
    %4136 = vmatpush2.msra.mxu0 0.0
    %4137 = vmatprep.subr.mxu0 0.0
    %4138 = vmatpush2.msra.mxu0 0.0
    %4139 = vmatprep.subr.mxu0 0.0
    %4140 = vmatpush2.msra.mxu0 0.0
    %4141 = vmatprep.subr.mxu0 0.0
    %4142 = vmatpush2.msra.mxu0 0.0
    %4143 = vmatprep.subr.mxu0 0.0
    %4144 = vmatpush2.msra.mxu0 0.0
    %4145 = vmatprep.subr.mxu0 0.0
    %4146 = vmatpush2.msra.mxu0 0.0
    %4147 = vmatprep.subr.mxu0 0.0
    %4148 = vmatpush2.msra.mxu0 0.0
    %4149 = vmatprep.subr.mxu0 0.0
    %4150 = vmatpush2.msra.mxu0 0.0
    %4151 = vmatprep.subr.mxu0 0.0
    %4152 = vmatpush2.msra.mxu0 0.0
    %4153 = vmatprep.subr.mxu0 0.0
    %4154 = vmatpush2.msra.mxu0 0.0
    %4155 = vmatprep.subr.mxu0 0.0
    %4156 = vmatpush2.msra.mxu0 0.0
    %4157 = vmatprep.mubr.f32.mxu0 0.0
    %4158 = vmatmul.mubr.f32.gmra.mxu0 %v4082
    %v4159 = vpop.f32.mrf.mxu0
    %v4160 = vadd.f32 0.0, %v4159
    %v4161 = vpop.f32.mrf.mxu0
    %4162 = vmatprep.mubr.f32.mxu0 0.0
    %4163 = vmatmul.mubr.f32.gmra.mxu0 %v4085
    %v4164 = vpop.f32.mrf.mxu0
    %v4165 = vadd.f32 0.0, %v4164
    %v4166 = vpop.f32.mrf.mxu0
    %4167 = vmatprep.mubr.f32.mxu0 0.0
    %4168 = vmatmul.mubr.f32.gmra.mxu0 %v4088
    %v4169 = vpop.f32.mrf.mxu0
    %v4170 = vadd.f32 0.0, %v4169
    %v4171 = vpop.f32.mrf.mxu0
    %4172 = vmatprep.mubr.f32.mxu0 0.0
    %4173 = vmatmul.mubr.f32.gmra.mxu0 %v4091
    %v4174 = vpop.f32.mrf.mxu0
    %v4175 = vadd.f32 0.0, %v4174
    %v4176 = vpop.f32.mrf.mxu0
    %4177 = vdwg.mxu0
    %v4178 = vadd.f32 %v3970, %v4160
    %v4179 = vadd.f32 %v3971, %v4165
    %v4180 = vadd.f32 %v3972, %v4170
    %v4181 = vadd.f32 %v3973, %v4175
    %v4182 = vld [vmem:[%s0 + $0x280] sm:$0xff]
    %v4183 = vld [vmem:[%s0 + $0x288] sm:$0xff]
    %v4184 = vld [vmem:[%s0 + $0x290] sm:$0xff]
    %v4185 = vld [vmem:[%s0 + $0x298] sm:$0xff]
    %v4187 = vsel %vm33, %v4182, 0
    %v4190 = vsel %vm33, %v4183, 0
    %v4193 = vsel %vm33, %v4184, 0
    %v4196 = vsel %vm33, %v4185, 0
    %4198 = vmatprep.subr.mxu0 0.0
    %4199 = vmatpush1.msra.mxu0 0.0
    %4200 = vmatprep.subr.mxu0 0.0
    %4201 = vmatpush1.msra.mxu0 0.0
    %4202 = vmatprep.subr.mxu0 0.0
    %4203 = vmatpush1.msra.mxu0 0.0
    %4204 = vmatprep.subr.mxu0 0.0
    %4205 = vmatpush1.msra.mxu0 0.0
    %4206 = vmatprep.subr.mxu0 0.0
    %4207 = vmatpush1.msra.mxu0 0.0
    %4208 = vmatprep.subr.mxu0 0.0
    %4209 = vmatpush1.msra.mxu0 0.0
    %4210 = vmatprep.subr.mxu0 0.0
    %4211 = vmatpush1.msra.mxu0 0.0
    %4212 = vmatprep.subr.mxu0 0.0
    %4213 = vmatpush1.msra.mxu0 0.0
    %4214 = vmatprep.subr.mxu0 0.0
    %4215 = vmatpush1.msra.mxu0 0.0
    %4216 = vmatprep.subr.mxu0 0.0
    %4217 = vmatpush1.msra.mxu0 0.0
    %4218 = vmatprep.subr.mxu0 0.0
    %4219 = vmatpush1.msra.mxu0 0.0
    %4220 = vmatprep.subr.mxu0 0.0
    %4221 = vmatpush1.msra.mxu0 0.0
    %4222 = vmatprep.subr.mxu0 0.0
    %4223 = vmatpush1.msra.mxu0 %v28
    %4224 = vmatprep.subr.mxu0 0.0
    %4225 = vmatpush1.msra.mxu0 %v27
    %4226 = vmatprep.subr.mxu0 0.0
    %4227 = vmatpush1.msra.mxu0 %v26
    %4228 = vmatprep.subr.mxu0 0.0
    %4229 = vmatpush1.msra.mxu0 %v25
    %4230 = vmatprep.subr.mxu0 0.0
    %4231 = vmatpush2.msra.mxu0 0.0
    %4232 = vmatprep.subr.mxu0 0.0
    %4233 = vmatpush2.msra.mxu0 0.0
    %4234 = vmatprep.subr.mxu0 0.0
    %4235 = vmatpush2.msra.mxu0 0.0
    %4236 = vmatprep.subr.mxu0 0.0
    %4237 = vmatpush2.msra.mxu0 0.0
    %4238 = vmatprep.subr.mxu0 0.0
    %4239 = vmatpush2.msra.mxu0 0.0
    %4240 = vmatprep.subr.mxu0 0.0
    %4241 = vmatpush2.msra.mxu0 0.0
    %4242 = vmatprep.subr.mxu0 0.0
    %4243 = vmatpush2.msra.mxu0 0.0
    %4244 = vmatprep.subr.mxu0 0.0
    %4245 = vmatpush2.msra.mxu0 0.0
    %4246 = vmatprep.subr.mxu0 0.0
    %4247 = vmatpush2.msra.mxu0 0.0
    %4248 = vmatprep.subr.mxu0 0.0
    %4249 = vmatpush2.msra.mxu0 0.0
    %4250 = vmatprep.subr.mxu0 0.0
    %4251 = vmatpush2.msra.mxu0 0.0
    %4252 = vmatprep.subr.mxu0 0.0
    %4253 = vmatpush2.msra.mxu0 0.0
    %4254 = vmatprep.subr.mxu0 0.0
    %4255 = vmatpush2.msra.mxu0 0.0
    %4256 = vmatprep.subr.mxu0 0.0
    %4257 = vmatpush2.msra.mxu0 0.0
    %4258 = vmatprep.subr.mxu0 0.0
    %4259 = vmatpush2.msra.mxu0 0.0
    %4260 = vmatprep.subr.mxu0 0.0
    %4261 = vmatpush2.msra.mxu0 0.0
    %4262 = vmatprep.mubr.f32.mxu0 0.0
    %4263 = vmatmul.mubr.f32.gmra.mxu0 %v4187
    %v4264 = vpop.f32.mrf.mxu0
    %v4265 = vadd.f32 0.0, %v4264
    %v4266 = vpop.f32.mrf.mxu0
    %4267 = vmatprep.mubr.f32.mxu0 0.0
    %4268 = vmatmul.mubr.f32.gmra.mxu0 %v4190
    %v4269 = vpop.f32.mrf.mxu0
    %v4270 = vadd.f32 0.0, %v4269
    %v4271 = vpop.f32.mrf.mxu0
    %4272 = vmatprep.mubr.f32.mxu0 0.0
    %4273 = vmatmul.mubr.f32.gmra.mxu0 %v4193
    %v4274 = vpop.f32.mrf.mxu0
    %v4275 = vadd.f32 0.0, %v4274
    %v4276 = vpop.f32.mrf.mxu0
    %4277 = vmatprep.mubr.f32.mxu0 0.0
    %4278 = vmatmul.mubr.f32.gmra.mxu0 %v4196
    %v4279 = vpop.f32.mrf.mxu0
    %v4280 = vadd.f32 0.0, %v4279
    %v4281 = vpop.f32.mrf.mxu0
    %4282 = vdwg.mxu0
    %v4283 = vmax.f32 %v4265, 0.0
    %v4284 = vmax.f32 %v4270, 0.0
    %v4285 = vmax.f32 %v4275, 0.0
    %v4286 = vmax.f32 %v4280, 0.0
    %s4287 = scalar_lea.vmem %s2, 160
    %v4288 = vld [vmem:[%s4287] sm:$0xff]
    %v4290 = vsel %vm243, %v4283, 0
    %v4293 = vsel %vm243, %v4284, 0
    %v4296 = vsel %vm243, %v4285, 0
    %v4299 = vsel %vm243, %v4286, 0
    %4301 = vmatprep.subr.mxu0 0.0
    %4302 = vmatpush1.msra.mxu0 0.0
    %4303 = vmatprep.subr.mxu0 0.0
    %4304 = vmatpush1.msra.mxu0 0.0
    %4305 = vmatprep.subr.mxu0 0.0
    %4306 = vmatpush1.msra.mxu0 0.0
    %4307 = vmatprep.subr.mxu0 0.0
    %4308 = vmatpush1.msra.mxu0 0.0
    %4309 = vmatprep.subr.mxu0 0.0
    %4310 = vmatpush1.msra.mxu0 0.0
    %4311 = vmatprep.subr.mxu0 0.0
    %4312 = vmatpush1.msra.mxu0 0.0
    %4313 = vmatprep.subr.mxu0 0.0
    %4314 = vmatpush1.msra.mxu0 0.0
    %4315 = vmatprep.subr.mxu0 0.0
    %4316 = vmatpush1.msra.mxu0 0.0
    %4317 = vmatprep.subr.mxu0 0.0
    %4318 = vmatpush1.msra.mxu0 0.0
    %4319 = vmatprep.subr.mxu0 0.0
    %4320 = vmatpush1.msra.mxu0 0.0
    %4321 = vmatprep.subr.mxu0 0.0
    %4322 = vmatpush1.msra.mxu0 0.0
    %4323 = vmatprep.subr.mxu0 0.0
    %4324 = vmatpush1.msra.mxu0 0.0
    %4325 = vmatprep.subr.mxu0 0.0
    %4326 = vmatpush1.msra.mxu0 0.0
    %4327 = vmatprep.subr.mxu0 0.0
    %4328 = vmatpush1.msra.mxu0 0.0
    %4329 = vmatprep.subr.mxu0 0.0
    %4330 = vmatpush1.msra.mxu0 0.0
    %4331 = vmatprep.subr.mxu0 0.0
    %4332 = vmatpush1.msra.mxu0 %v4288
    %4333 = vmatprep.subr.mxu0 0.0
    %4334 = vmatpush2.msra.mxu0 0.0
    %4335 = vmatprep.subr.mxu0 0.0
    %4336 = vmatpush2.msra.mxu0 0.0
    %4337 = vmatprep.subr.mxu0 0.0
    %4338 = vmatpush2.msra.mxu0 0.0
    %4339 = vmatprep.subr.mxu0 0.0
    %4340 = vmatpush2.msra.mxu0 0.0
    %4341 = vmatprep.subr.mxu0 0.0
    %4342 = vmatpush2.msra.mxu0 0.0
    %4343 = vmatprep.subr.mxu0 0.0
    %4344 = vmatpush2.msra.mxu0 0.0
    %4345 = vmatprep.subr.mxu0 0.0
    %4346 = vmatpush2.msra.mxu0 0.0
    %4347 = vmatprep.subr.mxu0 0.0
    %4348 = vmatpush2.msra.mxu0 0.0
    %4349 = vmatprep.subr.mxu0 0.0
    %4350 = vmatpush2.msra.mxu0 0.0
    %4351 = vmatprep.subr.mxu0 0.0
    %4352 = vmatpush2.msra.mxu0 0.0
    %4353 = vmatprep.subr.mxu0 0.0
    %4354 = vmatpush2.msra.mxu0 0.0
    %4355 = vmatprep.subr.mxu0 0.0
    %4356 = vmatpush2.msra.mxu0 0.0
    %4357 = vmatprep.subr.mxu0 0.0
    %4358 = vmatpush2.msra.mxu0 0.0
    %4359 = vmatprep.subr.mxu0 0.0
    %4360 = vmatpush2.msra.mxu0 0.0
    %4361 = vmatprep.subr.mxu0 0.0
    %4362 = vmatpush2.msra.mxu0 0.0
    %4363 = vmatprep.subr.mxu0 0.0
    %4364 = vmatpush2.msra.mxu0 0.0
    %4365 = vmatprep.mubr.f32.mxu0 0.0
    %4366 = vmatmul.mubr.f32.gmra.mxu0 %v4290
    %v4367 = vpop.f32.mrf.mxu0
    %v4368 = vadd.f32 0.0, %v4367
    %v4369 = vpop.f32.mrf.mxu0
    %4370 = vmatprep.mubr.f32.mxu0 0.0
    %4371 = vmatmul.mubr.f32.gmra.mxu0 %v4293
    %v4372 = vpop.f32.mrf.mxu0
    %v4373 = vadd.f32 0.0, %v4372
    %v4374 = vpop.f32.mrf.mxu0
    %4375 = vmatprep.mubr.f32.mxu0 0.0
    %4376 = vmatmul.mubr.f32.gmra.mxu0 %v4296
    %v4377 = vpop.f32.mrf.mxu0
    %v4378 = vadd.f32 0.0, %v4377
    %v4379 = vpop.f32.mrf.mxu0
    %4380 = vmatprep.mubr.f32.mxu0 0.0
    %4381 = vmatmul.mubr.f32.gmra.mxu0 %v4299
    %v4382 = vpop.f32.mrf.mxu0
    %v4383 = vadd.f32 0.0, %v4382
    %v4384 = vpop.f32.mrf.mxu0
    %4385 = vdwg.mxu0
    %v4386 = vadd.f32 %v4178, %v4368
    %v4387 = vadd.f32 %v4179, %v4373
    %v4388 = vadd.f32 %v4180, %v4378
    %v4389 = vadd.f32 %v4181, %v4383
    %v4390 = vld [vmem:[%s0 + $0x2a0] sm:$0xff]
    %v4391 = vld [vmem:[%s0 + $0x2a8] sm:$0xff]
    %v4392 = vld [vmem:[%s0 + $0x2b0] sm:$0xff]
    %v4393 = vld [vmem:[%s0 + $0x2b8] sm:$0xff]
    %v4395 = vsel %vm33, %v4390, 0
    %v4398 = vsel %vm33, %v4391, 0
    %v4401 = vsel %vm33, %v4392, 0
    %v4404 = vsel %vm33, %v4393, 0
    %4406 = vmatprep.subr.mxu0 0.0
    %4407 = vmatpush1.msra.mxu0 0.0
    %4408 = vmatprep.subr.mxu0 0.0
    %4409 = vmatpush1.msra.mxu0 0.0
    %4410 = vmatprep.subr.mxu0 0.0
    %4411 = vmatpush1.msra.mxu0 0.0
    %4412 = vmatprep.subr.mxu0 0.0
    %4413 = vmatpush1.msra.mxu0 0.0
    %4414 = vmatprep.subr.mxu0 0.0
    %4415 = vmatpush1.msra.mxu0 0.0
    %4416 = vmatprep.subr.mxu0 0.0
    %4417 = vmatpush1.msra.mxu0 0.0
    %4418 = vmatprep.subr.mxu0 0.0
    %4419 = vmatpush1.msra.mxu0 0.0
    %4420 = vmatprep.subr.mxu0 0.0
    %4421 = vmatpush1.msra.mxu0 0.0
    %4422 = vmatprep.subr.mxu0 0.0
    %4423 = vmatpush1.msra.mxu0 0.0
    %4424 = vmatprep.subr.mxu0 0.0
    %4425 = vmatpush1.msra.mxu0 0.0
    %4426 = vmatprep.subr.mxu0 0.0
    %4427 = vmatpush1.msra.mxu0 0.0
    %4428 = vmatprep.subr.mxu0 0.0
    %4429 = vmatpush1.msra.mxu0 0.0
    %4430 = vmatprep.subr.mxu0 0.0
    %4431 = vmatpush1.msra.mxu0 %v28
    %4432 = vmatprep.subr.mxu0 0.0
    %4433 = vmatpush1.msra.mxu0 %v27
    %4434 = vmatprep.subr.mxu0 0.0
    %4435 = vmatpush1.msra.mxu0 %v26
    %4436 = vmatprep.subr.mxu0 0.0
    %4437 = vmatpush1.msra.mxu0 %v25
    %4438 = vmatprep.subr.mxu0 0.0
    %4439 = vmatpush2.msra.mxu0 0.0
    %4440 = vmatprep.subr.mxu0 0.0
    %4441 = vmatpush2.msra.mxu0 0.0
    %4442 = vmatprep.subr.mxu0 0.0
    %4443 = vmatpush2.msra.mxu0 0.0
    %4444 = vmatprep.subr.mxu0 0.0
    %4445 = vmatpush2.msra.mxu0 0.0
    %4446 = vmatprep.subr.mxu0 0.0
    %4447 = vmatpush2.msra.mxu0 0.0
    %4448 = vmatprep.subr.mxu0 0.0
    %4449 = vmatpush2.msra.mxu0 0.0
    %4450 = vmatprep.subr.mxu0 0.0
    %4451 = vmatpush2.msra.mxu0 0.0
    %4452 = vmatprep.subr.mxu0 0.0
    %4453 = vmatpush2.msra.mxu0 0.0
    %4454 = vmatprep.subr.mxu0 0.0
    %4455 = vmatpush2.msra.mxu0 0.0
    %4456 = vmatprep.subr.mxu0 0.0
    %4457 = vmatpush2.msra.mxu0 0.0
    %4458 = vmatprep.subr.mxu0 0.0
    %4459 = vmatpush2.msra.mxu0 0.0
    %4460 = vmatprep.subr.mxu0 0.0
    %4461 = vmatpush2.msra.mxu0 0.0
    %4462 = vmatprep.subr.mxu0 0.0
    %4463 = vmatpush2.msra.mxu0 0.0
    %4464 = vmatprep.subr.mxu0 0.0
    %4465 = vmatpush2.msra.mxu0 0.0
    %4466 = vmatprep.subr.mxu0 0.0
    %4467 = vmatpush2.msra.mxu0 0.0
    %4468 = vmatprep.subr.mxu0 0.0
    %4469 = vmatpush2.msra.mxu0 0.0
    %4470 = vmatprep.mubr.f32.mxu0 0.0
    %4471 = vmatmul.mubr.f32.gmra.mxu0 %v4395
    %v4472 = vpop.f32.mrf.mxu0
    %v4473 = vadd.f32 0.0, %v4472
    %v4474 = vpop.f32.mrf.mxu0
    %4475 = vmatprep.mubr.f32.mxu0 0.0
    %4476 = vmatmul.mubr.f32.gmra.mxu0 %v4398
    %v4477 = vpop.f32.mrf.mxu0
    %v4478 = vadd.f32 0.0, %v4477
    %v4479 = vpop.f32.mrf.mxu0
    %4480 = vmatprep.mubr.f32.mxu0 0.0
    %4481 = vmatmul.mubr.f32.gmra.mxu0 %v4401
    %v4482 = vpop.f32.mrf.mxu0
    %v4483 = vadd.f32 0.0, %v4482
    %v4484 = vpop.f32.mrf.mxu0
    %4485 = vmatprep.mubr.f32.mxu0 0.0
    %4486 = vmatmul.mubr.f32.gmra.mxu0 %v4404
    %v4487 = vpop.f32.mrf.mxu0
    %v4488 = vadd.f32 0.0, %v4487
    %v4489 = vpop.f32.mrf.mxu0
    %4490 = vdwg.mxu0
    %v4491 = vmax.f32 %v4473, 0.0
    %v4492 = vmax.f32 %v4478, 0.0
    %v4493 = vmax.f32 %v4483, 0.0
    %v4494 = vmax.f32 %v4488, 0.0
    %s4495 = scalar_lea.vmem %s2, 168
    %v4496 = vld [vmem:[%s4495] sm:$0xff]
    %v4498 = vsel %vm243, %v4491, 0
    %v4501 = vsel %vm243, %v4492, 0
    %v4504 = vsel %vm243, %v4493, 0
    %v4507 = vsel %vm243, %v4494, 0
    %4509 = vmatprep.subr.mxu0 0.0
    %4510 = vmatpush1.msra.mxu0 0.0
    %4511 = vmatprep.subr.mxu0 0.0
    %4512 = vmatpush1.msra.mxu0 0.0
    %4513 = vmatprep.subr.mxu0 0.0
    %4514 = vmatpush1.msra.mxu0 0.0
    %4515 = vmatprep.subr.mxu0 0.0
    %4516 = vmatpush1.msra.mxu0 0.0
    %4517 = vmatprep.subr.mxu0 0.0
    %4518 = vmatpush1.msra.mxu0 0.0
    %4519 = vmatprep.subr.mxu0 0.0
    %4520 = vmatpush1.msra.mxu0 0.0
    %4521 = vmatprep.subr.mxu0 0.0
    %4522 = vmatpush1.msra.mxu0 0.0
    %4523 = vmatprep.subr.mxu0 0.0
    %4524 = vmatpush1.msra.mxu0 0.0
    %4525 = vmatprep.subr.mxu0 0.0
    %4526 = vmatpush1.msra.mxu0 0.0
    %4527 = vmatprep.subr.mxu0 0.0
    %4528 = vmatpush1.msra.mxu0 0.0
    %4529 = vmatprep.subr.mxu0 0.0
    %4530 = vmatpush1.msra.mxu0 0.0
    %4531 = vmatprep.subr.mxu0 0.0
    %4532 = vmatpush1.msra.mxu0 0.0
    %4533 = vmatprep.subr.mxu0 0.0
    %4534 = vmatpush1.msra.mxu0 0.0
    %4535 = vmatprep.subr.mxu0 0.0
    %4536 = vmatpush1.msra.mxu0 0.0
    %4537 = vmatprep.subr.mxu0 0.0
    %4538 = vmatpush1.msra.mxu0 0.0
    %4539 = vmatprep.subr.mxu0 0.0
    %4540 = vmatpush1.msra.mxu0 %v4496
    %4541 = vmatprep.subr.mxu0 0.0
    %4542 = vmatpush2.msra.mxu0 0.0
    %4543 = vmatprep.subr.mxu0 0.0
    %4544 = vmatpush2.msra.mxu0 0.0
    %4545 = vmatprep.subr.mxu0 0.0
    %4546 = vmatpush2.msra.mxu0 0.0
    %4547 = vmatprep.subr.mxu0 0.0
    %4548 = vmatpush2.msra.mxu0 0.0
    %4549 = vmatprep.subr.mxu0 0.0
    %4550 = vmatpush2.msra.mxu0 0.0
    %4551 = vmatprep.subr.mxu0 0.0
    %4552 = vmatpush2.msra.mxu0 0.0
    %4553 = vmatprep.subr.mxu0 0.0
    %4554 = vmatpush2.msra.mxu0 0.0
    %4555 = vmatprep.subr.mxu0 0.0
    %4556 = vmatpush2.msra.mxu0 0.0
    %4557 = vmatprep.subr.mxu0 0.0
    %4558 = vmatpush2.msra.mxu0 0.0
    %4559 = vmatprep.subr.mxu0 0.0
    %4560 = vmatpush2.msra.mxu0 0.0
    %4561 = vmatprep.subr.mxu0 0.0
    %4562 = vmatpush2.msra.mxu0 0.0
    %4563 = vmatprep.subr.mxu0 0.0
    %4564 = vmatpush2.msra.mxu0 0.0
    %4565 = vmatprep.subr.mxu0 0.0
    %4566 = vmatpush2.msra.mxu0 0.0
    %4567 = vmatprep.subr.mxu0 0.0
    %4568 = vmatpush2.msra.mxu0 0.0
    %4569 = vmatprep.subr.mxu0 0.0
    %4570 = vmatpush2.msra.mxu0 0.0
    %4571 = vmatprep.subr.mxu0 0.0
    %4572 = vmatpush2.msra.mxu0 0.0
    %4573 = vmatprep.mubr.f32.mxu0 0.0
    %4574 = vmatmul.mubr.f32.gmra.mxu0 %v4498
    %v4575 = vpop.f32.mrf.mxu0
    %v4576 = vadd.f32 0.0, %v4575
    %v4577 = vpop.f32.mrf.mxu0
    %4578 = vmatprep.mubr.f32.mxu0 0.0
    %4579 = vmatmul.mubr.f32.gmra.mxu0 %v4501
    %v4580 = vpop.f32.mrf.mxu0
    %v4581 = vadd.f32 0.0, %v4580
    %v4582 = vpop.f32.mrf.mxu0
    %4583 = vmatprep.mubr.f32.mxu0 0.0
    %4584 = vmatmul.mubr.f32.gmra.mxu0 %v4504
    %v4585 = vpop.f32.mrf.mxu0
    %v4586 = vadd.f32 0.0, %v4585
    %v4587 = vpop.f32.mrf.mxu0
    %4588 = vmatprep.mubr.f32.mxu0 0.0
    %4589 = vmatmul.mubr.f32.gmra.mxu0 %v4507
    %v4590 = vpop.f32.mrf.mxu0
    %v4591 = vadd.f32 0.0, %v4590
    %v4592 = vpop.f32.mrf.mxu0
    %4593 = vdwg.mxu0
    %v4594 = vadd.f32 %v4386, %v4576
    %v4595 = vadd.f32 %v4387, %v4581
    %v4596 = vadd.f32 %v4388, %v4586
    %v4597 = vadd.f32 %v4389, %v4591
    %v4598 = vld [vmem:[%s0 + $0x2c0] sm:$0xff]
    %v4599 = vld [vmem:[%s0 + $0x2c8] sm:$0xff]
    %v4600 = vld [vmem:[%s0 + $0x2d0] sm:$0xff]
    %v4601 = vld [vmem:[%s0 + $0x2d8] sm:$0xff]
    %v4603 = vsel %vm33, %v4598, 0
    %v4606 = vsel %vm33, %v4599, 0
    %v4609 = vsel %vm33, %v4600, 0
    %v4612 = vsel %vm33, %v4601, 0
    %4614 = vmatprep.subr.mxu0 0.0
    %4615 = vmatpush1.msra.mxu0 0.0
    %4616 = vmatprep.subr.mxu0 0.0
    %4617 = vmatpush1.msra.mxu0 0.0
    %4618 = vmatprep.subr.mxu0 0.0
    %4619 = vmatpush1.msra.mxu0 0.0
    %4620 = vmatprep.subr.mxu0 0.0
    %4621 = vmatpush1.msra.mxu0 0.0
    %4622 = vmatprep.subr.mxu0 0.0
    %4623 = vmatpush1.msra.mxu0 0.0
    %4624 = vmatprep.subr.mxu0 0.0
    %4625 = vmatpush1.msra.mxu0 0.0
    %4626 = vmatprep.subr.mxu0 0.0
    %4627 = vmatpush1.msra.mxu0 0.0
    %4628 = vmatprep.subr.mxu0 0.0
    %4629 = vmatpush1.msra.mxu0 0.0
    %4630 = vmatprep.subr.mxu0 0.0
    %4631 = vmatpush1.msra.mxu0 0.0
    %4632 = vmatprep.subr.mxu0 0.0
    %4633 = vmatpush1.msra.mxu0 0.0
    %4634 = vmatprep.subr.mxu0 0.0
    %4635 = vmatpush1.msra.mxu0 0.0
    %4636 = vmatprep.subr.mxu0 0.0
    %4637 = vmatpush1.msra.mxu0 0.0
    %4638 = vmatprep.subr.mxu0 0.0
    %4639 = vmatpush1.msra.mxu0 %v28
    %4640 = vmatprep.subr.mxu0 0.0
    %4641 = vmatpush1.msra.mxu0 %v27
    %4642 = vmatprep.subr.mxu0 0.0
    %4643 = vmatpush1.msra.mxu0 %v26
    %4644 = vmatprep.subr.mxu0 0.0
    %4645 = vmatpush1.msra.mxu0 %v25
    %4646 = vmatprep.subr.mxu0 0.0
    %4647 = vmatpush2.msra.mxu0 0.0
    %4648 = vmatprep.subr.mxu0 0.0
    %4649 = vmatpush2.msra.mxu0 0.0
    %4650 = vmatprep.subr.mxu0 0.0
    %4651 = vmatpush2.msra.mxu0 0.0
    %4652 = vmatprep.subr.mxu0 0.0
    %4653 = vmatpush2.msra.mxu0 0.0
    %4654 = vmatprep.subr.mxu0 0.0
    %4655 = vmatpush2.msra.mxu0 0.0
    %4656 = vmatprep.subr.mxu0 0.0
    %4657 = vmatpush2.msra.mxu0 0.0
    %4658 = vmatprep.subr.mxu0 0.0
    %4659 = vmatpush2.msra.mxu0 0.0
    %4660 = vmatprep.subr.mxu0 0.0
    %4661 = vmatpush2.msra.mxu0 0.0
    %4662 = vmatprep.subr.mxu0 0.0
    %4663 = vmatpush2.msra.mxu0 0.0
    %4664 = vmatprep.subr.mxu0 0.0
    %4665 = vmatpush2.msra.mxu0 0.0
    %4666 = vmatprep.subr.mxu0 0.0
    %4667 = vmatpush2.msra.mxu0 0.0
    %4668 = vmatprep.subr.mxu0 0.0
    %4669 = vmatpush2.msra.mxu0 0.0
    %4670 = vmatprep.subr.mxu0 0.0
    %4671 = vmatpush2.msra.mxu0 0.0
    %4672 = vmatprep.subr.mxu0 0.0
    %4673 = vmatpush2.msra.mxu0 0.0
    %4674 = vmatprep.subr.mxu0 0.0
    %4675 = vmatpush2.msra.mxu0 0.0
    %4676 = vmatprep.subr.mxu0 0.0
    %4677 = vmatpush2.msra.mxu0 0.0
    %4678 = vmatprep.mubr.f32.mxu0 0.0
    %4679 = vmatmul.mubr.f32.gmra.mxu0 %v4603
    %v4680 = vpop.f32.mrf.mxu0
    %v4681 = vadd.f32 0.0, %v4680
    %v4682 = vpop.f32.mrf.mxu0
    %4683 = vmatprep.mubr.f32.mxu0 0.0
    %4684 = vmatmul.mubr.f32.gmra.mxu0 %v4606
    %v4685 = vpop.f32.mrf.mxu0
    %v4686 = vadd.f32 0.0, %v4685
    %v4687 = vpop.f32.mrf.mxu0
    %4688 = vmatprep.mubr.f32.mxu0 0.0
    %4689 = vmatmul.mubr.f32.gmra.mxu0 %v4609
    %v4690 = vpop.f32.mrf.mxu0
    %v4691 = vadd.f32 0.0, %v4690
    %v4692 = vpop.f32.mrf.mxu0
    %4693 = vmatprep.mubr.f32.mxu0 0.0
    %4694 = vmatmul.mubr.f32.gmra.mxu0 %v4612
    %v4695 = vpop.f32.mrf.mxu0
    %v4696 = vadd.f32 0.0, %v4695
    %v4697 = vpop.f32.mrf.mxu0
    %4698 = vdwg.mxu0
    %v4699 = vmax.f32 %v4681, 0.0
    %v4700 = vmax.f32 %v4686, 0.0
    %v4701 = vmax.f32 %v4691, 0.0
    %v4702 = vmax.f32 %v4696, 0.0
    %s4703 = scalar_lea.vmem %s2, 176
    %v4704 = vld [vmem:[%s4703] sm:$0xff]
    %v4706 = vsel %vm243, %v4699, 0
    %v4709 = vsel %vm243, %v4700, 0
    %v4712 = vsel %vm243, %v4701, 0
    %v4715 = vsel %vm243, %v4702, 0
    %4717 = vmatprep.subr.mxu0 0.0
    %4718 = vmatpush1.msra.mxu0 0.0
    %4719 = vmatprep.subr.mxu0 0.0
    %4720 = vmatpush1.msra.mxu0 0.0
    %4721 = vmatprep.subr.mxu0 0.0
    %4722 = vmatpush1.msra.mxu0 0.0
    %4723 = vmatprep.subr.mxu0 0.0
    %4724 = vmatpush1.msra.mxu0 0.0
    %4725 = vmatprep.subr.mxu0 0.0
    %4726 = vmatpush1.msra.mxu0 0.0
    %4727 = vmatprep.subr.mxu0 0.0
    %4728 = vmatpush1.msra.mxu0 0.0
    %4729 = vmatprep.subr.mxu0 0.0
    %4730 = vmatpush1.msra.mxu0 0.0
    %4731 = vmatprep.subr.mxu0 0.0
    %4732 = vmatpush1.msra.mxu0 0.0
    %4733 = vmatprep.subr.mxu0 0.0
    %4734 = vmatpush1.msra.mxu0 0.0
    %4735 = vmatprep.subr.mxu0 0.0
    %4736 = vmatpush1.msra.mxu0 0.0
    %4737 = vmatprep.subr.mxu0 0.0
    %4738 = vmatpush1.msra.mxu0 0.0
    %4739 = vmatprep.subr.mxu0 0.0
    %4740 = vmatpush1.msra.mxu0 0.0
    %4741 = vmatprep.subr.mxu0 0.0
    %4742 = vmatpush1.msra.mxu0 0.0
    %4743 = vmatprep.subr.mxu0 0.0
    %4744 = vmatpush1.msra.mxu0 0.0
    %4745 = vmatprep.subr.mxu0 0.0
    %4746 = vmatpush1.msra.mxu0 0.0
    %4747 = vmatprep.subr.mxu0 0.0
    %4748 = vmatpush1.msra.mxu0 %v4704
    %4749 = vmatprep.subr.mxu0 0.0
    %4750 = vmatpush2.msra.mxu0 0.0
    %4751 = vmatprep.subr.mxu0 0.0
    %4752 = vmatpush2.msra.mxu0 0.0
    %4753 = vmatprep.subr.mxu0 0.0
    %4754 = vmatpush2.msra.mxu0 0.0
    %4755 = vmatprep.subr.mxu0 0.0
    %4756 = vmatpush2.msra.mxu0 0.0
    %4757 = vmatprep.subr.mxu0 0.0
    %4758 = vmatpush2.msra.mxu0 0.0
    %4759 = vmatprep.subr.mxu0 0.0
    %4760 = vmatpush2.msra.mxu0 0.0
    %4761 = vmatprep.subr.mxu0 0.0
    %4762 = vmatpush2.msra.mxu0 0.0
    %4763 = vmatprep.subr.mxu0 0.0
    %4764 = vmatpush2.msra.mxu0 0.0
    %4765 = vmatprep.subr.mxu0 0.0
    %4766 = vmatpush2.msra.mxu0 0.0
    %4767 = vmatprep.subr.mxu0 0.0
    %4768 = vmatpush2.msra.mxu0 0.0
    %4769 = vmatprep.subr.mxu0 0.0
    %4770 = vmatpush2.msra.mxu0 0.0
    %4771 = vmatprep.subr.mxu0 0.0
    %4772 = vmatpush2.msra.mxu0 0.0
    %4773 = vmatprep.subr.mxu0 0.0
    %4774 = vmatpush2.msra.mxu0 0.0
    %4775 = vmatprep.subr.mxu0 0.0
    %4776 = vmatpush2.msra.mxu0 0.0
    %4777 = vmatprep.subr.mxu0 0.0
    %4778 = vmatpush2.msra.mxu0 0.0
    %4779 = vmatprep.subr.mxu0 0.0
    %4780 = vmatpush2.msra.mxu0 0.0
    %4781 = vmatprep.mubr.f32.mxu0 0.0
    %4782 = vmatmul.mubr.f32.gmra.mxu0 %v4706
    %v4783 = vpop.f32.mrf.mxu0
    %v4784 = vadd.f32 0.0, %v4783
    %v4785 = vpop.f32.mrf.mxu0
    %4786 = vmatprep.mubr.f32.mxu0 0.0
    %4787 = vmatmul.mubr.f32.gmra.mxu0 %v4709
    %v4788 = vpop.f32.mrf.mxu0
    %v4789 = vadd.f32 0.0, %v4788
    %v4790 = vpop.f32.mrf.mxu0
    %4791 = vmatprep.mubr.f32.mxu0 0.0
    %4792 = vmatmul.mubr.f32.gmra.mxu0 %v4712
    %v4793 = vpop.f32.mrf.mxu0
    %v4794 = vadd.f32 0.0, %v4793
    %v4795 = vpop.f32.mrf.mxu0
    %4796 = vmatprep.mubr.f32.mxu0 0.0
    %4797 = vmatmul.mubr.f32.gmra.mxu0 %v4715
    %v4798 = vpop.f32.mrf.mxu0
    %v4799 = vadd.f32 0.0, %v4798
    %v4800 = vpop.f32.mrf.mxu0
    %4801 = vdwg.mxu0
    %v4802 = vadd.f32 %v4594, %v4784
    %v4803 = vadd.f32 %v4595, %v4789
    %v4804 = vadd.f32 %v4596, %v4794
    %v4805 = vadd.f32 %v4597, %v4799
    %v4806 = vld [vmem:[%s0 + $0x2e0] sm:$0xff]
    %v4807 = vld [vmem:[%s0 + $0x2e8] sm:$0xff]
    %v4808 = vld [vmem:[%s0 + $0x2f0] sm:$0xff]
    %v4809 = vld [vmem:[%s0 + $0x2f8] sm:$0xff]
    %v4811 = vsel %vm33, %v4806, 0
    %v4814 = vsel %vm33, %v4807, 0
    %v4817 = vsel %vm33, %v4808, 0
    %v4820 = vsel %vm33, %v4809, 0
    %4822 = vmatprep.subr.mxu0 0.0
    %4823 = vmatpush1.msra.mxu0 0.0
    %4824 = vmatprep.subr.mxu0 0.0
    %4825 = vmatpush1.msra.mxu0 0.0
    %4826 = vmatprep.subr.mxu0 0.0
    %4827 = vmatpush1.msra.mxu0 0.0
    %4828 = vmatprep.subr.mxu0 0.0
    %4829 = vmatpush1.msra.mxu0 0.0
    %4830 = vmatprep.subr.mxu0 0.0
    %4831 = vmatpush1.msra.mxu0 0.0
    %4832 = vmatprep.subr.mxu0 0.0
    %4833 = vmatpush1.msra.mxu0 0.0
    %4834 = vmatprep.subr.mxu0 0.0
    %4835 = vmatpush1.msra.mxu0 0.0
    %4836 = vmatprep.subr.mxu0 0.0
    %4837 = vmatpush1.msra.mxu0 0.0
    %4838 = vmatprep.subr.mxu0 0.0
    %4839 = vmatpush1.msra.mxu0 0.0
    %4840 = vmatprep.subr.mxu0 0.0
    %4841 = vmatpush1.msra.mxu0 0.0
    %4842 = vmatprep.subr.mxu0 0.0
    %4843 = vmatpush1.msra.mxu0 0.0
    %4844 = vmatprep.subr.mxu0 0.0
    %4845 = vmatpush1.msra.mxu0 0.0
    %4846 = vmatprep.subr.mxu0 0.0
    %4847 = vmatpush1.msra.mxu0 %v28
    %4848 = vmatprep.subr.mxu0 0.0
    %4849 = vmatpush1.msra.mxu0 %v27
    %4850 = vmatprep.subr.mxu0 0.0
    %4851 = vmatpush1.msra.mxu0 %v26
    %4852 = vmatprep.subr.mxu0 0.0
    %4853 = vmatpush1.msra.mxu0 %v25
    %4854 = vmatprep.subr.mxu0 0.0
    %4855 = vmatpush2.msra.mxu0 0.0
    %4856 = vmatprep.subr.mxu0 0.0
    %4857 = vmatpush2.msra.mxu0 0.0
    %4858 = vmatprep.subr.mxu0 0.0
    %4859 = vmatpush2.msra.mxu0 0.0
    %4860 = vmatprep.subr.mxu0 0.0
    %4861 = vmatpush2.msra.mxu0 0.0
    %4862 = vmatprep.subr.mxu0 0.0
    %4863 = vmatpush2.msra.mxu0 0.0
    %4864 = vmatprep.subr.mxu0 0.0
    %4865 = vmatpush2.msra.mxu0 0.0
    %4866 = vmatprep.subr.mxu0 0.0
    %4867 = vmatpush2.msra.mxu0 0.0
    %4868 = vmatprep.subr.mxu0 0.0
    %4869 = vmatpush2.msra.mxu0 0.0
    %4870 = vmatprep.subr.mxu0 0.0
    %4871 = vmatpush2.msra.mxu0 0.0
    %4872 = vmatprep.subr.mxu0 0.0
    %4873 = vmatpush2.msra.mxu0 0.0
    %4874 = vmatprep.subr.mxu0 0.0
    %4875 = vmatpush2.msra.mxu0 0.0
    %4876 = vmatprep.subr.mxu0 0.0
    %4877 = vmatpush2.msra.mxu0 0.0
    %4878 = vmatprep.subr.mxu0 0.0
    %4879 = vmatpush2.msra.mxu0 0.0
    %4880 = vmatprep.subr.mxu0 0.0
    %4881 = vmatpush2.msra.mxu0 0.0
    %4882 = vmatprep.subr.mxu0 0.0
    %4883 = vmatpush2.msra.mxu0 0.0
    %4884 = vmatprep.subr.mxu0 0.0
    %4885 = vmatpush2.msra.mxu0 0.0
    %4886 = vmatprep.mubr.f32.mxu0 0.0
    %4887 = vmatmul.mubr.f32.gmra.mxu0 %v4811
    %v4888 = vpop.f32.mrf.mxu0
    %v4889 = vadd.f32 0.0, %v4888
    %v4890 = vpop.f32.mrf.mxu0
    %4891 = vmatprep.mubr.f32.mxu0 0.0
    %4892 = vmatmul.mubr.f32.gmra.mxu0 %v4814
    %v4893 = vpop.f32.mrf.mxu0
    %v4894 = vadd.f32 0.0, %v4893
    %v4895 = vpop.f32.mrf.mxu0
    %4896 = vmatprep.mubr.f32.mxu0 0.0
    %4897 = vmatmul.mubr.f32.gmra.mxu0 %v4817
    %v4898 = vpop.f32.mrf.mxu0
    %v4899 = vadd.f32 0.0, %v4898
    %v4900 = vpop.f32.mrf.mxu0
    %4901 = vmatprep.mubr.f32.mxu0 0.0
    %4902 = vmatmul.mubr.f32.gmra.mxu0 %v4820
    %v4903 = vpop.f32.mrf.mxu0
    %v4904 = vadd.f32 0.0, %v4903
    %v4905 = vpop.f32.mrf.mxu0
    %4906 = vdwg.mxu0
    %v4907 = vmax.f32 %v4889, 0.0
    %v4908 = vmax.f32 %v4894, 0.0
    %v4909 = vmax.f32 %v4899, 0.0
    %v4910 = vmax.f32 %v4904, 0.0
    %s4911 = scalar_lea.vmem %s2, 184
    %v4912 = vld [vmem:[%s4911] sm:$0xff]
    %v4914 = vsel %vm243, %v4907, 0
    %v4917 = vsel %vm243, %v4908, 0
    %v4920 = vsel %vm243, %v4909, 0
    %v4923 = vsel %vm243, %v4910, 0
    %4925 = vmatprep.subr.mxu0 0.0
    %4926 = vmatpush1.msra.mxu0 0.0
    %4927 = vmatprep.subr.mxu0 0.0
    %4928 = vmatpush1.msra.mxu0 0.0
    %4929 = vmatprep.subr.mxu0 0.0
    %4930 = vmatpush1.msra.mxu0 0.0
    %4931 = vmatprep.subr.mxu0 0.0
    %4932 = vmatpush1.msra.mxu0 0.0
    %4933 = vmatprep.subr.mxu0 0.0
    %4934 = vmatpush1.msra.mxu0 0.0
    %4935 = vmatprep.subr.mxu0 0.0
    %4936 = vmatpush1.msra.mxu0 0.0
    %4937 = vmatprep.subr.mxu0 0.0
    %4938 = vmatpush1.msra.mxu0 0.0
    %4939 = vmatprep.subr.mxu0 0.0
    %4940 = vmatpush1.msra.mxu0 0.0
    %4941 = vmatprep.subr.mxu0 0.0
    %4942 = vmatpush1.msra.mxu0 0.0
    %4943 = vmatprep.subr.mxu0 0.0
    %4944 = vmatpush1.msra.mxu0 0.0
    %4945 = vmatprep.subr.mxu0 0.0
    %4946 = vmatpush1.msra.mxu0 0.0
    %4947 = vmatprep.subr.mxu0 0.0
    %4948 = vmatpush1.msra.mxu0 0.0
    %4949 = vmatprep.subr.mxu0 0.0
    %4950 = vmatpush1.msra.mxu0 0.0
    %4951 = vmatprep.subr.mxu0 0.0
    %4952 = vmatpush1.msra.mxu0 0.0
    %4953 = vmatprep.subr.mxu0 0.0
    %4954 = vmatpush1.msra.mxu0 0.0
    %4955 = vmatprep.subr.mxu0 0.0
    %4956 = vmatpush1.msra.mxu0 %v4912
    %4957 = vmatprep.subr.mxu0 0.0
    %4958 = vmatpush2.msra.mxu0 0.0
    %4959 = vmatprep.subr.mxu0 0.0
    %4960 = vmatpush2.msra.mxu0 0.0
    %4961 = vmatprep.subr.mxu0 0.0
    %4962 = vmatpush2.msra.mxu0 0.0
    %4963 = vmatprep.subr.mxu0 0.0
    %4964 = vmatpush2.msra.mxu0 0.0
    %4965 = vmatprep.subr.mxu0 0.0
    %4966 = vmatpush2.msra.mxu0 0.0
    %4967 = vmatprep.subr.mxu0 0.0
    %4968 = vmatpush2.msra.mxu0 0.0
    %4969 = vmatprep.subr.mxu0 0.0
    %4970 = vmatpush2.msra.mxu0 0.0
    %4971 = vmatprep.subr.mxu0 0.0
    %4972 = vmatpush2.msra.mxu0 0.0
    %4973 = vmatprep.subr.mxu0 0.0
    %4974 = vmatpush2.msra.mxu0 0.0
    %4975 = vmatprep.subr.mxu0 0.0
    %4976 = vmatpush2.msra.mxu0 0.0
    %4977 = vmatprep.subr.mxu0 0.0
    %4978 = vmatpush2.msra.mxu0 0.0
    %4979 = vmatprep.subr.mxu0 0.0
    %4980 = vmatpush2.msra.mxu0 0.0
    %4981 = vmatprep.subr.mxu0 0.0
    %4982 = vmatpush2.msra.mxu0 0.0
    %4983 = vmatprep.subr.mxu0 0.0
    %4984 = vmatpush2.msra.mxu0 0.0
    %4985 = vmatprep.subr.mxu0 0.0
    %4986 = vmatpush2.msra.mxu0 0.0
    %4987 = vmatprep.subr.mxu0 0.0
    %4988 = vmatpush2.msra.mxu0 0.0
    %4989 = vmatprep.mubr.f32.mxu0 0.0
    %4990 = vmatmul.mubr.f32.gmra.mxu0 %v4914
    %v4991 = vpop.f32.mrf.mxu0
    %v4992 = vadd.f32 0.0, %v4991
    %v4993 = vpop.f32.mrf.mxu0
    %4994 = vmatprep.mubr.f32.mxu0 0.0
    %4995 = vmatmul.mubr.f32.gmra.mxu0 %v4917
    %v4996 = vpop.f32.mrf.mxu0
    %v4997 = vadd.f32 0.0, %v4996
    %v4998 = vpop.f32.mrf.mxu0
    %4999 = vmatprep.mubr.f32.mxu0 0.0
    %5000 = vmatmul.mubr.f32.gmra.mxu0 %v4920
    %v5001 = vpop.f32.mrf.mxu0
    %v5002 = vadd.f32 0.0, %v5001
    %v5003 = vpop.f32.mrf.mxu0
    %5004 = vmatprep.mubr.f32.mxu0 0.0
    %5005 = vmatmul.mubr.f32.gmra.mxu0 %v4923
    %v5006 = vpop.f32.mrf.mxu0
    %v5007 = vadd.f32 0.0, %v5006
    %v5008 = vpop.f32.mrf.mxu0
    %5009 = vdwg.mxu0
    %v5010 = vadd.f32 %v4802, %v4992
    %v5011 = vadd.f32 %v4803, %v4997
    %v5012 = vadd.f32 %v4804, %v5002
    %v5013 = vadd.f32 %v4805, %v5007
    %v5014 = vld [vmem:[%s0 + $0x300] sm:$0xff]
    %v5015 = vld [vmem:[%s0 + $0x308] sm:$0xff]
    %v5016 = vld [vmem:[%s0 + $0x310] sm:$0xff]
    %v5017 = vld [vmem:[%s0 + $0x318] sm:$0xff]
    %v5019 = vsel %vm33, %v5014, 0
    %v5022 = vsel %vm33, %v5015, 0
    %v5025 = vsel %vm33, %v5016, 0
    %v5028 = vsel %vm33, %v5017, 0
    %5030 = vmatprep.subr.mxu0 0.0
    %5031 = vmatpush1.msra.mxu0 0.0
    %5032 = vmatprep.subr.mxu0 0.0
    %5033 = vmatpush1.msra.mxu0 0.0
    %5034 = vmatprep.subr.mxu0 0.0
    %5035 = vmatpush1.msra.mxu0 0.0
    %5036 = vmatprep.subr.mxu0 0.0
    %5037 = vmatpush1.msra.mxu0 0.0
    %5038 = vmatprep.subr.mxu0 0.0
    %5039 = vmatpush1.msra.mxu0 0.0
    %5040 = vmatprep.subr.mxu0 0.0
    %5041 = vmatpush1.msra.mxu0 0.0
    %5042 = vmatprep.subr.mxu0 0.0
    %5043 = vmatpush1.msra.mxu0 0.0
    %5044 = vmatprep.subr.mxu0 0.0
    %5045 = vmatpush1.msra.mxu0 0.0
    %5046 = vmatprep.subr.mxu0 0.0
    %5047 = vmatpush1.msra.mxu0 0.0
    %5048 = vmatprep.subr.mxu0 0.0
    %5049 = vmatpush1.msra.mxu0 0.0
    %5050 = vmatprep.subr.mxu0 0.0
    %5051 = vmatpush1.msra.mxu0 0.0
    %5052 = vmatprep.subr.mxu0 0.0
    %5053 = vmatpush1.msra.mxu0 0.0
    %5054 = vmatprep.subr.mxu0 0.0
    %5055 = vmatpush1.msra.mxu0 %v28
    %5056 = vmatprep.subr.mxu0 0.0
    %5057 = vmatpush1.msra.mxu0 %v27
    %5058 = vmatprep.subr.mxu0 0.0
    %5059 = vmatpush1.msra.mxu0 %v26
    %5060 = vmatprep.subr.mxu0 0.0
    %5061 = vmatpush1.msra.mxu0 %v25
    %5062 = vmatprep.subr.mxu0 0.0
    %5063 = vmatpush2.msra.mxu0 0.0
    %5064 = vmatprep.subr.mxu0 0.0
    %5065 = vmatpush2.msra.mxu0 0.0
    %5066 = vmatprep.subr.mxu0 0.0
    %5067 = vmatpush2.msra.mxu0 0.0
    %5068 = vmatprep.subr.mxu0 0.0
    %5069 = vmatpush2.msra.mxu0 0.0
    %5070 = vmatprep.subr.mxu0 0.0
    %5071 = vmatpush2.msra.mxu0 0.0
    %5072 = vmatprep.subr.mxu0 0.0
    %5073 = vmatpush2.msra.mxu0 0.0
    %5074 = vmatprep.subr.mxu0 0.0
    %5075 = vmatpush2.msra.mxu0 0.0
    %5076 = vmatprep.subr.mxu0 0.0
    %5077 = vmatpush2.msra.mxu0 0.0
    %5078 = vmatprep.subr.mxu0 0.0
    %5079 = vmatpush2.msra.mxu0 0.0
    %5080 = vmatprep.subr.mxu0 0.0
    %5081 = vmatpush2.msra.mxu0 0.0
    %5082 = vmatprep.subr.mxu0 0.0
    %5083 = vmatpush2.msra.mxu0 0.0
    %5084 = vmatprep.subr.mxu0 0.0
    %5085 = vmatpush2.msra.mxu0 0.0
    %5086 = vmatprep.subr.mxu0 0.0
    %5087 = vmatpush2.msra.mxu0 0.0
    %5088 = vmatprep.subr.mxu0 0.0
    %5089 = vmatpush2.msra.mxu0 0.0
    %5090 = vmatprep.subr.mxu0 0.0
    %5091 = vmatpush2.msra.mxu0 0.0
    %5092 = vmatprep.subr.mxu0 0.0
    %5093 = vmatpush2.msra.mxu0 0.0
    %5094 = vmatprep.mubr.f32.mxu0 0.0
    %5095 = vmatmul.mubr.f32.gmra.mxu0 %v5019
    %v5096 = vpop.f32.mrf.mxu0
    %v5097 = vadd.f32 0.0, %v5096
    %v5098 = vpop.f32.mrf.mxu0
    %5099 = vmatprep.mubr.f32.mxu0 0.0
    %5100 = vmatmul.mubr.f32.gmra.mxu0 %v5022
    %v5101 = vpop.f32.mrf.mxu0
    %v5102 = vadd.f32 0.0, %v5101
    %v5103 = vpop.f32.mrf.mxu0
    %5104 = vmatprep.mubr.f32.mxu0 0.0
    %5105 = vmatmul.mubr.f32.gmra.mxu0 %v5025
    %v5106 = vpop.f32.mrf.mxu0
    %v5107 = vadd.f32 0.0, %v5106
    %v5108 = vpop.f32.mrf.mxu0
    %5109 = vmatprep.mubr.f32.mxu0 0.0
    %5110 = vmatmul.mubr.f32.gmra.mxu0 %v5028
    %v5111 = vpop.f32.mrf.mxu0
    %v5112 = vadd.f32 0.0, %v5111
    %v5113 = vpop.f32.mrf.mxu0
    %5114 = vdwg.mxu0
    %v5115 = vmax.f32 %v5097, 0.0
    %v5116 = vmax.f32 %v5102, 0.0
    %v5117 = vmax.f32 %v5107, 0.0
    %v5118 = vmax.f32 %v5112, 0.0
    %s5119 = scalar_lea.vmem %s2, 192
    %v5120 = vld [vmem:[%s5119] sm:$0xff]
    %v5122 = vsel %vm243, %v5115, 0
    %v5125 = vsel %vm243, %v5116, 0
    %v5128 = vsel %vm243, %v5117, 0
    %v5131 = vsel %vm243, %v5118, 0
    %5133 = vmatprep.subr.mxu0 0.0
    %5134 = vmatpush1.msra.mxu0 0.0
    %5135 = vmatprep.subr.mxu0 0.0
    %5136 = vmatpush1.msra.mxu0 0.0
    %5137 = vmatprep.subr.mxu0 0.0
    %5138 = vmatpush1.msra.mxu0 0.0
    %5139 = vmatprep.subr.mxu0 0.0
    %5140 = vmatpush1.msra.mxu0 0.0
    %5141 = vmatprep.subr.mxu0 0.0
    %5142 = vmatpush1.msra.mxu0 0.0
    %5143 = vmatprep.subr.mxu0 0.0
    %5144 = vmatpush1.msra.mxu0 0.0
    %5145 = vmatprep.subr.mxu0 0.0
    %5146 = vmatpush1.msra.mxu0 0.0
    %5147 = vmatprep.subr.mxu0 0.0
    %5148 = vmatpush1.msra.mxu0 0.0
    %5149 = vmatprep.subr.mxu0 0.0
    %5150 = vmatpush1.msra.mxu0 0.0
    %5151 = vmatprep.subr.mxu0 0.0
    %5152 = vmatpush1.msra.mxu0 0.0
    %5153 = vmatprep.subr.mxu0 0.0
    %5154 = vmatpush1.msra.mxu0 0.0
    %5155 = vmatprep.subr.mxu0 0.0
    %5156 = vmatpush1.msra.mxu0 0.0
    %5157 = vmatprep.subr.mxu0 0.0
    %5158 = vmatpush1.msra.mxu0 0.0
    %5159 = vmatprep.subr.mxu0 0.0
    %5160 = vmatpush1.msra.mxu0 0.0
    %5161 = vmatprep.subr.mxu0 0.0
    %5162 = vmatpush1.msra.mxu0 0.0
    %5163 = vmatprep.subr.mxu0 0.0
    %5164 = vmatpush1.msra.mxu0 %v5120
    %5165 = vmatprep.subr.mxu0 0.0
    %5166 = vmatpush2.msra.mxu0 0.0
    %5167 = vmatprep.subr.mxu0 0.0
    %5168 = vmatpush2.msra.mxu0 0.0
    %5169 = vmatprep.subr.mxu0 0.0
    %5170 = vmatpush2.msra.mxu0 0.0
    %5171 = vmatprep.subr.mxu0 0.0
    %5172 = vmatpush2.msra.mxu0 0.0
    %5173 = vmatprep.subr.mxu0 0.0
    %5174 = vmatpush2.msra.mxu0 0.0
    %5175 = vmatprep.subr.mxu0 0.0
    %5176 = vmatpush2.msra.mxu0 0.0
    %5177 = vmatprep.subr.mxu0 0.0
    %5178 = vmatpush2.msra.mxu0 0.0
    %5179 = vmatprep.subr.mxu0 0.0
    %5180 = vmatpush2.msra.mxu0 0.0
    %5181 = vmatprep.subr.mxu0 0.0
    %5182 = vmatpush2.msra.mxu0 0.0
    %5183 = vmatprep.subr.mxu0 0.0
    %5184 = vmatpush2.msra.mxu0 0.0
    %5185 = vmatprep.subr.mxu0 0.0
    %5186 = vmatpush2.msra.mxu0 0.0
    %5187 = vmatprep.subr.mxu0 0.0
    %5188 = vmatpush2.msra.mxu0 0.0
    %5189 = vmatprep.subr.mxu0 0.0
    %5190 = vmatpush2.msra.mxu0 0.0
    %5191 = vmatprep.subr.mxu0 0.0
    %5192 = vmatpush2.msra.mxu0 0.0
    %5193 = vmatprep.subr.mxu0 0.0
    %5194 = vmatpush2.msra.mxu0 0.0
    %5195 = vmatprep.subr.mxu0 0.0
    %5196 = vmatpush2.msra.mxu0 0.0
    %5197 = vmatprep.mubr.f32.mxu0 0.0
    %5198 = vmatmul.mubr.f32.gmra.mxu0 %v5122
    %v5199 = vpop.f32.mrf.mxu0
    %v5200 = vadd.f32 0.0, %v5199
    %v5201 = vpop.f32.mrf.mxu0
    %5202 = vmatprep.mubr.f32.mxu0 0.0
    %5203 = vmatmul.mubr.f32.gmra.mxu0 %v5125
    %v5204 = vpop.f32.mrf.mxu0
    %v5205 = vadd.f32 0.0, %v5204
    %v5206 = vpop.f32.mrf.mxu0
    %5207 = vmatprep.mubr.f32.mxu0 0.0
    %5208 = vmatmul.mubr.f32.gmra.mxu0 %v5128
    %v5209 = vpop.f32.mrf.mxu0
    %v5210 = vadd.f32 0.0, %v5209
    %v5211 = vpop.f32.mrf.mxu0
    %5212 = vmatprep.mubr.f32.mxu0 0.0
    %5213 = vmatmul.mubr.f32.gmra.mxu0 %v5131
    %v5214 = vpop.f32.mrf.mxu0
    %v5215 = vadd.f32 0.0, %v5214
    %v5216 = vpop.f32.mrf.mxu0
    %5217 = vdwg.mxu0
    %v5218 = vadd.f32 %v5010, %v5200
    %v5219 = vadd.f32 %v5011, %v5205
    %v5220 = vadd.f32 %v5012, %v5210
    %v5221 = vadd.f32 %v5013, %v5215
    %v5222 = vld [vmem:[%s3] sm:$0x1]
    %v5224 = vlaneseq
    %v5225 = vshrl.u32 %v5224, 7
    %v5226 = vsub.s32 0, %v5225
    %v5227 = vrot.slane %v5222, %v5226
    %v5229 = vadd.f32 %v5218, %v5227
    %v5230 = vadd.f32 %v5219, %v5227
    %v5231 = vadd.f32 %v5220, %v5227
    %v5232 = vadd.f32 %v5221, %v5227
    %v5233 = vmax.f32 %v5229, 0.0
    %v5234 = vmax.f32 %v5230, 0.0
    %v5235 = vmax.f32 %v5231, 0.0
    %v5236 = vmax.f32 %v5232, 0.0
    %v5237 = vpack.c.bf16 %v5234, %v5233
    %v5238 = vpack.c.bf16 %v5236, %v5235
    %v5239 = vld [vmem:[%s4] sm:$0xf]
    %v5240 = vld [vmem:[%s4 + $0x4] sm:$0xf]
    %v5241 = vld [vmem:[%s4 + $0x8] sm:$0xf]
    %v5242 = vld [vmem:[%s4 + $0xc] sm:$0xf]
    %v5243 = vld [vmem:[%s4 + $0x10] sm:$0xf]
    %v5244 = vld [vmem:[%s4 + $0x14] sm:$0xf]
    %v5245 = vld [vmem:[%s4 + $0x18] sm:$0xf]
    %v5246 = vld [vmem:[%s4 + $0x1c] sm:$0xf]
    %s5247 = scalar_lea.vmem %s4, 32
    %v5248 = vld [vmem:[%s5247] sm:$0xf]
    %v5249 = vld [vmem:[%s5247 + $0x4] sm:$0xf]
    %v5250 = vld [vmem:[%s5247 + $0x8] sm:$0xf]
    %v5251 = vld [vmem:[%s5247 + $0xc] sm:$0xf]
    %v5252 = vld [vmem:[%s5247 + $0x10] sm:$0xf]
    %v5253 = vld [vmem:[%s5247 + $0x14] sm:$0xf]
    %v5254 = vld [vmem:[%s5247 + $0x18] sm:$0xf]
    %v5255 = vld [vmem:[%s5247 + $0x1c] sm:$0xf]
    %v5257 = vrot.slane %v5237, 1
    %v5266 = vunpack.c.l.b16 %v5248
    %v5267 = vunpack.c.l.b16 %v5249
    %v5268 = vunpack.c.l.b16 %v5250
    %v5269 = vunpack.c.l.b16 %v5251
    %v5270 = vunpack.c.l.b16 %v5252
    %v5271 = vunpack.c.l.b16 %v5253
    %v5272 = vunpack.c.l.b16 %v5254
    %v5273 = vunpack.c.l.b16 %v5255
    %v5274 = vpack.c.b16 %v5267, %v5266
    %v5275 = vpack.c.b16 %v5269, %v5268
    %v5276 = vpack.c.b16 %v5271, %v5270
    %v5277 = vpack.c.b16 %v5273, %v5272
    %vm5282 = vcmask 523264
    %v5284 = vsel %vm5282, %v5257, 0
    %5286 = vmatprep.subr.bf16.mxu0 0
    %5287 = vmatpush1.bf16.msra.mxu0 0
    %5288 = vmatprep.subr.bf16.mxu0 0
    %5289 = vmatpush1.bf16.msra.mxu0 0
    %5290 = vmatprep.subr.bf16.mxu0 0
    %5291 = vmatpush1.bf16.msra.mxu0 0
    %5292 = vmatprep.subr.bf16.mxu0 0
    %5293 = vmatpush1.bf16.msra.mxu0 0
    %5294 = vmatprep.subr.bf16.mxu0 0
    %5295 = vmatpush1.bf16.msra.mxu0 %v5277
    %5296 = vmatprep.subr.bf16.mxu0 0
    %5297 = vmatpush1.bf16.msra.mxu0 %v5276
    %5298 = vmatprep.subr.bf16.mxu0 0
    %5299 = vmatpush1.bf16.msra.mxu0 %v5275
    %5300 = vmatprep.subr.bf16.mxu0 0
    %5301 = vmatpush1.bf16.msra.mxu0 %v5274
    %5302 = vmatprep.subr.bf16.mxu0 0
    %5303 = vmatpush2.bf16.msra.mxu0 0
    %5304 = vmatprep.subr.bf16.mxu0 0
    %5305 = vmatpush2.bf16.msra.mxu0 0
    %5306 = vmatprep.subr.bf16.mxu0 0
    %5307 = vmatpush2.bf16.msra.mxu0 0
    %5308 = vmatprep.subr.bf16.mxu0 0
    %5309 = vmatpush2.bf16.msra.mxu0 0
    %5310 = vmatprep.subr.bf16.mxu0 0
    %5311 = vmatpush2.bf16.msra.mxu0 0
    %5312 = vmatprep.subr.bf16.mxu0 0
    %5313 = vmatpush2.bf16.msra.mxu0 0
    %5314 = vmatprep.subr.bf16.mxu0 0
    %5315 = vmatpush2.bf16.msra.mxu0 0
    %5316 = vmatprep.subr.bf16.mxu0 0
    %5317 = vmatpush2.bf16.msra.mxu0 0
    %5318 = vmatprep.mubr.bf16.mxu0 0
    %5319 = vmatmul.mubr.bf16.gmra.mxu0 %v5284
    %v5320 = vpop.f32.mrf.mxu0
    %v5321 = vadd.f32 0.0, %v5320
    %v5322 = vpop.f32.mrf.mxu0
    %v5323 = vpop.f32.mrf.mxu0
    %v5324 = vpop.f32.mrf.mxu0
    %5325 = vdwg.mxu0
    %v5334 = vunpack.c.l.b16 %v5239
    %v5335 = vunpack.c.l.b16 %v5240
    %v5336 = vunpack.c.l.b16 %v5241
    %v5337 = vunpack.c.l.b16 %v5242
    %v5338 = vunpack.c.l.b16 %v5243
    %v5339 = vunpack.c.l.b16 %v5244
    %v5340 = vunpack.c.l.b16 %v5245
    %v5341 = vunpack.c.l.b16 %v5246
    %v5342 = vpack.c.b16 %v5335, %v5334
    %v5343 = vpack.c.b16 %v5337, %v5336
    %v5344 = vpack.c.b16 %v5339, %v5338
    %v5345 = vpack.c.b16 %v5341, %v5340
    %v5351 = vsel %vm5282, %v5237, 0
    %5353 = vmatprep.subr.bf16.mxu0 0
    %5354 = vmatpush1.bf16.msra.mxu0 0
    %5355 = vmatprep.subr.bf16.mxu0 0
    %5356 = vmatpush1.bf16.msra.mxu0 0
    %5357 = vmatprep.subr.bf16.mxu0 0
    %5358 = vmatpush1.bf16.msra.mxu0 0
    %5359 = vmatprep.subr.bf16.mxu0 0
    %5360 = vmatpush1.bf16.msra.mxu0 0
    %5361 = vmatprep.subr.bf16.mxu0 0
    %5362 = vmatpush1.bf16.msra.mxu0 %v5345
    %5363 = vmatprep.subr.bf16.mxu0 0
    %5364 = vmatpush1.bf16.msra.mxu0 %v5344
    %5365 = vmatprep.subr.bf16.mxu0 0
    %5366 = vmatpush1.bf16.msra.mxu0 %v5343
    %5367 = vmatprep.subr.bf16.mxu0 0
    %5368 = vmatpush1.bf16.msra.mxu0 %v5342
    %5369 = vmatprep.subr.bf16.mxu0 0
    %5370 = vmatpush2.bf16.msra.mxu0 0
    %5371 = vmatprep.subr.bf16.mxu0 0
    %5372 = vmatpush2.bf16.msra.mxu0 0
    %5373 = vmatprep.subr.bf16.mxu0 0
    %5374 = vmatpush2.bf16.msra.mxu0 0
    %5375 = vmatprep.subr.bf16.mxu0 0
    %5376 = vmatpush2.bf16.msra.mxu0 0
    %5377 = vmatprep.subr.bf16.mxu0 0
    %5378 = vmatpush2.bf16.msra.mxu0 0
    %5379 = vmatprep.subr.bf16.mxu0 0
    %5380 = vmatpush2.bf16.msra.mxu0 0
    %5381 = vmatprep.subr.bf16.mxu0 0
    %5382 = vmatpush2.bf16.msra.mxu0 0
    %5383 = vmatprep.subr.bf16.mxu0 0
    %5384 = vmatpush2.bf16.msra.mxu0 0
    %5385 = vmatprep.mubr.bf16.mxu0 0
    %5386 = vmatmul.mubr.bf16.gmra.mxu0 %v5351
    %v5387 = vpop.f32.mrf.mxu0
    %v5388 = vadd.f32 %v5321, %v5387
    %v5389 = vpop.f32.mrf.mxu0
    %v5390 = vpop.f32.mrf.mxu0
    %v5391 = vpop.f32.mrf.mxu0
    %5392 = vdwg.mxu0
    %s5393 = scalar_lea.vmem %s4, 64
    %v5394 = vld [vmem:[%s5393] sm:$0xf]
    %v5395 = vld [vmem:[%s5393 + $0x4] sm:$0xf]
    %v5396 = vld [vmem:[%s5393 + $0x8] sm:$0xf]
    %v5397 = vld [vmem:[%s5393 + $0xc] sm:$0xf]
    %v5398 = vld [vmem:[%s5393 + $0x10] sm:$0xf]
    %v5399 = vld [vmem:[%s5393 + $0x14] sm:$0xf]
    %v5400 = vld [vmem:[%s5393 + $0x18] sm:$0xf]
    %v5401 = vld [vmem:[%s5393 + $0x1c] sm:$0xf]
    %v5402 = vrot.slane %v5237, 2
    %v5411 = vunpack.c.l.b16 %v5394
    %v5412 = vunpack.c.l.b16 %v5395
    %v5413 = vunpack.c.l.b16 %v5396
    %v5414 = vunpack.c.l.b16 %v5397
    %v5415 = vunpack.c.l.b16 %v5398
    %v5416 = vunpack.c.l.b16 %v5399
    %v5417 = vunpack.c.l.b16 %v5400
    %v5418 = vunpack.c.l.b16 %v5401
    %v5419 = vpack.c.b16 %v5412, %v5411
    %v5420 = vpack.c.b16 %v5414, %v5413
    %v5421 = vpack.c.b16 %v5416, %v5415
    %v5422 = vpack.c.b16 %v5418, %v5417
    %v5428 = vsel %vm5282, %v5402, 0
    %5430 = vmatprep.subr.bf16.mxu0 0
    %5431 = vmatpush1.bf16.msra.mxu0 0
    %5432 = vmatprep.subr.bf16.mxu0 0
    %5433 = vmatpush1.bf16.msra.mxu0 0
    %5434 = vmatprep.subr.bf16.mxu0 0
    %5435 = vmatpush1.bf16.msra.mxu0 0
    %5436 = vmatprep.subr.bf16.mxu0 0
    %5437 = vmatpush1.bf16.msra.mxu0 0
    %5438 = vmatprep.subr.bf16.mxu0 0
    %5439 = vmatpush1.bf16.msra.mxu0 %v5422
    %5440 = vmatprep.subr.bf16.mxu0 0
    %5441 = vmatpush1.bf16.msra.mxu0 %v5421
    %5442 = vmatprep.subr.bf16.mxu0 0
    %5443 = vmatpush1.bf16.msra.mxu0 %v5420
    %5444 = vmatprep.subr.bf16.mxu0 0
    %5445 = vmatpush1.bf16.msra.mxu0 %v5419
    %5446 = vmatprep.subr.bf16.mxu0 0
    %5447 = vmatpush2.bf16.msra.mxu0 0
    %5448 = vmatprep.subr.bf16.mxu0 0
    %5449 = vmatpush2.bf16.msra.mxu0 0
    %5450 = vmatprep.subr.bf16.mxu0 0
    %5451 = vmatpush2.bf16.msra.mxu0 0
    %5452 = vmatprep.subr.bf16.mxu0 0
    %5453 = vmatpush2.bf16.msra.mxu0 0
    %5454 = vmatprep.subr.bf16.mxu0 0
    %5455 = vmatpush2.bf16.msra.mxu0 0
    %5456 = vmatprep.subr.bf16.mxu0 0
    %5457 = vmatpush2.bf16.msra.mxu0 0
    %5458 = vmatprep.subr.bf16.mxu0 0
    %5459 = vmatpush2.bf16.msra.mxu0 0
    %5460 = vmatprep.subr.bf16.mxu0 0
    %5461 = vmatpush2.bf16.msra.mxu0 0
    %5462 = vmatprep.mubr.bf16.mxu0 0
    %5463 = vmatmul.mubr.bf16.gmra.mxu0 %v5428
    %v5464 = vpop.f32.mrf.mxu0
    %v5465 = vadd.f32 0.0, %v5464
    %v5466 = vpop.f32.mrf.mxu0
    %v5467 = vpop.f32.mrf.mxu0
    %v5468 = vpop.f32.mrf.mxu0
    %5469 = vdwg.mxu0
    %v5470 = vadd.f32 %v5388, %v5465
    %s5471 = scalar_lea.vmem %s4, 96
    %v5472 = vld [vmem:[%s5471] sm:$0xf]
    %v5473 = vld [vmem:[%s5471 + $0x4] sm:$0xf]
    %v5474 = vld [vmem:[%s5471 + $0x8] sm:$0xf]
    %v5475 = vld [vmem:[%s5471 + $0xc] sm:$0xf]
    %v5476 = vld [vmem:[%s5471 + $0x10] sm:$0xf]
    %v5477 = vld [vmem:[%s5471 + $0x14] sm:$0xf]
    %v5478 = vld [vmem:[%s5471 + $0x18] sm:$0xf]
    %v5479 = vld [vmem:[%s5471 + $0x1c] sm:$0xf]
    %v5480 = vrot.slane %v5237, 3
    %v5489 = vunpack.c.l.b16 %v5472
    %v5490 = vunpack.c.l.b16 %v5473
    %v5491 = vunpack.c.l.b16 %v5474
    %v5492 = vunpack.c.l.b16 %v5475
    %v5493 = vunpack.c.l.b16 %v5476
    %v5494 = vunpack.c.l.b16 %v5477
    %v5495 = vunpack.c.l.b16 %v5478
    %v5496 = vunpack.c.l.b16 %v5479
    %v5497 = vpack.c.b16 %v5490, %v5489
    %v5498 = vpack.c.b16 %v5492, %v5491
    %v5499 = vpack.c.b16 %v5494, %v5493
    %v5500 = vpack.c.b16 %v5496, %v5495
    %v5506 = vsel %vm5282, %v5480, 0
    %5508 = vmatprep.subr.bf16.mxu0 0
    %5509 = vmatpush1.bf16.msra.mxu0 0
    %5510 = vmatprep.subr.bf16.mxu0 0
    %5511 = vmatpush1.bf16.msra.mxu0 0
    %5512 = vmatprep.subr.bf16.mxu0 0
    %5513 = vmatpush1.bf16.msra.mxu0 0
    %5514 = vmatprep.subr.bf16.mxu0 0
    %5515 = vmatpush1.bf16.msra.mxu0 0
    %5516 = vmatprep.subr.bf16.mxu0 0
    %5517 = vmatpush1.bf16.msra.mxu0 %v5500
    %5518 = vmatprep.subr.bf16.mxu0 0
    %5519 = vmatpush1.bf16.msra.mxu0 %v5499
    %5520 = vmatprep.subr.bf16.mxu0 0
    %5521 = vmatpush1.bf16.msra.mxu0 %v5498
    %5522 = vmatprep.subr.bf16.mxu0 0
    %5523 = vmatpush1.bf16.msra.mxu0 %v5497
    %5524 = vmatprep.subr.bf16.mxu0 0
    %5525 = vmatpush2.bf16.msra.mxu0 0
    %5526 = vmatprep.subr.bf16.mxu0 0
    %5527 = vmatpush2.bf16.msra.mxu0 0
    %5528 = vmatprep.subr.bf16.mxu0 0
    %5529 = vmatpush2.bf16.msra.mxu0 0
    %5530 = vmatprep.subr.bf16.mxu0 0
    %5531 = vmatpush2.bf16.msra.mxu0 0
    %5532 = vmatprep.subr.bf16.mxu0 0
    %5533 = vmatpush2.bf16.msra.mxu0 0
    %5534 = vmatprep.subr.bf16.mxu0 0
    %5535 = vmatpush2.bf16.msra.mxu0 0
    %5536 = vmatprep.subr.bf16.mxu0 0
    %5537 = vmatpush2.bf16.msra.mxu0 0
    %5538 = vmatprep.subr.bf16.mxu0 0
    %5539 = vmatpush2.bf16.msra.mxu0 0
    %5540 = vmatprep.mubr.bf16.mxu0 0
    %5541 = vmatmul.mubr.bf16.gmra.mxu0 %v5506
    %v5542 = vpop.f32.mrf.mxu0
    %v5543 = vadd.f32 0.0, %v5542
    %v5544 = vpop.f32.mrf.mxu0
    %v5545 = vpop.f32.mrf.mxu0
    %v5546 = vpop.f32.mrf.mxu0
    %5547 = vdwg.mxu0
    %v5548 = vadd.f32 %v5470, %v5543
    %s5549 = scalar_lea.vmem %s4, 128
    %v5550 = vld [vmem:[%s5549] sm:$0xf]
    %v5551 = vld [vmem:[%s5549 + $0x4] sm:$0xf]
    %v5552 = vld [vmem:[%s5549 + $0x8] sm:$0xf]
    %v5553 = vld [vmem:[%s5549 + $0xc] sm:$0xf]
    %v5554 = vld [vmem:[%s5549 + $0x10] sm:$0xf]
    %v5555 = vld [vmem:[%s5549 + $0x14] sm:$0xf]
    %v5556 = vld [vmem:[%s5549 + $0x18] sm:$0xf]
    %v5557 = vld [vmem:[%s5549 + $0x1c] sm:$0xf]
    %v5558 = vrot.slane %v5237, 4
    %v5567 = vunpack.c.l.b16 %v5550
    %v5568 = vunpack.c.l.b16 %v5551
    %v5569 = vunpack.c.l.b16 %v5552
    %v5570 = vunpack.c.l.b16 %v5553
    %v5571 = vunpack.c.l.b16 %v5554
    %v5572 = vunpack.c.l.b16 %v5555
    %v5573 = vunpack.c.l.b16 %v5556
    %v5574 = vunpack.c.l.b16 %v5557
    %v5575 = vpack.c.b16 %v5568, %v5567
    %v5576 = vpack.c.b16 %v5570, %v5569
    %v5577 = vpack.c.b16 %v5572, %v5571
    %v5578 = vpack.c.b16 %v5574, %v5573
    %v5584 = vsel %vm5282, %v5558, 0
    %5586 = vmatprep.subr.bf16.mxu0 0
    %5587 = vmatpush1.bf16.msra.mxu0 0
    %5588 = vmatprep.subr.bf16.mxu0 0
    %5589 = vmatpush1.bf16.msra.mxu0 0
    %5590 = vmatprep.subr.bf16.mxu0 0
    %5591 = vmatpush1.bf16.msra.mxu0 0
    %5592 = vmatprep.subr.bf16.mxu0 0
    %5593 = vmatpush1.bf16.msra.mxu0 0
    %5594 = vmatprep.subr.bf16.mxu0 0
    %5595 = vmatpush1.bf16.msra.mxu0 %v5578
    %5596 = vmatprep.subr.bf16.mxu0 0
    %5597 = vmatpush1.bf16.msra.mxu0 %v5577
    %5598 = vmatprep.subr.bf16.mxu0 0
    %5599 = vmatpush1.bf16.msra.mxu0 %v5576
    %5600 = vmatprep.subr.bf16.mxu0 0
    %5601 = vmatpush1.bf16.msra.mxu0 %v5575
    %5602 = vmatprep.subr.bf16.mxu0 0
    %5603 = vmatpush2.bf16.msra.mxu0 0
    %5604 = vmatprep.subr.bf16.mxu0 0
    %5605 = vmatpush2.bf16.msra.mxu0 0
    %5606 = vmatprep.subr.bf16.mxu0 0
    %5607 = vmatpush2.bf16.msra.mxu0 0
    %5608 = vmatprep.subr.bf16.mxu0 0
    %5609 = vmatpush2.bf16.msra.mxu0 0
    %5610 = vmatprep.subr.bf16.mxu0 0
    %5611 = vmatpush2.bf16.msra.mxu0 0
    %5612 = vmatprep.subr.bf16.mxu0 0
    %5613 = vmatpush2.bf16.msra.mxu0 0
    %5614 = vmatprep.subr.bf16.mxu0 0
    %5615 = vmatpush2.bf16.msra.mxu0 0
    %5616 = vmatprep.subr.bf16.mxu0 0
    %5617 = vmatpush2.bf16.msra.mxu0 0
    %5618 = vmatprep.mubr.bf16.mxu0 0
    %5619 = vmatmul.mubr.bf16.gmra.mxu0 %v5584
    %v5620 = vpop.f32.mrf.mxu0
    %v5621 = vadd.f32 0.0, %v5620
    %v5622 = vpop.f32.mrf.mxu0
    %v5623 = vpop.f32.mrf.mxu0
    %v5624 = vpop.f32.mrf.mxu0
    %5625 = vdwg.mxu0
    %v5626 = vadd.f32 %v5548, %v5621
    %s5627 = scalar_lea.vmem %s4, 160
    %v5628 = vld [vmem:[%s5627] sm:$0xf]
    %v5629 = vld [vmem:[%s5627 + $0x4] sm:$0xf]
    %v5630 = vld [vmem:[%s5627 + $0x8] sm:$0xf]
    %v5631 = vld [vmem:[%s5627 + $0xc] sm:$0xf]
    %v5632 = vld [vmem:[%s5627 + $0x10] sm:$0xf]
    %v5633 = vld [vmem:[%s5627 + $0x14] sm:$0xf]
    %v5634 = vld [vmem:[%s5627 + $0x18] sm:$0xf]
    %v5635 = vld [vmem:[%s5627 + $0x1c] sm:$0xf]
    %v5636 = vrot.slane %v5237, 5
    %v5645 = vunpack.c.l.b16 %v5628
    %v5646 = vunpack.c.l.b16 %v5629
    %v5647 = vunpack.c.l.b16 %v5630
    %v5648 = vunpack.c.l.b16 %v5631
    %v5649 = vunpack.c.l.b16 %v5632
    %v5650 = vunpack.c.l.b16 %v5633
    %v5651 = vunpack.c.l.b16 %v5634
    %v5652 = vunpack.c.l.b16 %v5635
    %v5653 = vpack.c.b16 %v5646, %v5645
    %v5654 = vpack.c.b16 %v5648, %v5647
    %v5655 = vpack.c.b16 %v5650, %v5649
    %v5656 = vpack.c.b16 %v5652, %v5651
    %v5662 = vsel %vm5282, %v5636, 0
    %5664 = vmatprep.subr.bf16.mxu0 0
    %5665 = vmatpush1.bf16.msra.mxu0 0
    %5666 = vmatprep.subr.bf16.mxu0 0
    %5667 = vmatpush1.bf16.msra.mxu0 0
    %5668 = vmatprep.subr.bf16.mxu0 0
    %5669 = vmatpush1.bf16.msra.mxu0 0
    %5670 = vmatprep.subr.bf16.mxu0 0
    %5671 = vmatpush1.bf16.msra.mxu0 0
    %5672 = vmatprep.subr.bf16.mxu0 0
    %5673 = vmatpush1.bf16.msra.mxu0 %v5656
    %5674 = vmatprep.subr.bf16.mxu0 0
    %5675 = vmatpush1.bf16.msra.mxu0 %v5655
    %5676 = vmatprep.subr.bf16.mxu0 0
    %5677 = vmatpush1.bf16.msra.mxu0 %v5654
    %5678 = vmatprep.subr.bf16.mxu0 0
    %5679 = vmatpush1.bf16.msra.mxu0 %v5653
    %5680 = vmatprep.subr.bf16.mxu0 0
    %5681 = vmatpush2.bf16.msra.mxu0 0
    %5682 = vmatprep.subr.bf16.mxu0 0
    %5683 = vmatpush2.bf16.msra.mxu0 0
    %5684 = vmatprep.subr.bf16.mxu0 0
    %5685 = vmatpush2.bf16.msra.mxu0 0
    %5686 = vmatprep.subr.bf16.mxu0 0
    %5687 = vmatpush2.bf16.msra.mxu0 0
    %5688 = vmatprep.subr.bf16.mxu0 0
    %5689 = vmatpush2.bf16.msra.mxu0 0
    %5690 = vmatprep.subr.bf16.mxu0 0
    %5691 = vmatpush2.bf16.msra.mxu0 0
    %5692 = vmatprep.subr.bf16.mxu0 0
    %5693 = vmatpush2.bf16.msra.mxu0 0
    %5694 = vmatprep.subr.bf16.mxu0 0
    %5695 = vmatpush2.bf16.msra.mxu0 0
    %5696 = vmatprep.mubr.bf16.mxu0 0
    %5697 = vmatmul.mubr.bf16.gmra.mxu0 %v5662
    %v5698 = vpop.f32.mrf.mxu0
    %v5699 = vadd.f32 0.0, %v5698
    %v5700 = vpop.f32.mrf.mxu0
    %v5701 = vpop.f32.mrf.mxu0
    %v5702 = vpop.f32.mrf.mxu0
    %5703 = vdwg.mxu0
    %v5704 = vadd.f32 %v5626, %v5699
    %s5705 = scalar_lea.vmem %s4, 192
    %v5706 = vld [vmem:[%s5705] sm:$0xf]
    %v5707 = vld [vmem:[%s5705 + $0x4] sm:$0xf]
    %v5708 = vld [vmem:[%s5705 + $0x8] sm:$0xf]
    %v5709 = vld [vmem:[%s5705 + $0xc] sm:$0xf]
    %v5710 = vld [vmem:[%s5705 + $0x10] sm:$0xf]
    %v5711 = vld [vmem:[%s5705 + $0x14] sm:$0xf]
    %v5712 = vld [vmem:[%s5705 + $0x18] sm:$0xf]
    %v5713 = vld [vmem:[%s5705 + $0x1c] sm:$0xf]
    %v5714 = vrot.slane %v5237, 6
    %v5723 = vunpack.c.l.b16 %v5706
    %v5724 = vunpack.c.l.b16 %v5707
    %v5725 = vunpack.c.l.b16 %v5708
    %v5726 = vunpack.c.l.b16 %v5709
    %v5727 = vunpack.c.l.b16 %v5710
    %v5728 = vunpack.c.l.b16 %v5711
    %v5729 = vunpack.c.l.b16 %v5712
    %v5730 = vunpack.c.l.b16 %v5713
    %v5731 = vpack.c.b16 %v5724, %v5723
    %v5732 = vpack.c.b16 %v5726, %v5725
    %v5733 = vpack.c.b16 %v5728, %v5727
    %v5734 = vpack.c.b16 %v5730, %v5729
    %v5740 = vsel %vm5282, %v5714, 0
    %5742 = vmatprep.subr.bf16.mxu0 0
    %5743 = vmatpush1.bf16.msra.mxu0 0
    %5744 = vmatprep.subr.bf16.mxu0 0
    %5745 = vmatpush1.bf16.msra.mxu0 0
    %5746 = vmatprep.subr.bf16.mxu0 0
    %5747 = vmatpush1.bf16.msra.mxu0 0
    %5748 = vmatprep.subr.bf16.mxu0 0
    %5749 = vmatpush1.bf16.msra.mxu0 0
    %5750 = vmatprep.subr.bf16.mxu0 0
    %5751 = vmatpush1.bf16.msra.mxu0 %v5734
    %5752 = vmatprep.subr.bf16.mxu0 0
    %5753 = vmatpush1.bf16.msra.mxu0 %v5733
    %5754 = vmatprep.subr.bf16.mxu0 0
    %5755 = vmatpush1.bf16.msra.mxu0 %v5732
    %5756 = vmatprep.subr.bf16.mxu0 0
    %5757 = vmatpush1.bf16.msra.mxu0 %v5731
    %5758 = vmatprep.subr.bf16.mxu0 0
    %5759 = vmatpush2.bf16.msra.mxu0 0
    %5760 = vmatprep.subr.bf16.mxu0 0
    %5761 = vmatpush2.bf16.msra.mxu0 0
    %5762 = vmatprep.subr.bf16.mxu0 0
    %5763 = vmatpush2.bf16.msra.mxu0 0
    %5764 = vmatprep.subr.bf16.mxu0 0
    %5765 = vmatpush2.bf16.msra.mxu0 0
    %5766 = vmatprep.subr.bf16.mxu0 0
    %5767 = vmatpush2.bf16.msra.mxu0 0
    %5768 = vmatprep.subr.bf16.mxu0 0
    %5769 = vmatpush2.bf16.msra.mxu0 0
    %5770 = vmatprep.subr.bf16.mxu0 0
    %5771 = vmatpush2.bf16.msra.mxu0 0
    %5772 = vmatprep.subr.bf16.mxu0 0
    %5773 = vmatpush2.bf16.msra.mxu0 0
    %5774 = vmatprep.mubr.bf16.mxu0 0
    %5775 = vmatmul.mubr.bf16.gmra.mxu0 %v5740
    %v5776 = vpop.f32.mrf.mxu0
    %v5777 = vadd.f32 0.0, %v5776
    %v5778 = vpop.f32.mrf.mxu0
    %v5779 = vpop.f32.mrf.mxu0
    %v5780 = vpop.f32.mrf.mxu0
    %5781 = vdwg.mxu0
    %v5782 = vadd.f32 %v5704, %v5777
    %s5783 = scalar_lea.vmem %s4, 224
    %v5784 = vld [vmem:[%s5783] sm:$0xf]
    %v5785 = vld [vmem:[%s5783 + $0x4] sm:$0xf]
    %v5786 = vld [vmem:[%s5783 + $0x8] sm:$0xf]
    %v5787 = vld [vmem:[%s5783 + $0xc] sm:$0xf]
    %v5788 = vld [vmem:[%s5783 + $0x10] sm:$0xf]
    %v5789 = vld [vmem:[%s5783 + $0x14] sm:$0xf]
    %v5790 = vld [vmem:[%s5783 + $0x18] sm:$0xf]
    %v5791 = vld [vmem:[%s5783 + $0x1c] sm:$0xf]
    %v5792 = vrot.slane %v5237, 7
    %v5801 = vunpack.c.l.b16 %v5784
    %v5802 = vunpack.c.l.b16 %v5785
    %v5803 = vunpack.c.l.b16 %v5786
    %v5804 = vunpack.c.l.b16 %v5787
    %v5805 = vunpack.c.l.b16 %v5788
    %v5806 = vunpack.c.l.b16 %v5789
    %v5807 = vunpack.c.l.b16 %v5790
    %v5808 = vunpack.c.l.b16 %v5791
    %v5809 = vpack.c.b16 %v5802, %v5801
    %v5810 = vpack.c.b16 %v5804, %v5803
    %v5811 = vpack.c.b16 %v5806, %v5805
    %v5812 = vpack.c.b16 %v5808, %v5807
    %v5818 = vsel %vm5282, %v5792, 0
    %5820 = vmatprep.subr.bf16.mxu0 0
    %5821 = vmatpush1.bf16.msra.mxu0 0
    %5822 = vmatprep.subr.bf16.mxu0 0
    %5823 = vmatpush1.bf16.msra.mxu0 0
    %5824 = vmatprep.subr.bf16.mxu0 0
    %5825 = vmatpush1.bf16.msra.mxu0 0
    %5826 = vmatprep.subr.bf16.mxu0 0
    %5827 = vmatpush1.bf16.msra.mxu0 0
    %5828 = vmatprep.subr.bf16.mxu0 0
    %5829 = vmatpush1.bf16.msra.mxu0 %v5812
    %5830 = vmatprep.subr.bf16.mxu0 0
    %5831 = vmatpush1.bf16.msra.mxu0 %v5811
    %5832 = vmatprep.subr.bf16.mxu0 0
    %5833 = vmatpush1.bf16.msra.mxu0 %v5810
    %5834 = vmatprep.subr.bf16.mxu0 0
    %5835 = vmatpush1.bf16.msra.mxu0 %v5809
    %5836 = vmatprep.subr.bf16.mxu0 0
    %5837 = vmatpush2.bf16.msra.mxu0 0
    %5838 = vmatprep.subr.bf16.mxu0 0
    %5839 = vmatpush2.bf16.msra.mxu0 0
    %5840 = vmatprep.subr.bf16.mxu0 0
    %5841 = vmatpush2.bf16.msra.mxu0 0
    %5842 = vmatprep.subr.bf16.mxu0 0
    %5843 = vmatpush2.bf16.msra.mxu0 0
    %5844 = vmatprep.subr.bf16.mxu0 0
    %5845 = vmatpush2.bf16.msra.mxu0 0
    %5846 = vmatprep.subr.bf16.mxu0 0
    %5847 = vmatpush2.bf16.msra.mxu0 0
    %5848 = vmatprep.subr.bf16.mxu0 0
    %5849 = vmatpush2.bf16.msra.mxu0 0
    %5850 = vmatprep.subr.bf16.mxu0 0
    %5851 = vmatpush2.bf16.msra.mxu0 0
    %5852 = vmatprep.mubr.bf16.mxu0 0
    %5853 = vmatmul.mubr.bf16.gmra.mxu0 %v5818
    %v5854 = vpop.f32.mrf.mxu0
    %v5855 = vadd.f32 0.0, %v5854
    %v5856 = vpop.f32.mrf.mxu0
    %v5857 = vpop.f32.mrf.mxu0
    %v5858 = vpop.f32.mrf.mxu0
    %5859 = vdwg.mxu0
    %v5860 = vadd.f32 %v5782, %v5855
    %s5861 = scalar_lea.vmem %s4, 256
    %v5862 = vld [vmem:[%s5861] sm:$0xf]
    %v5863 = vld [vmem:[%s5861 + $0x4] sm:$0xf]
    %v5864 = vld [vmem:[%s5861 + $0x8] sm:$0xf]
    %v5865 = vld [vmem:[%s5861 + $0xc] sm:$0xf]
    %v5866 = vld [vmem:[%s5861 + $0x10] sm:$0xf]
    %v5867 = vld [vmem:[%s5861 + $0x14] sm:$0xf]
    %v5868 = vld [vmem:[%s5861 + $0x18] sm:$0xf]
    %v5869 = vld [vmem:[%s5861 + $0x1c] sm:$0xf]
    %v5878 = vunpack.c.l.b16 %v5862
    %v5879 = vunpack.c.l.b16 %v5863
    %v5880 = vunpack.c.l.b16 %v5864
    %v5881 = vunpack.c.l.b16 %v5865
    %v5882 = vunpack.c.l.b16 %v5866
    %v5883 = vunpack.c.l.b16 %v5867
    %v5884 = vunpack.c.l.b16 %v5868
    %v5885 = vunpack.c.l.b16 %v5869
    %v5886 = vpack.c.b16 %v5879, %v5878
    %v5887 = vpack.c.b16 %v5881, %v5880
    %v5888 = vpack.c.b16 %v5883, %v5882
    %v5889 = vpack.c.b16 %v5885, %v5884
    %v5895 = vsel %vm5282, %v5238, 0
    %5897 = vmatprep.subr.bf16.mxu0 0
    %5898 = vmatpush1.bf16.msra.mxu0 0
    %5899 = vmatprep.subr.bf16.mxu0 0
    %5900 = vmatpush1.bf16.msra.mxu0 0
    %5901 = vmatprep.subr.bf16.mxu0 0
    %5902 = vmatpush1.bf16.msra.mxu0 0
    %5903 = vmatprep.subr.bf16.mxu0 0
    %5904 = vmatpush1.bf16.msra.mxu0 0
    %5905 = vmatprep.subr.bf16.mxu0 0
    %5906 = vmatpush1.bf16.msra.mxu0 %v5889
    %5907 = vmatprep.subr.bf16.mxu0 0
    %5908 = vmatpush1.bf16.msra.mxu0 %v5888
    %5909 = vmatprep.subr.bf16.mxu0 0
    %5910 = vmatpush1.bf16.msra.mxu0 %v5887
    %5911 = vmatprep.subr.bf16.mxu0 0
    %5912 = vmatpush1.bf16.msra.mxu0 %v5886
    %5913 = vmatprep.subr.bf16.mxu0 0
    %5914 = vmatpush2.bf16.msra.mxu0 0
    %5915 = vmatprep.subr.bf16.mxu0 0
    %5916 = vmatpush2.bf16.msra.mxu0 0
    %5917 = vmatprep.subr.bf16.mxu0 0
    %5918 = vmatpush2.bf16.msra.mxu0 0
    %5919 = vmatprep.subr.bf16.mxu0 0
    %5920 = vmatpush2.bf16.msra.mxu0 0
    %5921 = vmatprep.subr.bf16.mxu0 0
    %5922 = vmatpush2.bf16.msra.mxu0 0
    %5923 = vmatprep.subr.bf16.mxu0 0
    %5924 = vmatpush2.bf16.msra.mxu0 0
    %5925 = vmatprep.subr.bf16.mxu0 0
    %5926 = vmatpush2.bf16.msra.mxu0 0
    %5927 = vmatprep.subr.bf16.mxu0 0
    %5928 = vmatpush2.bf16.msra.mxu0 0
    %5929 = vmatprep.mubr.bf16.mxu0 0
    %5930 = vmatmul.mubr.bf16.gmra.mxu0 %v5895
    %v5931 = vpop.f32.mrf.mxu0
    %v5932 = vadd.f32 0.0, %v5931
    %v5933 = vpop.f32.mrf.mxu0
    %v5934 = vpop.f32.mrf.mxu0
    %v5935 = vpop.f32.mrf.mxu0
    %5936 = vdwg.mxu0
    %v5937 = vadd.f32 %v5860, %v5932
    %s5938 = scalar_lea.vmem %s4, 288
    %v5939 = vld [vmem:[%s5938] sm:$0xf]
    %v5940 = vld [vmem:[%s5938 + $0x4] sm:$0xf]
    %v5941 = vld [vmem:[%s5938 + $0x8] sm:$0xf]
    %v5942 = vld [vmem:[%s5938 + $0xc] sm:$0xf]
    %v5943 = vld [vmem:[%s5938 + $0x10] sm:$0xf]
    %v5944 = vld [vmem:[%s5938 + $0x14] sm:$0xf]
    %v5945 = vld [vmem:[%s5938 + $0x18] sm:$0xf]
    %v5946 = vld [vmem:[%s5938 + $0x1c] sm:$0xf]
    %v5948 = vrot.slane %v5238, 1
    %v5957 = vunpack.c.l.b16 %v5939
    %v5958 = vunpack.c.l.b16 %v5940
    %v5959 = vunpack.c.l.b16 %v5941
    %v5960 = vunpack.c.l.b16 %v5942
    %v5961 = vunpack.c.l.b16 %v5943
    %v5962 = vunpack.c.l.b16 %v5944
    %v5963 = vunpack.c.l.b16 %v5945
    %v5964 = vunpack.c.l.b16 %v5946
    %v5965 = vpack.c.b16 %v5958, %v5957
    %v5966 = vpack.c.b16 %v5960, %v5959
    %v5967 = vpack.c.b16 %v5962, %v5961
    %v5968 = vpack.c.b16 %v5964, %v5963
    %v5974 = vsel %vm5282, %v5948, 0
    %5976 = vmatprep.subr.bf16.mxu0 0
    %5977 = vmatpush1.bf16.msra.mxu0 0
    %5978 = vmatprep.subr.bf16.mxu0 0
    %5979 = vmatpush1.bf16.msra.mxu0 0
    %5980 = vmatprep.subr.bf16.mxu0 0
    %5981 = vmatpush1.bf16.msra.mxu0 0
    %5982 = vmatprep.subr.bf16.mxu0 0
    %5983 = vmatpush1.bf16.msra.mxu0 0
    %5984 = vmatprep.subr.bf16.mxu0 0
    %5985 = vmatpush1.bf16.msra.mxu0 %v5968
    %5986 = vmatprep.subr.bf16.mxu0 0
    %5987 = vmatpush1.bf16.msra.mxu0 %v5967
    %5988 = vmatprep.subr.bf16.mxu0 0
    %5989 = vmatpush1.bf16.msra.mxu0 %v5966
    %5990 = vmatprep.subr.bf16.mxu0 0
    %5991 = vmatpush1.bf16.msra.mxu0 %v5965
    %5992 = vmatprep.subr.bf16.mxu0 0
    %5993 = vmatpush2.bf16.msra.mxu0 0
    %5994 = vmatprep.subr.bf16.mxu0 0
    %5995 = vmatpush2.bf16.msra.mxu0 0
    %5996 = vmatprep.subr.bf16.mxu0 0
    %5997 = vmatpush2.bf16.msra.mxu0 0
    %5998 = vmatprep.subr.bf16.mxu0 0
    %5999 = vmatpush2.bf16.msra.mxu0 0
    %6000 = vmatprep.subr.bf16.mxu0 0
    %6001 = vmatpush2.bf16.msra.mxu0 0
    %6002 = vmatprep.subr.bf16.mxu0 0
    %6003 = vmatpush2.bf16.msra.mxu0 0
    %6004 = vmatprep.subr.bf16.mxu0 0
    %6005 = vmatpush2.bf16.msra.mxu0 0
    %6006 = vmatprep.subr.bf16.mxu0 0
    %6007 = vmatpush2.bf16.msra.mxu0 0
    %6008 = vmatprep.mubr.bf16.mxu0 0
    %6009 = vmatmul.mubr.bf16.gmra.mxu0 %v5974
    %v6010 = vpop.f32.mrf.mxu0
    %v6011 = vadd.f32 0.0, %v6010
    %v6012 = vpop.f32.mrf.mxu0
    %v6013 = vpop.f32.mrf.mxu0
    %v6014 = vpop.f32.mrf.mxu0
    %6015 = vdwg.mxu0
    %v6016 = vadd.f32 %v5937, %v6011
    %s6017 = scalar_lea.vmem %s4, 320
    %v6018 = vld [vmem:[%s6017] sm:$0xf]
    %v6019 = vld [vmem:[%s6017 + $0x4] sm:$0xf]
    %v6020 = vld [vmem:[%s6017 + $0x8] sm:$0xf]
    %v6021 = vld [vmem:[%s6017 + $0xc] sm:$0xf]
    %v6022 = vld [vmem:[%s6017 + $0x10] sm:$0xf]
    %v6023 = vld [vmem:[%s6017 + $0x14] sm:$0xf]
    %v6024 = vld [vmem:[%s6017 + $0x18] sm:$0xf]
    %v6025 = vld [vmem:[%s6017 + $0x1c] sm:$0xf]
    %v6026 = vrot.slane %v5238, 2
    %v6035 = vunpack.c.l.b16 %v6018
    %v6036 = vunpack.c.l.b16 %v6019
    %v6037 = vunpack.c.l.b16 %v6020
    %v6038 = vunpack.c.l.b16 %v6021
    %v6039 = vunpack.c.l.b16 %v6022
    %v6040 = vunpack.c.l.b16 %v6023
    %v6041 = vunpack.c.l.b16 %v6024
    %v6042 = vunpack.c.l.b16 %v6025
    %v6043 = vpack.c.b16 %v6036, %v6035
    %v6044 = vpack.c.b16 %v6038, %v6037
    %v6045 = vpack.c.b16 %v6040, %v6039
    %v6046 = vpack.c.b16 %v6042, %v6041
    %v6052 = vsel %vm5282, %v6026, 0
    %6054 = vmatprep.subr.bf16.mxu0 0
    %6055 = vmatpush1.bf16.msra.mxu0 0
    %6056 = vmatprep.subr.bf16.mxu0 0
    %6057 = vmatpush1.bf16.msra.mxu0 0
    %6058 = vmatprep.subr.bf16.mxu0 0
    %6059 = vmatpush1.bf16.msra.mxu0 0
    %6060 = vmatprep.subr.bf16.mxu0 0
    %6061 = vmatpush1.bf16.msra.mxu0 0
    %6062 = vmatprep.subr.bf16.mxu0 0
    %6063 = vmatpush1.bf16.msra.mxu0 %v6046
    %6064 = vmatprep.subr.bf16.mxu0 0
    %6065 = vmatpush1.bf16.msra.mxu0 %v6045
    %6066 = vmatprep.subr.bf16.mxu0 0
    %6067 = vmatpush1.bf16.msra.mxu0 %v6044
    %6068 = vmatprep.subr.bf16.mxu0 0
    %6069 = vmatpush1.bf16.msra.mxu0 %v6043
    %6070 = vmatprep.subr.bf16.mxu0 0
    %6071 = vmatpush2.bf16.msra.mxu0 0
    %6072 = vmatprep.subr.bf16.mxu0 0
    %6073 = vmatpush2.bf16.msra.mxu0 0
    %6074 = vmatprep.subr.bf16.mxu0 0
    %6075 = vmatpush2.bf16.msra.mxu0 0
    %6076 = vmatprep.subr.bf16.mxu0 0
    %6077 = vmatpush2.bf16.msra.mxu0 0
    %6078 = vmatprep.subr.bf16.mxu0 0
    %6079 = vmatpush2.bf16.msra.mxu0 0
    %6080 = vmatprep.subr.bf16.mxu0 0
    %6081 = vmatpush2.bf16.msra.mxu0 0
    %6082 = vmatprep.subr.bf16.mxu0 0
    %6083 = vmatpush2.bf16.msra.mxu0 0
    %6084 = vmatprep.subr.bf16.mxu0 0
    %6085 = vmatpush2.bf16.msra.mxu0 0
    %6086 = vmatprep.mubr.bf16.mxu0 0
    %6087 = vmatmul.mubr.bf16.gmra.mxu0 %v6052
    %v6088 = vpop.f32.mrf.mxu0
    %v6089 = vadd.f32 0.0, %v6088
    %v6090 = vpop.f32.mrf.mxu0
    %v6091 = vpop.f32.mrf.mxu0
    %v6092 = vpop.f32.mrf.mxu0
    %6093 = vdwg.mxu0
    %v6094 = vadd.f32 %v6016, %v6089
    %s6095 = scalar_lea.vmem %s4, 352
    %v6096 = vld [vmem:[%s6095] sm:$0xf]
    %v6097 = vld [vmem:[%s6095 + $0x4] sm:$0xf]
    %v6098 = vld [vmem:[%s6095 + $0x8] sm:$0xf]
    %v6099 = vld [vmem:[%s6095 + $0xc] sm:$0xf]
    %v6100 = vld [vmem:[%s6095 + $0x10] sm:$0xf]
    %v6101 = vld [vmem:[%s6095 + $0x14] sm:$0xf]
    %v6102 = vld [vmem:[%s6095 + $0x18] sm:$0xf]
    %v6103 = vld [vmem:[%s6095 + $0x1c] sm:$0xf]
    %v6104 = vrot.slane %v5238, 3
    %v6113 = vunpack.c.l.b16 %v6096
    %v6114 = vunpack.c.l.b16 %v6097
    %v6115 = vunpack.c.l.b16 %v6098
    %v6116 = vunpack.c.l.b16 %v6099
    %v6117 = vunpack.c.l.b16 %v6100
    %v6118 = vunpack.c.l.b16 %v6101
    %v6119 = vunpack.c.l.b16 %v6102
    %v6120 = vunpack.c.l.b16 %v6103
    %v6121 = vpack.c.b16 %v6114, %v6113
    %v6122 = vpack.c.b16 %v6116, %v6115
    %v6123 = vpack.c.b16 %v6118, %v6117
    %v6124 = vpack.c.b16 %v6120, %v6119
    %v6130 = vsel %vm5282, %v6104, 0
    %6132 = vmatprep.subr.bf16.mxu0 0
    %6133 = vmatpush1.bf16.msra.mxu0 0
    %6134 = vmatprep.subr.bf16.mxu0 0
    %6135 = vmatpush1.bf16.msra.mxu0 0
    %6136 = vmatprep.subr.bf16.mxu0 0
    %6137 = vmatpush1.bf16.msra.mxu0 0
    %6138 = vmatprep.subr.bf16.mxu0 0
    %6139 = vmatpush1.bf16.msra.mxu0 0
    %6140 = vmatprep.subr.bf16.mxu0 0
    %6141 = vmatpush1.bf16.msra.mxu0 %v6124
    %6142 = vmatprep.subr.bf16.mxu0 0
    %6143 = vmatpush1.bf16.msra.mxu0 %v6123
    %6144 = vmatprep.subr.bf16.mxu0 0
    %6145 = vmatpush1.bf16.msra.mxu0 %v6122
    %6146 = vmatprep.subr.bf16.mxu0 0
    %6147 = vmatpush1.bf16.msra.mxu0 %v6121
    %6148 = vmatprep.subr.bf16.mxu0 0
    %6149 = vmatpush2.bf16.msra.mxu0 0
    %6150 = vmatprep.subr.bf16.mxu0 0
    %6151 = vmatpush2.bf16.msra.mxu0 0
    %6152 = vmatprep.subr.bf16.mxu0 0
    %6153 = vmatpush2.bf16.msra.mxu0 0
    %6154 = vmatprep.subr.bf16.mxu0 0
    %6155 = vmatpush2.bf16.msra.mxu0 0
    %6156 = vmatprep.subr.bf16.mxu0 0
    %6157 = vmatpush2.bf16.msra.mxu0 0
    %6158 = vmatprep.subr.bf16.mxu0 0
    %6159 = vmatpush2.bf16.msra.mxu0 0
    %6160 = vmatprep.subr.bf16.mxu0 0
    %6161 = vmatpush2.bf16.msra.mxu0 0
    %6162 = vmatprep.subr.bf16.mxu0 0
    %6163 = vmatpush2.bf16.msra.mxu0 0
    %6164 = vmatprep.mubr.bf16.mxu0 0
    %6165 = vmatmul.mubr.bf16.gmra.mxu0 %v6130
    %v6166 = vpop.f32.mrf.mxu0
    %v6167 = vadd.f32 0.0, %v6166
    %v6168 = vpop.f32.mrf.mxu0
    %v6169 = vpop.f32.mrf.mxu0
    %v6170 = vpop.f32.mrf.mxu0
    %6171 = vdwg.mxu0
    %v6172 = vadd.f32 %v6094, %v6167
    %s6173 = scalar_lea.vmem %s4, 384
    %v6174 = vld [vmem:[%s6173] sm:$0xf]
    %v6175 = vld [vmem:[%s6173 + $0x4] sm:$0xf]
    %v6176 = vld [vmem:[%s6173 + $0x8] sm:$0xf]
    %v6177 = vld [vmem:[%s6173 + $0xc] sm:$0xf]
    %v6178 = vld [vmem:[%s6173 + $0x10] sm:$0xf]
    %v6179 = vld [vmem:[%s6173 + $0x14] sm:$0xf]
    %v6180 = vld [vmem:[%s6173 + $0x18] sm:$0xf]
    %v6181 = vld [vmem:[%s6173 + $0x1c] sm:$0xf]
    %v6182 = vrot.slane %v5238, 4
    %v6191 = vunpack.c.l.b16 %v6174
    %v6192 = vunpack.c.l.b16 %v6175
    %v6193 = vunpack.c.l.b16 %v6176
    %v6194 = vunpack.c.l.b16 %v6177
    %v6195 = vunpack.c.l.b16 %v6178
    %v6196 = vunpack.c.l.b16 %v6179
    %v6197 = vunpack.c.l.b16 %v6180
    %v6198 = vunpack.c.l.b16 %v6181
    %v6199 = vpack.c.b16 %v6192, %v6191
    %v6200 = vpack.c.b16 %v6194, %v6193
    %v6201 = vpack.c.b16 %v6196, %v6195
    %v6202 = vpack.c.b16 %v6198, %v6197
    %v6208 = vsel %vm5282, %v6182, 0
    %6210 = vmatprep.subr.bf16.mxu0 0
    %6211 = vmatpush1.bf16.msra.mxu0 0
    %6212 = vmatprep.subr.bf16.mxu0 0
    %6213 = vmatpush1.bf16.msra.mxu0 0
    %6214 = vmatprep.subr.bf16.mxu0 0
    %6215 = vmatpush1.bf16.msra.mxu0 0
    %6216 = vmatprep.subr.bf16.mxu0 0
    %6217 = vmatpush1.bf16.msra.mxu0 0
    %6218 = vmatprep.subr.bf16.mxu0 0
    %6219 = vmatpush1.bf16.msra.mxu0 %v6202
    %6220 = vmatprep.subr.bf16.mxu0 0
    %6221 = vmatpush1.bf16.msra.mxu0 %v6201
    %6222 = vmatprep.subr.bf16.mxu0 0
    %6223 = vmatpush1.bf16.msra.mxu0 %v6200
    %6224 = vmatprep.subr.bf16.mxu0 0
    %6225 = vmatpush1.bf16.msra.mxu0 %v6199
    %6226 = vmatprep.subr.bf16.mxu0 0
    %6227 = vmatpush2.bf16.msra.mxu0 0
    %6228 = vmatprep.subr.bf16.mxu0 0
    %6229 = vmatpush2.bf16.msra.mxu0 0
    %6230 = vmatprep.subr.bf16.mxu0 0
    %6231 = vmatpush2.bf16.msra.mxu0 0
    %6232 = vmatprep.subr.bf16.mxu0 0
    %6233 = vmatpush2.bf16.msra.mxu0 0
    %6234 = vmatprep.subr.bf16.mxu0 0
    %6235 = vmatpush2.bf16.msra.mxu0 0
    %6236 = vmatprep.subr.bf16.mxu0 0
    %6237 = vmatpush2.bf16.msra.mxu0 0
    %6238 = vmatprep.subr.bf16.mxu0 0
    %6239 = vmatpush2.bf16.msra.mxu0 0
    %6240 = vmatprep.subr.bf16.mxu0 0
    %6241 = vmatpush2.bf16.msra.mxu0 0
    %6242 = vmatprep.mubr.bf16.mxu0 0
    %6243 = vmatmul.mubr.bf16.gmra.mxu0 %v6208
    %v6244 = vpop.f32.mrf.mxu0
    %v6245 = vadd.f32 0.0, %v6244
    %v6246 = vpop.f32.mrf.mxu0
    %v6247 = vpop.f32.mrf.mxu0
    %v6248 = vpop.f32.mrf.mxu0
    %6249 = vdwg.mxu0
    %v6250 = vadd.f32 %v6172, %v6245
    %s6251 = scalar_lea.vmem %s4, 416
    %v6252 = vld [vmem:[%s6251] sm:$0xf]
    %v6253 = vld [vmem:[%s6251 + $0x4] sm:$0xf]
    %v6254 = vld [vmem:[%s6251 + $0x8] sm:$0xf]
    %v6255 = vld [vmem:[%s6251 + $0xc] sm:$0xf]
    %v6256 = vld [vmem:[%s6251 + $0x10] sm:$0xf]
    %v6257 = vld [vmem:[%s6251 + $0x14] sm:$0xf]
    %v6258 = vld [vmem:[%s6251 + $0x18] sm:$0xf]
    %v6259 = vld [vmem:[%s6251 + $0x1c] sm:$0xf]
    %v6260 = vrot.slane %v5238, 5
    %v6269 = vunpack.c.l.b16 %v6252
    %v6270 = vunpack.c.l.b16 %v6253
    %v6271 = vunpack.c.l.b16 %v6254
    %v6272 = vunpack.c.l.b16 %v6255
    %v6273 = vunpack.c.l.b16 %v6256
    %v6274 = vunpack.c.l.b16 %v6257
    %v6275 = vunpack.c.l.b16 %v6258
    %v6276 = vunpack.c.l.b16 %v6259
    %v6277 = vpack.c.b16 %v6270, %v6269
    %v6278 = vpack.c.b16 %v6272, %v6271
    %v6279 = vpack.c.b16 %v6274, %v6273
    %v6280 = vpack.c.b16 %v6276, %v6275
    %v6286 = vsel %vm5282, %v6260, 0
    %6288 = vmatprep.subr.bf16.mxu0 0
    %6289 = vmatpush1.bf16.msra.mxu0 0
    %6290 = vmatprep.subr.bf16.mxu0 0
    %6291 = vmatpush1.bf16.msra.mxu0 0
    %6292 = vmatprep.subr.bf16.mxu0 0
    %6293 = vmatpush1.bf16.msra.mxu0 0
    %6294 = vmatprep.subr.bf16.mxu0 0
    %6295 = vmatpush1.bf16.msra.mxu0 0
    %6296 = vmatprep.subr.bf16.mxu0 0
    %6297 = vmatpush1.bf16.msra.mxu0 %v6280
    %6298 = vmatprep.subr.bf16.mxu0 0
    %6299 = vmatpush1.bf16.msra.mxu0 %v6279
    %6300 = vmatprep.subr.bf16.mxu0 0
    %6301 = vmatpush1.bf16.msra.mxu0 %v6278
    %6302 = vmatprep.subr.bf16.mxu0 0
    %6303 = vmatpush1.bf16.msra.mxu0 %v6277
    %6304 = vmatprep.subr.bf16.mxu0 0
    %6305 = vmatpush2.bf16.msra.mxu0 0
    %6306 = vmatprep.subr.bf16.mxu0 0
    %6307 = vmatpush2.bf16.msra.mxu0 0
    %6308 = vmatprep.subr.bf16.mxu0 0
    %6309 = vmatpush2.bf16.msra.mxu0 0
    %6310 = vmatprep.subr.bf16.mxu0 0
    %6311 = vmatpush2.bf16.msra.mxu0 0
    %6312 = vmatprep.subr.bf16.mxu0 0
    %6313 = vmatpush2.bf16.msra.mxu0 0
    %6314 = vmatprep.subr.bf16.mxu0 0
    %6315 = vmatpush2.bf16.msra.mxu0 0
    %6316 = vmatprep.subr.bf16.mxu0 0
    %6317 = vmatpush2.bf16.msra.mxu0 0
    %6318 = vmatprep.subr.bf16.mxu0 0
    %6319 = vmatpush2.bf16.msra.mxu0 0
    %6320 = vmatprep.mubr.bf16.mxu0 0
    %6321 = vmatmul.mubr.bf16.gmra.mxu0 %v6286
    %v6322 = vpop.f32.mrf.mxu0
    %v6323 = vadd.f32 0.0, %v6322
    %v6324 = vpop.f32.mrf.mxu0
    %v6325 = vpop.f32.mrf.mxu0
    %v6326 = vpop.f32.mrf.mxu0
    %6327 = vdwg.mxu0
    %v6328 = vadd.f32 %v6250, %v6323
    %s6329 = scalar_lea.vmem %s4, 448
    %v6330 = vld [vmem:[%s6329] sm:$0xf]
    %v6331 = vld [vmem:[%s6329 + $0x4] sm:$0xf]
    %v6332 = vld [vmem:[%s6329 + $0x8] sm:$0xf]
    %v6333 = vld [vmem:[%s6329 + $0xc] sm:$0xf]
    %v6334 = vld [vmem:[%s6329 + $0x10] sm:$0xf]
    %v6335 = vld [vmem:[%s6329 + $0x14] sm:$0xf]
    %v6336 = vld [vmem:[%s6329 + $0x18] sm:$0xf]
    %v6337 = vld [vmem:[%s6329 + $0x1c] sm:$0xf]
    %v6338 = vrot.slane %v5238, 6
    %v6347 = vunpack.c.l.b16 %v6330
    %v6348 = vunpack.c.l.b16 %v6331
    %v6349 = vunpack.c.l.b16 %v6332
    %v6350 = vunpack.c.l.b16 %v6333
    %v6351 = vunpack.c.l.b16 %v6334
    %v6352 = vunpack.c.l.b16 %v6335
    %v6353 = vunpack.c.l.b16 %v6336
    %v6354 = vunpack.c.l.b16 %v6337
    %v6355 = vpack.c.b16 %v6348, %v6347
    %v6356 = vpack.c.b16 %v6350, %v6349
    %v6357 = vpack.c.b16 %v6352, %v6351
    %v6358 = vpack.c.b16 %v6354, %v6353
    %v6364 = vsel %vm5282, %v6338, 0
    %6366 = vmatprep.subr.bf16.mxu0 0
    %6367 = vmatpush1.bf16.msra.mxu0 0
    %6368 = vmatprep.subr.bf16.mxu0 0
    %6369 = vmatpush1.bf16.msra.mxu0 0
    %6370 = vmatprep.subr.bf16.mxu0 0
    %6371 = vmatpush1.bf16.msra.mxu0 0
    %6372 = vmatprep.subr.bf16.mxu0 0
    %6373 = vmatpush1.bf16.msra.mxu0 0
    %6374 = vmatprep.subr.bf16.mxu0 0
    %6375 = vmatpush1.bf16.msra.mxu0 %v6358
    %6376 = vmatprep.subr.bf16.mxu0 0
    %6377 = vmatpush1.bf16.msra.mxu0 %v6357
    %6378 = vmatprep.subr.bf16.mxu0 0
    %6379 = vmatpush1.bf16.msra.mxu0 %v6356
    %6380 = vmatprep.subr.bf16.mxu0 0
    %6381 = vmatpush1.bf16.msra.mxu0 %v6355
    %6382 = vmatprep.subr.bf16.mxu0 0
    %6383 = vmatpush2.bf16.msra.mxu0 0
    %6384 = vmatprep.subr.bf16.mxu0 0
    %6385 = vmatpush2.bf16.msra.mxu0 0
    %6386 = vmatprep.subr.bf16.mxu0 0
    %6387 = vmatpush2.bf16.msra.mxu0 0
    %6388 = vmatprep.subr.bf16.mxu0 0
    %6389 = vmatpush2.bf16.msra.mxu0 0
    %6390 = vmatprep.subr.bf16.mxu0 0
    %6391 = vmatpush2.bf16.msra.mxu0 0
    %6392 = vmatprep.subr.bf16.mxu0 0
    %6393 = vmatpush2.bf16.msra.mxu0 0
    %6394 = vmatprep.subr.bf16.mxu0 0
    %6395 = vmatpush2.bf16.msra.mxu0 0
    %6396 = vmatprep.subr.bf16.mxu0 0
    %6397 = vmatpush2.bf16.msra.mxu0 0
    %6398 = vmatprep.mubr.bf16.mxu0 0
    %6399 = vmatmul.mubr.bf16.gmra.mxu0 %v6364
    %v6400 = vpop.f32.mrf.mxu0
    %v6401 = vadd.f32 0.0, %v6400
    %v6402 = vpop.f32.mrf.mxu0
    %v6403 = vpop.f32.mrf.mxu0
    %v6404 = vpop.f32.mrf.mxu0
    %6405 = vdwg.mxu0
    %v6406 = vadd.f32 %v6328, %v6401
    %s6407 = scalar_lea.vmem %s4, 480
    %v6408 = vld [vmem:[%s6407] sm:$0xf]
    %v6409 = vld [vmem:[%s6407 + $0x4] sm:$0xf]
    %v6410 = vld [vmem:[%s6407 + $0x8] sm:$0xf]
    %v6411 = vld [vmem:[%s6407 + $0xc] sm:$0xf]
    %v6412 = vld [vmem:[%s6407 + $0x10] sm:$0xf]
    %v6413 = vld [vmem:[%s6407 + $0x14] sm:$0xf]
    %v6414 = vld [vmem:[%s6407 + $0x18] sm:$0xf]
    %v6415 = vld [vmem:[%s6407 + $0x1c] sm:$0xf]
    %v6416 = vrot.slane %v5238, 7
    %v6425 = vunpack.c.l.b16 %v6408
    %v6426 = vunpack.c.l.b16 %v6409
    %v6427 = vunpack.c.l.b16 %v6410
    %v6428 = vunpack.c.l.b16 %v6411
    %v6429 = vunpack.c.l.b16 %v6412
    %v6430 = vunpack.c.l.b16 %v6413
    %v6431 = vunpack.c.l.b16 %v6414
    %v6432 = vunpack.c.l.b16 %v6415
    %v6433 = vpack.c.b16 %v6426, %v6425
    %v6434 = vpack.c.b16 %v6428, %v6427
    %v6435 = vpack.c.b16 %v6430, %v6429
    %v6436 = vpack.c.b16 %v6432, %v6431
    %v6442 = vsel %vm5282, %v6416, 0
    %6444 = vmatprep.subr.bf16.mxu0 0
    %6445 = vmatpush1.bf16.msra.mxu0 0
    %6446 = vmatprep.subr.bf16.mxu0 0
    %6447 = vmatpush1.bf16.msra.mxu0 0
    %6448 = vmatprep.subr.bf16.mxu0 0
    %6449 = vmatpush1.bf16.msra.mxu0 0
    %6450 = vmatprep.subr.bf16.mxu0 0
    %6451 = vmatpush1.bf16.msra.mxu0 0
    %6452 = vmatprep.subr.bf16.mxu0 0
    %6453 = vmatpush1.bf16.msra.mxu0 %v6436
    %6454 = vmatprep.subr.bf16.mxu0 0
    %6455 = vmatpush1.bf16.msra.mxu0 %v6435
    %6456 = vmatprep.subr.bf16.mxu0 0
    %6457 = vmatpush1.bf16.msra.mxu0 %v6434
    %6458 = vmatprep.subr.bf16.mxu0 0
    %6459 = vmatpush1.bf16.msra.mxu0 %v6433
    %6460 = vmatprep.subr.bf16.mxu0 0
    %6461 = vmatpush2.bf16.msra.mxu0 0
    %6462 = vmatprep.subr.bf16.mxu0 0
    %6463 = vmatpush2.bf16.msra.mxu0 0
    %6464 = vmatprep.subr.bf16.mxu0 0
    %6465 = vmatpush2.bf16.msra.mxu0 0
    %6466 = vmatprep.subr.bf16.mxu0 0
    %6467 = vmatpush2.bf16.msra.mxu0 0
    %6468 = vmatprep.subr.bf16.mxu0 0
    %6469 = vmatpush2.bf16.msra.mxu0 0
    %6470 = vmatprep.subr.bf16.mxu0 0
    %6471 = vmatpush2.bf16.msra.mxu0 0
    %6472 = vmatprep.subr.bf16.mxu0 0
    %6473 = vmatpush2.bf16.msra.mxu0 0
    %6474 = vmatprep.subr.bf16.mxu0 0
    %6475 = vmatpush2.bf16.msra.mxu0 0
    %6476 = vmatprep.mubr.bf16.mxu0 0
    %6477 = vmatmul.mubr.bf16.gmra.mxu0 %v6442
    %v6478 = vpop.f32.mrf.mxu0
    %v6479 = vadd.f32 0.0, %v6478
    %v6480 = vpop.f32.mrf.mxu0
    %v6481 = vpop.f32.mrf.mxu0
    %v6482 = vpop.f32.mrf.mxu0
    %6483 = vdwg.mxu0
    %v6484 = vadd.f32 %v6406, %v6479
    %v6485 = vld [vmem:[%s5] sm:$0x1]
    %v6487 = vlaneseq
    %v6488 = vshrl.u32 %v6487, 7
    %v6489 = vsub.s32 0, %v6488
    %v6490 = vrot.slane %v6485, %v6489
    %v6492 = vadd.f32 %v6484, %v6490
    %6493 = vst [vmem:[#allocation2] sm:$0x3] %v6492
    // Predicated region
    $region26: #{attack_net_mnist_forward.1} parent=1 // pred_check
      _
    $region27: #{attack_net_mnist_forward.1} parent=1 // pred_check_branch
      %6495 = sbr.rel (0) target = $region29
    $region28: #{attack_net_mnist_forward.1} parent=1 // pred_region
      %s6497 = ssub.s32 32, 32
      %6498 = vsyncadd [#allocation3], %s6497
      %s6500 = sshll.u32 [#allocation2], 4
      %s6501 = int_to_ptr.vmem [resolvable:$true] %s6500
      %6503 = dma.vmem_to_hbm [thread:$0]  %s6501, 32, %s6, [#allocation3]
    $region29: #{attack_net_mnist_forward.1} parent=1 // pred_fallthru
      _
    // Predicated region
    $region30: #{attack_net_mnist_forward.1} parent=1 // pred_check
      _
    $region31: #{attack_net_mnist_forward.1} parent=1 // pred_check_branch
      %6505 = sbr.rel (0) target = $region33
    $region32: #{attack_net_mnist_forward.1} parent=1 // pred_region
      %6506 = dma.done [#allocation3], 32
    $region33: #{attack_net_mnist_forward.1} parent=1 // pred_fallthru
      _
    %6507 = vsyncpa [#allocation3], 1

</llo_original>
